<compile_context>
chip_gen: v7x
topology: tpu7x:2x2x1
jax: 0.10.0
libtpu: 0.0.40
codegen_flags: <defaults>
</compile_context>

<pallas_src>
import math
from functools import partial

import jax
import jax.numpy as jnp
from jax.experimental import pallas as pl
from jax.experimental.pallas import tpu as pltpu


# ----------------------------- Pallas kernel ------------------------------- #

def _fused_block_kernel(x_ref,                     # (B*S, C) input tokens (f32)
                        wl_ref, bl_ref,            # pos-embed linear (C,C), (1,C)
                        wq_ref, wk_ref, wv_ref,    # (L, C, C) fused (+scaled) weights
                        biq_ref, bik_ref, biv_ref, # (L, 1, C) f32 biases
                        wo_ref, bo_ref,            # (L, C, C), (L, 1, C)
                        wff_ref,                   # (L, C, C) fused fc1·fc2
                        o_ref,                     # (B*S, C) output
                        x1_ref,                    # (B*S, C) f32 VMEM scratch
                        *, batch, seq, num_heads, num_layers):
    B, S, H = batch, seq, num_heads
    C = x_ref.shape[-1]
    dh = C // H
    mdt = wl_ref.dtype            # MXU operand dtype (f32 or bf16); math stays f32.

    # Position embedding: act = p + (p @ Wl + bl). Full-width (BS,C)x(C,C) matmul.
    p = x_ref[...].astype(jnp.float32)
    act = p + (jnp.dot(p.astype(mdt), wl_ref[...],
                       preferred_element_type=jnp.float32) + bl_ref[...])

    # Static in-kernel loop over layers (no grid, no pl.when phase gating).
    for l in range(num_layers):
        wq_l = wq_ref[l]
        wk_l = wk_ref[l]
        wv_l = wv_ref[l]
        wo_l = wo_ref[l]
        wff_l = wff_ref[l]
        bo_l = bo_ref[l]                                    # (1, C) f32

        # --- full-width fused projections (MXU-filling 128x128x128 matmuls) --- #
        xm = act.astype(mdt)
        q = jnp.dot(xm, wq_l, preferred_element_type=jnp.float32) + biq_ref[l]
        k = jnp.dot(xm, wk_l, preferred_element_type=jnp.float32) + bik_ref[l]
        v = jnp.dot(xm, wv_l, preferred_element_type=jnp.float32) + biv_ref[l]
        qm = q.astype(mdt)
        km = k.astype(mdt)
        vm = v.astype(mdt)

        # --- attention: per-(b,h) views only for the SxS / AV matmuls --- #
        for b in range(B):                                  # B tiny & static
            r0 = b * S
            # accumulator seeded with residual + out_proj bias (one pass);
            # per-head out-projections are accumulated straight into it.
            attn_b = act[r0:r0 + S, :] + bo_l               # (S, C) f32
            for h in range(H):
                c0 = h * dh
                q_bh = qm[r0:r0 + S, c0:c0 + dh]            # (S, dh)
                k_bh = km[r0:r0 + S, c0:c0 + dh]
                v_bh = vm[r0:r0 + S, c0:c0 + dh]

                # scores = q @ k^T  (contract last dims; no materialized k^T)
                s = jax.lax.dot_general(
                    q_bh, k_bh,
                    dimension_numbers=(((1,), (1,)), ((), ())),
                    preferred_element_type=jnp.float32)     # (S, S)
                s = s - jnp.max(s, axis=-1, keepdims=True)
                e = jnp.exp(s)

                # AV first, normalize the (S,dh) result afterwards (EUP recip).
                av = jnp.dot(e.astype(mdt), v_bh,
                             preferred_element_type=jnp.float32)   # (S, dh)
                av = av * pl.reciprocal(
                    jnp.sum(e, axis=-1, keepdims=True), approx=True)

                # out_proj folded per head; accumulate (no concat / head-sum pass).
                attn_b = attn_b + jnp.dot(
                    av.astype(mdt), wo_l[c0:c0 + dh, :],
                    preferred_element_type=jnp.float32)            # (S, C)

            x1_ref[r0:r0 + S, :] = attn_b                   # assemble (BS, C) once

        # --- fused fc2(fc1(.)) (both bias-free) + residual, full width --- #
        x1 = x1_ref[...]
        act = jnp.dot(x1.astype(mdt), wff_l,
                      preferred_element_type=jnp.float32) + x1

    o_ref[...] = act.astype(o_ref.dtype)


# ------------------------------- wrapper ------------------------------------ #

def transformer_block_forward(x, fused, num_heads):
    """Pallas implementation of TransformerBlock.forward (c1 == c2, conv is None)."""
    b, c, w, h = x.shape
    s = w * h
    bs = b * s
    num_layers = fused["wff"].shape[0]

    # p = x.flatten(2).permute(2, 0, 1) -> element (s, b, c) == x[b, c, s].
    # Kept as (B*S, C) (batch-major rows): per-token / per-batch math identical.
    p = jnp.transpose(x.reshape(b, c, s), (0, 2, 1)).reshape(bs, c)

    # Grid-less call: all stacked fused weights (~5*L*C^2 * 2-4 B ≈ 0.3-0.6 MiB
    # here) plus the (BS,C) scratch comfortably fit VMEM, so the per-grid-step
    # pipeline overhead is removed.  Switch to a layer-streamed grid=(L,) only
    # when per-layer weights reach multiple MiB.
    out2d = pl.pallas_call(
        partial(_fused_block_kernel, batch=b, seq=s,
                num_heads=num_heads, num_layers=num_layers),
        out_shape=jax.ShapeDtypeStruct((bs, c), x.dtype),
        scratch_shapes=[pltpu.VMEM((bs, c), jnp.float32)],
    )(p, fused["wl_t"], fused["bl"],
      fused["wq"], fused["wk"], fused["wv"],
      fused["biq"], fused["bik"], fused["biv"],
      fused["wo"], fused["bo"], fused["wff"])

    # .permute(1, 2, 0).reshape(b, c2, w, h)
    return jnp.transpose(out2d.reshape(b, s, c), (0, 2, 1)).reshape(b, c, w, h)


# ------------------------- param prep (host side) --------------------------- #

def prepare_fused_params(params, num_heads, mxu_dtype=jnp.float32):
    """Fuse weight chains algebraically (in f32), fold attention scale, stack per layer.

    Weights are kept FULL WIDTH (C,C); per-head views are taken inside the
    kernel only for the SxS attention math.  `mxu_dtype=jnp.bfloat16` stores
    the matmul weights bf16 (MXU-native on v5e/v6e/v7x, halves weight bytes);
    biases stay f32.
    """
    c = params["wl_t"].shape[0]
    dh = c // num_heads
    scale = 1.0 / math.sqrt(dh)

    wq, wk, wv, biq, bik, biv, wo, bo, wff = ([] for _ in range(9))
    for lp in params["layers"]:
        wq.append((lp["wq_t"] @ lp["wiq_t"]) * scale)   # fold in_proj and 1/sqrt(dh)
        wk.append(lp["wk_t"] @ lp["wik_t"])
        wv.append(lp["wv_t"] @ lp["wiv_t"])
        biq.append(lp["biq"] * scale)
        bik.append(lp["bik"])
        biv.append(lp["biv"])
        wo.append(lp["wo_t"])
        bo.append(lp["bo"])
        wff.append(lp["wfc1_t"] @ lp["wfc2_t"])         # fc1/fc2 bias-free -> exact

    stk = lambda xs: jnp.stack(xs, axis=0)
    wcast = lambda a: a.astype(mxu_dtype)
    return {
        "wl_t": wcast(params["wl_t"]), "bl": params["bl"],
        "wq": wcast(stk(wq)), "wk": wcast(stk(wk)), "wv": wcast(stk(wv)),
        "biq": stk(biq), "bik": stk(bik), "biv": stk(biv),
        "wo": wcast(stk(wo)), "bo": stk(bo), "wff": wcast(stk(wff)),
    }


# ------------------------- pure-JAX reference ------------------------------- #

def ref_forward(x, params, num_heads):
    b, c, w, h = x.shape
    p = jnp.transpose(x.reshape(b, c, w * h), (0, 2, 1)).astype(jnp.float32)
    p = p + (p @ params["wl_t"] + params["bl"])
    for lp in params["layers"]:
        q = p @ lp["wq_t"]; k = p @ lp["wk_t"]; v = p @ lp["wv_t"]
        qi = q @ lp["wiq_t"] + lp["biq"]
        ki = k @ lp["wik_t"] + lp["bik"]
        vi = v @ lp["wiv_t"] + lp["biv"]
        B, S, C = qi.shape
        dh = C // num_heads
        qh = qi.reshape(B, S, num_heads, dh).transpose(0, 2, 1, 3)
        kh = ki.reshape(B, S, num_heads, dh).transpose(0, 2, 1, 3)
        vh = vi.reshape(B, S, num_heads, dh).transpose(0, 2, 1, 3)
        s = jnp.einsum('bhqd,bhkd->bhqk', qh, kh) / math.sqrt(dh)
        a = jax.nn.softmax(s, axis=-1)
        o = jnp.einsum('bhqk,bhkd->bhqd', a, vh).transpose(0, 2, 1, 3).reshape(B, S, C)
        attn_out = o @ lp["wo_t"] + lp["bo"]
        x1 = attn_out + p
        p = (x1 @ lp["wfc1_t"]) @ lp["wfc2_t"] + x1
    return jnp.transpose(p, (0, 2, 1)).reshape(b, c, w, h)


# ------------------------------ param init ---------------------------------- #

def init_params(key, c, num_layers, scale=0.05):
    # Weights are stored pre-transposed ((in, out)) so kernels compute x @ W_t,
    # matching nn.Linear's y = x @ W.T semantics.
    n_per_layer = 12
    keys = jax.random.split(key, 2 + num_layers * n_per_layer)

    def rnd(k, shape):
        return scale * jax.random.normal(k, shape, jnp.float32)

    params = {"wl_t": rnd(keys[0], (c, c)), "bl": rnd(keys[1], (1, c)), "layers": []}
    idx = 2
    for _ in range(num_layers):
        lk = keys[idx:idx + n_per_layer]; idx += n_per_layer
        params["layers"].append({
            "wq_t":   rnd(lk[0], (c, c)),
            "wk_t":   rnd(lk[1], (c, c)),
            "wv_t":   rnd(lk[2], (c, c)),
            "wiq_t":  rnd(lk[3], (c, c)),
            "wik_t":  rnd(lk[4], (c, c)),
            "wiv_t":  rnd(lk[5], (c, c)),
            "biq":    rnd(lk[6], (1, c)),
            "bik":    rnd(lk[7], (1, c)),
            "biv":    rnd(lk[8], (1, c)),
            "wo_t":   rnd(lk[9], (c, c)),
            "bo":     rnd(lk[10], (1, c)),
            "wfc1_t": rnd(lk[11], (c, c)),
            "wfc2_t": rnd(jax.random.fold_in(lk[11], 1), (c, c)),
        })
    return params


# --------------------------------- main -------------------------------------- #

if __name__ == "__main__":
    B, C, W, H = 2, 128, 8, 8          # c1 == c2 == 128 -> conv branch skipped
    NUM_HEADS, NUM_LAYERS = 4, 2

    key = jax.random.PRNGKey(0)
    kx, kp = jax.random.split(key)
    x = jax.random.normal(kx, (B, C, W, H), jnp.float32)

    params = init_params(kp, C, NUM_LAYERS)
    ref = jax.block_until_ready(ref_forward(x, params, NUM_HEADS))

    fwd = jax.jit(partial(transformer_block_forward, num_heads=NUM_HEADS))

    # f32 weights: tight check (algebraic fusion + EUP approx-reciprocal only).
    fused_f32 = prepare_fused_params(params, NUM_HEADS, jnp.float32)
    out_f32 = jax.block_until_ready(fwd(x, fused_f32))
    assert out_f32.shape == (B, C, W, H)
    err_f32 = float(jnp.max(jnp.abs(out_f32 - ref)))
    assert jnp.allclose(out_f32, ref, rtol=2e-3, atol=2e-3), err_f32

    # bf16 weights (MXU-native on v5e/v6e/v7x): looser tolerance — bf16 operand
    # rounding through the fused weight products differs from the two-step f32
    # reference; softmax/residual math stays f32 in the kernel.
    fused_bf16 = prepare_fused_params(params, NUM_HEADS, jnp.bfloat16)
    out_bf16 = jax.block_until_ready(fwd(x, fused_bf16))
    err_bf16 = float(jnp.max(jnp.abs(out_bf16 - ref)))
    assert jnp.allclose(out_bf16, ref, rtol=5e-2, atol=5e-2), err_bf16

    print("KERNEL_OK")
</pallas_src>

<mosaic_0001>
module attributes {stable_mosaic.version = 11 : i64} {
  func.func @_fused_block_kernel(%arg0: memref<128x128xf32, #tpu.memory_space<vmem>>, %arg1: memref<128x128xf32, #tpu.memory_space<vmem>>, %arg2: memref<1x128xf32, #tpu.memory_space<vmem>>, %arg3: memref<2x128x128xf32, #tpu.memory_space<vmem>>, %arg4: memref<2x128x128xf32, #tpu.memory_space<vmem>>, %arg5: memref<2x128x128xf32, #tpu.memory_space<vmem>>, %arg6: memref<2x1x128xf32, #tpu.memory_space<vmem>>, %arg7: memref<2x1x128xf32, #tpu.memory_space<vmem>>, %arg8: memref<2x1x128xf32, #tpu.memory_space<vmem>>, %arg9: memref<2x128x128xf32, #tpu.memory_space<vmem>>, %arg10: memref<2x1x128xf32, #tpu.memory_space<vmem>>, %arg11: memref<2x128x128xf32, #tpu.memory_space<vmem>>, %arg12: memref<128x128xf32, #tpu.memory_space<vmem>>, %arg13: memref<128x128xf32, #tpu.memory_space<vmem>>) attributes {dimension_semantics = [], scalar_prefetch = 0 : i64, scratch_operands = 1 : i64, tpu.core_type = #tpu.core_type<tc>} {
    %c0 = arith.constant 0 : index
    %c0_0 = arith.constant 0 : index
    %0 = vector.load %arg0[%c0, %c0_0] : memref<128x128xf32, #tpu.memory_space<vmem>>, vector<128x128xf32>
    %c0_1 = arith.constant 0 : index
    %c0_2 = arith.constant 0 : index
    %1 = vector.load %arg1[%c0_1, %c0_2] : memref<128x128xf32, #tpu.memory_space<vmem>>, vector<128x128xf32>
    %cst = arith.constant dense<0.000000e+00> : vector<128x128xf32>
    %2 = tpu.matmul %0, %1, %cst {dimension_numbers = #tpu.dot_dimension_numbers<[1], [0], [0], [1], [0, 0, 1, 1], [], []>} : vector<128x128xf32>, vector<128x128xf32>, vector<128x128xf32> -> vector<128x128xf32>
    %c0_3 = arith.constant 0 : index
    %c0_4 = arith.constant 0 : index
    %3 = vector.load %arg2[%c0_3, %c0_4] : memref<1x128xf32, #tpu.memory_space<vmem>>, vector<1x128xf32>
    %4 = vector.broadcast %3 : vector<1x128xf32> to vector<128x128xf32>
    %5 = arith.addf %2, %4 : vector<128x128xf32>
    %6 = arith.addf %0, %5 : vector<128x128xf32>
    %c0_5 = arith.constant 0 : index
    %c0_6 = arith.constant 0 : index
    %c0_7 = arith.constant 0 : index
    %7 = vector.load %arg3[%c0_5, %c0_6, %c0_7] : memref<2x128x128xf32, #tpu.memory_space<vmem>>, vector<1x128x128xf32>
    %8 = vector.shape_cast %7 : vector<1x128x128xf32> to vector<128x128xf32>
    %c0_8 = arith.constant 0 : index
    %c0_9 = arith.constant 0 : index
    %c0_10 = arith.constant 0 : index
    %9 = vector.load %arg4[%c0_8, %c0_9, %c0_10] : memref<2x128x128xf32, #tpu.memory_space<vmem>>, vector<1x128x128xf32>
    %10 = vector.shape_cast %9 : vector<1x128x128xf32> to vector<128x128xf32>
    %c0_11 = arith.constant 0 : index
    %c0_12 = arith.constant 0 : index
    %c0_13 = arith.constant 0 : index
    %11 = vector.load %arg5[%c0_11, %c0_12, %c0_13] : memref<2x128x128xf32, #tpu.memory_space<vmem>>, vector<1x128x128xf32>
    %12 = vector.shape_cast %11 : vector<1x128x128xf32> to vector<128x128xf32>
    %c0_14 = arith.constant 0 : index
    %c0_15 = arith.constant 0 : index
    %c0_16 = arith.constant 0 : index
    %13 = vector.load %arg9[%c0_14, %c0_15, %c0_16] : memref<2x128x128xf32, #tpu.memory_space<vmem>>, vector<1x128x128xf32>
    %14 = vector.shape_cast %13 : vector<1x128x128xf32> to vector<128x128xf32>
    %c0_17 = arith.constant 0 : index
    %c0_18 = arith.constant 0 : index
    %c0_19 = arith.constant 0 : index
    %15 = vector.load %arg11[%c0_17, %c0_18, %c0_19] : memref<2x128x128xf32, #tpu.memory_space<vmem>>, vector<1x128x128xf32>
    %16 = vector.shape_cast %15 : vector<1x128x128xf32> to vector<128x128xf32>
    %c0_20 = arith.constant 0 : index
    %c0_21 = arith.constant 0 : index
    %c0_22 = arith.constant 0 : index
    %17 = vector.load %arg10[%c0_20, %c0_21, %c0_22] : memref<2x1x128xf32, #tpu.memory_space<vmem>>, vector<1x1x128xf32>
    %18 = vector.shape_cast %17 : vector<1x1x128xf32> to vector<1x128xf32>
    %cst_23 = arith.constant dense<0.000000e+00> : vector<128x128xf32>
    %19 = tpu.matmul %6, %8, %cst_23 {dimension_numbers = #tpu.dot_dimension_numbers<[1], [0], [0], [1], [0, 0, 1, 1], [], []>} : vector<128x128xf32>, vector<128x128xf32>, vector<128x128xf32> -> vector<128x128xf32>
    %c0_24 = arith.constant 0 : index
    %c0_25 = arith.constant 0 : index
    %c0_26 = arith.constant 0 : index
    %20 = vector.load %arg6[%c0_24, %c0_25, %c0_26] : memref<2x1x128xf32, #tpu.memory_space<vmem>>, vector<1x1x128xf32>
    %21 = vector.shape_cast %20 : vector<1x1x128xf32> to vector<1x128xf32>
    %22 = vector.broadcast %21 : vector<1x128xf32> to vector<128x128xf32>
    %23 = arith.addf %19, %22 : vector<128x128xf32>
    %cst_27 = arith.constant dense<0.000000e+00> : vector<128x128xf32>
    %24 = tpu.matmul %6, %10, %cst_27 {dimension_numbers = #tpu.dot_dimension_numbers<[1], [0], [0], [1], [0, 0, 1, 1], [], []>} : vector<128x128xf32>, vector<128x128xf32>, vector<128x128xf32> -> vector<128x128xf32>
    %c0_28 = arith.constant 0 : index
    %c0_29 = arith.constant 0 : index
    %c0_30 = arith.constant 0 : index
    %25 = vector.load %arg7[%c0_28, %c0_29, %c0_30] : memref<2x1x128xf32, #tpu.memory_space<vmem>>, vector<1x1x128xf32>
    %26 = vector.shape_cast %25 : vector<1x1x128xf32> to vector<1x128xf32>
    %27 = vector.broadcast %26 : vector<1x128xf32> to vector<128x128xf32>
    %28 = arith.addf %24, %27 : vector<128x128xf32>
    %cst_31 = arith.constant dense<0.000000e+00> : vector<128x128xf32>
    %29 = tpu.matmul %6, %12, %cst_31 {dimension_numbers = #tpu.dot_dimension_numbers<[1], [0], [0], [1], [0, 0, 1, 1], [], []>} : vector<128x128xf32>, vector<128x128xf32>, vector<128x128xf32> -> vector<128x128xf32>
    %c0_32 = arith.constant 0 : index
    %c0_33 = arith.constant 0 : index
    %c0_34 = arith.constant 0 : index
    %30 = vector.load %arg8[%c0_32, %c0_33, %c0_34] : memref<2x1x128xf32, #tpu.memory_space<vmem>>, vector<1x1x128xf32>
    %31 = vector.shape_cast %30 : vector<1x1x128xf32> to vector<1x128xf32>
    %32 = vector.broadcast %31 : vector<1x128xf32> to vector<128x128xf32>
    %33 = arith.addf %29, %32 : vector<128x128xf32>
    %34 = vector.extract_strided_slice %6 {offsets = [0, 0], sizes = [64, 128], strides = [1, 1]} : vector<128x128xf32> to vector<64x128xf32>
    %35 = vector.broadcast %18 : vector<1x128xf32> to vector<64x128xf32>
    %36 = arith.addf %34, %35 : vector<64x128xf32>
    %37 = vector.extract_strided_slice %23 {offsets = [0, 0], sizes = [64, 32], strides = [1, 1]} : vector<128x128xf32> to vector<64x32xf32>
    %38 = vector.extract_strided_slice %28 {offsets = [0, 0], sizes = [64, 32], strides = [1, 1]} : vector<128x128xf32> to vector<64x32xf32>
    %39 = vector.extract_strided_slice %33 {offsets = [0, 0], sizes = [64, 32], strides = [1, 1]} : vector<128x128xf32> to vector<64x32xf32>
    %cst_35 = arith.constant dense<0.000000e+00> : vector<64x64xf32>
    %40 = tpu.matmul %37, %38, %cst_35 {dimension_numbers = #tpu.dot_dimension_numbers<[1], [1], [0], [0], [0, 0, 1, 0], [], []>} : vector<64x32xf32>, vector<64x32xf32>, vector<64x64xf32> -> vector<64x64xf32>
    %cst_36 = arith.constant dense<0xFF800000> : vector<64xf32>
    %41 = vector.multi_reduction <maximumf>, %40, %cst_36 [1] : vector<64x64xf32> to vector<64xf32>
    %42 = vector.shape_cast %41 : vector<64xf32> to vector<64x1xf32>
    %43 = vector.broadcast %42 : vector<64x1xf32> to vector<64x64xf32>
    %44 = arith.subf %40, %43 : vector<64x64xf32>
    %45 = math.exp %44 : vector<64x64xf32>
    %cst_37 = arith.constant dense<0.000000e+00> : vector<64x32xf32>
    %46 = tpu.matmul %45, %39, %cst_37 {dimension_numbers = #tpu.dot_dimension_numbers<[1], [0], [0], [1], [0, 0, 1, 1], [], []>} : vector<64x64xf32>, vector<64x32xf32>, vector<64x32xf32> -> vector<64x32xf32>
    %cst_38 = arith.constant dense<0.000000e+00> : vector<64xf32>
    %47 = vector.multi_reduction <add>, %45, %cst_38 [1] : vector<64x64xf32> to vector<64xf32>
    %48 = vector.shape_cast %47 : vector<64xf32> to vector<64x1xf32>
    %49 = tpu.reciprocal %48 {approx = true} : vector<64x1xf32> -> vector<64x1xf32>
    %50 = vector.broadcast %49 : vector<64x1xf32> to vector<64x32xf32>
    %51 = arith.mulf %46, %50 : vector<64x32xf32>
    %52 = vector.extract_strided_slice %14 {offsets = [0, 0], sizes = [32, 128], strides = [1, 1]} : vector<128x128xf32> to vector<32x128xf32>
    %cst_39 = arith.constant dense<0.000000e+00> : vector<64x128xf32>
    %53 = tpu.matmul %51, %52, %cst_39 {dimension_numbers = #tpu.dot_dimension_numbers<[1], [0], [0], [1], [0, 0, 1, 1], [], []>} : vector<64x32xf32>, vector<32x128xf32>, vector<64x128xf32> -> vector<64x128xf32>
    %54 = arith.addf %36, %53 : vector<64x128xf32>
    %55 = vector.extract_strided_slice %23 {offsets = [0, 32], sizes = [64, 32], strides = [1, 1]} : vector<128x128xf32> to vector<64x32xf32>
    %56 = vector.extract_strided_slice %28 {offsets = [0, 32], sizes = [64, 32], strides = [1, 1]} : vector<128x128xf32> to vector<64x32xf32>
    %57 = vector.extract_strided_slice %33 {offsets = [0, 32], sizes = [64, 32], strides = [1, 1]} : vector<128x128xf32> to vector<64x32xf32>
    %cst_40 = arith.constant dense<0.000000e+00> : vector<64x64xf32>
    %58 = tpu.matmul %55, %56, %cst_40 {dimension_numbers = #tpu.dot_dimension_numbers<[1], [1], [0], [0], [0, 0, 1, 0], [], []>} : vector<64x32xf32>, vector<64x32xf32>, vector<64x64xf32> -> vector<64x64xf32>
    %cst_41 = arith.constant dense<0xFF800000> : vector<64xf32>
    %59 = vector.multi_reduction <maximumf>, %58, %cst_41 [1] : vector<64x64xf32> to vector<64xf32>
    %60 = vector.shape_cast %59 : vector<64xf32> to vector<64x1xf32>
    %61 = vector.broadcast %60 : vector<64x1xf32> to vector<64x64xf32>
    %62 = arith.subf %58, %61 : vector<64x64xf32>
    %63 = math.exp %62 : vector<64x64xf32>
    %cst_42 = arith.constant dense<0.000000e+00> : vector<64x32xf32>
    %64 = tpu.matmul %63, %57, %cst_42 {dimension_numbers = #tpu.dot_dimension_numbers<[1], [0], [0], [1], [0, 0, 1, 1], [], []>} : vector<64x64xf32>, vector<64x32xf32>, vector<64x32xf32> -> vector<64x32xf32>
    %cst_43 = arith.constant dense<0.000000e+00> : vector<64xf32>
    %65 = vector.multi_reduction <add>, %63, %cst_43 [1] : vector<64x64xf32> to vector<64xf32>
    %66 = vector.shape_cast %65 : vector<64xf32> to vector<64x1xf32>
    %67 = tpu.reciprocal %66 {approx = true} : vector<64x1xf32> -> vector<64x1xf32>
    %68 = vector.broadcast %67 : vector<64x1xf32> to vector<64x32xf32>
    %69 = arith.mulf %64, %68 : vector<64x32xf32>
    %70 = vector.extract_strided_slice %14 {offsets = [32, 0], sizes = [32, 128], strides = [1, 1]} : vector<128x128xf32> to vector<32x128xf32>
    %cst_44 = arith.constant dense<0.000000e+00> : vector<64x128xf32>
    %71 = tpu.matmul %69, %70, %cst_44 {dimension_numbers = #tpu.dot_dimension_numbers<[1], [0], [0], [1], [0, 0, 1, 1], [], []>} : vector<64x32xf32>, vector<32x128xf32>, vector<64x128xf32> -> vector<64x128xf32>
    %72 = arith.addf %54, %71 : vector<64x128xf32>
    %73 = vector.extract_strided_slice %23 {offsets = [0, 64], sizes = [64, 32], strides = [1, 1]} : vector<128x128xf32> to vector<64x32xf32>
    %74 = vector.extract_strided_slice %28 {offsets = [0, 64], sizes = [64, 32], strides = [1, 1]} : vector<128x128xf32> to vector<64x32xf32>
    %75 = vector.extract_strided_slice %33 {offsets = [0, 64], sizes = [64, 32], strides = [1, 1]} : vector<128x128xf32> to vector<64x32xf32>
    %cst_45 = arith.constant dense<0.000000e+00> : vector<64x64xf32>
    %76 = tpu.matmul %73, %74, %cst_45 {dimension_numbers = #tpu.dot_dimension_numbers<[1], [1], [0], [0], [0, 0, 1, 0], [], []>} : vector<64x32xf32>, vector<64x32xf32>, vector<64x64xf32> -> vector<64x64xf32>
    %cst_46 = arith.constant dense<0xFF800000> : vector<64xf32>
    %77 = vector.multi_reduction <maximumf>, %76, %cst_46 [1] : vector<64x64xf32> to vector<64xf32>
    %78 = vector.shape_cast %77 : vector<64xf32> to vector<64x1xf32>
    %79 = vector.broadcast %78 : vector<64x1xf32> to vector<64x64xf32>
    %80 = arith.subf %76, %79 : vector<64x64xf32>
    %81 = math.exp %80 : vector<64x64xf32>
    %cst_47 = arith.constant dense<0.000000e+00> : vector<64x32xf32>
    %82 = tpu.matmul %81, %75, %cst_47 {dimension_numbers = #tpu.dot_dimension_numbers<[1], [0], [0], [1], [0, 0, 1, 1], [], []>} : vector<64x64xf32>, vector<64x32xf32>, vector<64x32xf32> -> vector<64x32xf32>
    %cst_48 = arith.constant dense<0.000000e+00> : vector<64xf32>
    %83 = vector.multi_reduction <add>, %81, %cst_48 [1] : vector<64x64xf32> to vector<64xf32>
    %84 = vector.shape_cast %83 : vector<64xf32> to vector<64x1xf32>
    %85 = tpu.reciprocal %84 {approx = true} : vector<64x1xf32> -> vector<64x1xf32>
    %86 = vector.broadcast %85 : vector<64x1xf32> to vector<64x32xf32>
    %87 = arith.mulf %82, %86 : vector<64x32xf32>
    %88 = vector.extract_strided_slice %14 {offsets = [64, 0], sizes = [32, 128], strides = [1, 1]} : vector<128x128xf32> to vector<32x128xf32>
    %cst_49 = arith.constant dense<0.000000e+00> : vector<64x128xf32>
    %89 = tpu.matmul %87, %88, %cst_49 {dimension_numbers = #tpu.dot_dimension_numbers<[1], [0], [0], [1], [0, 0, 1, 1], [], []>} : vector<64x32xf32>, vector<32x128xf32>, vector<64x128xf32> -> vector<64x128xf32>
    %90 = arith.addf %72, %89 : vector<64x128xf32>
    %91 = vector.extract_strided_slice %23 {offsets = [0, 96], sizes = [64, 32], strides = [1, 1]} : vector<128x128xf32> to vector<64x32xf32>
    %92 = vector.extract_strided_slice %28 {offsets = [0, 96], sizes = [64, 32], strides = [1, 1]} : vector<128x128xf32> to vector<64x32xf32>
    %93 = vector.extract_strided_slice %33 {offsets = [0, 96], sizes = [64, 32], strides = [1, 1]} : vector<128x128xf32> to vector<64x32xf32>
    %cst_50 = arith.constant dense<0.000000e+00> : vector<64x64xf32>
    %94 = tpu.matmul %91, %92, %cst_50 {dimension_numbers = #tpu.dot_dimension_numbers<[1], [1], [0], [0], [0, 0, 1, 0], [], []>} : vector<64x32xf32>, vector<64x32xf32>, vector<64x64xf32> -> vector<64x64xf32>
    %cst_51 = arith.constant dense<0xFF800000> : vector<64xf32>
    %95 = vector.multi_reduction <maximumf>, %94, %cst_51 [1] : vector<64x64xf32> to vector<64xf32>
    %96 = vector.shape_cast %95 : vector<64xf32> to vector<64x1xf32>
    %97 = vector.broadcast %96 : vector<64x1xf32> to vector<64x64xf32>
    %98 = arith.subf %94, %97 : vector<64x64xf32>
    %99 = math.exp %98 : vector<64x64xf32>
    %cst_52 = arith.constant dense<0.000000e+00> : vector<64x32xf32>
    %100 = tpu.matmul %99, %93, %cst_52 {dimension_numbers = #tpu.dot_dimension_numbers<[1], [0], [0], [1], [0, 0, 1, 1], [], []>} : vector<64x64xf32>, vector<64x32xf32>, vector<64x32xf32> -> vector<64x32xf32>
    %cst_53 = arith.constant dense<0.000000e+00> : vector<64xf32>
    %101 = vector.multi_reduction <add>, %99, %cst_53 [1] : vector<64x64xf32> to vector<64xf32>
    %102 = vector.shape_cast %101 : vector<64xf32> to vector<64x1xf32>
    %103 = tpu.reciprocal %102 {approx = true} : vector<64x1xf32> -> vector<64x1xf32>
    %104 = vector.broadcast %103 : vector<64x1xf32> to vector<64x32xf32>
    %105 = arith.mulf %100, %104 : vector<64x32xf32>
    %106 = vector.extract_strided_slice %14 {offsets = [96, 0], sizes = [32, 128], strides = [1, 1]} : vector<128x128xf32> to vector<32x128xf32>
    %cst_54 = arith.constant dense<0.000000e+00> : vector<64x128xf32>
    %107 = tpu.matmul %105, %106, %cst_54 {dimension_numbers = #tpu.dot_dimension_numbers<[1], [0], [0], [1], [0, 0, 1, 1], [], []>} : vector<64x32xf32>, vector<32x128xf32>, vector<64x128xf32> -> vector<64x128xf32>
    %108 = arith.addf %90, %107 : vector<64x128xf32>
    %c0_55 = arith.constant 0 : index
    %c0_56 = arith.constant 0 : index
    %109 = vector.load %arg13[%c0_55, %c0_56] : memref<128x128xf32, #tpu.memory_space<vmem>>, vector<64x128xf32>
    tpu.vector_store %arg13[%c0_55, %c0_56], %108 {strides = array<i32>} : memref<128x128xf32, #tpu.memory_space<vmem>>, vector<64x128xf32>,
    %110 = vector.extract_strided_slice %6 {offsets = [64, 0], sizes = [64, 128], strides = [1, 1]} : vector<128x128xf32> to vector<64x128xf32>
    %111 = vector.broadcast %18 : vector<1x128xf32> to vector<64x128xf32>
    %112 = arith.addf %110, %111 : vector<64x128xf32>
    %113 = vector.extract_strided_slice %23 {offsets = [64, 0], sizes = [64, 32], strides = [1, 1]} : vector<128x128xf32> to vector<64x32xf32>
    %114 = vector.extract_strided_slice %28 {offsets = [64, 0], sizes = [64, 32], strides = [1, 1]} : vector<128x128xf32> to vector<64x32xf32>
    %115 = vector.extract_strided_slice %33 {offsets = [64, 0], sizes = [64, 32], strides = [1, 1]} : vector<128x128xf32> to vector<64x32xf32>
    %cst_57 = arith.constant dense<0.000000e+00> : vector<64x64xf32>
    %116 = tpu.matmul %113, %114, %cst_57 {dimension_numbers = #tpu.dot_dimension_numbers<[1], [1], [0], [0], [0, 0, 1, 0], [], []>} : vector<64x32xf32>, vector<64x32xf32>, vector<64x64xf32> -> vector<64x64xf32>
    %cst_58 = arith.constant dense<0xFF800000> : vector<64xf32>
    %117 = vector.multi_reduction <maximumf>, %116, %cst_58 [1] : vector<64x64xf32> to vector<64xf32>
    %118 = vector.shape_cast %117 : vector<64xf32> to vector<64x1xf32>
    %119 = vector.broadcast %118 : vector<64x1xf32> to vector<64x64xf32>
    %120 = arith.subf %116, %119 : vector<64x64xf32>
    %121 = math.exp %120 : vector<64x64xf32>
    %cst_59 = arith.constant dense<0.000000e+00> : vector<64x32xf32>
    %122 = tpu.matmul %121, %115, %cst_59 {dimension_numbers = #tpu.dot_dimension_numbers<[1], [0], [0], [1], [0, 0, 1, 1], [], []>} : vector<64x64xf32>, vector<64x32xf32>, vector<64x32xf32> -> vector<64x32xf32>
    %cst_60 = arith.constant dense<0.000000e+00> : vector<64xf32>
    %123 = vector.multi_reduction <add>, %121, %cst_60 [1] : vector<64x64xf32> to vector<64xf32>
    %124 = vector.shape_cast %123 : vector<64xf32> to vector<64x1xf32>
    %125 = tpu.reciprocal %124 {approx = true} : vector<64x1xf32> -> vector<64x1xf32>
    %126 = vector.broadcast %125 : vector<64x1xf32> to vector<64x32xf32>
    %127 = arith.mulf %122, %126 : vector<64x32xf32>
    %128 = vector.extract_strided_slice %14 {offsets = [0, 0], sizes = [32, 128], strides = [1, 1]} : vector<128x128xf32> to vector<32x128xf32>
    %cst_61 = arith.constant dense<0.000000e+00> : vector<64x128xf32>
    %129 = tpu.matmul %127, %128, %cst_61 {dimension_numbers = #tpu.dot_dimension_numbers<[1], [0], [0], [1], [0, 0, 1, 1], [], []>} : vector<64x32xf32>, vector<32x128xf32>, vector<64x128xf32> -> vector<64x128xf32>
    %130 = arith.addf %112, %129 : vector<64x128xf32>
    %131 = vector.extract_strided_slice %23 {offsets = [64, 32], sizes = [64, 32], strides = [1, 1]} : vector<128x128xf32> to vector<64x32xf32>
    %132 = vector.extract_strided_slice %28 {offsets = [64, 32], sizes = [64, 32], strides = [1, 1]} : vector<128x128xf32> to vector<64x32xf32>
    %133 = vector.extract_strided_slice %33 {offsets = [64, 32], sizes = [64, 32], strides = [1, 1]} : vector<128x128xf32> to vector<64x32xf32>
    %cst_62 = arith.constant dense<0.000000e+00> : vector<64x64xf32>
    %134 = tpu.matmul %131, %132, %cst_62 {dimension_numbers = #tpu.dot_dimension_numbers<[1], [1], [0], [0], [0, 0, 1, 0], [], []>} : vector<64x32xf32>, vector<64x32xf32>, vector<64x64xf32> -> vector<64x64xf32>
    %cst_63 = arith.constant dense<0xFF800000> : vector<64xf32>
    %135 = vector.multi_reduction <maximumf>, %134, %cst_63 [1] : vector<64x64xf32> to vector<64xf32>
    %136 = vector.shape_cast %135 : vector<64xf32> to vector<64x1xf32>
    %137 = vector.broadcast %136 : vector<64x1xf32> to vector<64x64xf32>
    %138 = arith.subf %134, %137 : vector<64x64xf32>
    %139 = math.exp %138 : vector<64x64xf32>
    %cst_64 = arith.constant dense<0.000000e+00> : vector<64x32xf32>
    %140 = tpu.matmul %139, %133, %cst_64 {dimension_numbers = #tpu.dot_dimension_numbers<[1], [0], [0], [1], [0, 0, 1, 1], [], []>} : vector<64x64xf32>, vector<64x32xf32>, vector<64x32xf32> -> vector<64x32xf32>
    %cst_65 = arith.constant dense<0.000000e+00> : vector<64xf32>
    %141 = vector.multi_reduction <add>, %139, %cst_65 [1] : vector<64x64xf32> to vector<64xf32>
    %142 = vector.shape_cast %141 : vector<64xf32> to vector<64x1xf32>
    %143 = tpu.reciprocal %142 {approx = true} : vector<64x1xf32> -> vector<64x1xf32>
    %144 = vector.broadcast %143 : vector<64x1xf32> to vector<64x32xf32>
    %145 = arith.mulf %140, %144 : vector<64x32xf32>
    %146 = vector.extract_strided_slice %14 {offsets = [32, 0], sizes = [32, 128], strides = [1, 1]} : vector<128x128xf32> to vector<32x128xf32>
    %cst_66 = arith.constant dense<0.000000e+00> : vector<64x128xf32>
    %147 = tpu.matmul %145, %146, %cst_66 {dimension_numbers = #tpu.dot_dimension_numbers<[1], [0], [0], [1], [0, 0, 1, 1], [], []>} : vector<64x32xf32>, vector<32x128xf32>, vector<64x128xf32> -> vector<64x128xf32>
    %148 = arith.addf %130, %147 : vector<64x128xf32>
    %149 = vector.extract_strided_slice %23 {offsets = [64, 64], sizes = [64, 32], strides = [1, 1]} : vector<128x128xf32> to vector<64x32xf32>
    %150 = vector.extract_strided_slice %28 {offsets = [64, 64], sizes = [64, 32], strides = [1, 1]} : vector<128x128xf32> to vector<64x32xf32>
    %151 = vector.extract_strided_slice %33 {offsets = [64, 64], sizes = [64, 32], strides = [1, 1]} : vector<128x128xf32> to vector<64x32xf32>
    %cst_67 = arith.constant dense<0.000000e+00> : vector<64x64xf32>
    %152 = tpu.matmul %149, %150, %cst_67 {dimension_numbers = #tpu.dot_dimension_numbers<[1], [1], [0], [0], [0, 0, 1, 0], [], []>} : vector<64x32xf32>, vector<64x32xf32>, vector<64x64xf32> -> vector<64x64xf32>
    %cst_68 = arith.constant dense<0xFF800000> : vector<64xf32>
    %153 = vector.multi_reduction <maximumf>, %152, %cst_68 [1] : vector<64x64xf32> to vector<64xf32>
    %154 = vector.shape_cast %153 : vector<64xf32> to vector<64x1xf32>
    %155 = vector.broadcast %154 : vector<64x1xf32> to vector<64x64xf32>
    %156 = arith.subf %152, %155 : vector<64x64xf32>
    %157 = math.exp %156 : vector<64x64xf32>
    %cst_69 = arith.constant dense<0.000000e+00> : vector<64x32xf32>
    %158 = tpu.matmul %157, %151, %cst_69 {dimension_numbers = #tpu.dot_dimension_numbers<[1], [0], [0], [1], [0, 0, 1, 1], [], []>} : vector<64x64xf32>, vector<64x32xf32>, vector<64x32xf32> -> vector<64x32xf32>
    %cst_70 = arith.constant dense<0.000000e+00> : vector<64xf32>
    %159 = vector.multi_reduction <add>, %157, %cst_70 [1] : vector<64x64xf32> to vector<64xf32>
    %160 = vector.shape_cast %159 : vector<64xf32> to vector<64x1xf32>
    %161 = tpu.reciprocal %160 {approx = true} : vector<64x1xf32> -> vector<64x1xf32>
    %162 = vector.broadcast %161 : vector<64x1xf32> to vector<64x32xf32>
    %163 = arith.mulf %158, %162 : vector<64x32xf32>
    %164 = vector.extract_strided_slice %14 {offsets = [64, 0], sizes = [32, 128], strides = [1, 1]} : vector<128x128xf32> to vector<32x128xf32>
    %cst_71 = arith.constant dense<0.000000e+00> : vector<64x128xf32>
    %165 = tpu.matmul %163, %164, %cst_71 {dimension_numbers = #tpu.dot_dimension_numbers<[1], [0], [0], [1], [0, 0, 1, 1], [], []>} : vector<64x32xf32>, vector<32x128xf32>, vector<64x128xf32> -> vector<64x128xf32>
    %166 = arith.addf %148, %165 : vector<64x128xf32>
    %167 = vector.extract_strided_slice %23 {offsets = [64, 96], sizes = [64, 32], strides = [1, 1]} : vector<128x128xf32> to vector<64x32xf32>
    %168 = vector.extract_strided_slice %28 {offsets = [64, 96], sizes = [64, 32], strides = [1, 1]} : vector<128x128xf32> to vector<64x32xf32>
    %169 = vector.extract_strided_slice %33 {offsets = [64, 96], sizes = [64, 32], strides = [1, 1]} : vector<128x128xf32> to vector<64x32xf32>
    %cst_72 = arith.constant dense<0.000000e+00> : vector<64x64xf32>
    %170 = tpu.matmul %167, %168, %cst_72 {dimension_numbers = #tpu.dot_dimension_numbers<[1], [1], [0], [0], [0, 0, 1, 0], [], []>} : vector<64x32xf32>, vector<64x32xf32>, vector<64x64xf32> -> vector<64x64xf32>
    %cst_73 = arith.constant dense<0xFF800000> : vector<64xf32>
    %171 = vector.multi_reduction <maximumf>, %170, %cst_73 [1] : vector<64x64xf32> to vector<64xf32>
    %172 = vector.shape_cast %171 : vector<64xf32> to vector<64x1xf32>
    %173 = vector.broadcast %172 : vector<64x1xf32> to vector<64x64xf32>
    %174 = arith.subf %170, %173 : vector<64x64xf32>
    %175 = math.exp %174 : vector<64x64xf32>
    %cst_74 = arith.constant dense<0.000000e+00> : vector<64x32xf32>
    %176 = tpu.matmul %175, %169, %cst_74 {dimension_numbers = #tpu.dot_dimension_numbers<[1], [0], [0], [1], [0, 0, 1, 1], [], []>} : vector<64x64xf32>, vector<64x32xf32>, vector<64x32xf32> -> vector<64x32xf32>
    %cst_75 = arith.constant dense<0.000000e+00> : vector<64xf32>
    %177 = vector.multi_reduction <add>, %175, %cst_75 [1] : vector<64x64xf32> to vector<64xf32>
    %178 = vector.shape_cast %177 : vector<64xf32> to vector<64x1xf32>
    %179 = tpu.reciprocal %178 {approx = true} : vector<64x1xf32> -> vector<64x1xf32>
    %180 = vector.broadcast %179 : vector<64x1xf32> to vector<64x32xf32>
    %181 = arith.mulf %176, %180 : vector<64x32xf32>
    %182 = vector.extract_strided_slice %14 {offsets = [96, 0], sizes = [32, 128], strides = [1, 1]} : vector<128x128xf32> to vector<32x128xf32>
    %cst_76 = arith.constant dense<0.000000e+00> : vector<64x128xf32>
    %183 = tpu.matmul %181, %182, %cst_76 {dimension_numbers = #tpu.dot_dimension_numbers<[1], [0], [0], [1], [0, 0, 1, 1], [], []>} : vector<64x32xf32>, vector<32x128xf32>, vector<64x128xf32> -> vector<64x128xf32>
    %184 = arith.addf %166, %183 : vector<64x128xf32>
    %c64 = arith.constant 64 : index
    %c0_77 = arith.constant 0 : index
    %185 = vector.load %arg13[%c64, %c0_77] : memref<128x128xf32, #tpu.memory_space<vmem>>, vector<64x128xf32>
    tpu.vector_store %arg13[%c64, %c0_77], %184 {strides = array<i32>} : memref<128x128xf32, #tpu.memory_space<vmem>>, vector<64x128xf32>,
    %c0_78 = arith.constant 0 : index
    %c0_79 = arith.constant 0 : index
    %186 = vector.load %arg13[%c0_78, %c0_79] : memref<128x128xf32, #tpu.memory_space<vmem>>, vector<128x128xf32>
    %cst_80 = arith.constant dense<0.000000e+00> : vector<128x128xf32>
    %187 = tpu.matmul %186, %16, %cst_80 {dimension_numbers = #tpu.dot_dimension_numbers<[1], [0], [0], [1], [0, 0, 1, 1], [], []>} : vector<128x128xf32>, vector<128x128xf32>, vector<128x128xf32> -> vector<128x128xf32>
    %188 = arith.addf %187, %186 : vector<128x128xf32>
    %c1 = arith.constant 1 : index
    %c0_81 = arith.constant 0 : index
    %c0_82 = arith.constant 0 : index
    %189 = vector.load %arg3[%c1, %c0_81, %c0_82] : memref<2x128x128xf32, #tpu.memory_space<vmem>>, vector<1x128x128xf32>
    %190 = vector.shape_cast %189 : vector<1x128x128xf32> to vector<128x128xf32>
    %c1_83 = arith.constant 1 : index
    %c0_84 = arith.constant 0 : index
    %c0_85 = arith.constant 0 : index
    %191 = vector.load %arg4[%c1_83, %c0_84, %c0_85] : memref<2x128x128xf32, #tpu.memory_space<vmem>>, vector<1x128x128xf32>
    %192 = vector.shape_cast %191 : vector<1x128x128xf32> to vector<128x128xf32>
    %c1_86 = arith.constant 1 : index
    %c0_87 = arith.constant 0 : index
    %c0_88 = arith.constant 0 : index
    %193 = vector.load %arg5[%c1_86, %c0_87, %c0_88] : memref<2x128x128xf32, #tpu.memory_space<vmem>>, vector<1x128x128xf32>
    %194 = vector.shape_cast %193 : vector<1x128x128xf32> to vector<128x128xf32>
    %c1_89 = arith.constant 1 : index
    %c0_90 = arith.constant 0 : index
    %c0_91 = arith.constant 0 : index
    %195 = vector.load %arg9[%c1_89, %c0_90, %c0_91] : memref<2x128x128xf32, #tpu.memory_space<vmem>>, vector<1x128x128xf32>
    %196 = vector.shape_cast %195 : vector<1x128x128xf32> to vector<128x128xf32>
    %c1_92 = arith.constant 1 : index
    %c0_93 = arith.constant 0 : index
    %c0_94 = arith.constant 0 : index
    %197 = vector.load %arg11[%c1_92, %c0_93, %c0_94] : memref<2x128x128xf32, #tpu.memory_space<vmem>>, vector<1x128x128xf32>
    %198 = vector.shape_cast %197 : vector<1x128x128xf32> to vector<128x128xf32>
    %c1_95 = arith.constant 1 : index
    %c0_96 = arith.constant 0 : index
    %c0_97 = arith.constant 0 : index
    %199 = vector.load %arg10[%c1_95, %c0_96, %c0_97] : memref<2x1x128xf32, #tpu.memory_space<vmem>>, vector<1x1x128xf32>
    %200 = vector.shape_cast %199 : vector<1x1x128xf32> to vector<1x128xf32>
    %cst_98 = arith.constant dense<0.000000e+00> : vector<128x128xf32>
    %201 = tpu.matmul %188, %190, %cst_98 {dimension_numbers = #tpu.dot_dimension_numbers<[1], [0], [0], [1], [0, 0, 1, 1], [], []>} : vector<128x128xf32>, vector<128x128xf32>, vector<128x128xf32> -> vector<128x128xf32>
    %c1_99 = arith.constant 1 : index
    %c0_100 = arith.constant 0 : index
    %c0_101 = arith.constant 0 : index
    %202 = vector.load %arg6[%c1_99, %c0_100, %c0_101] : memref<2x1x128xf32, #tpu.memory_space<vmem>>, vector<1x1x128xf32>
    %203 = vector.shape_cast %202 : vector<1x1x128xf32> to vector<1x128xf32>
    %204 = vector.broadcast %203 : vector<1x128xf32> to vector<128x128xf32>
    %205 = arith.addf %201, %204 : vector<128x128xf32>
    %cst_102 = arith.constant dense<0.000000e+00> : vector<128x128xf32>
    %206 = tpu.matmul %188, %192, %cst_102 {dimension_numbers = #tpu.dot_dimension_numbers<[1], [0], [0], [1], [0, 0, 1, 1], [], []>} : vector<128x128xf32>, vector<128x128xf32>, vector<128x128xf32> -> vector<128x128xf32>
    %c1_103 = arith.constant 1 : index
    %c0_104 = arith.constant 0 : index
    %c0_105 = arith.constant 0 : index
    %207 = vector.load %arg7[%c1_103, %c0_104, %c0_105] : memref<2x1x128xf32, #tpu.memory_space<vmem>>, vector<1x1x128xf32>
    %208 = vector.shape_cast %207 : vector<1x1x128xf32> to vector<1x128xf32>
    %209 = vector.broadcast %208 : vector<1x128xf32> to vector<128x128xf32>
    %210 = arith.addf %206, %209 : vector<128x128xf32>
    %cst_106 = arith.constant dense<0.000000e+00> : vector<128x128xf32>
    %211 = tpu.matmul %188, %194, %cst_106 {dimension_numbers = #tpu.dot_dimension_numbers<[1], [0], [0], [1], [0, 0, 1, 1], [], []>} : vector<128x128xf32>, vector<128x128xf32>, vector<128x128xf32> -> vector<128x128xf32>
    %c1_107 = arith.constant 1 : index
    %c0_108 = arith.constant 0 : index
    %c0_109 = arith.constant 0 : index
    %212 = vector.load %arg8[%c1_107, %c0_108, %c0_109] : memref<2x1x128xf32, #tpu.memory_space<vmem>>, vector<1x1x128xf32>
    %213 = vector.shape_cast %212 : vector<1x1x128xf32> to vector<1x128xf32>
    %214 = vector.broadcast %213 : vector<1x128xf32> to vector<128x128xf32>
    %215 = arith.addf %211, %214 : vector<128x128xf32>
    %216 = vector.extract_strided_slice %188 {offsets = [0, 0], sizes = [64, 128], strides = [1, 1]} : vector<128x128xf32> to vector<64x128xf32>
    %217 = vector.broadcast %200 : vector<1x128xf32> to vector<64x128xf32>
    %218 = arith.addf %216, %217 : vector<64x128xf32>
    %219 = vector.extract_strided_slice %205 {offsets = [0, 0], sizes = [64, 32], strides = [1, 1]} : vector<128x128xf32> to vector<64x32xf32>
    %220 = vector.extract_strided_slice %210 {offsets = [0, 0], sizes = [64, 32], strides = [1, 1]} : vector<128x128xf32> to vector<64x32xf32>
    %221 = vector.extract_strided_slice %215 {offsets = [0, 0], sizes = [64, 32], strides = [1, 1]} : vector<128x128xf32> to vector<64x32xf32>
    %cst_110 = arith.constant dense<0.000000e+00> : vector<64x64xf32>
    %222 = tpu.matmul %219, %220, %cst_110 {dimension_numbers = #tpu.dot_dimension_numbers<[1], [1], [0], [0], [0, 0, 1, 0], [], []>} : vector<64x32xf32>, vector<64x32xf32>, vector<64x64xf32> -> vector<64x64xf32>
    %cst_111 = arith.constant dense<0xFF800000> : vector<64xf32>
    %223 = vector.multi_reduction <maximumf>, %222, %cst_111 [1] : vector<64x64xf32> to vector<64xf32>
    %224 = vector.shape_cast %223 : vector<64xf32> to vector<64x1xf32>
    %225 = vector.broadcast %224 : vector<64x1xf32> to vector<64x64xf32>
    %226 = arith.subf %222, %225 : vector<64x64xf32>
    %227 = math.exp %226 : vector<64x64xf32>
    %cst_112 = arith.constant dense<0.000000e+00> : vector<64x32xf32>
    %228 = tpu.matmul %227, %221, %cst_112 {dimension_numbers = #tpu.dot_dimension_numbers<[1], [0], [0], [1], [0, 0, 1, 1], [], []>} : vector<64x64xf32>, vector<64x32xf32>, vector<64x32xf32> -> vector<64x32xf32>
    %cst_113 = arith.constant dense<0.000000e+00> : vector<64xf32>
    %229 = vector.multi_reduction <add>, %227, %cst_113 [1] : vector<64x64xf32> to vector<64xf32>
    %230 = vector.shape_cast %229 : vector<64xf32> to vector<64x1xf32>
    %231 = tpu.reciprocal %230 {approx = true} : vector<64x1xf32> -> vector<64x1xf32>
    %232 = vector.broadcast %231 : vector<64x1xf32> to vector<64x32xf32>
    %233 = arith.mulf %228, %232 : vector<64x32xf32>
    %234 = vector.extract_strided_slice %196 {offsets = [0, 0], sizes = [32, 128], strides = [1, 1]} : vector<128x128xf32> to vector<32x128xf32>
    %cst_114 = arith.constant dense<0.000000e+00> : vector<64x128xf32>
    %235 = tpu.matmul %233, %234, %cst_114 {dimension_numbers = #tpu.dot_dimension_numbers<[1], [0], [0], [1], [0, 0, 1, 1], [], []>} : vector<64x32xf32>, vector<32x128xf32>, vector<64x128xf32> -> vector<64x128xf32>
    %236 = arith.addf %218, %235 : vector<64x128xf32>
    %237 = vector.extract_strided_slice %205 {offsets = [0, 32], sizes = [64, 32], strides = [1, 1]} : vector<128x128xf32> to vector<64x32xf32>
    %238 = vector.extract_strided_slice %210 {offsets = [0, 32], sizes = [64, 32], strides = [1, 1]} : vector<128x128xf32> to vector<64x32xf32>
    %239 = vector.extract_strided_slice %215 {offsets = [0, 32], sizes = [64, 32], strides = [1, 1]} : vector<128x128xf32> to vector<64x32xf32>
    %cst_115 = arith.constant dense<0.000000e+00> : vector<64x64xf32>
    %240 = tpu.matmul %237, %238, %cst_115 {dimension_numbers = #tpu.dot_dimension_numbers<[1], [1], [0], [0], [0, 0, 1, 0], [], []>} : vector<64x32xf32>, vector<64x32xf32>, vector<64x64xf32> -> vector<64x64xf32>
    %cst_116 = arith.constant dense<0xFF800000> : vector<64xf32>
    %241 = vector.multi_reduction <maximumf>, %240, %cst_116 [1] : vector<64x64xf32> to vector<64xf32>
    %242 = vector.shape_cast %241 : vector<64xf32> to vector<64x1xf32>
    %243 = vector.broadcast %242 : vector<64x1xf32> to vector<64x64xf32>
    %244 = arith.subf %240, %243 : vector<64x64xf32>
    %245 = math.exp %244 : vector<64x64xf32>
    %cst_117 = arith.constant dense<0.000000e+00> : vector<64x32xf32>
    %246 = tpu.matmul %245, %239, %cst_117 {dimension_numbers = #tpu.dot_dimension_numbers<[1], [0], [0], [1], [0, 0, 1, 1], [], []>} : vector<64x64xf32>, vector<64x32xf32>, vector<64x32xf32> -> vector<64x32xf32>
    %cst_118 = arith.constant dense<0.000000e+00> : vector<64xf32>
    %247 = vector.multi_reduction <add>, %245, %cst_118 [1] : vector<64x64xf32> to vector<64xf32>
    %248 = vector.shape_cast %247 : vector<64xf32> to vector<64x1xf32>
    %249 = tpu.reciprocal %248 {approx = true} : vector<64x1xf32> -> vector<64x1xf32>
    %250 = vector.broadcast %249 : vector<64x1xf32> to vector<64x32xf32>
    %251 = arith.mulf %246, %250 : vector<64x32xf32>
    %252 = vector.extract_strided_slice %196 {offsets = [32, 0], sizes = [32, 128], strides = [1, 1]} : vector<128x128xf32> to vector<32x128xf32>
    %cst_119 = arith.constant dense<0.000000e+00> : vector<64x128xf32>
    %253 = tpu.matmul %251, %252, %cst_119 {dimension_numbers = #tpu.dot_dimension_numbers<[1], [0], [0], [1], [0, 0, 1, 1], [], []>} : vector<64x32xf32>, vector<32x128xf32>, vector<64x128xf32> -> vector<64x128xf32>
    %254 = arith.addf %236, %253 : vector<64x128xf32>
    %255 = vector.extract_strided_slice %205 {offsets = [0, 64], sizes = [64, 32], strides = [1, 1]} : vector<128x128xf32> to vector<64x32xf32>
    %256 = vector.extract_strided_slice %210 {offsets = [0, 64], sizes = [64, 32], strides = [1, 1]} : vector<128x128xf32> to vector<64x32xf32>
    %257 = vector.extract_strided_slice %215 {offsets = [0, 64], sizes = [64, 32], strides = [1, 1]} : vector<128x128xf32> to vector<64x32xf32>
    %cst_120 = arith.constant dense<0.000000e+00> : vector<64x64xf32>
    %258 = tpu.matmul %255, %256, %cst_120 {dimension_numbers = #tpu.dot_dimension_numbers<[1], [1], [0], [0], [0, 0, 1, 0], [], []>} : vector<64x32xf32>, vector<64x32xf32>, vector<64x64xf32> -> vector<64x64xf32>
    %cst_121 = arith.constant dense<0xFF800000> : vector<64xf32>
    %259 = vector.multi_reduction <maximumf>, %258, %cst_121 [1] : vector<64x64xf32> to vector<64xf32>
    %260 = vector.shape_cast %259 : vector<64xf32> to vector<64x1xf32>
    %261 = vector.broadcast %260 : vector<64x1xf32> to vector<64x64xf32>
    %262 = arith.subf %258, %261 : vector<64x64xf32>
    %263 = math.exp %262 : vector<64x64xf32>
    %cst_122 = arith.constant dense<0.000000e+00> : vector<64x32xf32>
    %264 = tpu.matmul %263, %257, %cst_122 {dimension_numbers = #tpu.dot_dimension_numbers<[1], [0], [0], [1], [0, 0, 1, 1], [], []>} : vector<64x64xf32>, vector<64x32xf32>, vector<64x32xf32> -> vector<64x32xf32>
    %cst_123 = arith.constant dense<0.000000e+00> : vector<64xf32>
    %265 = vector.multi_reduction <add>, %263, %cst_123 [1] : vector<64x64xf32> to vector<64xf32>
    %266 = vector.shape_cast %265 : vector<64xf32> to vector<64x1xf32>
    %267 = tpu.reciprocal %266 {approx = true} : vector<64x1xf32> -> vector<64x1xf32>
    %268 = vector.broadcast %267 : vector<64x1xf32> to vector<64x32xf32>
    %269 = arith.mulf %264, %268 : vector<64x32xf32>
    %270 = vector.extract_strided_slice %196 {offsets = [64, 0], sizes = [32, 128], strides = [1, 1]} : vector<128x128xf32> to vector<32x128xf32>
    %cst_124 = arith.constant dense<0.000000e+00> : vector<64x128xf32>
    %271 = tpu.matmul %269, %270, %cst_124 {dimension_numbers = #tpu.dot_dimension_numbers<[1], [0], [0], [1], [0, 0, 1, 1], [], []>} : vector<64x32xf32>, vector<32x128xf32>, vector<64x128xf32> -> vector<64x128xf32>
    %272 = arith.addf %254, %271 : vector<64x128xf32>
    %273 = vector.extract_strided_slice %205 {offsets = [0, 96], sizes = [64, 32], strides = [1, 1]} : vector<128x128xf32> to vector<64x32xf32>
    %274 = vector.extract_strided_slice %210 {offsets = [0, 96], sizes = [64, 32], strides = [1, 1]} : vector<128x128xf32> to vector<64x32xf32>
    %275 = vector.extract_strided_slice %215 {offsets = [0, 96], sizes = [64, 32], strides = [1, 1]} : vector<128x128xf32> to vector<64x32xf32>
    %cst_125 = arith.constant dense<0.000000e+00> : vector<64x64xf32>
    %276 = tpu.matmul %273, %274, %cst_125 {dimension_numbers = #tpu.dot_dimension_numbers<[1], [1], [0], [0], [0, 0, 1, 0], [], []>} : vector<64x32xf32>, vector<64x32xf32>, vector<64x64xf32> -> vector<64x64xf32>
    %cst_126 = arith.constant dense<0xFF800000> : vector<64xf32>
    %277 = vector.multi_reduction <maximumf>, %276, %cst_126 [1] : vector<64x64xf32> to vector<64xf32>
    %278 = vector.shape_cast %277 : vector<64xf32> to vector<64x1xf32>
    %279 = vector.broadcast %278 : vector<64x1xf32> to vector<64x64xf32>
    %280 = arith.subf %276, %279 : vector<64x64xf32>
    %281 = math.exp %280 : vector<64x64xf32>
    %cst_127 = arith.constant dense<0.000000e+00> : vector<64x32xf32>
    %282 = tpu.matmul %281, %275, %cst_127 {dimension_numbers = #tpu.dot_dimension_numbers<[1], [0], [0], [1], [0, 0, 1, 1], [], []>} : vector<64x64xf32>, vector<64x32xf32>, vector<64x32xf32> -> vector<64x32xf32>
    %cst_128 = arith.constant dense<0.000000e+00> : vector<64xf32>
    %283 = vector.multi_reduction <add>, %281, %cst_128 [1] : vector<64x64xf32> to vector<64xf32>
    %284 = vector.shape_cast %283 : vector<64xf32> to vector<64x1xf32>
    %285 = tpu.reciprocal %284 {approx = true} : vector<64x1xf32> -> vector<64x1xf32>
    %286 = vector.broadcast %285 : vector<64x1xf32> to vector<64x32xf32>
    %287 = arith.mulf %282, %286 : vector<64x32xf32>
    %288 = vector.extract_strided_slice %196 {offsets = [96, 0], sizes = [32, 128], strides = [1, 1]} : vector<128x128xf32> to vector<32x128xf32>
    %cst_129 = arith.constant dense<0.000000e+00> : vector<64x128xf32>
    %289 = tpu.matmul %287, %288, %cst_129 {dimension_numbers = #tpu.dot_dimension_numbers<[1], [0], [0], [1], [0, 0, 1, 1], [], []>} : vector<64x32xf32>, vector<32x128xf32>, vector<64x128xf32> -> vector<64x128xf32>
    %290 = arith.addf %272, %289 : vector<64x128xf32>
    %c0_130 = arith.constant 0 : index
    %c0_131 = arith.constant 0 : index
    %291 = vector.load %arg13[%c0_130, %c0_131] : memref<128x128xf32, #tpu.memory_space<vmem>>, vector<64x128xf32>
    tpu.vector_store %arg13[%c0_130, %c0_131], %290 {strides = array<i32>} : memref<128x128xf32, #tpu.memory_space<vmem>>, vector<64x128xf32>,
    %292 = vector.extract_strided_slice %188 {offsets = [64, 0], sizes = [64, 128], strides = [1, 1]} : vector<128x128xf32> to vector<64x128xf32>
    %293 = vector.broadcast %200 : vector<1x128xf32> to vector<64x128xf32>
    %294 = arith.addf %292, %293 : vector<64x128xf32>
    %295 = vector.extract_strided_slice %205 {offsets = [64, 0], sizes = [64, 32], strides = [1, 1]} : vector<128x128xf32> to vector<64x32xf32>
    %296 = vector.extract_strided_slice %210 {offsets = [64, 0], sizes = [64, 32], strides = [1, 1]} : vector<128x128xf32> to vector<64x32xf32>
    %297 = vector.extract_strided_slice %215 {offsets = [64, 0], sizes = [64, 32], strides = [1, 1]} : vector<128x128xf32> to vector<64x32xf32>
    %cst_132 = arith.constant dense<0.000000e+00> : vector<64x64xf32>
    %298 = tpu.matmul %295, %296, %cst_132 {dimension_numbers = #tpu.dot_dimension_numbers<[1], [1], [0], [0], [0, 0, 1, 0], [], []>} : vector<64x32xf32>, vector<64x32xf32>, vector<64x64xf32> -> vector<64x64xf32>
    %cst_133 = arith.constant dense<0xFF800000> : vector<64xf32>
    %299 = vector.multi_reduction <maximumf>, %298, %cst_133 [1] : vector<64x64xf32> to vector<64xf32>
    %300 = vector.shape_cast %299 : vector<64xf32> to vector<64x1xf32>
    %301 = vector.broadcast %300 : vector<64x1xf32> to vector<64x64xf32>
    %302 = arith.subf %298, %301 : vector<64x64xf32>
    %303 = math.exp %302 : vector<64x64xf32>
    %cst_134 = arith.constant dense<0.000000e+00> : vector<64x32xf32>
    %304 = tpu.matmul %303, %297, %cst_134 {dimension_numbers = #tpu.dot_dimension_numbers<[1], [0], [0], [1], [0, 0, 1, 1], [], []>} : vector<64x64xf32>, vector<64x32xf32>, vector<64x32xf32> -> vector<64x32xf32>
    %cst_135 = arith.constant dense<0.000000e+00> : vector<64xf32>
    %305 = vector.multi_reduction <add>, %303, %cst_135 [1] : vector<64x64xf32> to vector<64xf32>
    %306 = vector.shape_cast %305 : vector<64xf32> to vector<64x1xf32>
    %307 = tpu.reciprocal %306 {approx = true} : vector<64x1xf32> -> vector<64x1xf32>
    %308 = vector.broadcast %307 : vector<64x1xf32> to vector<64x32xf32>
    %309 = arith.mulf %304, %308 : vector<64x32xf32>
    %310 = vector.extract_strided_slice %196 {offsets = [0, 0], sizes = [32, 128], strides = [1, 1]} : vector<128x128xf32> to vector<32x128xf32>
    %cst_136 = arith.constant dense<0.000000e+00> : vector<64x128xf32>
    %311 = tpu.matmul %309, %310, %cst_136 {dimension_numbers = #tpu.dot_dimension_numbers<[1], [0], [0], [1], [0, 0, 1, 1], [], []>} : vector<64x32xf32>, vector<32x128xf32>, vector<64x128xf32> -> vector<64x128xf32>
    %312 = arith.addf %294, %311 : vector<64x128xf32>
    %313 = vector.extract_strided_slice %205 {offsets = [64, 32], sizes = [64, 32], strides = [1, 1]} : vector<128x128xf32> to vector<64x32xf32>
    %314 = vector.extract_strided_slice %210 {offsets = [64, 32], sizes = [64, 32], strides = [1, 1]} : vector<128x128xf32> to vector<64x32xf32>
    %315 = vector.extract_strided_slice %215 {offsets = [64, 32], sizes = [64, 32], strides = [1, 1]} : vector<128x128xf32> to vector<64x32xf32>
    %cst_137 = arith.constant dense<0.000000e+00> : vector<64x64xf32>
    %316 = tpu.matmul %313, %314, %cst_137 {dimension_numbers = #tpu.dot_dimension_numbers<[1], [1], [0], [0], [0, 0, 1, 0], [], []>} : vector<64x32xf32>, vector<64x32xf32>, vector<64x64xf32> -> vector<64x64xf32>
    %cst_138 = arith.constant dense<0xFF800000> : vector<64xf32>
    %317 = vector.multi_reduction <maximumf>, %316, %cst_138 [1] : vector<64x64xf32> to vector<64xf32>
    %318 = vector.shape_cast %317 : vector<64xf32> to vector<64x1xf32>
    %319 = vector.broadcast %318 : vector<64x1xf32> to vector<64x64xf32>
    %320 = arith.subf %316, %319 : vector<64x64xf32>
    %321 = math.exp %320 : vector<64x64xf32>
    %cst_139 = arith.constant dense<0.000000e+00> : vector<64x32xf32>
    %322 = tpu.matmul %321, %315, %cst_139 {dimension_numbers = #tpu.dot_dimension_numbers<[1], [0], [0], [1], [0, 0, 1, 1], [], []>} : vector<64x64xf32>, vector<64x32xf32>, vector<64x32xf32> -> vector<64x32xf32>
    %cst_140 = arith.constant dense<0.000000e+00> : vector<64xf32>
    %323 = vector.multi_reduction <add>, %321, %cst_140 [1] : vector<64x64xf32> to vector<64xf32>
    %324 = vector.shape_cast %323 : vector<64xf32> to vector<64x1xf32>
    %325 = tpu.reciprocal %324 {approx = true} : vector<64x1xf32> -> vector<64x1xf32>
    %326 = vector.broadcast %325 : vector<64x1xf32> to vector<64x32xf32>
    %327 = arith.mulf %322, %326 : vector<64x32xf32>
    %328 = vector.extract_strided_slice %196 {offsets = [32, 0], sizes = [32, 128], strides = [1, 1]} : vector<128x128xf32> to vector<32x128xf32>
    %cst_141 = arith.constant dense<0.000000e+00> : vector<64x128xf32>
    %329 = tpu.matmul %327, %328, %cst_141 {dimension_numbers = #tpu.dot_dimension_numbers<[1], [0], [0], [1], [0, 0, 1, 1], [], []>} : vector<64x32xf32>, vector<32x128xf32>, vector<64x128xf32> -> vector<64x128xf32>
    %330 = arith.addf %312, %329 : vector<64x128xf32>
    %331 = vector.extract_strided_slice %205 {offsets = [64, 64], sizes = [64, 32], strides = [1, 1]} : vector<128x128xf32> to vector<64x32xf32>
    %332 = vector.extract_strided_slice %210 {offsets = [64, 64], sizes = [64, 32], strides = [1, 1]} : vector<128x128xf32> to vector<64x32xf32>
    %333 = vector.extract_strided_slice %215 {offsets = [64, 64], sizes = [64, 32], strides = [1, 1]} : vector<128x128xf32> to vector<64x32xf32>
    %cst_142 = arith.constant dense<0.000000e+00> : vector<64x64xf32>
    %334 = tpu.matmul %331, %332, %cst_142 {dimension_numbers = #tpu.dot_dimension_numbers<[1], [1], [0], [0], [0, 0, 1, 0], [], []>} : vector<64x32xf32>, vector<64x32xf32>, vector<64x64xf32> -> vector<64x64xf32>
    %cst_143 = arith.constant dense<0xFF800000> : vector<64xf32>
    %335 = vector.multi_reduction <maximumf>, %334, %cst_143 [1] : vector<64x64xf32> to vector<64xf32>
    %336 = vector.shape_cast %335 : vector<64xf32> to vector<64x1xf32>
    %337 = vector.broadcast %336 : vector<64x1xf32> to vector<64x64xf32>
    %338 = arith.subf %334, %337 : vector<64x64xf32>
    %339 = math.exp %338 : vector<64x64xf32>
    %cst_144 = arith.constant dense<0.000000e+00> : vector<64x32xf32>
    %340 = tpu.matmul %339, %333, %cst_144 {dimension_numbers = #tpu.dot_dimension_numbers<[1], [0], [0], [1], [0, 0, 1, 1], [], []>} : vector<64x64xf32>, vector<64x32xf32>, vector<64x32xf32> -> vector<64x32xf32>
    %cst_145 = arith.constant dense<0.000000e+00> : vector<64xf32>
    %341 = vector.multi_reduction <add>, %339, %cst_145 [1] : vector<64x64xf32> to vector<64xf32>
    %342 = vector.shape_cast %341 : vector<64xf32> to vector<64x1xf32>
    %343 = tpu.reciprocal %342 {approx = true} : vector<64x1xf32> -> vector<64x1xf32>
    %344 = vector.broadcast %343 : vector<64x1xf32> to vector<64x32xf32>
    %345 = arith.mulf %340, %344 : vector<64x32xf32>
    %346 = vector.extract_strided_slice %196 {offsets = [64, 0], sizes = [32, 128], strides = [1, 1]} : vector<128x128xf32> to vector<32x128xf32>
    %cst_146 = arith.constant dense<0.000000e+00> : vector<64x128xf32>
    %347 = tpu.matmul %345, %346, %cst_146 {dimension_numbers = #tpu.dot_dimension_numbers<[1], [0], [0], [1], [0, 0, 1, 1], [], []>} : vector<64x32xf32>, vector<32x128xf32>, vector<64x128xf32> -> vector<64x128xf32>
    %348 = arith.addf %330, %347 : vector<64x128xf32>
    %349 = vector.extract_strided_slice %205 {offsets = [64, 96], sizes = [64, 32], strides = [1, 1]} : vector<128x128xf32> to vector<64x32xf32>
    %350 = vector.extract_strided_slice %210 {offsets = [64, 96], sizes = [64, 32], strides = [1, 1]} : vector<128x128xf32> to vector<64x32xf32>
    %351 = vector.extract_strided_slice %215 {offsets = [64, 96], sizes = [64, 32], strides = [1, 1]} : vector<128x128xf32> to vector<64x32xf32>
    %cst_147 = arith.constant dense<0.000000e+00> : vector<64x64xf32>
    %352 = tpu.matmul %349, %350, %cst_147 {dimension_numbers = #tpu.dot_dimension_numbers<[1], [1], [0], [0], [0, 0, 1, 0], [], []>} : vector<64x32xf32>, vector<64x32xf32>, vector<64x64xf32> -> vector<64x64xf32>
    %cst_148 = arith.constant dense<0xFF800000> : vector<64xf32>
    %353 = vector.multi_reduction <maximumf>, %352, %cst_148 [1] : vector<64x64xf32> to vector<64xf32>
    %354 = vector.shape_cast %353 : vector<64xf32> to vector<64x1xf32>
    %355 = vector.broadcast %354 : vector<64x1xf32> to vector<64x64xf32>
    %356 = arith.subf %352, %355 : vector<64x64xf32>
    %357 = math.exp %356 : vector<64x64xf32>
    %cst_149 = arith.constant dense<0.000000e+00> : vector<64x32xf32>
    %358 = tpu.matmul %357, %351, %cst_149 {dimension_numbers = #tpu.dot_dimension_numbers<[1], [0], [0], [1], [0, 0, 1, 1], [], []>} : vector<64x64xf32>, vector<64x32xf32>, vector<64x32xf32> -> vector<64x32xf32>
    %cst_150 = arith.constant dense<0.000000e+00> : vector<64xf32>
    %359 = vector.multi_reduction <add>, %357, %cst_150 [1] : vector<64x64xf32> to vector<64xf32>
    %360 = vector.shape_cast %359 : vector<64xf32> to vector<64x1xf32>
    %361 = tpu.reciprocal %360 {approx = true} : vector<64x1xf32> -> vector<64x1xf32>
    %362 = vector.broadcast %361 : vector<64x1xf32> to vector<64x32xf32>
    %363 = arith.mulf %358, %362 : vector<64x32xf32>
    %364 = vector.extract_strided_slice %196 {offsets = [96, 0], sizes = [32, 128], strides = [1, 1]} : vector<128x128xf32> to vector<32x128xf32>
    %cst_151 = arith.constant dense<0.000000e+00> : vector<64x128xf32>
    %365 = tpu.matmul %363, %364, %cst_151 {dimension_numbers = #tpu.dot_dimension_numbers<[1], [0], [0], [1], [0, 0, 1, 1], [], []>} : vector<64x32xf32>, vector<32x128xf32>, vector<64x128xf32> -> vector<64x128xf32>
    %366 = arith.addf %348, %365 : vector<64x128xf32>
    %c64_152 = arith.constant 64 : index
    %c0_153 = arith.constant 0 : index
    %367 = vector.load %arg13[%c64_152, %c0_153] : memref<128x128xf32, #tpu.memory_space<vmem>>, vector<64x128xf32>
    tpu.vector_store %arg13[%c64_152, %c0_153], %366 {strides = array<i32>} : memref<128x128xf32, #tpu.memory_space<vmem>>, vector<64x128xf32>,
    %c0_154 = arith.constant 0 : index
    %c0_155 = arith.constant 0 : index
    %368 = vector.load %arg13[%c0_154, %c0_155] : memref<128x128xf32, #tpu.memory_space<vmem>>, vector<128x128xf32>
    %cst_156 = arith.constant dense<0.000000e+00> : vector<128x128xf32>
    %369 = tpu.matmul %368, %198, %cst_156 {dimension_numbers = #tpu.dot_dimension_numbers<[1], [0], [0], [1], [0, 0, 1, 1], [], []>} : vector<128x128xf32>, vector<128x128xf32>, vector<128x128xf32> -> vector<128x128xf32>
    %370 = arith.addf %369, %368 : vector<128x128xf32>
    %c0_157 = arith.constant 0 : index
    %c0_158 = arith.constant 0 : index
    %371 = vector.load %arg12[%c0_157, %c0_158] : memref<128x128xf32, #tpu.memory_space<vmem>>, vector<128x128xf32>
    tpu.vector_store %arg12[%c0_157, %c0_158], %370 {strides = array<i32>} : memref<128x128xf32, #tpu.memory_space<vmem>>, vector<128x128xf32>,
    return
  }
}

</mosaic_0001>

<llo_original>
// kernel: transformer_block_forward.1
$region0: #{transformer_block_forward.1}
  #allocation0 [shape = 'u32[]', space=smem, size = 0x4, offset = 0x4, fixed_abs, tag = 'smem constant byte address 0x4 - core index']
  #allocation1 [shape = 'u32[144,128]{1,0:T(1,128)}', space=vmem, size = 0x12000, scoped, tag = 'internal scratch']
  #allocation2 [shape = 'f32[128,128]{1,0:T(8,128)}', space=vmem, size = 0x10000, scoped, tag = 'scratch operand']
  %s0 = inlined_call_operand.hbm [shape: f32[128,128], index: 0, kind: input, shape index: {}]
  %s1 = inlined_call_operand.hbm [shape: f32[128,128], index: 1, kind: input, shape index: {}]
  %s2 = inlined_call_operand.vmem [shape: f32[1,128], index: 2, kind: input, shape index: {}]
  %s3 = inlined_call_operand.hbm [shape: f32[2,128,128], index: 3, kind: input, shape index: {}]
  %s4 = inlined_call_operand.hbm [shape: f32[2,128,128], index: 4, kind: input, shape index: {}]
  %s5 = inlined_call_operand.hbm [shape: f32[2,128,128], index: 5, kind: input, shape index: {}]
  %s6 = inlined_call_operand.vmem [shape: f32[2,1,128], index: 6, kind: input, shape index: {}]
  %s7 = inlined_call_operand.vmem [shape: f32[2,1,128], index: 7, kind: input, shape index: {}]
  %s8 = inlined_call_operand.vmem [shape: f32[2,1,128], index: 8, kind: input, shape index: {}]
  %s9 = inlined_call_operand.hbm [shape: f32[2,128,128], index: 9, kind: input, shape index: {}]
  %s10 = inlined_call_operand.vmem [shape: f32[2,1,128], index: 10, kind: input, shape index: {}]
  %s11 = inlined_call_operand.hbm [shape: f32[2,128,128], index: 11, kind: input, shape index: {}]
  %s12 = inlined_call_operand.hbm [shape: f32[128,128], index: 12, kind: output, shape index: {}]
  %s13 = sld [smem:[#allocation0]]
  $region86: #{transformer_block_forward.1} parent=0
    _
  %s15 = ssub.s32 1, %s13
  %s16 = scalar_select 0, %s15, %s13
  $region1: #{transformer_block_forward.1} parent=0
    #allocation3 [shape = 'u8[65536]{0}', space=vmem, size = 0x10000, scoped, tag = 'input window, operand 0, single buffered']
    #allocation4 [shape = 's32[1]{0}', space=sflag, size = 0x4, scoped, tag = 'scoped memory for transformer_block_forward.1']
    #allocation5 [shape = 's32[1]{0}', space=sflag, size = 0x4, scoped, tag = 'scoped memory for transformer_block_forward.1']
    #allocation6 [shape = 'u8[65536]{0}', space=vmem, size = 0x10000, scoped, tag = 'input window, operand 1, single buffered']
    #allocation7 [shape = 's32[1]{0}', space=sflag, size = 0x4, scoped, tag = 'scoped memory for transformer_block_forward.1']
    #allocation8 [shape = 'u8[131072]{0}', space=vmem, size = 0x20000, scoped, tag = 'input window, operand 3, single buffered']
    #allocation9 [shape = 'u8[131072]{0}', space=vmem, size = 0x20000, scoped, tag = 'input window, operand 4, single buffered']
    #allocation10 [shape = 's32[1]{0}', space=sflag, size = 0x4, scoped, tag = 'scoped memory for transformer_block_forward.1']
    #allocation11 [shape = 'u8[131072]{0}', space=vmem, size = 0x20000, scoped, tag = 'input window, operand 5, single buffered']
    #allocation12 [shape = 'u8[131072]{0}', space=vmem, size = 0x20000, scoped, tag = 'input window, operand 9, single buffered']
    #allocation13 [shape = 's32[1]{0}', space=sflag, size = 0x4, scoped, tag = 'scoped memory for transformer_block_forward.1']
    #allocation14 [shape = 'u8[131072]{0}', space=vmem, size = 0x20000, scoped, tag = 'input window, operand 11, single buffered']
    #allocation15 [shape = 'u8[65536]{0}', space=vmem, size = 0x10000, scoped, tag = 'output window, operand 0, single buffered']
    %17 = vsyncpa [#allocation4], 0
    %18 = vsyncpa [#allocation7], 0
    %19 = vsyncpa [#allocation10], 0
    %20 = vsyncpa [#allocation13], 0
    %21 = vsyncpa [#allocation5], 0
    // Predicated region
    $region2: #{transformer_block_forward.1} parent=1 // pred_check
      _
    $region3: #{transformer_block_forward.1} parent=1 // pred_check_branch
      %23 = sbr.rel (0) target = $region5
    $region4: #{transformer_block_forward.1} parent=1 // pred_region
      %s25 = ssub.s32 2048, 2048
      %26 = vsyncadd [#allocation4], %s25
      %s27 = sshll.u32 [#allocation3], 4
      %s28 = int_to_ptr.vmem [resolvable:$true] %s27
      %33 = dma.hbm_to_vmem [thread:$0]  %s0, 2048, %s28, [#allocation4], 128, 128, 8
    $region5: #{transformer_block_forward.1} parent=1 // pred_fallthru
      _
    // Predicated region
    $region6: #{transformer_block_forward.1} parent=1 // pred_check
      _
    $region7: #{transformer_block_forward.1} parent=1 // pred_check_branch
      %35 = sbr.rel (0) target = $region9
    $region8: #{transformer_block_forward.1} parent=1 // pred_region
      %s37 = ssub.s32 2048, 2048
      %38 = vsyncadd [#allocation7], %s37
      %s39 = sshll.u32 [#allocation6], 4
      %s40 = int_to_ptr.vmem [resolvable:$true] %s39
      %45 = dma.hbm_to_vmem [thread:$0]  %s1, 2048, %s40, [#allocation7], 128, 128, 8
    $region9: #{transformer_block_forward.1} parent=1 // pred_fallthru
      _
    // Predicated region
    $region10: #{transformer_block_forward.1} parent=1 // pred_check
      _
    $region11: #{transformer_block_forward.1} parent=1 // pred_check_branch
      %47 = sbr.rel (0) target = $region13
    $region12: #{transformer_block_forward.1} parent=1 // pred_region
      _
    $region13: #{transformer_block_forward.1} parent=1 // pred_fallthru
      _
    // Predicated region
    $region14: #{transformer_block_forward.1} parent=1 // pred_check
      _
    $region15: #{transformer_block_forward.1} parent=1 // pred_check_branch
      %49 = sbr.rel (0) target = $region17
    $region16: #{transformer_block_forward.1} parent=1 // pred_region
      %s51 = ssub.s32 4096, 4096
      %52 = vsyncadd [#allocation7], %s51
      %s53 = sshll.u32 [#allocation8], 4
      %s54 = int_to_ptr.vmem [resolvable:$true] %s53
      %59 = dma.hbm_to_vmem [thread:$0]  %s3, 4096, %s54, [#allocation7], 128, 128, 8
    $region17: #{transformer_block_forward.1} parent=1 // pred_fallthru
      _
    // Predicated region
    $region18: #{transformer_block_forward.1} parent=1 // pred_check
      _
    $region19: #{transformer_block_forward.1} parent=1 // pred_check_branch
      %61 = sbr.rel (0) target = $region21
    $region20: #{transformer_block_forward.1} parent=1 // pred_region
      %s63 = ssub.s32 4096, 4096
      %64 = vsyncadd [#allocation10], %s63
      %s65 = sshll.u32 [#allocation9], 4
      %s66 = int_to_ptr.vmem [resolvable:$true] %s65
      %71 = dma.hbm_to_vmem [thread:$0]  %s4, 4096, %s66, [#allocation10], 128, 128, 8
    $region21: #{transformer_block_forward.1} parent=1 // pred_fallthru
      _
    // Predicated region
    $region22: #{transformer_block_forward.1} parent=1 // pred_check
      _
    $region23: #{transformer_block_forward.1} parent=1 // pred_check_branch
      %73 = sbr.rel (0) target = $region25
    $region24: #{transformer_block_forward.1} parent=1 // pred_region
      %s75 = ssub.s32 4096, 4096
      %76 = vsyncadd [#allocation10], %s75
      %s77 = sshll.u32 [#allocation11], 4
      %s78 = int_to_ptr.vmem [resolvable:$true] %s77
      %83 = dma.hbm_to_vmem [thread:$0]  %s5, 4096, %s78, [#allocation10], 128, 128, 8
    $region25: #{transformer_block_forward.1} parent=1 // pred_fallthru
      _
    // Predicated region
    $region26: #{transformer_block_forward.1} parent=1 // pred_check
      _
    $region27: #{transformer_block_forward.1} parent=1 // pred_check_branch
      %85 = sbr.rel (0) target = $region29
    $region28: #{transformer_block_forward.1} parent=1 // pred_region
      _
    $region29: #{transformer_block_forward.1} parent=1 // pred_fallthru
      _
    // Predicated region
    $region30: #{transformer_block_forward.1} parent=1 // pred_check
      _
    $region31: #{transformer_block_forward.1} parent=1 // pred_check_branch
      %87 = sbr.rel (0) target = $region33
    $region32: #{transformer_block_forward.1} parent=1 // pred_region
      _
    $region33: #{transformer_block_forward.1} parent=1 // pred_fallthru
      _
    // Predicated region
    $region34: #{transformer_block_forward.1} parent=1 // pred_check
      _
    $region35: #{transformer_block_forward.1} parent=1 // pred_check_branch
      %89 = sbr.rel (0) target = $region37
    $region36: #{transformer_block_forward.1} parent=1 // pred_region
      _
    $region37: #{transformer_block_forward.1} parent=1 // pred_fallthru
      _
    // Predicated region
    $region38: #{transformer_block_forward.1} parent=1 // pred_check
      _
    $region39: #{transformer_block_forward.1} parent=1 // pred_check_branch
      %91 = sbr.rel (0) target = $region41
    $region40: #{transformer_block_forward.1} parent=1 // pred_region
      %s93 = ssub.s32 4096, 4096
      %94 = vsyncadd [#allocation13], %s93
      %s95 = sshll.u32 [#allocation12], 4
      %s96 = int_to_ptr.vmem [resolvable:$true] %s95
      %101 = dma.hbm_to_vmem [thread:$0]  %s9, 4096, %s96, [#allocation13], 128, 128, 8
    $region41: #{transformer_block_forward.1} parent=1 // pred_fallthru
      _
    // Predicated region
    $region42: #{transformer_block_forward.1} parent=1 // pred_check
      _
    $region43: #{transformer_block_forward.1} parent=1 // pred_check_branch
      %103 = sbr.rel (0) target = $region45
    $region44: #{transformer_block_forward.1} parent=1 // pred_region
      _
    $region45: #{transformer_block_forward.1} parent=1 // pred_fallthru
      _
    // Predicated region
    $region46: #{transformer_block_forward.1} parent=1 // pred_check
      _
    $region47: #{transformer_block_forward.1} parent=1 // pred_check_branch
      %105 = sbr.rel (0) target = $region49
    $region48: #{transformer_block_forward.1} parent=1 // pred_region
      %s107 = ssub.s32 4096, 4096
      %108 = vsyncadd [#allocation13], %s107
      %s109 = sshll.u32 [#allocation14], 4
      %s110 = int_to_ptr.vmem [resolvable:$true] %s109
      %115 = dma.hbm_to_vmem [thread:$0]  %s11, 4096, %s110, [#allocation13], 128, 128, 8
    $region49: #{transformer_block_forward.1} parent=1 // pred_fallthru
      _
    // Predicated region
    $region50: #{transformer_block_forward.1} parent=1 // pred_check
      _
    $region51: #{transformer_block_forward.1} parent=1 // pred_check_branch
      %117 = sbr.rel (0) target = $region53
    $region52: #{transformer_block_forward.1} parent=1 // pred_region
      %118 = dma.done [#allocation4], 2048
    $region53: #{transformer_block_forward.1} parent=1 // pred_fallthru
      _
    // Predicated region
    $region54: #{transformer_block_forward.1} parent=1 // pred_check
      _
    $region55: #{transformer_block_forward.1} parent=1 // pred_check_branch
      %120 = sbr.rel (0) target = $region57
    $region56: #{transformer_block_forward.1} parent=1 // pred_region
      %121 = dma.done [#allocation7], 2048
    $region57: #{transformer_block_forward.1} parent=1 // pred_fallthru
      _
    // Predicated region
    $region58: #{transformer_block_forward.1} parent=1 // pred_check
      _
    $region59: #{transformer_block_forward.1} parent=1 // pred_check_branch
      %123 = sbr.rel (0) target = $region61
    $region60: #{transformer_block_forward.1} parent=1 // pred_region
      %124 = dma.done [#allocation7], 4096
    $region61: #{transformer_block_forward.1} parent=1 // pred_fallthru
      _
    // Predicated region
    $region62: #{transformer_block_forward.1} parent=1 // pred_check
      _
    $region63: #{transformer_block_forward.1} parent=1 // pred_check_branch
      %126 = sbr.rel (0) target = $region65
    $region64: #{transformer_block_forward.1} parent=1 // pred_region
      %127 = dma.done [#allocation10], 4096
    $region65: #{transformer_block_forward.1} parent=1 // pred_fallthru
      _
    // Predicated region
    $region66: #{transformer_block_forward.1} parent=1 // pred_check
      _
    $region67: #{transformer_block_forward.1} parent=1 // pred_check_branch
      %129 = sbr.rel (0) target = $region69
    $region68: #{transformer_block_forward.1} parent=1 // pred_region
      %130 = dma.done [#allocation10], 4096
    $region69: #{transformer_block_forward.1} parent=1 // pred_fallthru
      _
    // Predicated region
    $region70: #{transformer_block_forward.1} parent=1 // pred_check
      _
    $region71: #{transformer_block_forward.1} parent=1 // pred_check_branch
      %132 = sbr.rel (0) target = $region73
    $region72: #{transformer_block_forward.1} parent=1 // pred_region
      %133 = dma.done [#allocation13], 4096
    $region73: #{transformer_block_forward.1} parent=1 // pred_fallthru
      _
    // Predicated region
    $region74: #{transformer_block_forward.1} parent=1 // pred_check
      _
    $region75: #{transformer_block_forward.1} parent=1 // pred_check_branch
      %135 = sbr.rel (0) target = $region77
    $region76: #{transformer_block_forward.1} parent=1 // pred_region
      %136 = dma.done [#allocation13], 4096
    $region77: #{transformer_block_forward.1} parent=1 // pred_fallthru
      _
    %v137 = vld [vmem:[#allocation3] sm:$0xff]
    %v138 = vld [vmem:[#allocation3 + $0x8] sm:$0xff]
    %v139 = vld [vmem:[#allocation3 + $0x10] sm:$0xff]
    %v140 = vld [vmem:[#allocation3 + $0x18] sm:$0xff]
    %v141 = vld [vmem:[#allocation3 + $0x20] sm:$0xff]
    %v142 = vld [vmem:[#allocation3 + $0x28] sm:$0xff]
    %v143 = vld [vmem:[#allocation3 + $0x30] sm:$0xff]
    %v144 = vld [vmem:[#allocation3 + $0x38] sm:$0xff]
    %v145 = vld [vmem:[#allocation3 + $0x40] sm:$0xff]
    %v146 = vld [vmem:[#allocation3 + $0x48] sm:$0xff]
    %v147 = vld [vmem:[#allocation3 + $0x50] sm:$0xff]
    %v148 = vld [vmem:[#allocation3 + $0x58] sm:$0xff]
    %v149 = vld [vmem:[#allocation3 + $0x60] sm:$0xff]
    %v150 = vld [vmem:[#allocation3 + $0x68] sm:$0xff]
    %v151 = vld [vmem:[#allocation3 + $0x70] sm:$0xff]
    %v152 = vld [vmem:[#allocation3 + $0x78] sm:$0xff]
    %v153 = vld [vmem:[#allocation6] sm:$0xff]
    %v154 = vld [vmem:[#allocation6 + $0x8] sm:$0xff]
    %v155 = vld [vmem:[#allocation6 + $0x10] sm:$0xff]
    %v156 = vld [vmem:[#allocation6 + $0x18] sm:$0xff]
    %v157 = vld [vmem:[#allocation6 + $0x20] sm:$0xff]
    %v158 = vld [vmem:[#allocation6 + $0x28] sm:$0xff]
    %v159 = vld [vmem:[#allocation6 + $0x30] sm:$0xff]
    %v160 = vld [vmem:[#allocation6 + $0x38] sm:$0xff]
    %v161 = vld [vmem:[#allocation6 + $0x40] sm:$0xff]
    %v162 = vld [vmem:[#allocation6 + $0x48] sm:$0xff]
    %v163 = vld [vmem:[#allocation6 + $0x50] sm:$0xff]
    %v164 = vld [vmem:[#allocation6 + $0x58] sm:$0xff]
    %v165 = vld [vmem:[#allocation6 + $0x60] sm:$0xff]
    %v166 = vld [vmem:[#allocation6 + $0x68] sm:$0xff]
    %v167 = vld [vmem:[#allocation6 + $0x70] sm:$0xff]
    %v168 = vld [vmem:[#allocation6 + $0x78] sm:$0xff]
    %v169 = vld [vmem:[%s2] sm:$0x1]
    %v171 = vlaneseq
    %v172 = vshrl.u32 %v171, 7
    %v173 = vsub.s32 0, %v172
    %v174 = vrot.slane %v169, %v173
    %176 = vmatprep.subr.mxu0 0.0
    %177 = vmatpush1.msra.mxu0 %v153
    %178 = vmatprep.subr.mxu0 0.0
    %179 = vmatpush1.msra.mxu0 %v154
    %180 = vmatprep.subr.mxu0 0.0
    %181 = vmatpush1.msra.mxu0 %v155
    %182 = vmatprep.subr.mxu0 0.0
    %183 = vmatpush1.msra.mxu0 %v156
    %184 = vmatprep.subr.mxu0 0.0
    %185 = vmatpush1.msra.mxu0 %v157
    %186 = vmatprep.subr.mxu0 0.0
    %187 = vmatpush1.msra.mxu0 %v158
    %188 = vmatprep.subr.mxu0 0.0
    %189 = vmatpush1.msra.mxu0 %v159
    %190 = vmatprep.subr.mxu0 0.0
    %191 = vmatpush1.msra.mxu0 %v160
    %192 = vmatprep.subr.mxu0 0.0
    %193 = vmatpush1.msra.mxu0 %v161
    %194 = vmatprep.subr.mxu0 0.0
    %195 = vmatpush1.msra.mxu0 %v162
    %196 = vmatprep.subr.mxu0 0.0
    %197 = vmatpush1.msra.mxu0 %v163
    %198 = vmatprep.subr.mxu0 0.0
    %199 = vmatpush1.msra.mxu0 %v164
    %200 = vmatprep.subr.mxu0 0.0
    %201 = vmatpush1.msra.mxu0 %v165
    %202 = vmatprep.subr.mxu0 0.0
    %203 = vmatpush1.msra.mxu0 %v166
    %204 = vmatprep.subr.mxu0 0.0
    %205 = vmatpush1.msra.mxu0 %v167
    %206 = vmatprep.subr.mxu0 0.0
    %207 = vmatpush1.msra.mxu0 %v168
    %208 = vmatprep.subr.mxu0 0.0
    %209 = vmatpush1.msra.mxu0 0.0
    %210 = vmatprep.subr.mxu0 0.0
    %211 = vmatpush1.msra.mxu0 0.0
    %212 = vmatprep.subr.mxu0 0.0
    %213 = vmatpush1.msra.mxu0 0.0
    %214 = vmatprep.subr.mxu0 0.0
    %215 = vmatpush1.msra.mxu0 0.0
    %216 = vmatprep.subr.mxu0 0.0
    %217 = vmatpush1.msra.mxu0 0.0
    %218 = vmatprep.subr.mxu0 0.0
    %219 = vmatpush1.msra.mxu0 0.0
    %220 = vmatprep.subr.mxu0 0.0
    %221 = vmatpush1.msra.mxu0 0.0
    %222 = vmatprep.subr.mxu0 0.0
    %223 = vmatpush1.msra.mxu0 0.0
    %224 = vmatprep.subr.mxu0 0.0
    %225 = vmatpush1.msra.mxu0 0.0
    %226 = vmatprep.subr.mxu0 0.0
    %227 = vmatpush1.msra.mxu0 0.0
    %228 = vmatprep.subr.mxu0 0.0
    %229 = vmatpush1.msra.mxu0 0.0
    %230 = vmatprep.subr.mxu0 0.0
    %231 = vmatpush1.msra.mxu0 0.0
    %232 = vmatprep.subr.mxu0 0.0
    %233 = vmatpush1.msra.mxu0 0.0
    %234 = vmatprep.subr.mxu0 0.0
    %235 = vmatpush1.msra.mxu0 0.0
    %236 = vmatprep.subr.mxu0 0.0
    %237 = vmatpush1.msra.mxu0 0.0
    %238 = vmatprep.subr.mxu0 0.0
    %239 = vmatpush1.msra.mxu0 0.0
    %240 = vmatprep.mubr.f32.mxu0 0.0
    %241 = vmatmul.mubr.f32.gmra.mrb[0].mxu0 %v137
    %v242 = vpop.f32.mrb[0].mxu0
    %v243 = vadd.f32 %v174, %v242
    %v244 = vpop.f32.mrb[0].mxu0
    %245 = vmatprep.mubr.f32.mxu0 0.0
    %246 = vmatmul.mubr.f32.gmra.mrb[0].mxu0 %v138
    %v247 = vpop.f32.mrb[0].mxu0
    %v248 = vadd.f32 %v174, %v247
    %v249 = vpop.f32.mrb[0].mxu0
    %250 = vmatprep.mubr.f32.mxu0 0.0
    %251 = vmatmul.mubr.f32.gmra.mrb[0].mxu0 %v139
    %v252 = vpop.f32.mrb[0].mxu0
    %v253 = vadd.f32 %v174, %v252
    %v254 = vpop.f32.mrb[0].mxu0
    %255 = vmatprep.mubr.f32.mxu0 0.0
    %256 = vmatmul.mubr.f32.gmra.mrb[0].mxu0 %v140
    %v257 = vpop.f32.mrb[0].mxu0
    %v258 = vadd.f32 %v174, %v257
    %v259 = vpop.f32.mrb[0].mxu0
    %260 = vmatprep.mubr.f32.mxu0 0.0
    %261 = vmatmul.mubr.f32.gmra.mrb[0].mxu0 %v141
    %v262 = vpop.f32.mrb[0].mxu0
    %v263 = vadd.f32 %v174, %v262
    %v264 = vpop.f32.mrb[0].mxu0
    %265 = vmatprep.mubr.f32.mxu0 0.0
    %266 = vmatmul.mubr.f32.gmra.mrb[0].mxu0 %v142
    %v267 = vpop.f32.mrb[0].mxu0
    %v268 = vadd.f32 %v174, %v267
    %v269 = vpop.f32.mrb[0].mxu0
    %270 = vmatprep.mubr.f32.mxu0 0.0
    %271 = vmatmul.mubr.f32.gmra.mrb[0].mxu0 %v143
    %v272 = vpop.f32.mrb[0].mxu0
    %v273 = vadd.f32 %v174, %v272
    %v274 = vpop.f32.mrb[0].mxu0
    %275 = vmatprep.mubr.f32.mxu0 0.0
    %276 = vmatmul.mubr.f32.gmra.mrb[0].mxu0 %v144
    %v277 = vpop.f32.mrb[0].mxu0
    %v278 = vadd.f32 %v174, %v277
    %v279 = vpop.f32.mrb[0].mxu0
    %280 = vmatprep.mubr.f32.mxu0 0.0
    %281 = vmatmul.mubr.f32.gmra.mrb[0].mxu0 %v145
    %v282 = vpop.f32.mrb[0].mxu0
    %v283 = vadd.f32 %v174, %v282
    %v284 = vpop.f32.mrb[0].mxu0
    %285 = vmatprep.mubr.f32.mxu0 0.0
    %286 = vmatmul.mubr.f32.gmra.mrb[0].mxu0 %v146
    %v287 = vpop.f32.mrb[0].mxu0
    %v288 = vadd.f32 %v174, %v287
    %v289 = vpop.f32.mrb[0].mxu0
    %290 = vmatprep.mubr.f32.mxu0 0.0
    %291 = vmatmul.mubr.f32.gmra.mrb[0].mxu0 %v147
    %v292 = vpop.f32.mrb[0].mxu0
    %v293 = vadd.f32 %v174, %v292
    %v294 = vpop.f32.mrb[0].mxu0
    %295 = vmatprep.mubr.f32.mxu0 0.0
    %296 = vmatmul.mubr.f32.gmra.mrb[0].mxu0 %v148
    %v297 = vpop.f32.mrb[0].mxu0
    %v298 = vadd.f32 %v174, %v297
    %v299 = vpop.f32.mrb[0].mxu0
    %300 = vmatprep.mubr.f32.mxu0 0.0
    %301 = vmatmul.mubr.f32.gmra.mrb[0].mxu0 %v149
    %v302 = vpop.f32.mrb[0].mxu0
    %v303 = vadd.f32 %v174, %v302
    %v304 = vpop.f32.mrb[0].mxu0
    %305 = vmatprep.mubr.f32.mxu0 0.0
    %306 = vmatmul.mubr.f32.gmra.mrb[0].mxu0 %v150
    %v307 = vpop.f32.mrb[0].mxu0
    %v308 = vadd.f32 %v174, %v307
    %v309 = vpop.f32.mrb[0].mxu0
    %310 = vmatprep.mubr.f32.mxu0 0.0
    %311 = vmatmul.mubr.f32.gmra.mrb[0].mxu0 %v151
    %v312 = vpop.f32.mrb[0].mxu0
    %v313 = vadd.f32 %v174, %v312
    %v314 = vpop.f32.mrb[0].mxu0
    %315 = vmatprep.mubr.f32.mxu0 0.0
    %316 = vmatmul.mubr.f32.gmra.mrb[0].mxu0 %v152
    %v317 = vpop.f32.mrb[0].mxu0
    %v318 = vadd.f32 %v174, %v317
    %v319 = vpop.f32.mrb[0].mxu0
    %320 = vdwg.mxu0
    %v321 = vadd.f32 %v137, %v243
    %v322 = vadd.f32 %v138, %v248
    %v323 = vadd.f32 %v139, %v253
    %v324 = vadd.f32 %v140, %v258
    %v325 = vadd.f32 %v141, %v263
    %v326 = vadd.f32 %v142, %v268
    %v327 = vadd.f32 %v143, %v273
    %v328 = vadd.f32 %v144, %v278
    %v329 = vadd.f32 %v145, %v283
    %v330 = vadd.f32 %v146, %v288
    %v331 = vadd.f32 %v147, %v293
    %v332 = vadd.f32 %v148, %v298
    %v333 = vadd.f32 %v149, %v303
    %v334 = vadd.f32 %v150, %v308
    %v335 = vadd.f32 %v151, %v313
    %v336 = vadd.f32 %v152, %v318
    %v337 = vld [vmem:[#allocation8] sm:$0xff]
    %v338 = vld [vmem:[#allocation8 + $0x8] sm:$0xff]
    %v339 = vld [vmem:[#allocation8 + $0x10] sm:$0xff]
    %v340 = vld [vmem:[#allocation8 + $0x18] sm:$0xff]
    %v341 = vld [vmem:[#allocation8 + $0x20] sm:$0xff]
    %v342 = vld [vmem:[#allocation8 + $0x28] sm:$0xff]
    %v343 = vld [vmem:[#allocation8 + $0x30] sm:$0xff]
    %v344 = vld [vmem:[#allocation8 + $0x38] sm:$0xff]
    %v345 = vld [vmem:[#allocation8 + $0x40] sm:$0xff]
    %v346 = vld [vmem:[#allocation8 + $0x48] sm:$0xff]
    %v347 = vld [vmem:[#allocation8 + $0x50] sm:$0xff]
    %v348 = vld [vmem:[#allocation8 + $0x58] sm:$0xff]
    %v349 = vld [vmem:[#allocation8 + $0x60] sm:$0xff]
    %v350 = vld [vmem:[#allocation8 + $0x68] sm:$0xff]
    %v351 = vld [vmem:[#allocation8 + $0x70] sm:$0xff]
    %v352 = vld [vmem:[#allocation8 + $0x78] sm:$0xff]
    %v353 = vld [vmem:[#allocation9] sm:$0xff]
    %v354 = vld [vmem:[#allocation9 + $0x8] sm:$0xff]
    %v355 = vld [vmem:[#allocation9 + $0x10] sm:$0xff]
    %v356 = vld [vmem:[#allocation9 + $0x18] sm:$0xff]
    %v357 = vld [vmem:[#allocation9 + $0x20] sm:$0xff]
    %v358 = vld [vmem:[#allocation9 + $0x28] sm:$0xff]
    %v359 = vld [vmem:[#allocation9 + $0x30] sm:$0xff]
    %v360 = vld [vmem:[#allocation9 + $0x38] sm:$0xff]
    %v361 = vld [vmem:[#allocation9 + $0x40] sm:$0xff]
    %v362 = vld [vmem:[#allocation9 + $0x48] sm:$0xff]
    %v363 = vld [vmem:[#allocation9 + $0x50] sm:$0xff]
    %v364 = vld [vmem:[#allocation9 + $0x58] sm:$0xff]
    %v365 = vld [vmem:[#allocation9 + $0x60] sm:$0xff]
    %v366 = vld [vmem:[#allocation9 + $0x68] sm:$0xff]
    %v367 = vld [vmem:[#allocation9 + $0x70] sm:$0xff]
    %v368 = vld [vmem:[#allocation9 + $0x78] sm:$0xff]
    %v369 = vld [vmem:[#allocation11] sm:$0xff]
    %v370 = vld [vmem:[#allocation11 + $0x8] sm:$0xff]
    %v371 = vld [vmem:[#allocation11 + $0x10] sm:$0xff]
    %v372 = vld [vmem:[#allocation11 + $0x18] sm:$0xff]
    %v373 = vld [vmem:[#allocation11 + $0x20] sm:$0xff]
    %v374 = vld [vmem:[#allocation11 + $0x28] sm:$0xff]
    %v375 = vld [vmem:[#allocation11 + $0x30] sm:$0xff]
    %v376 = vld [vmem:[#allocation11 + $0x38] sm:$0xff]
    %v377 = vld [vmem:[#allocation11 + $0x40] sm:$0xff]
    %v378 = vld [vmem:[#allocation11 + $0x48] sm:$0xff]
    %v379 = vld [vmem:[#allocation11 + $0x50] sm:$0xff]
    %v380 = vld [vmem:[#allocation11 + $0x58] sm:$0xff]
    %v381 = vld [vmem:[#allocation11 + $0x60] sm:$0xff]
    %v382 = vld [vmem:[#allocation11 + $0x68] sm:$0xff]
    %v383 = vld [vmem:[#allocation11 + $0x70] sm:$0xff]
    %v384 = vld [vmem:[#allocation11 + $0x78] sm:$0xff]
    %v385 = vld [vmem:[#allocation12] sm:$0xff]
    %v386 = vld [vmem:[#allocation12 + $0x8] sm:$0xff]
    %v387 = vld [vmem:[#allocation12 + $0x10] sm:$0xff]
    %v388 = vld [vmem:[#allocation12 + $0x18] sm:$0xff]
    %v389 = vld [vmem:[#allocation12 + $0x20] sm:$0xff]
    %v390 = vld [vmem:[#allocation12 + $0x28] sm:$0xff]
    %v391 = vld [vmem:[#allocation12 + $0x30] sm:$0xff]
    %v392 = vld [vmem:[#allocation12 + $0x38] sm:$0xff]
    %v393 = vld [vmem:[#allocation12 + $0x40] sm:$0xff]
    %v394 = vld [vmem:[#allocation12 + $0x48] sm:$0xff]
    %v395 = vld [vmem:[#allocation12 + $0x50] sm:$0xff]
    %v396 = vld [vmem:[#allocation12 + $0x58] sm:$0xff]
    %v397 = vld [vmem:[#allocation12 + $0x60] sm:$0xff]
    %v398 = vld [vmem:[#allocation12 + $0x68] sm:$0xff]
    %v399 = vld [vmem:[#allocation12 + $0x70] sm:$0xff]
    %v400 = vld [vmem:[#allocation12 + $0x78] sm:$0xff]
    %v401 = vld [vmem:[#allocation14] sm:$0xff]
    %v402 = vld [vmem:[#allocation14 + $0x8] sm:$0xff]
    %v403 = vld [vmem:[#allocation14 + $0x10] sm:$0xff]
    %v404 = vld [vmem:[#allocation14 + $0x18] sm:$0xff]
    %v405 = vld [vmem:[#allocation14 + $0x20] sm:$0xff]
    %v406 = vld [vmem:[#allocation14 + $0x28] sm:$0xff]
    %v407 = vld [vmem:[#allocation14 + $0x30] sm:$0xff]
    %v408 = vld [vmem:[#allocation14 + $0x38] sm:$0xff]
    %v409 = vld [vmem:[#allocation14 + $0x40] sm:$0xff]
    %v410 = vld [vmem:[#allocation14 + $0x48] sm:$0xff]
    %v411 = vld [vmem:[#allocation14 + $0x50] sm:$0xff]
    %v412 = vld [vmem:[#allocation14 + $0x58] sm:$0xff]
    %v413 = vld [vmem:[#allocation14 + $0x60] sm:$0xff]
    %v414 = vld [vmem:[#allocation14 + $0x68] sm:$0xff]
    %v415 = vld [vmem:[#allocation14 + $0x70] sm:$0xff]
    %v416 = vld [vmem:[#allocation14 + $0x78] sm:$0xff]
    %v417 = vld [vmem:[%s10] sm:$0x1]
    %v418 = vld [vmem:[%s6] sm:$0x1]
    %v420 = vlaneseq
    %v421 = vshrl.u32 %v420, 7
    %v422 = vsub.s32 0, %v421
    %v423 = vrot.slane %v418, %v422
    %425 = vmatprep.subr.mxu0 0.0
    %426 = vmatpush1.msra.mxu0 %v337
    %427 = vmatprep.subr.mxu0 0.0
    %428 = vmatpush1.msra.mxu0 %v338
    %429 = vmatprep.subr.mxu0 0.0
    %430 = vmatpush1.msra.mxu0 %v339
    %431 = vmatprep.subr.mxu0 0.0
    %432 = vmatpush1.msra.mxu0 %v340
    %433 = vmatprep.subr.mxu0 0.0
    %434 = vmatpush1.msra.mxu0 %v341
    %435 = vmatprep.subr.mxu0 0.0
    %436 = vmatpush1.msra.mxu0 %v342
    %437 = vmatprep.subr.mxu0 0.0
    %438 = vmatpush1.msra.mxu0 %v343
    %439 = vmatprep.subr.mxu0 0.0
    %440 = vmatpush1.msra.mxu0 %v344
    %441 = vmatprep.subr.mxu0 0.0
    %442 = vmatpush1.msra.mxu0 %v345
    %443 = vmatprep.subr.mxu0 0.0
    %444 = vmatpush1.msra.mxu0 %v346
    %445 = vmatprep.subr.mxu0 0.0
    %446 = vmatpush1.msra.mxu0 %v347
    %447 = vmatprep.subr.mxu0 0.0
    %448 = vmatpush1.msra.mxu0 %v348
    %449 = vmatprep.subr.mxu0 0.0
    %450 = vmatpush1.msra.mxu0 %v349
    %451 = vmatprep.subr.mxu0 0.0
    %452 = vmatpush1.msra.mxu0 %v350
    %453 = vmatprep.subr.mxu0 0.0
    %454 = vmatpush1.msra.mxu0 %v351
    %455 = vmatprep.subr.mxu0 0.0
    %456 = vmatpush1.msra.mxu0 %v352
    %457 = vmatprep.subr.mxu0 0.0
    %458 = vmatpush1.msra.mxu0 0.0
    %459 = vmatprep.subr.mxu0 0.0
    %460 = vmatpush1.msra.mxu0 0.0
    %461 = vmatprep.subr.mxu0 0.0
    %462 = vmatpush1.msra.mxu0 0.0
    %463 = vmatprep.subr.mxu0 0.0
    %464 = vmatpush1.msra.mxu0 0.0
    %465 = vmatprep.subr.mxu0 0.0
    %466 = vmatpush1.msra.mxu0 0.0
    %467 = vmatprep.subr.mxu0 0.0
    %468 = vmatpush1.msra.mxu0 0.0
    %469 = vmatprep.subr.mxu0 0.0
    %470 = vmatpush1.msra.mxu0 0.0
    %471 = vmatprep.subr.mxu0 0.0
    %472 = vmatpush1.msra.mxu0 0.0
    %473 = vmatprep.subr.mxu0 0.0
    %474 = vmatpush1.msra.mxu0 0.0
    %475 = vmatprep.subr.mxu0 0.0
    %476 = vmatpush1.msra.mxu0 0.0
    %477 = vmatprep.subr.mxu0 0.0
    %478 = vmatpush1.msra.mxu0 0.0
    %479 = vmatprep.subr.mxu0 0.0
    %480 = vmatpush1.msra.mxu0 0.0
    %481 = vmatprep.subr.mxu0 0.0
    %482 = vmatpush1.msra.mxu0 0.0
    %483 = vmatprep.subr.mxu0 0.0
    %484 = vmatpush1.msra.mxu0 0.0
    %485 = vmatprep.subr.mxu0 0.0
    %486 = vmatpush1.msra.mxu0 0.0
    %487 = vmatprep.subr.mxu0 0.0
    %488 = vmatpush1.msra.mxu0 0.0
    %489 = vmatprep.mubr.f32.mxu0 0.0
    %490 = vmatmul.mubr.f32.gmra.mrb[0].mxu0 %v321
    %v491 = vpop.f32.mrb[0].mxu0
    %v492 = vadd.f32 %v423, %v491
    %v493 = vpop.f32.mrb[0].mxu0
    %494 = vmatprep.mubr.f32.mxu0 0.0
    %495 = vmatmul.mubr.f32.gmra.mrb[0].mxu0 %v322
    %v496 = vpop.f32.mrb[0].mxu0
    %v497 = vadd.f32 %v423, %v496
    %v498 = vpop.f32.mrb[0].mxu0
    %499 = vmatprep.mubr.f32.mxu0 0.0
    %500 = vmatmul.mubr.f32.gmra.mrb[0].mxu0 %v323
    %v501 = vpop.f32.mrb[0].mxu0
    %v502 = vadd.f32 %v423, %v501
    %v503 = vpop.f32.mrb[0].mxu0
    %504 = vmatprep.mubr.f32.mxu0 0.0
    %505 = vmatmul.mubr.f32.gmra.mrb[0].mxu0 %v324
    %v506 = vpop.f32.mrb[0].mxu0
    %v507 = vadd.f32 %v423, %v506
    %v508 = vpop.f32.mrb[0].mxu0
    %509 = vmatprep.mubr.f32.mxu0 0.0
    %510 = vmatmul.mubr.f32.gmra.mrb[0].mxu0 %v325
    %v511 = vpop.f32.mrb[0].mxu0
    %v512 = vadd.f32 %v423, %v511
    %v513 = vpop.f32.mrb[0].mxu0
    %514 = vmatprep.mubr.f32.mxu0 0.0
    %515 = vmatmul.mubr.f32.gmra.mrb[0].mxu0 %v326
    %v516 = vpop.f32.mrb[0].mxu0
    %v517 = vadd.f32 %v423, %v516
    %v518 = vpop.f32.mrb[0].mxu0
    %519 = vmatprep.mubr.f32.mxu0 0.0
    %520 = vmatmul.mubr.f32.gmra.mrb[0].mxu0 %v327
    %v521 = vpop.f32.mrb[0].mxu0
    %v522 = vadd.f32 %v423, %v521
    %v523 = vpop.f32.mrb[0].mxu0
    %524 = vmatprep.mubr.f32.mxu0 0.0
    %525 = vmatmul.mubr.f32.gmra.mrb[0].mxu0 %v328
    %v526 = vpop.f32.mrb[0].mxu0
    %v527 = vadd.f32 %v423, %v526
    %v528 = vpop.f32.mrb[0].mxu0
    %529 = vmatprep.mubr.f32.mxu0 0.0
    %530 = vmatmul.mubr.f32.gmra.mrb[0].mxu0 %v329
    %v531 = vpop.f32.mrb[0].mxu0
    %v532 = vadd.f32 %v423, %v531
    %v533 = vpop.f32.mrb[0].mxu0
    %534 = vmatprep.mubr.f32.mxu0 0.0
    %535 = vmatmul.mubr.f32.gmra.mrb[0].mxu0 %v330
    %v536 = vpop.f32.mrb[0].mxu0
    %v537 = vadd.f32 %v423, %v536
    %v538 = vpop.f32.mrb[0].mxu0
    %539 = vmatprep.mubr.f32.mxu0 0.0
    %540 = vmatmul.mubr.f32.gmra.mrb[0].mxu0 %v331
    %v541 = vpop.f32.mrb[0].mxu0
    %v542 = vadd.f32 %v423, %v541
    %v543 = vpop.f32.mrb[0].mxu0
    %544 = vmatprep.mubr.f32.mxu0 0.0
    %545 = vmatmul.mubr.f32.gmra.mrb[0].mxu0 %v332
    %v546 = vpop.f32.mrb[0].mxu0
    %v547 = vadd.f32 %v423, %v546
    %v548 = vpop.f32.mrb[0].mxu0
    %549 = vmatprep.mubr.f32.mxu0 0.0
    %550 = vmatmul.mubr.f32.gmra.mrb[0].mxu0 %v333
    %v551 = vpop.f32.mrb[0].mxu0
    %v552 = vadd.f32 %v423, %v551
    %v553 = vpop.f32.mrb[0].mxu0
    %554 = vmatprep.mubr.f32.mxu0 0.0
    %555 = vmatmul.mubr.f32.gmra.mrb[0].mxu0 %v334
    %v556 = vpop.f32.mrb[0].mxu0
    %v557 = vadd.f32 %v423, %v556
    %v558 = vpop.f32.mrb[0].mxu0
    %559 = vmatprep.mubr.f32.mxu0 0.0
    %560 = vmatmul.mubr.f32.gmra.mrb[0].mxu0 %v335
    %v561 = vpop.f32.mrb[0].mxu0
    %v562 = vadd.f32 %v423, %v561
    %v563 = vpop.f32.mrb[0].mxu0
    %564 = vmatprep.mubr.f32.mxu0 0.0
    %565 = vmatmul.mubr.f32.gmra.mrb[0].mxu0 %v336
    %v566 = vpop.f32.mrb[0].mxu0
    %v567 = vadd.f32 %v423, %v566
    %v568 = vpop.f32.mrb[0].mxu0
    %569 = vdwg.mxu0
    %v570 = vld [vmem:[%s7] sm:$0x1]
    %v572 = vlaneseq
    %v573 = vshrl.u32 %v572, 7
    %v574 = vsub.s32 0, %v573
    %v575 = vrot.slane %v570, %v574
    %577 = vmatprep.subr.mxu0 0.0
    %578 = vmatpush1.msra.mxu0 %v353
    %579 = vmatprep.subr.mxu0 0.0
    %580 = vmatpush1.msra.mxu0 %v354
    %581 = vmatprep.subr.mxu0 0.0
    %582 = vmatpush1.msra.mxu0 %v355
    %583 = vmatprep.subr.mxu0 0.0
    %584 = vmatpush1.msra.mxu0 %v356
    %585 = vmatprep.subr.mxu0 0.0
    %586 = vmatpush1.msra.mxu0 %v357
    %587 = vmatprep.subr.mxu0 0.0
    %588 = vmatpush1.msra.mxu0 %v358
    %589 = vmatprep.subr.mxu0 0.0
    %590 = vmatpush1.msra.mxu0 %v359
    %591 = vmatprep.subr.mxu0 0.0
    %592 = vmatpush1.msra.mxu0 %v360
    %593 = vmatprep.subr.mxu0 0.0
    %594 = vmatpush1.msra.mxu0 %v361
    %595 = vmatprep.subr.mxu0 0.0
    %596 = vmatpush1.msra.mxu0 %v362
    %597 = vmatprep.subr.mxu0 0.0
    %598 = vmatpush1.msra.mxu0 %v363
    %599 = vmatprep.subr.mxu0 0.0
    %600 = vmatpush1.msra.mxu0 %v364
    %601 = vmatprep.subr.mxu0 0.0
    %602 = vmatpush1.msra.mxu0 %v365
    %603 = vmatprep.subr.mxu0 0.0
    %604 = vmatpush1.msra.mxu0 %v366
    %605 = vmatprep.subr.mxu0 0.0
    %606 = vmatpush1.msra.mxu0 %v367
    %607 = vmatprep.subr.mxu0 0.0
    %608 = vmatpush1.msra.mxu0 %v368
    %609 = vmatprep.subr.mxu0 0.0
    %610 = vmatpush1.msra.mxu0 0.0
    %611 = vmatprep.subr.mxu0 0.0
    %612 = vmatpush1.msra.mxu0 0.0
    %613 = vmatprep.subr.mxu0 0.0
    %614 = vmatpush1.msra.mxu0 0.0
    %615 = vmatprep.subr.mxu0 0.0
    %616 = vmatpush1.msra.mxu0 0.0
    %617 = vmatprep.subr.mxu0 0.0
    %618 = vmatpush1.msra.mxu0 0.0
    %619 = vmatprep.subr.mxu0 0.0
    %620 = vmatpush1.msra.mxu0 0.0
    %621 = vmatprep.subr.mxu0 0.0
    %622 = vmatpush1.msra.mxu0 0.0
    %623 = vmatprep.subr.mxu0 0.0
    %624 = vmatpush1.msra.mxu0 0.0
    %625 = vmatprep.subr.mxu0 0.0
    %626 = vmatpush1.msra.mxu0 0.0
    %627 = vmatprep.subr.mxu0 0.0
    %628 = vmatpush1.msra.mxu0 0.0
    %629 = vmatprep.subr.mxu0 0.0
    %630 = vmatpush1.msra.mxu0 0.0
    %631 = vmatprep.subr.mxu0 0.0
    %632 = vmatpush1.msra.mxu0 0.0
    %633 = vmatprep.subr.mxu0 0.0
    %634 = vmatpush1.msra.mxu0 0.0
    %635 = vmatprep.subr.mxu0 0.0
    %636 = vmatpush1.msra.mxu0 0.0
    %637 = vmatprep.subr.mxu0 0.0
    %638 = vmatpush1.msra.mxu0 0.0
    %639 = vmatprep.subr.mxu0 0.0
    %640 = vmatpush1.msra.mxu0 0.0
    %641 = vmatprep.mubr.f32.mxu0 0.0
    %642 = vmatmul.mubr.f32.gmra.mrb[0].mxu0 %v321
    %v643 = vpop.f32.mrb[0].mxu0
    %v644 = vadd.f32 %v575, %v643
    %v645 = vpop.f32.mrb[0].mxu0
    %646 = vmatprep.mubr.f32.mxu0 0.0
    %647 = vmatmul.mubr.f32.gmra.mrb[0].mxu0 %v322
    %v648 = vpop.f32.mrb[0].mxu0
    %v649 = vadd.f32 %v575, %v648
    %v650 = vpop.f32.mrb[0].mxu0
    %651 = vmatprep.mubr.f32.mxu0 0.0
    %652 = vmatmul.mubr.f32.gmra.mrb[0].mxu0 %v323
    %v653 = vpop.f32.mrb[0].mxu0
    %v654 = vadd.f32 %v575, %v653
    %v655 = vpop.f32.mrb[0].mxu0
    %656 = vmatprep.mubr.f32.mxu0 0.0
    %657 = vmatmul.mubr.f32.gmra.mrb[0].mxu0 %v324
    %v658 = vpop.f32.mrb[0].mxu0
    %v659 = vadd.f32 %v575, %v658
    %v660 = vpop.f32.mrb[0].mxu0
    %661 = vmatprep.mubr.f32.mxu0 0.0
    %662 = vmatmul.mubr.f32.gmra.mrb[0].mxu0 %v325
    %v663 = vpop.f32.mrb[0].mxu0
    %v664 = vadd.f32 %v575, %v663
    %v665 = vpop.f32.mrb[0].mxu0
    %666 = vmatprep.mubr.f32.mxu0 0.0
    %667 = vmatmul.mubr.f32.gmra.mrb[0].mxu0 %v326
    %v668 = vpop.f32.mrb[0].mxu0
    %v669 = vadd.f32 %v575, %v668
    %v670 = vpop.f32.mrb[0].mxu0
    %671 = vmatprep.mubr.f32.mxu0 0.0
    %672 = vmatmul.mubr.f32.gmra.mrb[0].mxu0 %v327
    %v673 = vpop.f32.mrb[0].mxu0
    %v674 = vadd.f32 %v575, %v673
    %v675 = vpop.f32.mrb[0].mxu0
    %676 = vmatprep.mubr.f32.mxu0 0.0
    %677 = vmatmul.mubr.f32.gmra.mrb[0].mxu0 %v328
    %v678 = vpop.f32.mrb[0].mxu0
    %v679 = vadd.f32 %v575, %v678
    %v680 = vpop.f32.mrb[0].mxu0
    %681 = vmatprep.mubr.f32.mxu0 0.0
    %682 = vmatmul.mubr.f32.gmra.mrb[0].mxu0 %v329
    %v683 = vpop.f32.mrb[0].mxu0
    %v684 = vadd.f32 %v575, %v683
    %v685 = vpop.f32.mrb[0].mxu0
    %686 = vmatprep.mubr.f32.mxu0 0.0
    %687 = vmatmul.mubr.f32.gmra.mrb[0].mxu0 %v330
    %v688 = vpop.f32.mrb[0].mxu0
    %v689 = vadd.f32 %v575, %v688
    %v690 = vpop.f32.mrb[0].mxu0
    %691 = vmatprep.mubr.f32.mxu0 0.0
    %692 = vmatmul.mubr.f32.gmra.mrb[0].mxu0 %v331
    %v693 = vpop.f32.mrb[0].mxu0
    %v694 = vadd.f32 %v575, %v693
    %v695 = vpop.f32.mrb[0].mxu0
    %696 = vmatprep.mubr.f32.mxu0 0.0
    %697 = vmatmul.mubr.f32.gmra.mrb[0].mxu0 %v332
    %v698 = vpop.f32.mrb[0].mxu0
    %v699 = vadd.f32 %v575, %v698
    %v700 = vpop.f32.mrb[0].mxu0
    %701 = vmatprep.mubr.f32.mxu0 0.0
    %702 = vmatmul.mubr.f32.gmra.mrb[0].mxu0 %v333
    %v703 = vpop.f32.mrb[0].mxu0
    %v704 = vadd.f32 %v575, %v703
    %v705 = vpop.f32.mrb[0].mxu0
    %706 = vmatprep.mubr.f32.mxu0 0.0
    %707 = vmatmul.mubr.f32.gmra.mrb[0].mxu0 %v334
    %v708 = vpop.f32.mrb[0].mxu0
    %v709 = vadd.f32 %v575, %v708
    %v710 = vpop.f32.mrb[0].mxu0
    %711 = vmatprep.mubr.f32.mxu0 0.0
    %712 = vmatmul.mubr.f32.gmra.mrb[0].mxu0 %v335
    %v713 = vpop.f32.mrb[0].mxu0
    %v714 = vadd.f32 %v575, %v713
    %v715 = vpop.f32.mrb[0].mxu0
    %716 = vmatprep.mubr.f32.mxu0 0.0
    %717 = vmatmul.mubr.f32.gmra.mrb[0].mxu0 %v336
    %v718 = vpop.f32.mrb[0].mxu0
    %v719 = vadd.f32 %v575, %v718
    %v720 = vpop.f32.mrb[0].mxu0
    %721 = vdwg.mxu0
    %v722 = vld [vmem:[%s8] sm:$0x1]
    %v724 = vlaneseq
    %v725 = vshrl.u32 %v724, 7
    %v726 = vsub.s32 0, %v725
    %v727 = vrot.slane %v722, %v726
    %729 = vmatprep.subr.mxu0 0.0
    %730 = vmatpush1.msra.mxu0 %v369
    %731 = vmatprep.subr.mxu0 0.0
    %732 = vmatpush1.msra.mxu0 %v370
    %733 = vmatprep.subr.mxu0 0.0
    %734 = vmatpush1.msra.mxu0 %v371
    %735 = vmatprep.subr.mxu0 0.0
    %736 = vmatpush1.msra.mxu0 %v372
    %737 = vmatprep.subr.mxu0 0.0
    %738 = vmatpush1.msra.mxu0 %v373
    %739 = vmatprep.subr.mxu0 0.0
    %740 = vmatpush1.msra.mxu0 %v374
    %741 = vmatprep.subr.mxu0 0.0
    %742 = vmatpush1.msra.mxu0 %v375
    %743 = vmatprep.subr.mxu0 0.0
    %744 = vmatpush1.msra.mxu0 %v376
    %745 = vmatprep.subr.mxu0 0.0
    %746 = vmatpush1.msra.mxu0 %v377
    %747 = vmatprep.subr.mxu0 0.0
    %748 = vmatpush1.msra.mxu0 %v378
    %749 = vmatprep.subr.mxu0 0.0
    %750 = vmatpush1.msra.mxu0 %v379
    %751 = vmatprep.subr.mxu0 0.0
    %752 = vmatpush1.msra.mxu0 %v380
    %753 = vmatprep.subr.mxu0 0.0
    %754 = vmatpush1.msra.mxu0 %v381
    %755 = vmatprep.subr.mxu0 0.0
    %756 = vmatpush1.msra.mxu0 %v382
    %757 = vmatprep.subr.mxu0 0.0
    %758 = vmatpush1.msra.mxu0 %v383
    %759 = vmatprep.subr.mxu0 0.0
    %760 = vmatpush1.msra.mxu0 %v384
    %761 = vmatprep.subr.mxu0 0.0
    %762 = vmatpush1.msra.mxu0 0.0
    %763 = vmatprep.subr.mxu0 0.0
    %764 = vmatpush1.msra.mxu0 0.0
    %765 = vmatprep.subr.mxu0 0.0
    %766 = vmatpush1.msra.mxu0 0.0
    %767 = vmatprep.subr.mxu0 0.0
    %768 = vmatpush1.msra.mxu0 0.0
    %769 = vmatprep.subr.mxu0 0.0
    %770 = vmatpush1.msra.mxu0 0.0
    %771 = vmatprep.subr.mxu0 0.0
    %772 = vmatpush1.msra.mxu0 0.0
    %773 = vmatprep.subr.mxu0 0.0
    %774 = vmatpush1.msra.mxu0 0.0
    %775 = vmatprep.subr.mxu0 0.0
    %776 = vmatpush1.msra.mxu0 0.0
    %777 = vmatprep.subr.mxu0 0.0
    %778 = vmatpush1.msra.mxu0 0.0
    %779 = vmatprep.subr.mxu0 0.0
    %780 = vmatpush1.msra.mxu0 0.0
    %781 = vmatprep.subr.mxu0 0.0
    %782 = vmatpush1.msra.mxu0 0.0
    %783 = vmatprep.subr.mxu0 0.0
    %784 = vmatpush1.msra.mxu0 0.0
    %785 = vmatprep.subr.mxu0 0.0
    %786 = vmatpush1.msra.mxu0 0.0
    %787 = vmatprep.subr.mxu0 0.0
    %788 = vmatpush1.msra.mxu0 0.0
    %789 = vmatprep.subr.mxu0 0.0
    %790 = vmatpush1.msra.mxu0 0.0
    %791 = vmatprep.subr.mxu0 0.0
    %792 = vmatpush1.msra.mxu0 0.0
    %793 = vmatprep.mubr.f32.mxu0 0.0
    %794 = vmatmul.mubr.f32.gmra.mrb[0].mxu0 %v321
    %v795 = vpop.f32.mrb[0].mxu0
    %v796 = vadd.f32 %v727, %v795
    %v797 = vpop.f32.mrb[0].mxu0
    %798 = vmatprep.mubr.f32.mxu0 0.0
    %799 = vmatmul.mubr.f32.gmra.mrb[0].mxu0 %v322
    %v800 = vpop.f32.mrb[0].mxu0
    %v801 = vadd.f32 %v727, %v800
    %v802 = vpop.f32.mrb[0].mxu0
    %803 = vmatprep.mubr.f32.mxu0 0.0
    %804 = vmatmul.mubr.f32.gmra.mrb[0].mxu0 %v323
    %v805 = vpop.f32.mrb[0].mxu0
    %v806 = vadd.f32 %v727, %v805
    %v807 = vpop.f32.mrb[0].mxu0
    %808 = vmatprep.mubr.f32.mxu0 0.0
    %809 = vmatmul.mubr.f32.gmra.mrb[0].mxu0 %v324
    %v810 = vpop.f32.mrb[0].mxu0
    %v811 = vadd.f32 %v727, %v810
    %v812 = vpop.f32.mrb[0].mxu0
    %813 = vmatprep.mubr.f32.mxu0 0.0
    %814 = vmatmul.mubr.f32.gmra.mrb[0].mxu0 %v325
    %v815 = vpop.f32.mrb[0].mxu0
    %v816 = vadd.f32 %v727, %v815
    %v817 = vpop.f32.mrb[0].mxu0
    %818 = vmatprep.mubr.f32.mxu0 0.0
    %819 = vmatmul.mubr.f32.gmra.mrb[0].mxu0 %v326
    %v820 = vpop.f32.mrb[0].mxu0
    %v821 = vadd.f32 %v727, %v820
    %v822 = vpop.f32.mrb[0].mxu0
    %823 = vmatprep.mubr.f32.mxu0 0.0
    %824 = vmatmul.mubr.f32.gmra.mrb[0].mxu0 %v327
    %v825 = vpop.f32.mrb[0].mxu0
    %v826 = vadd.f32 %v727, %v825
    %v827 = vpop.f32.mrb[0].mxu0
    %828 = vmatprep.mubr.f32.mxu0 0.0
    %829 = vmatmul.mubr.f32.gmra.mrb[0].mxu0 %v328
    %v830 = vpop.f32.mrb[0].mxu0
    %v831 = vadd.f32 %v727, %v830
    %v832 = vpop.f32.mrb[0].mxu0
    %833 = vmatprep.mubr.f32.mxu0 0.0
    %834 = vmatmul.mubr.f32.gmra.mrb[0].mxu0 %v329
    %v835 = vpop.f32.mrb[0].mxu0
    %v836 = vadd.f32 %v727, %v835
    %v837 = vpop.f32.mrb[0].mxu0
    %838 = vmatprep.mubr.f32.mxu0 0.0
    %839 = vmatmul.mubr.f32.gmra.mrb[0].mxu0 %v330
    %v840 = vpop.f32.mrb[0].mxu0
    %v841 = vadd.f32 %v727, %v840
    %v842 = vpop.f32.mrb[0].mxu0
    %843 = vmatprep.mubr.f32.mxu0 0.0
    %844 = vmatmul.mubr.f32.gmra.mrb[0].mxu0 %v331
    %v845 = vpop.f32.mrb[0].mxu0
    %v846 = vadd.f32 %v727, %v845
    %v847 = vpop.f32.mrb[0].mxu0
    %848 = vmatprep.mubr.f32.mxu0 0.0
    %849 = vmatmul.mubr.f32.gmra.mrb[0].mxu0 %v332
    %v850 = vpop.f32.mrb[0].mxu0
    %v851 = vadd.f32 %v727, %v850
    %v852 = vpop.f32.mrb[0].mxu0
    %853 = vmatprep.mubr.f32.mxu0 0.0
    %854 = vmatmul.mubr.f32.gmra.mrb[0].mxu0 %v333
    %v855 = vpop.f32.mrb[0].mxu0
    %v856 = vadd.f32 %v727, %v855
    %v857 = vpop.f32.mrb[0].mxu0
    %858 = vmatprep.mubr.f32.mxu0 0.0
    %859 = vmatmul.mubr.f32.gmra.mrb[0].mxu0 %v334
    %v860 = vpop.f32.mrb[0].mxu0
    %v861 = vadd.f32 %v727, %v860
    %v862 = vpop.f32.mrb[0].mxu0
    %863 = vmatprep.mubr.f32.mxu0 0.0
    %864 = vmatmul.mubr.f32.gmra.mrb[0].mxu0 %v335
    %v865 = vpop.f32.mrb[0].mxu0
    %v866 = vadd.f32 %v727, %v865
    %v867 = vpop.f32.mrb[0].mxu0
    %868 = vmatprep.mubr.f32.mxu0 0.0
    %869 = vmatmul.mubr.f32.gmra.mrb[0].mxu0 %v336
    %v870 = vpop.f32.mrb[0].mxu0
    %v871 = vadd.f32 %v727, %v870
    %v872 = vpop.f32.mrb[0].mxu0
    %873 = vdwg.mxu0
    %v875 = vlaneseq
    %v876 = vshrl.u32 %v875, 7
    %v877 = vsub.s32 0, %v876
    %v878 = vrot.slane %v417, %v877
    %v880 = vadd.f32 %v321, %v878
    %v881 = vadd.f32 %v322, %v878
    %v882 = vadd.f32 %v323, %v878
    %v883 = vadd.f32 %v324, %v878
    %v884 = vadd.f32 %v325, %v878
    %v885 = vadd.f32 %v326, %v878
    %v886 = vadd.f32 %v327, %v878
    %v887 = vadd.f32 %v328, %v878
    %vm888 = vcmask 261120
    %v890 = vsel %vm888, %v492, 0
    %v893 = vsel %vm888, %v497, 0
    %v896 = vsel %vm888, %v502, 0
    %v899 = vsel %vm888, %v507, 0
    %v902 = vsel %vm888, %v512, 0
    %v905 = vsel %vm888, %v517, 0
    %v908 = vsel %vm888, %v522, 0
    %v911 = vsel %vm888, %v527, 0
    %v914 = vsel %vm888, %v644, 0
    %v917 = vsel %vm888, %v649, 0
    %v920 = vsel %vm888, %v654, 0
    %v923 = vsel %vm888, %v659, 0
    %v926 = vsel %vm888, %v664, 0
    %v929 = vsel %vm888, %v669, 0
    %v932 = vsel %vm888, %v674, 0
    %v935 = vsel %vm888, %v679, 0
    %937 = vmatprep.subr.mxu0 0.0
    %938 = vmatpush1.xpose.msra.mxu0 %v914
    %939 = vmatprep.subr.mxu0 0.0
    %940 = vmatpush1.xpose.msra.mxu0 %v917
    %941 = vmatprep.subr.mxu0 0.0
    %942 = vmatpush1.xpose.msra.mxu0 %v920
    %943 = vmatprep.subr.mxu0 0.0
    %944 = vmatpush1.xpose.msra.mxu0 %v923
    %945 = vmatprep.subr.mxu0 0.0
    %946 = vmatpush1.xpose.msra.mxu0 %v926
    %947 = vmatprep.subr.mxu0 0.0
    %948 = vmatpush1.xpose.msra.mxu0 %v929
    %949 = vmatprep.subr.mxu0 0.0
    %950 = vmatpush1.xpose.msra.mxu0 %v932
    %951 = vmatprep.subr.mxu0 0.0
    %952 = vmatpush1.xpose.msra.mxu0 %v935
    %953 = vmatprep.subr.mxu0 0.0
    %954 = vmatpush1.xpose.msra.mxu0 0.0
    %955 = vmatprep.subr.mxu0 0.0
    %956 = vmatpush1.xpose.msra.mxu0 0.0
    %957 = vmatprep.subr.mxu0 0.0
    %958 = vmatpush1.xpose.msra.mxu0 0.0
    %959 = vmatprep.subr.mxu0 0.0
    %960 = vmatpush1.xpose.msra.mxu0 0.0
    %961 = vmatprep.subr.mxu0 0.0
    %962 = vmatpush1.xpose.msra.mxu0 0.0
    %963 = vmatprep.subr.mxu0 0.0
    %964 = vmatpush1.xpose.msra.mxu0 0.0
    %965 = vmatprep.subr.mxu0 0.0
    %966 = vmatpush1.xpose.msra.mxu0 0.0
    %967 = vmatprep.subr.mxu0 0.0
    %968 = vmatpush1.xpose.msra.mxu0 0.0
    %969 = vmatprep.subr.mxu0 0.0
    %970 = vmatpush1.xpose.msra.mxu0 0.0
    %971 = vmatprep.subr.mxu0 0.0
    %972 = vmatpush1.xpose.msra.mxu0 0.0
    %973 = vmatprep.subr.mxu0 0.0
    %974 = vmatpush1.xpose.msra.mxu0 0.0
    %975 = vmatprep.subr.mxu0 0.0
    %976 = vmatpush1.xpose.msra.mxu0 0.0
    %977 = vmatprep.subr.mxu0 0.0
    %978 = vmatpush1.xpose.msra.mxu0 0.0
    %979 = vmatprep.subr.mxu0 0.0
    %980 = vmatpush1.xpose.msra.mxu0 0.0
    %981 = vmatprep.subr.mxu0 0.0
    %982 = vmatpush1.xpose.msra.mxu0 0.0
    %983 = vmatprep.subr.mxu0 0.0
    %984 = vmatpush1.xpose.msra.mxu0 0.0
    %985 = vmatprep.subr.mxu0 0.0
    %986 = vmatpush1.xpose.msra.mxu0 0.0
    %987 = vmatprep.subr.mxu0 0.0
    %988 = vmatpush1.xpose.msra.mxu0 0.0
    %989 = vmatprep.subr.mxu0 0.0
    %990 = vmatpush1.xpose.msra.mxu0 0.0
    %991 = vmatprep.subr.mxu0 0.0
    %992 = vmatpush1.xpose.msra.mxu0 0.0
    %993 = vmatprep.subr.mxu0 0.0
    %994 = vmatpush1.xpose.msra.mxu0 0.0
    %995 = vmatprep.subr.mxu0 0.0
    %996 = vmatpush1.xpose.msra.mxu0 0.0
    %997 = vmatprep.subr.mxu0 0.0
    %998 = vmatpush1.xpose.msra.mxu0 0.0
    %999 = vmatprep.subr.mxu0 0.0
    %1000 = vmatpush1.xpose.msra.mxu0 0.0
    %1001 = vmatprep.mubr.f32.mxu0 0.0
    %1002 = vmatmul.mubr.f32.gmra.mrb[0].mxu0 %v890
    %v1003 = vpop.f32.mrb[0].mxu0
    %v1004 = vadd.f32 0.0, %v1003
    %v1005 = vpop.f32.mrb[0].mxu0
    %1006 = vmatprep.mubr.f32.mxu0 0.0
    %1007 = vmatmul.mubr.f32.gmra.mrb[0].mxu0 %v893
    %v1008 = vpop.f32.mrb[0].mxu0
    %v1009 = vadd.f32 0.0, %v1008
    %v1010 = vpop.f32.mrb[0].mxu0
    %1011 = vmatprep.mubr.f32.mxu0 0.0
    %1012 = vmatmul.mubr.f32.gmra.mrb[0].mxu0 %v896
    %v1013 = vpop.f32.mrb[0].mxu0
    %v1014 = vadd.f32 0.0, %v1013
    %v1015 = vpop.f32.mrb[0].mxu0
    %1016 = vmatprep.mubr.f32.mxu0 0.0
    %1017 = vmatmul.mubr.f32.gmra.mrb[0].mxu0 %v899
    %v1018 = vpop.f32.mrb[0].mxu0
    %v1019 = vadd.f32 0.0, %v1018
    %v1020 = vpop.f32.mrb[0].mxu0
    %1021 = vmatprep.mubr.f32.mxu0 0.0
    %1022 = vmatmul.mubr.f32.gmra.mrb[0].mxu0 %v902
    %v1023 = vpop.f32.mrb[0].mxu0
    %v1024 = vadd.f32 0.0, %v1023
    %v1025 = vpop.f32.mrb[0].mxu0
    %1026 = vmatprep.mubr.f32.mxu0 0.0
    %1027 = vmatmul.mubr.f32.gmra.mrb[0].mxu0 %v905
    %v1028 = vpop.f32.mrb[0].mxu0
    %v1029 = vadd.f32 0.0, %v1028
    %v1030 = vpop.f32.mrb[0].mxu0
    %1031 = vmatprep.mubr.f32.mxu0 0.0
    %1032 = vmatmul.mubr.f32.gmra.mrb[0].mxu0 %v908
    %v1033 = vpop.f32.mrb[0].mxu0
    %v1034 = vadd.f32 0.0, %v1033
    %v1035 = vpop.f32.mrb[0].mxu0
    %1036 = vmatprep.mubr.f32.mxu0 0.0
    %1037 = vmatmul.mubr.f32.gmra.mrb[0].mxu0 %v911
    %v1038 = vpop.f32.mrb[0].mxu0
    %v1039 = vadd.f32 0.0, %v1038
    %v1040 = vpop.f32.mrb[0].mxu0
    %1041 = vdwg.mxu0
    %vm1042 = vcmask 523264
    %v1043 = vsel %vm1042, %v1004, -inf
    %1044 = vmax.xlane.f32.xlu0 %v1043
    %v1045 = vpop.xlane.xlu0 %1044
    %v1046 = vsel %vm1042, %v1009, -inf
    %1047 = vmax.xlane.f32.xlu0 %v1046
    %v1048 = vpop.xlane.xlu0 %1047
    %v1049 = vsel %vm1042, %v1014, -inf
    %1050 = vmax.xlane.f32.xlu0 %v1049
    %v1051 = vpop.xlane.xlu0 %1050
    %v1052 = vsel %vm1042, %v1019, -inf
    %1053 = vmax.xlane.f32.xlu0 %v1052
    %v1054 = vpop.xlane.xlu0 %1053
    %v1055 = vsel %vm1042, %v1024, -inf
    %1056 = vmax.xlane.f32.xlu0 %v1055
    %v1057 = vpop.xlane.xlu0 %1056
    %v1058 = vsel %vm1042, %v1029, -inf
    %1059 = vmax.xlane.f32.xlu0 %v1058
    %v1060 = vpop.xlane.xlu0 %1059
    %v1061 = vsel %vm1042, %v1034, -inf
    %1062 = vmax.xlane.f32.xlu0 %v1061
    %v1063 = vpop.xlane.xlu0 %1062
    %v1064 = vsel %vm1042, %v1039, -inf
    %1065 = vmax.xlane.f32.xlu0 %v1064
    %v1066 = vpop.xlane.xlu0 %1065
    %v1067 = vsub.f32 %v1004, %v1045
    %v1068 = vsub.f32 %v1009, %v1048
    %v1069 = vsub.f32 %v1014, %v1051
    %v1070 = vsub.f32 %v1019, %v1054
    %v1071 = vsub.f32 %v1024, %v1057
    %v1072 = vsub.f32 %v1029, %v1060
    %v1073 = vsub.f32 %v1034, %v1063
    %v1074 = vsub.f32 %v1039, %v1066
    %v1075 = vmul.f32 %v1067, 1.442695
    %v1076 = vpow.pop %v1075
    %v1077 = vmul.f32 %v1068, 1.442695
    %v1078 = vpow.pop %v1077
    %v1079 = vmul.f32 %v1069, 1.442695
    %v1080 = vpow.pop %v1079
    %v1081 = vmul.f32 %v1070, 1.442695
    %v1082 = vpow.pop %v1081
    %v1083 = vmul.f32 %v1071, 1.442695
    %v1084 = vpow.pop %v1083
    %v1085 = vmul.f32 %v1072, 1.442695
    %v1086 = vpow.pop %v1085
    %v1087 = vmul.f32 %v1073, 1.442695
    %v1088 = vpow.pop %v1087
    %v1089 = vmul.f32 %v1074, 1.442695
    %v1090 = vpow.pop %v1089
    %v1092 = vsel %vm1042, %v1076, 0
    %v1095 = vsel %vm1042, %v1078, 0
    %v1098 = vsel %vm1042, %v1080, 0
    %v1101 = vsel %vm1042, %v1082, 0
    %v1104 = vsel %vm1042, %v1084, 0
    %v1107 = vsel %vm1042, %v1086, 0
    %v1110 = vsel %vm1042, %v1088, 0
    %v1113 = vsel %vm1042, %v1090, 0
    %1115 = vmatprep.subr.mxu0 0.0
    %1116 = vmatpush1.msra.mxu0 %v796
    %1117 = vmatprep.subr.mxu0 0.0
    %1118 = vmatpush1.msra.mxu0 %v801
    %1119 = vmatprep.subr.mxu0 0.0
    %1120 = vmatpush1.msra.mxu0 %v806
    %1121 = vmatprep.subr.mxu0 0.0
    %1122 = vmatpush1.msra.mxu0 %v811
    %1123 = vmatprep.subr.mxu0 0.0
    %1124 = vmatpush1.msra.mxu0 %v816
    %1125 = vmatprep.subr.mxu0 0.0
    %1126 = vmatpush1.msra.mxu0 %v821
    %1127 = vmatprep.subr.mxu0 0.0
    %1128 = vmatpush1.msra.mxu0 %v826
    %1129 = vmatprep.subr.mxu0 0.0
    %1130 = vmatpush1.msra.mxu0 %v831
    %1131 = vmatprep.subr.mxu0 0.0
    %1132 = vmatpush1.msra.mxu0 0.0
    %1133 = vmatprep.subr.mxu0 0.0
    %1134 = vmatpush1.msra.mxu0 0.0
    %1135 = vmatprep.subr.mxu0 0.0
    %1136 = vmatpush1.msra.mxu0 0.0
    %1137 = vmatprep.subr.mxu0 0.0
    %1138 = vmatpush1.msra.mxu0 0.0
    %1139 = vmatprep.subr.mxu0 0.0
    %1140 = vmatpush1.msra.mxu0 0.0
    %1141 = vmatprep.subr.mxu0 0.0
    %1142 = vmatpush1.msra.mxu0 0.0
    %1143 = vmatprep.subr.mxu0 0.0
    %1144 = vmatpush1.msra.mxu0 0.0
    %1145 = vmatprep.subr.mxu0 0.0
    %1146 = vmatpush1.msra.mxu0 0.0
    %1147 = vmatprep.subr.mxu0 0.0
    %1148 = vmatpush1.msra.mxu0 0.0
    %1149 = vmatprep.subr.mxu0 0.0
    %1150 = vmatpush1.msra.mxu0 0.0
    %1151 = vmatprep.subr.mxu0 0.0
    %1152 = vmatpush1.msra.mxu0 0.0
    %1153 = vmatprep.subr.mxu0 0.0
    %1154 = vmatpush1.msra.mxu0 0.0
    %1155 = vmatprep.subr.mxu0 0.0
    %1156 = vmatpush1.msra.mxu0 0.0
    %1157 = vmatprep.subr.mxu0 0.0
    %1158 = vmatpush1.msra.mxu0 0.0
    %1159 = vmatprep.subr.mxu0 0.0
    %1160 = vmatpush1.msra.mxu0 0.0
    %1161 = vmatprep.subr.mxu0 0.0
    %1162 = vmatpush1.msra.mxu0 0.0
    %1163 = vmatprep.subr.mxu0 0.0
    %1164 = vmatpush1.msra.mxu0 0.0
    %1165 = vmatprep.subr.mxu0 0.0
    %1166 = vmatpush1.msra.mxu0 0.0
    %1167 = vmatprep.subr.mxu0 0.0
    %1168 = vmatpush1.msra.mxu0 0.0
    %1169 = vmatprep.subr.mxu0 0.0
    %1170 = vmatpush1.msra.mxu0 0.0
    %1171 = vmatprep.subr.mxu0 0.0
    %1172 = vmatpush1.msra.mxu0 0.0
    %1173 = vmatprep.subr.mxu0 0.0
    %1174 = vmatpush1.msra.mxu0 0.0
    %1175 = vmatprep.subr.mxu0 0.0
    %1176 = vmatpush1.msra.mxu0 0.0
    %1177 = vmatprep.subr.mxu0 0.0
    %1178 = vmatpush1.msra.mxu0 0.0
    %1179 = vmatprep.mubr.f32.mxu0 0.0
    %1180 = vmatmul.mubr.f32.gmra.mrb[0].mxu0 %v1092
    %v1181 = vpop.f32.mrb[0].mxu0
    %v1182 = vadd.f32 0.0, %v1181
    %v1183 = vpop.f32.mrb[0].mxu0
    %1184 = vmatprep.mubr.f32.mxu0 0.0
    %1185 = vmatmul.mubr.f32.gmra.mrb[0].mxu0 %v1095
    %v1186 = vpop.f32.mrb[0].mxu0
    %v1187 = vadd.f32 0.0, %v1186
    %v1188 = vpop.f32.mrb[0].mxu0
    %1189 = vmatprep.mubr.f32.mxu0 0.0
    %1190 = vmatmul.mubr.f32.gmra.mrb[0].mxu0 %v1098
    %v1191 = vpop.f32.mrb[0].mxu0
    %v1192 = vadd.f32 0.0, %v1191
    %v1193 = vpop.f32.mrb[0].mxu0
    %1194 = vmatprep.mubr.f32.mxu0 0.0
    %1195 = vmatmul.mubr.f32.gmra.mrb[0].mxu0 %v1101
    %v1196 = vpop.f32.mrb[0].mxu0
    %v1197 = vadd.f32 0.0, %v1196
    %v1198 = vpop.f32.mrb[0].mxu0
    %1199 = vmatprep.mubr.f32.mxu0 0.0
    %1200 = vmatmul.mubr.f32.gmra.mrb[0].mxu0 %v1104
    %v1201 = vpop.f32.mrb[0].mxu0
    %v1202 = vadd.f32 0.0, %v1201
    %v1203 = vpop.f32.mrb[0].mxu0
    %1204 = vmatprep.mubr.f32.mxu0 0.0
    %1205 = vmatmul.mubr.f32.gmra.mrb[0].mxu0 %v1107
    %v1206 = vpop.f32.mrb[0].mxu0
    %v1207 = vadd.f32 0.0, %v1206
    %v1208 = vpop.f32.mrb[0].mxu0
    %1209 = vmatprep.mubr.f32.mxu0 0.0
    %1210 = vmatmul.mubr.f32.gmra.mrb[0].mxu0 %v1110
    %v1211 = vpop.f32.mrb[0].mxu0
    %v1212 = vadd.f32 0.0, %v1211
    %v1213 = vpop.f32.mrb[0].mxu0
    %1214 = vmatprep.mubr.f32.mxu0 0.0
    %1215 = vmatmul.mubr.f32.gmra.mrb[0].mxu0 %v1113
    %v1216 = vpop.f32.mrb[0].mxu0
    %v1217 = vadd.f32 0.0, %v1216
    %v1218 = vpop.f32.mrb[0].mxu0
    %1219 = vdwg.mxu0
    %v1220 = vsel %vm1042, %v1076, 0.0
    %1221 = vadd.xlane.f32.xlu0 %v1220
    %v1222 = vpop.xlane.xlu0 %1221
    %v1223 = vsel %vm1042, %v1078, 0.0
    %1224 = vadd.xlane.f32.xlu0 %v1223
    %v1225 = vpop.xlane.xlu0 %1224
    %v1226 = vsel %vm1042, %v1080, 0.0
    %1227 = vadd.xlane.f32.xlu0 %v1226
    %v1228 = vpop.xlane.xlu0 %1227
    %v1229 = vsel %vm1042, %v1082, 0.0
    %1230 = vadd.xlane.f32.xlu0 %v1229
    %v1231 = vpop.xlane.xlu0 %1230
    %v1232 = vsel %vm1042, %v1084, 0.0
    %1233 = vadd.xlane.f32.xlu0 %v1232
    %v1234 = vpop.xlane.xlu0 %1233
    %v1235 = vsel %vm1042, %v1086, 0.0
    %1236 = vadd.xlane.f32.xlu0 %v1235
    %v1237 = vpop.xlane.xlu0 %1236
    %v1238 = vsel %vm1042, %v1088, 0.0
    %1239 = vadd.xlane.f32.xlu0 %v1238
    %v1240 = vpop.xlane.xlu0 %1239
    %v1241 = vsel %vm1042, %v1090, 0.0
    %1242 = vadd.xlane.f32.xlu0 %v1241
    %v1243 = vpop.xlane.xlu0 %1242
    %v1244 = vrcp.pop %v1222
    %v1245 = vrcp.pop %v1225
    %v1246 = vrcp.pop %v1228
    %v1247 = vrcp.pop %v1231
    %v1248 = vrcp.pop %v1234
    %v1249 = vrcp.pop %v1237
    %v1250 = vrcp.pop %v1240
    %v1251 = vrcp.pop %v1243
    %v1252 = vmul.f32 %v1182, %v1244
    %v1253 = vmul.f32 %v1187, %v1245
    %v1254 = vmul.f32 %v1192, %v1246
    %v1255 = vmul.f32 %v1197, %v1247
    %v1256 = vmul.f32 %v1202, %v1248
    %v1257 = vmul.f32 %v1207, %v1249
    %v1258 = vmul.f32 %v1212, %v1250
    %v1259 = vmul.f32 %v1217, %v1251
    %v1261 = vsel %vm888, %v1252, 0
    %v1264 = vsel %vm888, %v1253, 0
    %v1267 = vsel %vm888, %v1254, 0
    %v1270 = vsel %vm888, %v1255, 0
    %v1273 = vsel %vm888, %v1256, 0
    %v1276 = vsel %vm888, %v1257, 0
    %v1279 = vsel %vm888, %v1258, 0
    %v1282 = vsel %vm888, %v1259, 0
    %1284 = vmatprep.subr.mxu0 0.0
    %1285 = vmatpush1.msra.mxu0 %v385
    %1286 = vmatprep.subr.mxu0 0.0
    %1287 = vmatpush1.msra.mxu0 %v386
    %1288 = vmatprep.subr.mxu0 0.0
    %1289 = vmatpush1.msra.mxu0 %v387
    %1290 = vmatprep.subr.mxu0 0.0
    %1291 = vmatpush1.msra.mxu0 %v388
    %1292 = vmatprep.subr.mxu0 0.0
    %1293 = vmatpush1.msra.mxu0 0.0
    %1294 = vmatprep.subr.mxu0 0.0
    %1295 = vmatpush1.msra.mxu0 0.0
    %1296 = vmatprep.subr.mxu0 0.0
    %1297 = vmatpush1.msra.mxu0 0.0
    %1298 = vmatprep.subr.mxu0 0.0
    %1299 = vmatpush1.msra.mxu0 0.0
    %1300 = vmatprep.subr.mxu0 0.0
    %1301 = vmatpush1.msra.mxu0 0.0
    %1302 = vmatprep.subr.mxu0 0.0
    %1303 = vmatpush1.msra.mxu0 0.0
    %1304 = vmatprep.subr.mxu0 0.0
    %1305 = vmatpush1.msra.mxu0 0.0
    %1306 = vmatprep.subr.mxu0 0.0
    %1307 = vmatpush1.msra.mxu0 0.0
    %1308 = vmatprep.subr.mxu0 0.0
    %1309 = vmatpush1.msra.mxu0 0.0
    %1310 = vmatprep.subr.mxu0 0.0
    %1311 = vmatpush1.msra.mxu0 0.0
    %1312 = vmatprep.subr.mxu0 0.0
    %1313 = vmatpush1.msra.mxu0 0.0
    %1314 = vmatprep.subr.mxu0 0.0
    %1315 = vmatpush1.msra.mxu0 0.0
    %1316 = vmatprep.subr.mxu0 0.0
    %1317 = vmatpush1.msra.mxu0 0.0
    %1318 = vmatprep.subr.mxu0 0.0
    %1319 = vmatpush1.msra.mxu0 0.0
    %1320 = vmatprep.subr.mxu0 0.0
    %1321 = vmatpush1.msra.mxu0 0.0
    %1322 = vmatprep.subr.mxu0 0.0
    %1323 = vmatpush1.msra.mxu0 0.0
    %1324 = vmatprep.subr.mxu0 0.0
    %1325 = vmatpush1.msra.mxu0 0.0
    %1326 = vmatprep.subr.mxu0 0.0
    %1327 = vmatpush1.msra.mxu0 0.0
    %1328 = vmatprep.subr.mxu0 0.0
    %1329 = vmatpush1.msra.mxu0 0.0
    %1330 = vmatprep.subr.mxu0 0.0
    %1331 = vmatpush1.msra.mxu0 0.0
    %1332 = vmatprep.subr.mxu0 0.0
    %1333 = vmatpush1.msra.mxu0 0.0
    %1334 = vmatprep.subr.mxu0 0.0
    %1335 = vmatpush1.msra.mxu0 0.0
    %1336 = vmatprep.subr.mxu0 0.0
    %1337 = vmatpush1.msra.mxu0 0.0
    %1338 = vmatprep.subr.mxu0 0.0
    %1339 = vmatpush1.msra.mxu0 0.0
    %1340 = vmatprep.subr.mxu0 0.0
    %1341 = vmatpush1.msra.mxu0 0.0
    %1342 = vmatprep.subr.mxu0 0.0
    %1343 = vmatpush1.msra.mxu0 0.0
    %1344 = vmatprep.subr.mxu0 0.0
    %1345 = vmatpush1.msra.mxu0 0.0
    %1346 = vmatprep.subr.mxu0 0.0
    %1347 = vmatpush1.msra.mxu0 0.0
    %1348 = vmatprep.mubr.f32.mxu0 0.0
    %1349 = vmatmul.mubr.f32.gmra.mrb[0].mxu0 %v1261
    %v1350 = vpop.f32.mrb[0].mxu0
    %v1351 = vadd.f32 0.0, %v1350
    %v1352 = vpop.f32.mrb[0].mxu0
    %1353 = vmatprep.mubr.f32.mxu0 0.0
    %1354 = vmatmul.mubr.f32.gmra.mrb[0].mxu0 %v1264
    %v1355 = vpop.f32.mrb[0].mxu0
    %v1356 = vadd.f32 0.0, %v1355
    %v1357 = vpop.f32.mrb[0].mxu0
    %1358 = vmatprep.mubr.f32.mxu0 0.0
    %1359 = vmatmul.mubr.f32.gmra.mrb[0].mxu0 %v1267
    %v1360 = vpop.f32.mrb[0].mxu0
    %v1361 = vadd.f32 0.0, %v1360
    %v1362 = vpop.f32.mrb[0].mxu0
    %1363 = vmatprep.mubr.f32.mxu0 0.0
    %1364 = vmatmul.mubr.f32.gmra.mrb[0].mxu0 %v1270
    %v1365 = vpop.f32.mrb[0].mxu0
    %v1366 = vadd.f32 0.0, %v1365
    %v1367 = vpop.f32.mrb[0].mxu0
    %1368 = vmatprep.mubr.f32.mxu0 0.0
    %1369 = vmatmul.mubr.f32.gmra.mrb[0].mxu0 %v1273
    %v1370 = vpop.f32.mrb[0].mxu0
    %v1371 = vadd.f32 0.0, %v1370
    %v1372 = vpop.f32.mrb[0].mxu0
    %1373 = vmatprep.mubr.f32.mxu0 0.0
    %1374 = vmatmul.mubr.f32.gmra.mrb[0].mxu0 %v1276
    %v1375 = vpop.f32.mrb[0].mxu0
    %v1376 = vadd.f32 0.0, %v1375
    %v1377 = vpop.f32.mrb[0].mxu0
    %1378 = vmatprep.mubr.f32.mxu0 0.0
    %1379 = vmatmul.mubr.f32.gmra.mrb[0].mxu0 %v1279
    %v1380 = vpop.f32.mrb[0].mxu0
    %v1381 = vadd.f32 0.0, %v1380
    %v1382 = vpop.f32.mrb[0].mxu0
    %1383 = vmatprep.mubr.f32.mxu0 0.0
    %1384 = vmatmul.mubr.f32.gmra.mrb[0].mxu0 %v1282
    %v1385 = vpop.f32.mrb[0].mxu0
    %v1386 = vadd.f32 0.0, %v1385
    %v1387 = vpop.f32.mrb[0].mxu0
    %1388 = vdwg.mxu0
    %v1389 = vadd.f32 %v880, %v1351
    %v1390 = vadd.f32 %v881, %v1356
    %v1391 = vadd.f32 %v882, %v1361
    %v1392 = vadd.f32 %v883, %v1366
    %v1393 = vadd.f32 %v884, %v1371
    %v1394 = vadd.f32 %v885, %v1376
    %v1395 = vadd.f32 %v886, %v1381
    %v1396 = vadd.f32 %v887, %v1386
    %1397 = vrot.lane.b32.xlu0 %v492, 96
    %v1398 = vpop.permute.xlu0 %1397
    %1399 = vrot.lane.b32.xlu0 %v497, 96
    %v1400 = vpop.permute.xlu0 %1399
    %1401 = vrot.lane.b32.xlu0 %v502, 96
    %v1402 = vpop.permute.xlu0 %1401
    %1403 = vrot.lane.b32.xlu0 %v507, 96
    %v1404 = vpop.permute.xlu0 %1403
    %1405 = vrot.lane.b32.xlu0 %v512, 96
    %v1406 = vpop.permute.xlu0 %1405
    %1407 = vrot.lane.b32.xlu0 %v517, 96
    %v1408 = vpop.permute.xlu0 %1407
    %1409 = vrot.lane.b32.xlu0 %v522, 96
    %v1410 = vpop.permute.xlu0 %1409
    %1411 = vrot.lane.b32.xlu0 %v527, 96
    %v1412 = vpop.permute.xlu0 %1411
    %1413 = vrot.lane.b32.xlu0 %v644, 96
    %v1414 = vpop.permute.xlu0 %1413
    %1415 = vrot.lane.b32.xlu0 %v649, 96
    %v1416 = vpop.permute.xlu0 %1415
    %1417 = vrot.lane.b32.xlu0 %v654, 96
    %v1418 = vpop.permute.xlu0 %1417
    %1419 = vrot.lane.b32.xlu0 %v659, 96
    %v1420 = vpop.permute.xlu0 %1419
    %1421 = vrot.lane.b32.xlu0 %v664, 96
    %v1422 = vpop.permute.xlu0 %1421
    %1423 = vrot.lane.b32.xlu0 %v669, 96
    %v1424 = vpop.permute.xlu0 %1423
    %1425 = vrot.lane.b32.xlu0 %v674, 96
    %v1426 = vpop.permute.xlu0 %1425
    %1427 = vrot.lane.b32.xlu0 %v679, 96
    %v1428 = vpop.permute.xlu0 %1427
    %v1429 = vsel %vm888, %v1398, 0
    %v1431 = vsel %vm888, %v1400, 0
    %v1433 = vsel %vm888, %v1402, 0
    %v1435 = vsel %vm888, %v1404, 0
    %v1437 = vsel %vm888, %v1406, 0
    %v1439 = vsel %vm888, %v1408, 0
    %v1441 = vsel %vm888, %v1410, 0
    %v1443 = vsel %vm888, %v1412, 0
    %v1445 = vsel %vm888, %v1414, 0
    %v1447 = vsel %vm888, %v1416, 0
    %v1449 = vsel %vm888, %v1418, 0
    %v1451 = vsel %vm888, %v1420, 0
    %v1453 = vsel %vm888, %v1422, 0
    %v1455 = vsel %vm888, %v1424, 0
    %v1457 = vsel %vm888, %v1426, 0
    %v1459 = vsel %vm888, %v1428, 0
    %1461 = vmatprep.subr.mxu0 0.0
    %1462 = vmatpush1.xpose.msra.mxu0 %v1445
    %1463 = vmatprep.subr.mxu0 0.0
    %1464 = vmatpush1.xpose.msra.mxu0 %v1447
    %1465 = vmatprep.subr.mxu0 0.0
    %1466 = vmatpush1.xpose.msra.mxu0 %v1449
    %1467 = vmatprep.subr.mxu0 0.0
    %1468 = vmatpush1.xpose.msra.mxu0 %v1451
    %1469 = vmatprep.subr.mxu0 0.0
    %1470 = vmatpush1.xpose.msra.mxu0 %v1453
    %1471 = vmatprep.subr.mxu0 0.0
    %1472 = vmatpush1.xpose.msra.mxu0 %v1455
    %1473 = vmatprep.subr.mxu0 0.0
    %1474 = vmatpush1.xpose.msra.mxu0 %v1457
    %1475 = vmatprep.subr.mxu0 0.0
    %1476 = vmatpush1.xpose.msra.mxu0 %v1459
    %1477 = vmatprep.subr.mxu0 0.0
    %1478 = vmatpush1.xpose.msra.mxu0 0.0
    %1479 = vmatprep.subr.mxu0 0.0
    %1480 = vmatpush1.xpose.msra.mxu0 0.0
    %1481 = vmatprep.subr.mxu0 0.0
    %1482 = vmatpush1.xpose.msra.mxu0 0.0
    %1483 = vmatprep.subr.mxu0 0.0
    %1484 = vmatpush1.xpose.msra.mxu0 0.0
    %1485 = vmatprep.subr.mxu0 0.0
    %1486 = vmatpush1.xpose.msra.mxu0 0.0
    %1487 = vmatprep.subr.mxu0 0.0
    %1488 = vmatpush1.xpose.msra.mxu0 0.0
    %1489 = vmatprep.subr.mxu0 0.0
    %1490 = vmatpush1.xpose.msra.mxu0 0.0
    %1491 = vmatprep.subr.mxu0 0.0
    %1492 = vmatpush1.xpose.msra.mxu0 0.0
    %1493 = vmatprep.subr.mxu0 0.0
    %1494 = vmatpush1.xpose.msra.mxu0 0.0
    %1495 = vmatprep.subr.mxu0 0.0
    %1496 = vmatpush1.xpose.msra.mxu0 0.0
    %1497 = vmatprep.subr.mxu0 0.0
    %1498 = vmatpush1.xpose.msra.mxu0 0.0
    %1499 = vmatprep.subr.mxu0 0.0
    %1500 = vmatpush1.xpose.msra.mxu0 0.0
    %1501 = vmatprep.subr.mxu0 0.0
    %1502 = vmatpush1.xpose.msra.mxu0 0.0
    %1503 = vmatprep.subr.mxu0 0.0
    %1504 = vmatpush1.xpose.msra.mxu0 0.0
    %1505 = vmatprep.subr.mxu0 0.0
    %1506 = vmatpush1.xpose.msra.mxu0 0.0
    %1507 = vmatprep.subr.mxu0 0.0
    %1508 = vmatpush1.xpose.msra.mxu0 0.0
    %1509 = vmatprep.subr.mxu0 0.0
    %1510 = vmatpush1.xpose.msra.mxu0 0.0
    %1511 = vmatprep.subr.mxu0 0.0
    %1512 = vmatpush1.xpose.msra.mxu0 0.0
    %1513 = vmatprep.subr.mxu0 0.0
    %1514 = vmatpush1.xpose.msra.mxu0 0.0
    %1515 = vmatprep.subr.mxu0 0.0
    %1516 = vmatpush1.xpose.msra.mxu0 0.0
    %1517 = vmatprep.subr.mxu0 0.0
    %1518 = vmatpush1.xpose.msra.mxu0 0.0
    %1519 = vmatprep.subr.mxu0 0.0
    %1520 = vmatpush1.xpose.msra.mxu0 0.0
    %1521 = vmatprep.subr.mxu0 0.0
    %1522 = vmatpush1.xpose.msra.mxu0 0.0
    %1523 = vmatprep.subr.mxu0 0.0
    %1524 = vmatpush1.xpose.msra.mxu0 0.0
    %1525 = vmatprep.mubr.f32.mxu0 0.0
    %1526 = vmatmul.mubr.f32.gmra.mrb[0].mxu0 %v1429
    %v1527 = vpop.f32.mrb[0].mxu0
    %v1528 = vadd.f32 0.0, %v1527
    %v1529 = vpop.f32.mrb[0].mxu0
    %1530 = vmatprep.mubr.f32.mxu0 0.0
    %1531 = vmatmul.mubr.f32.gmra.mrb[0].mxu0 %v1431
    %v1532 = vpop.f32.mrb[0].mxu0
    %v1533 = vadd.f32 0.0, %v1532
    %v1534 = vpop.f32.mrb[0].mxu0
    %1535 = vmatprep.mubr.f32.mxu0 0.0
    %1536 = vmatmul.mubr.f32.gmra.mrb[0].mxu0 %v1433
    %v1537 = vpop.f32.mrb[0].mxu0
    %v1538 = vadd.f32 0.0, %v1537
    %v1539 = vpop.f32.mrb[0].mxu0
    %1540 = vmatprep.mubr.f32.mxu0 0.0
    %1541 = vmatmul.mubr.f32.gmra.mrb[0].mxu0 %v1435
    %v1542 = vpop.f32.mrb[0].mxu0
    %v1543 = vadd.f32 0.0, %v1542
    %v1544 = vpop.f32.mrb[0].mxu0
    %1545 = vmatprep.mubr.f32.mxu0 0.0
    %1546 = vmatmul.mubr.f32.gmra.mrb[0].mxu0 %v1437
    %v1547 = vpop.f32.mrb[0].mxu0
    %v1548 = vadd.f32 0.0, %v1547
    %v1549 = vpop.f32.mrb[0].mxu0
    %1550 = vmatprep.mubr.f32.mxu0 0.0
    %1551 = vmatmul.mubr.f32.gmra.mrb[0].mxu0 %v1439
    %v1552 = vpop.f32.mrb[0].mxu0
    %v1553 = vadd.f32 0.0, %v1552
    %v1554 = vpop.f32.mrb[0].mxu0
    %1555 = vmatprep.mubr.f32.mxu0 0.0
    %1556 = vmatmul.mubr.f32.gmra.mrb[0].mxu0 %v1441
    %v1557 = vpop.f32.mrb[0].mxu0
    %v1558 = vadd.f32 0.0, %v1557
    %v1559 = vpop.f32.mrb[0].mxu0
    %1560 = vmatprep.mubr.f32.mxu0 0.0
    %1561 = vmatmul.mubr.f32.gmra.mrb[0].mxu0 %v1443
    %v1562 = vpop.f32.mrb[0].mxu0
    %v1563 = vadd.f32 0.0, %v1562
    %v1564 = vpop.f32.mrb[0].mxu0
    %1565 = vdwg.mxu0
    %v1566 = vsel %vm1042, %v1528, -inf
    %1567 = vmax.xlane.f32.xlu0 %v1566
    %v1568 = vpop.xlane.xlu0 %1567
    %v1569 = vsel %vm1042, %v1533, -inf
    %1570 = vmax.xlane.f32.xlu0 %v1569
    %v1571 = vpop.xlane.xlu0 %1570
    %v1572 = vsel %vm1042, %v1538, -inf
    %1573 = vmax.xlane.f32.xlu0 %v1572
    %v1574 = vpop.xlane.xlu0 %1573
    %v1575 = vsel %vm1042, %v1543, -inf
    %1576 = vmax.xlane.f32.xlu0 %v1575
    %v1577 = vpop.xlane.xlu0 %1576
    %v1578 = vsel %vm1042, %v1548, -inf
    %1579 = vmax.xlane.f32.xlu0 %v1578
    %v1580 = vpop.xlane.xlu0 %1579
    %v1581 = vsel %vm1042, %v1553, -inf
    %1582 = vmax.xlane.f32.xlu0 %v1581
    %v1583 = vpop.xlane.xlu0 %1582
    %v1584 = vsel %vm1042, %v1558, -inf
    %1585 = vmax.xlane.f32.xlu0 %v1584
    %v1586 = vpop.xlane.xlu0 %1585
    %v1587 = vsel %vm1042, %v1563, -inf
    %1588 = vmax.xlane.f32.xlu0 %v1587
    %v1589 = vpop.xlane.xlu0 %1588
    %v1590 = vsub.f32 %v1528, %v1568
    %v1591 = vsub.f32 %v1533, %v1571
    %v1592 = vsub.f32 %v1538, %v1574
    %v1593 = vsub.f32 %v1543, %v1577
    %v1594 = vsub.f32 %v1548, %v1580
    %v1595 = vsub.f32 %v1553, %v1583
    %v1596 = vsub.f32 %v1558, %v1586
    %v1597 = vsub.f32 %v1563, %v1589
    %v1598 = vmul.f32 %v1590, 1.442695
    %v1599 = vpow.pop %v1598
    %v1600 = vmul.f32 %v1591, 1.442695
    %v1601 = vpow.pop %v1600
    %v1602 = vmul.f32 %v1592, 1.442695
    %v1603 = vpow.pop %v1602
    %v1604 = vmul.f32 %v1593, 1.442695
    %v1605 = vpow.pop %v1604
    %v1606 = vmul.f32 %v1594, 1.442695
    %v1607 = vpow.pop %v1606
    %v1608 = vmul.f32 %v1595, 1.442695
    %v1609 = vpow.pop %v1608
    %v1610 = vmul.f32 %v1596, 1.442695
    %v1611 = vpow.pop %v1610
    %v1612 = vmul.f32 %v1597, 1.442695
    %v1613 = vpow.pop %v1612
    %1622 = vrot.lane.b32.xlu0 %v796, 96
    %v1623 = vpop.permute.xlu0 %1622
    %1624 = vrot.lane.b32.xlu0 %v801, 96
    %v1625 = vpop.permute.xlu0 %1624
    %1626 = vrot.lane.b32.xlu0 %v806, 96
    %v1627 = vpop.permute.xlu0 %1626
    %1628 = vrot.lane.b32.xlu0 %v811, 96
    %v1629 = vpop.permute.xlu0 %1628
    %1630 = vrot.lane.b32.xlu0 %v816, 96
    %v1631 = vpop.permute.xlu0 %1630
    %1632 = vrot.lane.b32.xlu0 %v821, 96
    %v1633 = vpop.permute.xlu0 %1632
    %1634 = vrot.lane.b32.xlu0 %v826, 96
    %v1635 = vpop.permute.xlu0 %1634
    %1636 = vrot.lane.b32.xlu0 %v831, 96
    %v1637 = vpop.permute.xlu0 %1636
    %v1647 = vsel %vm1042, %v1599, 0
    %v1650 = vsel %vm1042, %v1601, 0
    %v1653 = vsel %vm1042, %v1603, 0
    %v1656 = vsel %vm1042, %v1605, 0
    %v1659 = vsel %vm1042, %v1607, 0
    %v1662 = vsel %vm1042, %v1609, 0
    %v1665 = vsel %vm1042, %v1611, 0
    %v1668 = vsel %vm1042, %v1613, 0
    %1670 = vmatprep.subr.mxu0 0.0
    %1671 = vmatpush1.msra.mxu0 %v1623
    %1672 = vmatprep.subr.mxu0 0.0
    %1673 = vmatpush1.msra.mxu0 %v1625
    %1674 = vmatprep.subr.mxu0 0.0
    %1675 = vmatpush1.msra.mxu0 %v1627
    %1676 = vmatprep.subr.mxu0 0.0
    %1677 = vmatpush1.msra.mxu0 %v1629
    %1678 = vmatprep.subr.mxu0 0.0
    %1679 = vmatpush1.msra.mxu0 %v1631
    %1680 = vmatprep.subr.mxu0 0.0
    %1681 = vmatpush1.msra.mxu0 %v1633
    %1682 = vmatprep.subr.mxu0 0.0
    %1683 = vmatpush1.msra.mxu0 %v1635
    %1684 = vmatprep.subr.mxu0 0.0
    %1685 = vmatpush1.msra.mxu0 %v1637
    %1686 = vmatprep.subr.mxu0 0.0
    %1687 = vmatpush1.msra.mxu0 0.0
    %1688 = vmatprep.subr.mxu0 0.0
    %1689 = vmatpush1.msra.mxu0 0.0
    %1690 = vmatprep.subr.mxu0 0.0
    %1691 = vmatpush1.msra.mxu0 0.0
    %1692 = vmatprep.subr.mxu0 0.0
    %1693 = vmatpush1.msra.mxu0 0.0
    %1694 = vmatprep.subr.mxu0 0.0
    %1695 = vmatpush1.msra.mxu0 0.0
    %1696 = vmatprep.subr.mxu0 0.0
    %1697 = vmatpush1.msra.mxu0 0.0
    %1698 = vmatprep.subr.mxu0 0.0
    %1699 = vmatpush1.msra.mxu0 0.0
    %1700 = vmatprep.subr.mxu0 0.0
    %1701 = vmatpush1.msra.mxu0 0.0
    %1702 = vmatprep.subr.mxu0 0.0
    %1703 = vmatpush1.msra.mxu0 0.0
    %1704 = vmatprep.subr.mxu0 0.0
    %1705 = vmatpush1.msra.mxu0 0.0
    %1706 = vmatprep.subr.mxu0 0.0
    %1707 = vmatpush1.msra.mxu0 0.0
    %1708 = vmatprep.subr.mxu0 0.0
    %1709 = vmatpush1.msra.mxu0 0.0
    %1710 = vmatprep.subr.mxu0 0.0
    %1711 = vmatpush1.msra.mxu0 0.0
    %1712 = vmatprep.subr.mxu0 0.0
    %1713 = vmatpush1.msra.mxu0 0.0
    %1714 = vmatprep.subr.mxu0 0.0
    %1715 = vmatpush1.msra.mxu0 0.0
    %1716 = vmatprep.subr.mxu0 0.0
    %1717 = vmatpush1.msra.mxu0 0.0
    %1718 = vmatprep.subr.mxu0 0.0
    %1719 = vmatpush1.msra.mxu0 0.0
    %1720 = vmatprep.subr.mxu0 0.0
    %1721 = vmatpush1.msra.mxu0 0.0
    %1722 = vmatprep.subr.mxu0 0.0
    %1723 = vmatpush1.msra.mxu0 0.0
    %1724 = vmatprep.subr.mxu0 0.0
    %1725 = vmatpush1.msra.mxu0 0.0
    %1726 = vmatprep.subr.mxu0 0.0
    %1727 = vmatpush1.msra.mxu0 0.0
    %1728 = vmatprep.subr.mxu0 0.0
    %1729 = vmatpush1.msra.mxu0 0.0
    %1730 = vmatprep.subr.mxu0 0.0
    %1731 = vmatpush1.msra.mxu0 0.0
    %1732 = vmatprep.subr.mxu0 0.0
    %1733 = vmatpush1.msra.mxu0 0.0
    %1734 = vmatprep.mubr.f32.mxu0 0.0
    %1735 = vmatmul.mubr.f32.gmra.mrb[0].mxu0 %v1647
    %v1736 = vpop.f32.mrb[0].mxu0
    %v1737 = vadd.f32 0.0, %v1736
    %v1738 = vpop.f32.mrb[0].mxu0
    %1739 = vmatprep.mubr.f32.mxu0 0.0
    %1740 = vmatmul.mubr.f32.gmra.mrb[0].mxu0 %v1650
    %v1741 = vpop.f32.mrb[0].mxu0
    %v1742 = vadd.f32 0.0, %v1741
    %v1743 = vpop.f32.mrb[0].mxu0
    %1744 = vmatprep.mubr.f32.mxu0 0.0
    %1745 = vmatmul.mubr.f32.gmra.mrb[0].mxu0 %v1653
    %v1746 = vpop.f32.mrb[0].mxu0
    %v1747 = vadd.f32 0.0, %v1746
    %v1748 = vpop.f32.mrb[0].mxu0
    %1749 = vmatprep.mubr.f32.mxu0 0.0
    %1750 = vmatmul.mubr.f32.gmra.mrb[0].mxu0 %v1656
    %v1751 = vpop.f32.mrb[0].mxu0
    %v1752 = vadd.f32 0.0, %v1751
    %v1753 = vpop.f32.mrb[0].mxu0
    %1754 = vmatprep.mubr.f32.mxu0 0.0
    %1755 = vmatmul.mubr.f32.gmra.mrb[0].mxu0 %v1659
    %v1756 = vpop.f32.mrb[0].mxu0
    %v1757 = vadd.f32 0.0, %v1756
    %v1758 = vpop.f32.mrb[0].mxu0
    %1759 = vmatprep.mubr.f32.mxu0 0.0
    %1760 = vmatmul.mubr.f32.gmra.mrb[0].mxu0 %v1662
    %v1761 = vpop.f32.mrb[0].mxu0
    %v1762 = vadd.f32 0.0, %v1761
    %v1763 = vpop.f32.mrb[0].mxu0
    %1764 = vmatprep.mubr.f32.mxu0 0.0
    %1765 = vmatmul.mubr.f32.gmra.mrb[0].mxu0 %v1665
    %v1766 = vpop.f32.mrb[0].mxu0
    %v1767 = vadd.f32 0.0, %v1766
    %v1768 = vpop.f32.mrb[0].mxu0
    %1769 = vmatprep.mubr.f32.mxu0 0.0
    %1770 = vmatmul.mubr.f32.gmra.mrb[0].mxu0 %v1668
    %v1771 = vpop.f32.mrb[0].mxu0
    %v1772 = vadd.f32 0.0, %v1771
    %v1773 = vpop.f32.mrb[0].mxu0
    %1774 = vdwg.mxu0
    %v1775 = vsel %vm1042, %v1599, 0.0
    %1776 = vadd.xlane.f32.xlu0 %v1775
    %v1777 = vpop.xlane.xlu0 %1776
    %v1778 = vsel %vm1042, %v1601, 0.0
    %1779 = vadd.xlane.f32.xlu0 %v1778
    %v1780 = vpop.xlane.xlu0 %1779
    %v1781 = vsel %vm1042, %v1603, 0.0
    %1782 = vadd.xlane.f32.xlu0 %v1781
    %v1783 = vpop.xlane.xlu0 %1782
    %v1784 = vsel %vm1042, %v1605, 0.0
    %1785 = vadd.xlane.f32.xlu0 %v1784
    %v1786 = vpop.xlane.xlu0 %1785
    %v1787 = vsel %vm1042, %v1607, 0.0
    %1788 = vadd.xlane.f32.xlu0 %v1787
    %v1789 = vpop.xlane.xlu0 %1788
    %v1790 = vsel %vm1042, %v1609, 0.0
    %1791 = vadd.xlane.f32.xlu0 %v1790
    %v1792 = vpop.xlane.xlu0 %1791
    %v1793 = vsel %vm1042, %v1611, 0.0
    %1794 = vadd.xlane.f32.xlu0 %v1793
    %v1795 = vpop.xlane.xlu0 %1794
    %v1796 = vsel %vm1042, %v1613, 0.0
    %1797 = vadd.xlane.f32.xlu0 %v1796
    %v1798 = vpop.xlane.xlu0 %1797
    %v1799 = vrcp.pop %v1777
    %v1800 = vrcp.pop %v1780
    %v1801 = vrcp.pop %v1783
    %v1802 = vrcp.pop %v1786
    %v1803 = vrcp.pop %v1789
    %v1804 = vrcp.pop %v1792
    %v1805 = vrcp.pop %v1795
    %v1806 = vrcp.pop %v1798
    %v1807 = vmul.f32 %v1737, %v1799
    %v1808 = vmul.f32 %v1742, %v1800
    %v1809 = vmul.f32 %v1747, %v1801
    %v1810 = vmul.f32 %v1752, %v1802
    %v1811 = vmul.f32 %v1757, %v1803
    %v1812 = vmul.f32 %v1762, %v1804
    %v1813 = vmul.f32 %v1767, %v1805
    %v1814 = vmul.f32 %v1772, %v1806
    %v1816 = vsel %vm888, %v1807, 0
    %v1819 = vsel %vm888, %v1808, 0
    %v1822 = vsel %vm888, %v1809, 0
    %v1825 = vsel %vm888, %v1810, 0
    %v1828 = vsel %vm888, %v1811, 0
    %v1831 = vsel %vm888, %v1812, 0
    %v1834 = vsel %vm888, %v1813, 0
    %v1837 = vsel %vm888, %v1814, 0
    %1839 = vmatprep.subr.mxu0 0.0
    %1840 = vmatpush1.msra.mxu0 %v389
    %1841 = vmatprep.subr.mxu0 0.0
    %1842 = vmatpush1.msra.mxu0 %v390
    %1843 = vmatprep.subr.mxu0 0.0
    %1844 = vmatpush1.msra.mxu0 %v391
    %1845 = vmatprep.subr.mxu0 0.0
    %1846 = vmatpush1.msra.mxu0 %v392
    %1847 = vmatprep.subr.mxu0 0.0
    %1848 = vmatpush1.msra.mxu0 0.0
    %1849 = vmatprep.subr.mxu0 0.0
    %1850 = vmatpush1.msra.mxu0 0.0
    %1851 = vmatprep.subr.mxu0 0.0
    %1852 = vmatpush1.msra.mxu0 0.0
    %1853 = vmatprep.subr.mxu0 0.0
    %1854 = vmatpush1.msra.mxu0 0.0
    %1855 = vmatprep.subr.mxu0 0.0
    %1856 = vmatpush1.msra.mxu0 0.0
    %1857 = vmatprep.subr.mxu0 0.0
    %1858 = vmatpush1.msra.mxu0 0.0
    %1859 = vmatprep.subr.mxu0 0.0
    %1860 = vmatpush1.msra.mxu0 0.0
    %1861 = vmatprep.subr.mxu0 0.0
    %1862 = vmatpush1.msra.mxu0 0.0
    %1863 = vmatprep.subr.mxu0 0.0
    %1864 = vmatpush1.msra.mxu0 0.0
    %1865 = vmatprep.subr.mxu0 0.0
    %1866 = vmatpush1.msra.mxu0 0.0
    %1867 = vmatprep.subr.mxu0 0.0
    %1868 = vmatpush1.msra.mxu0 0.0
    %1869 = vmatprep.subr.mxu0 0.0
    %1870 = vmatpush1.msra.mxu0 0.0
    %1871 = vmatprep.subr.mxu0 0.0
    %1872 = vmatpush1.msra.mxu0 0.0
    %1873 = vmatprep.subr.mxu0 0.0
    %1874 = vmatpush1.msra.mxu0 0.0
    %1875 = vmatprep.subr.mxu0 0.0
    %1876 = vmatpush1.msra.mxu0 0.0
    %1877 = vmatprep.subr.mxu0 0.0
    %1878 = vmatpush1.msra.mxu0 0.0
    %1879 = vmatprep.subr.mxu0 0.0
    %1880 = vmatpush1.msra.mxu0 0.0
    %1881 = vmatprep.subr.mxu0 0.0
    %1882 = vmatpush1.msra.mxu0 0.0
    %1883 = vmatprep.subr.mxu0 0.0
    %1884 = vmatpush1.msra.mxu0 0.0
    %1885 = vmatprep.subr.mxu0 0.0
    %1886 = vmatpush1.msra.mxu0 0.0
    %1887 = vmatprep.subr.mxu0 0.0
    %1888 = vmatpush1.msra.mxu0 0.0
    %1889 = vmatprep.subr.mxu0 0.0
    %1890 = vmatpush1.msra.mxu0 0.0
    %1891 = vmatprep.subr.mxu0 0.0
    %1892 = vmatpush1.msra.mxu0 0.0
    %1893 = vmatprep.subr.mxu0 0.0
    %1894 = vmatpush1.msra.mxu0 0.0
    %1895 = vmatprep.subr.mxu0 0.0
    %1896 = vmatpush1.msra.mxu0 0.0
    %1897 = vmatprep.subr.mxu0 0.0
    %1898 = vmatpush1.msra.mxu0 0.0
    %1899 = vmatprep.subr.mxu0 0.0
    %1900 = vmatpush1.msra.mxu0 0.0
    %1901 = vmatprep.subr.mxu0 0.0
    %1902 = vmatpush1.msra.mxu0 0.0
    %1903 = vmatprep.mubr.f32.mxu0 0.0
    %1904 = vmatmul.mubr.f32.gmra.mrb[0].mxu0 %v1816
    %v1905 = vpop.f32.mrb[0].mxu0
    %v1906 = vadd.f32 0.0, %v1905
    %v1907 = vpop.f32.mrb[0].mxu0
    %1908 = vmatprep.mubr.f32.mxu0 0.0
    %1909 = vmatmul.mubr.f32.gmra.mrb[0].mxu0 %v1819
    %v1910 = vpop.f32.mrb[0].mxu0
    %v1911 = vadd.f32 0.0, %v1910
    %v1912 = vpop.f32.mrb[0].mxu0
    %1913 = vmatprep.mubr.f32.mxu0 0.0
    %1914 = vmatmul.mubr.f32.gmra.mrb[0].mxu0 %v1822
    %v1915 = vpop.f32.mrb[0].mxu0
    %v1916 = vadd.f32 0.0, %v1915
    %v1917 = vpop.f32.mrb[0].mxu0
    %1918 = vmatprep.mubr.f32.mxu0 0.0
    %1919 = vmatmul.mubr.f32.gmra.mrb[0].mxu0 %v1825
    %v1920 = vpop.f32.mrb[0].mxu0
    %v1921 = vadd.f32 0.0, %v1920
    %v1922 = vpop.f32.mrb[0].mxu0
    %1923 = vmatprep.mubr.f32.mxu0 0.0
    %1924 = vmatmul.mubr.f32.gmra.mrb[0].mxu0 %v1828
    %v1925 = vpop.f32.mrb[0].mxu0
    %v1926 = vadd.f32 0.0, %v1925
    %v1927 = vpop.f32.mrb[0].mxu0
    %1928 = vmatprep.mubr.f32.mxu0 0.0
    %1929 = vmatmul.mubr.f32.gmra.mrb[0].mxu0 %v1831
    %v1930 = vpop.f32.mrb[0].mxu0
    %v1931 = vadd.f32 0.0, %v1930
    %v1932 = vpop.f32.mrb[0].mxu0
    %1933 = vmatprep.mubr.f32.mxu0 0.0
    %1934 = vmatmul.mubr.f32.gmra.mrb[0].mxu0 %v1834
    %v1935 = vpop.f32.mrb[0].mxu0
    %v1936 = vadd.f32 0.0, %v1935
    %v1937 = vpop.f32.mrb[0].mxu0
    %1938 = vmatprep.mubr.f32.mxu0 0.0
    %1939 = vmatmul.mubr.f32.gmra.mrb[0].mxu0 %v1837
    %v1940 = vpop.f32.mrb[0].mxu0
    %v1941 = vadd.f32 0.0, %v1940
    %v1942 = vpop.f32.mrb[0].mxu0
    %1943 = vdwg.mxu0
    %v1944 = vadd.f32 %v1389, %v1906
    %v1945 = vadd.f32 %v1390, %v1911
    %v1946 = vadd.f32 %v1391, %v1916
    %v1947 = vadd.f32 %v1392, %v1921
    %v1948 = vadd.f32 %v1393, %v1926
    %v1949 = vadd.f32 %v1394, %v1931
    %v1950 = vadd.f32 %v1395, %v1936
    %v1951 = vadd.f32 %v1396, %v1941
    %1952 = vrot.lane.b32.xlu0 %v492, 64
    %v1953 = vpop.permute.xlu0 %1952
    %1954 = vrot.lane.b32.xlu0 %v497, 64
    %v1955 = vpop.permute.xlu0 %1954
    %1956 = vrot.lane.b32.xlu0 %v502, 64
    %v1957 = vpop.permute.xlu0 %1956
    %1958 = vrot.lane.b32.xlu0 %v507, 64
    %v1959 = vpop.permute.xlu0 %1958
    %1960 = vrot.lane.b32.xlu0 %v512, 64
    %v1961 = vpop.permute.xlu0 %1960
    %1962 = vrot.lane.b32.xlu0 %v517, 64
    %v1963 = vpop.permute.xlu0 %1962
    %1964 = vrot.lane.b32.xlu0 %v522, 64
    %v1965 = vpop.permute.xlu0 %1964
    %1966 = vrot.lane.b32.xlu0 %v527, 64
    %v1967 = vpop.permute.xlu0 %1966
    %1968 = vrot.lane.b32.xlu0 %v644, 64
    %v1969 = vpop.permute.xlu0 %1968
    %1970 = vrot.lane.b32.xlu0 %v649, 64
    %v1971 = vpop.permute.xlu0 %1970
    %1972 = vrot.lane.b32.xlu0 %v654, 64
    %v1973 = vpop.permute.xlu0 %1972
    %1974 = vrot.lane.b32.xlu0 %v659, 64
    %v1975 = vpop.permute.xlu0 %1974
    %1976 = vrot.lane.b32.xlu0 %v664, 64
    %v1977 = vpop.permute.xlu0 %1976
    %1978 = vrot.lane.b32.xlu0 %v669, 64
    %v1979 = vpop.permute.xlu0 %1978
    %1980 = vrot.lane.b32.xlu0 %v674, 64
    %v1981 = vpop.permute.xlu0 %1980
    %1982 = vrot.lane.b32.xlu0 %v679, 64
    %v1983 = vpop.permute.xlu0 %1982
    %v1984 = vsel %vm888, %v1953, 0
    %v1986 = vsel %vm888, %v1955, 0
    %v1988 = vsel %vm888, %v1957, 0
    %v1990 = vsel %vm888, %v1959, 0
    %v1992 = vsel %vm888, %v1961, 0
    %v1994 = vsel %vm888, %v1963, 0
    %v1996 = vsel %vm888, %v1965, 0
    %v1998 = vsel %vm888, %v1967, 0
    %v2000 = vsel %vm888, %v1969, 0
    %v2002 = vsel %vm888, %v1971, 0
    %v2004 = vsel %vm888, %v1973, 0
    %v2006 = vsel %vm888, %v1975, 0
    %v2008 = vsel %vm888, %v1977, 0
    %v2010 = vsel %vm888, %v1979, 0
    %v2012 = vsel %vm888, %v1981, 0
    %v2014 = vsel %vm888, %v1983, 0
    %2016 = vmatprep.subr.mxu0 0.0
    %2017 = vmatpush1.xpose.msra.mxu0 %v2000
    %2018 = vmatprep.subr.mxu0 0.0
    %2019 = vmatpush1.xpose.msra.mxu0 %v2002
    %2020 = vmatprep.subr.mxu0 0.0
    %2021 = vmatpush1.xpose.msra.mxu0 %v2004
    %2022 = vmatprep.subr.mxu0 0.0
    %2023 = vmatpush1.xpose.msra.mxu0 %v2006
    %2024 = vmatprep.subr.mxu0 0.0
    %2025 = vmatpush1.xpose.msra.mxu0 %v2008
    %2026 = vmatprep.subr.mxu0 0.0
    %2027 = vmatpush1.xpose.msra.mxu0 %v2010
    %2028 = vmatprep.subr.mxu0 0.0
    %2029 = vmatpush1.xpose.msra.mxu0 %v2012
    %2030 = vmatprep.subr.mxu0 0.0
    %2031 = vmatpush1.xpose.msra.mxu0 %v2014
    %2032 = vmatprep.subr.mxu0 0.0
    %2033 = vmatpush1.xpose.msra.mxu0 0.0
    %2034 = vmatprep.subr.mxu0 0.0
    %2035 = vmatpush1.xpose.msra.mxu0 0.0
    %2036 = vmatprep.subr.mxu0 0.0
    %2037 = vmatpush1.xpose.msra.mxu0 0.0
    %2038 = vmatprep.subr.mxu0 0.0
    %2039 = vmatpush1.xpose.msra.mxu0 0.0
    %2040 = vmatprep.subr.mxu0 0.0
    %2041 = vmatpush1.xpose.msra.mxu0 0.0
    %2042 = vmatprep.subr.mxu0 0.0
    %2043 = vmatpush1.xpose.msra.mxu0 0.0
    %2044 = vmatprep.subr.mxu0 0.0
    %2045 = vmatpush1.xpose.msra.mxu0 0.0
    %2046 = vmatprep.subr.mxu0 0.0
    %2047 = vmatpush1.xpose.msra.mxu0 0.0
    %2048 = vmatprep.subr.mxu0 0.0
    %2049 = vmatpush1.xpose.msra.mxu0 0.0
    %2050 = vmatprep.subr.mxu0 0.0
    %2051 = vmatpush1.xpose.msra.mxu0 0.0
    %2052 = vmatprep.subr.mxu0 0.0
    %2053 = vmatpush1.xpose.msra.mxu0 0.0
    %2054 = vmatprep.subr.mxu0 0.0
    %2055 = vmatpush1.xpose.msra.mxu0 0.0
    %2056 = vmatprep.subr.mxu0 0.0
    %2057 = vmatpush1.xpose.msra.mxu0 0.0
    %2058 = vmatprep.subr.mxu0 0.0
    %2059 = vmatpush1.xpose.msra.mxu0 0.0
    %2060 = vmatprep.subr.mxu0 0.0
    %2061 = vmatpush1.xpose.msra.mxu0 0.0
    %2062 = vmatprep.subr.mxu0 0.0
    %2063 = vmatpush1.xpose.msra.mxu0 0.0
    %2064 = vmatprep.subr.mxu0 0.0
    %2065 = vmatpush1.xpose.msra.mxu0 0.0
    %2066 = vmatprep.subr.mxu0 0.0
    %2067 = vmatpush1.xpose.msra.mxu0 0.0
    %2068 = vmatprep.subr.mxu0 0.0
    %2069 = vmatpush1.xpose.msra.mxu0 0.0
    %2070 = vmatprep.subr.mxu0 0.0
    %2071 = vmatpush1.xpose.msra.mxu0 0.0
    %2072 = vmatprep.subr.mxu0 0.0
    %2073 = vmatpush1.xpose.msra.mxu0 0.0
    %2074 = vmatprep.subr.mxu0 0.0
    %2075 = vmatpush1.xpose.msra.mxu0 0.0
    %2076 = vmatprep.subr.mxu0 0.0
    %2077 = vmatpush1.xpose.msra.mxu0 0.0
    %2078 = vmatprep.subr.mxu0 0.0
    %2079 = vmatpush1.xpose.msra.mxu0 0.0
    %2080 = vmatprep.mubr.f32.mxu0 0.0
    %2081 = vmatmul.mubr.f32.gmra.mrb[0].mxu0 %v1984
    %v2082 = vpop.f32.mrb[0].mxu0
    %v2083 = vadd.f32 0.0, %v2082
    %v2084 = vpop.f32.mrb[0].mxu0
    %2085 = vmatprep.mubr.f32.mxu0 0.0
    %2086 = vmatmul.mubr.f32.gmra.mrb[0].mxu0 %v1986
    %v2087 = vpop.f32.mrb[0].mxu0
    %v2088 = vadd.f32 0.0, %v2087
    %v2089 = vpop.f32.mrb[0].mxu0
    %2090 = vmatprep.mubr.f32.mxu0 0.0
    %2091 = vmatmul.mubr.f32.gmra.mrb[0].mxu0 %v1988
    %v2092 = vpop.f32.mrb[0].mxu0
    %v2093 = vadd.f32 0.0, %v2092
    %v2094 = vpop.f32.mrb[0].mxu0
    %2095 = vmatprep.mubr.f32.mxu0 0.0
    %2096 = vmatmul.mubr.f32.gmra.mrb[0].mxu0 %v1990
    %v2097 = vpop.f32.mrb[0].mxu0
    %v2098 = vadd.f32 0.0, %v2097
    %v2099 = vpop.f32.mrb[0].mxu0
    %2100 = vmatprep.mubr.f32.mxu0 0.0
    %2101 = vmatmul.mubr.f32.gmra.mrb[0].mxu0 %v1992
    %v2102 = vpop.f32.mrb[0].mxu0
    %v2103 = vadd.f32 0.0, %v2102
    %v2104 = vpop.f32.mrb[0].mxu0
    %2105 = vmatprep.mubr.f32.mxu0 0.0
    %2106 = vmatmul.mubr.f32.gmra.mrb[0].mxu0 %v1994
    %v2107 = vpop.f32.mrb[0].mxu0
    %v2108 = vadd.f32 0.0, %v2107
    %v2109 = vpop.f32.mrb[0].mxu0
    %2110 = vmatprep.mubr.f32.mxu0 0.0
    %2111 = vmatmul.mubr.f32.gmra.mrb[0].mxu0 %v1996
    %v2112 = vpop.f32.mrb[0].mxu0
    %v2113 = vadd.f32 0.0, %v2112
    %v2114 = vpop.f32.mrb[0].mxu0
    %2115 = vmatprep.mubr.f32.mxu0 0.0
    %2116 = vmatmul.mubr.f32.gmra.mrb[0].mxu0 %v1998
    %v2117 = vpop.f32.mrb[0].mxu0
    %v2118 = vadd.f32 0.0, %v2117
    %v2119 = vpop.f32.mrb[0].mxu0
    %2120 = vdwg.mxu0
    %v2121 = vsel %vm1042, %v2083, -inf
    %2122 = vmax.xlane.f32.xlu0 %v2121
    %v2123 = vpop.xlane.xlu0 %2122
    %v2124 = vsel %vm1042, %v2088, -inf
    %2125 = vmax.xlane.f32.xlu0 %v2124
    %v2126 = vpop.xlane.xlu0 %2125
    %v2127 = vsel %vm1042, %v2093, -inf
    %2128 = vmax.xlane.f32.xlu0 %v2127
    %v2129 = vpop.xlane.xlu0 %2128
    %v2130 = vsel %vm1042, %v2098, -inf
    %2131 = vmax.xlane.f32.xlu0 %v2130
    %v2132 = vpop.xlane.xlu0 %2131
    %v2133 = vsel %vm1042, %v2103, -inf
    %2134 = vmax.xlane.f32.xlu0 %v2133
    %v2135 = vpop.xlane.xlu0 %2134
    %v2136 = vsel %vm1042, %v2108, -inf
    %2137 = vmax.xlane.f32.xlu0 %v2136
    %v2138 = vpop.xlane.xlu0 %2137
    %v2139 = vsel %vm1042, %v2113, -inf
    %2140 = vmax.xlane.f32.xlu0 %v2139
    %v2141 = vpop.xlane.xlu0 %2140
    %v2142 = vsel %vm1042, %v2118, -inf
    %2143 = vmax.xlane.f32.xlu0 %v2142
    %v2144 = vpop.xlane.xlu0 %2143
    %v2145 = vsub.f32 %v2083, %v2123
    %v2146 = vsub.f32 %v2088, %v2126
    %v2147 = vsub.f32 %v2093, %v2129
    %v2148 = vsub.f32 %v2098, %v2132
    %v2149 = vsub.f32 %v2103, %v2135
    %v2150 = vsub.f32 %v2108, %v2138
    %v2151 = vsub.f32 %v2113, %v2141
    %v2152 = vsub.f32 %v2118, %v2144
    %v2153 = vmul.f32 %v2145, 1.442695
    %v2154 = vpow.pop %v2153
    %v2155 = vmul.f32 %v2146, 1.442695
    %v2156 = vpow.pop %v2155
    %v2157 = vmul.f32 %v2147, 1.442695
    %v2158 = vpow.pop %v2157
    %v2159 = vmul.f32 %v2148, 1.442695
    %v2160 = vpow.pop %v2159
    %v2161 = vmul.f32 %v2149, 1.442695
    %v2162 = vpow.pop %v2161
    %v2163 = vmul.f32 %v2150, 1.442695
    %v2164 = vpow.pop %v2163
    %v2165 = vmul.f32 %v2151, 1.442695
    %v2166 = vpow.pop %v2165
    %v2167 = vmul.f32 %v2152, 1.442695
    %v2168 = vpow.pop %v2167
    %2169 = vrot.lane.b32.xlu0 %v796, 64
    %v2170 = vpop.permute.xlu0 %2169
    %2171 = vrot.lane.b32.xlu0 %v801, 64
    %v2172 = vpop.permute.xlu0 %2171
    %2173 = vrot.lane.b32.xlu0 %v806, 64
    %v2174 = vpop.permute.xlu0 %2173
    %2175 = vrot.lane.b32.xlu0 %v811, 64
    %v2176 = vpop.permute.xlu0 %2175
    %2177 = vrot.lane.b32.xlu0 %v816, 64
    %v2178 = vpop.permute.xlu0 %2177
    %2179 = vrot.lane.b32.xlu0 %v821, 64
    %v2180 = vpop.permute.xlu0 %2179
    %2181 = vrot.lane.b32.xlu0 %v826, 64
    %v2182 = vpop.permute.xlu0 %2181
    %2183 = vrot.lane.b32.xlu0 %v831, 64
    %v2184 = vpop.permute.xlu0 %2183
    %v2194 = vsel %vm1042, %v2154, 0
    %v2197 = vsel %vm1042, %v2156, 0
    %v2200 = vsel %vm1042, %v2158, 0
    %v2203 = vsel %vm1042, %v2160, 0
    %v2206 = vsel %vm1042, %v2162, 0
    %v2209 = vsel %vm1042, %v2164, 0
    %v2212 = vsel %vm1042, %v2166, 0
    %v2215 = vsel %vm1042, %v2168, 0
    %2217 = vmatprep.subr.mxu0 0.0
    %2218 = vmatpush1.msra.mxu0 %v2170
    %2219 = vmatprep.subr.mxu0 0.0
    %2220 = vmatpush1.msra.mxu0 %v2172
    %2221 = vmatprep.subr.mxu0 0.0
    %2222 = vmatpush1.msra.mxu0 %v2174
    %2223 = vmatprep.subr.mxu0 0.0
    %2224 = vmatpush1.msra.mxu0 %v2176
    %2225 = vmatprep.subr.mxu0 0.0
    %2226 = vmatpush1.msra.mxu0 %v2178
    %2227 = vmatprep.subr.mxu0 0.0
    %2228 = vmatpush1.msra.mxu0 %v2180
    %2229 = vmatprep.subr.mxu0 0.0
    %2230 = vmatpush1.msra.mxu0 %v2182
    %2231 = vmatprep.subr.mxu0 0.0
    %2232 = vmatpush1.msra.mxu0 %v2184
    %2233 = vmatprep.subr.mxu0 0.0
    %2234 = vmatpush1.msra.mxu0 0.0
    %2235 = vmatprep.subr.mxu0 0.0
    %2236 = vmatpush1.msra.mxu0 0.0
    %2237 = vmatprep.subr.mxu0 0.0
    %2238 = vmatpush1.msra.mxu0 0.0
    %2239 = vmatprep.subr.mxu0 0.0
    %2240 = vmatpush1.msra.mxu0 0.0
    %2241 = vmatprep.subr.mxu0 0.0
    %2242 = vmatpush1.msra.mxu0 0.0
    %2243 = vmatprep.subr.mxu0 0.0
    %2244 = vmatpush1.msra.mxu0 0.0
    %2245 = vmatprep.subr.mxu0 0.0
    %2246 = vmatpush1.msra.mxu0 0.0
    %2247 = vmatprep.subr.mxu0 0.0
    %2248 = vmatpush1.msra.mxu0 0.0
    %2249 = vmatprep.subr.mxu0 0.0
    %2250 = vmatpush1.msra.mxu0 0.0
    %2251 = vmatprep.subr.mxu0 0.0
    %2252 = vmatpush1.msra.mxu0 0.0
    %2253 = vmatprep.subr.mxu0 0.0
    %2254 = vmatpush1.msra.mxu0 0.0
    %2255 = vmatprep.subr.mxu0 0.0
    %2256 = vmatpush1.msra.mxu0 0.0
    %2257 = vmatprep.subr.mxu0 0.0
    %2258 = vmatpush1.msra.mxu0 0.0
    %2259 = vmatprep.subr.mxu0 0.0
    %2260 = vmatpush1.msra.mxu0 0.0
    %2261 = vmatprep.subr.mxu0 0.0
    %2262 = vmatpush1.msra.mxu0 0.0
    %2263 = vmatprep.subr.mxu0 0.0
    %2264 = vmatpush1.msra.mxu0 0.0
    %2265 = vmatprep.subr.mxu0 0.0
    %2266 = vmatpush1.msra.mxu0 0.0
    %2267 = vmatprep.subr.mxu0 0.0
    %2268 = vmatpush1.msra.mxu0 0.0
    %2269 = vmatprep.subr.mxu0 0.0
    %2270 = vmatpush1.msra.mxu0 0.0
    %2271 = vmatprep.subr.mxu0 0.0
    %2272 = vmatpush1.msra.mxu0 0.0
    %2273 = vmatprep.subr.mxu0 0.0
    %2274 = vmatpush1.msra.mxu0 0.0
    %2275 = vmatprep.subr.mxu0 0.0
    %2276 = vmatpush1.msra.mxu0 0.0
    %2277 = vmatprep.subr.mxu0 0.0
    %2278 = vmatpush1.msra.mxu0 0.0
    %2279 = vmatprep.subr.mxu0 0.0
    %2280 = vmatpush1.msra.mxu0 0.0
    %2281 = vmatprep.mubr.f32.mxu0 0.0
    %2282 = vmatmul.mubr.f32.gmra.mrb[0].mxu0 %v2194
    %v2283 = vpop.f32.mrb[0].mxu0
    %v2284 = vadd.f32 0.0, %v2283
    %v2285 = vpop.f32.mrb[0].mxu0
    %2286 = vmatprep.mubr.f32.mxu0 0.0
    %2287 = vmatmul.mubr.f32.gmra.mrb[0].mxu0 %v2197
    %v2288 = vpop.f32.mrb[0].mxu0
    %v2289 = vadd.f32 0.0, %v2288
    %v2290 = vpop.f32.mrb[0].mxu0
    %2291 = vmatprep.mubr.f32.mxu0 0.0
    %2292 = vmatmul.mubr.f32.gmra.mrb[0].mxu0 %v2200
    %v2293 = vpop.f32.mrb[0].mxu0
    %v2294 = vadd.f32 0.0, %v2293
    %v2295 = vpop.f32.mrb[0].mxu0
    %2296 = vmatprep.mubr.f32.mxu0 0.0
    %2297 = vmatmul.mubr.f32.gmra.mrb[0].mxu0 %v2203
    %v2298 = vpop.f32.mrb[0].mxu0
    %v2299 = vadd.f32 0.0, %v2298
    %v2300 = vpop.f32.mrb[0].mxu0
    %2301 = vmatprep.mubr.f32.mxu0 0.0
    %2302 = vmatmul.mubr.f32.gmra.mrb[0].mxu0 %v2206
    %v2303 = vpop.f32.mrb[0].mxu0
    %v2304 = vadd.f32 0.0, %v2303
    %v2305 = vpop.f32.mrb[0].mxu0
    %2306 = vmatprep.mubr.f32.mxu0 0.0
    %2307 = vmatmul.mubr.f32.gmra.mrb[0].mxu0 %v2209
    %v2308 = vpop.f32.mrb[0].mxu0
    %v2309 = vadd.f32 0.0, %v2308
    %v2310 = vpop.f32.mrb[0].mxu0
    %2311 = vmatprep.mubr.f32.mxu0 0.0
    %2312 = vmatmul.mubr.f32.gmra.mrb[0].mxu0 %v2212
    %v2313 = vpop.f32.mrb[0].mxu0
    %v2314 = vadd.f32 0.0, %v2313
    %v2315 = vpop.f32.mrb[0].mxu0
    %2316 = vmatprep.mubr.f32.mxu0 0.0
    %2317 = vmatmul.mubr.f32.gmra.mrb[0].mxu0 %v2215
    %v2318 = vpop.f32.mrb[0].mxu0
    %v2319 = vadd.f32 0.0, %v2318
    %v2320 = vpop.f32.mrb[0].mxu0
    %2321 = vdwg.mxu0
    %v2322 = vsel %vm1042, %v2154, 0.0
    %2323 = vadd.xlane.f32.xlu0 %v2322
    %v2324 = vpop.xlane.xlu0 %2323
    %v2325 = vsel %vm1042, %v2156, 0.0
    %2326 = vadd.xlane.f32.xlu0 %v2325
    %v2327 = vpop.xlane.xlu0 %2326
    %v2328 = vsel %vm1042, %v2158, 0.0
    %2329 = vadd.xlane.f32.xlu0 %v2328
    %v2330 = vpop.xlane.xlu0 %2329
    %v2331 = vsel %vm1042, %v2160, 0.0
    %2332 = vadd.xlane.f32.xlu0 %v2331
    %v2333 = vpop.xlane.xlu0 %2332
    %v2334 = vsel %vm1042, %v2162, 0.0
    %2335 = vadd.xlane.f32.xlu0 %v2334
    %v2336 = vpop.xlane.xlu0 %2335
    %v2337 = vsel %vm1042, %v2164, 0.0
    %2338 = vadd.xlane.f32.xlu0 %v2337
    %v2339 = vpop.xlane.xlu0 %2338
    %v2340 = vsel %vm1042, %v2166, 0.0
    %2341 = vadd.xlane.f32.xlu0 %v2340
    %v2342 = vpop.xlane.xlu0 %2341
    %v2343 = vsel %vm1042, %v2168, 0.0
    %2344 = vadd.xlane.f32.xlu0 %v2343
    %v2345 = vpop.xlane.xlu0 %2344
    %v2346 = vrcp.pop %v2324
    %v2347 = vrcp.pop %v2327
    %v2348 = vrcp.pop %v2330
    %v2349 = vrcp.pop %v2333
    %v2350 = vrcp.pop %v2336
    %v2351 = vrcp.pop %v2339
    %v2352 = vrcp.pop %v2342
    %v2353 = vrcp.pop %v2345
    %v2354 = vmul.f32 %v2284, %v2346
    %v2355 = vmul.f32 %v2289, %v2347
    %v2356 = vmul.f32 %v2294, %v2348
    %v2357 = vmul.f32 %v2299, %v2349
    %v2358 = vmul.f32 %v2304, %v2350
    %v2359 = vmul.f32 %v2309, %v2351
    %v2360 = vmul.f32 %v2314, %v2352
    %v2361 = vmul.f32 %v2319, %v2353
    %v2363 = vsel %vm888, %v2354, 0
    %v2366 = vsel %vm888, %v2355, 0
    %v2369 = vsel %vm888, %v2356, 0
    %v2372 = vsel %vm888, %v2357, 0
    %v2375 = vsel %vm888, %v2358, 0
    %v2378 = vsel %vm888, %v2359, 0
    %v2381 = vsel %vm888, %v2360, 0
    %v2384 = vsel %vm888, %v2361, 0
    %2386 = vmatprep.subr.mxu0 0.0
    %2387 = vmatpush1.msra.mxu0 %v393
    %2388 = vmatprep.subr.mxu0 0.0
    %2389 = vmatpush1.msra.mxu0 %v394
    %2390 = vmatprep.subr.mxu0 0.0
    %2391 = vmatpush1.msra.mxu0 %v395
    %2392 = vmatprep.subr.mxu0 0.0
    %2393 = vmatpush1.msra.mxu0 %v396
    %2394 = vmatprep.subr.mxu0 0.0
    %2395 = vmatpush1.msra.mxu0 0.0
    %2396 = vmatprep.subr.mxu0 0.0
    %2397 = vmatpush1.msra.mxu0 0.0
    %2398 = vmatprep.subr.mxu0 0.0
    %2399 = vmatpush1.msra.mxu0 0.0
    %2400 = vmatprep.subr.mxu0 0.0
    %2401 = vmatpush1.msra.mxu0 0.0
    %2402 = vmatprep.subr.mxu0 0.0
    %2403 = vmatpush1.msra.mxu0 0.0
    %2404 = vmatprep.subr.mxu0 0.0
    %2405 = vmatpush1.msra.mxu0 0.0
    %2406 = vmatprep.subr.mxu0 0.0
    %2407 = vmatpush1.msra.mxu0 0.0
    %2408 = vmatprep.subr.mxu0 0.0
    %2409 = vmatpush1.msra.mxu0 0.0
    %2410 = vmatprep.subr.mxu0 0.0
    %2411 = vmatpush1.msra.mxu0 0.0
    %2412 = vmatprep.subr.mxu0 0.0
    %2413 = vmatpush1.msra.mxu0 0.0
    %2414 = vmatprep.subr.mxu0 0.0
    %2415 = vmatpush1.msra.mxu0 0.0
    %2416 = vmatprep.subr.mxu0 0.0
    %2417 = vmatpush1.msra.mxu0 0.0
    %2418 = vmatprep.subr.mxu0 0.0
    %2419 = vmatpush1.msra.mxu0 0.0
    %2420 = vmatprep.subr.mxu0 0.0
    %2421 = vmatpush1.msra.mxu0 0.0
    %2422 = vmatprep.subr.mxu0 0.0
    %2423 = vmatpush1.msra.mxu0 0.0
    %2424 = vmatprep.subr.mxu0 0.0
    %2425 = vmatpush1.msra.mxu0 0.0
    %2426 = vmatprep.subr.mxu0 0.0
    %2427 = vmatpush1.msra.mxu0 0.0
    %2428 = vmatprep.subr.mxu0 0.0
    %2429 = vmatpush1.msra.mxu0 0.0
    %2430 = vmatprep.subr.mxu0 0.0
    %2431 = vmatpush1.msra.mxu0 0.0
    %2432 = vmatprep.subr.mxu0 0.0
    %2433 = vmatpush1.msra.mxu0 0.0
    %2434 = vmatprep.subr.mxu0 0.0
    %2435 = vmatpush1.msra.mxu0 0.0
    %2436 = vmatprep.subr.mxu0 0.0
    %2437 = vmatpush1.msra.mxu0 0.0
    %2438 = vmatprep.subr.mxu0 0.0
    %2439 = vmatpush1.msra.mxu0 0.0
    %2440 = vmatprep.subr.mxu0 0.0
    %2441 = vmatpush1.msra.mxu0 0.0
    %2442 = vmatprep.subr.mxu0 0.0
    %2443 = vmatpush1.msra.mxu0 0.0
    %2444 = vmatprep.subr.mxu0 0.0
    %2445 = vmatpush1.msra.mxu0 0.0
    %2446 = vmatprep.subr.mxu0 0.0
    %2447 = vmatpush1.msra.mxu0 0.0
    %2448 = vmatprep.subr.mxu0 0.0
    %2449 = vmatpush1.msra.mxu0 0.0
    %2450 = vmatprep.mubr.f32.mxu0 0.0
    %2451 = vmatmul.mubr.f32.gmra.mrb[0].mxu0 %v2363
    %v2452 = vpop.f32.mrb[0].mxu0
    %v2453 = vadd.f32 0.0, %v2452
    %v2454 = vpop.f32.mrb[0].mxu0
    %2455 = vmatprep.mubr.f32.mxu0 0.0
    %2456 = vmatmul.mubr.f32.gmra.mrb[0].mxu0 %v2366
    %v2457 = vpop.f32.mrb[0].mxu0
    %v2458 = vadd.f32 0.0, %v2457
    %v2459 = vpop.f32.mrb[0].mxu0
    %2460 = vmatprep.mubr.f32.mxu0 0.0
    %2461 = vmatmul.mubr.f32.gmra.mrb[0].mxu0 %v2369
    %v2462 = vpop.f32.mrb[0].mxu0
    %v2463 = vadd.f32 0.0, %v2462
    %v2464 = vpop.f32.mrb[0].mxu0
    %2465 = vmatprep.mubr.f32.mxu0 0.0
    %2466 = vmatmul.mubr.f32.gmra.mrb[0].mxu0 %v2372
    %v2467 = vpop.f32.mrb[0].mxu0
    %v2468 = vadd.f32 0.0, %v2467
    %v2469 = vpop.f32.mrb[0].mxu0
    %2470 = vmatprep.mubr.f32.mxu0 0.0
    %2471 = vmatmul.mubr.f32.gmra.mrb[0].mxu0 %v2375
    %v2472 = vpop.f32.mrb[0].mxu0
    %v2473 = vadd.f32 0.0, %v2472
    %v2474 = vpop.f32.mrb[0].mxu0
    %2475 = vmatprep.mubr.f32.mxu0 0.0
    %2476 = vmatmul.mubr.f32.gmra.mrb[0].mxu0 %v2378
    %v2477 = vpop.f32.mrb[0].mxu0
    %v2478 = vadd.f32 0.0, %v2477
    %v2479 = vpop.f32.mrb[0].mxu0
    %2480 = vmatprep.mubr.f32.mxu0 0.0
    %2481 = vmatmul.mubr.f32.gmra.mrb[0].mxu0 %v2381
    %v2482 = vpop.f32.mrb[0].mxu0
    %v2483 = vadd.f32 0.0, %v2482
    %v2484 = vpop.f32.mrb[0].mxu0
    %2485 = vmatprep.mubr.f32.mxu0 0.0
    %2486 = vmatmul.mubr.f32.gmra.mrb[0].mxu0 %v2384
    %v2487 = vpop.f32.mrb[0].mxu0
    %v2488 = vadd.f32 0.0, %v2487
    %v2489 = vpop.f32.mrb[0].mxu0
    %2490 = vdwg.mxu0
    %v2491 = vadd.f32 %v1944, %v2453
    %v2492 = vadd.f32 %v1945, %v2458
    %v2493 = vadd.f32 %v1946, %v2463
    %v2494 = vadd.f32 %v1947, %v2468
    %v2495 = vadd.f32 %v1948, %v2473
    %v2496 = vadd.f32 %v1949, %v2478
    %v2497 = vadd.f32 %v1950, %v2483
    %v2498 = vadd.f32 %v1951, %v2488
    %2499 = vrot.lane.b32.xlu0 %v492, 32
    %v2500 = vpop.permute.xlu0 %2499
    %2501 = vrot.lane.b32.xlu0 %v497, 32
    %v2502 = vpop.permute.xlu0 %2501
    %2503 = vrot.lane.b32.xlu0 %v502, 32
    %v2504 = vpop.permute.xlu0 %2503
    %2505 = vrot.lane.b32.xlu0 %v507, 32
    %v2506 = vpop.permute.xlu0 %2505
    %2507 = vrot.lane.b32.xlu0 %v512, 32
    %v2508 = vpop.permute.xlu0 %2507
    %2509 = vrot.lane.b32.xlu0 %v517, 32
    %v2510 = vpop.permute.xlu0 %2509
    %2511 = vrot.lane.b32.xlu0 %v522, 32
    %v2512 = vpop.permute.xlu0 %2511
    %2513 = vrot.lane.b32.xlu0 %v527, 32
    %v2514 = vpop.permute.xlu0 %2513
    %2515 = vrot.lane.b32.xlu0 %v644, 32
    %v2516 = vpop.permute.xlu0 %2515
    %2517 = vrot.lane.b32.xlu0 %v649, 32
    %v2518 = vpop.permute.xlu0 %2517
    %2519 = vrot.lane.b32.xlu0 %v654, 32
    %v2520 = vpop.permute.xlu0 %2519
    %2521 = vrot.lane.b32.xlu0 %v659, 32
    %v2522 = vpop.permute.xlu0 %2521
    %2523 = vrot.lane.b32.xlu0 %v664, 32
    %v2524 = vpop.permute.xlu0 %2523
    %2525 = vrot.lane.b32.xlu0 %v669, 32
    %v2526 = vpop.permute.xlu0 %2525
    %2527 = vrot.lane.b32.xlu0 %v674, 32
    %v2528 = vpop.permute.xlu0 %2527
    %2529 = vrot.lane.b32.xlu0 %v679, 32
    %v2530 = vpop.permute.xlu0 %2529
    %v2531 = vsel %vm888, %v2500, 0
    %v2533 = vsel %vm888, %v2502, 0
    %v2535 = vsel %vm888, %v2504, 0
    %v2537 = vsel %vm888, %v2506, 0
    %v2539 = vsel %vm888, %v2508, 0
    %v2541 = vsel %vm888, %v2510, 0
    %v2543 = vsel %vm888, %v2512, 0
    %v2545 = vsel %vm888, %v2514, 0
    %v2547 = vsel %vm888, %v2516, 0
    %v2549 = vsel %vm888, %v2518, 0
    %v2551 = vsel %vm888, %v2520, 0
    %v2553 = vsel %vm888, %v2522, 0
    %v2555 = vsel %vm888, %v2524, 0
    %v2557 = vsel %vm888, %v2526, 0
    %v2559 = vsel %vm888, %v2528, 0
    %v2561 = vsel %vm888, %v2530, 0
    %2563 = vmatprep.subr.mxu0 0.0
    %2564 = vmatpush1.xpose.msra.mxu0 %v2547
    %2565 = vmatprep.subr.mxu0 0.0
    %2566 = vmatpush1.xpose.msra.mxu0 %v2549
    %2567 = vmatprep.subr.mxu0 0.0
    %2568 = vmatpush1.xpose.msra.mxu0 %v2551
    %2569 = vmatprep.subr.mxu0 0.0
    %2570 = vmatpush1.xpose.msra.mxu0 %v2553
    %2571 = vmatprep.subr.mxu0 0.0
    %2572 = vmatpush1.xpose.msra.mxu0 %v2555
    %2573 = vmatprep.subr.mxu0 0.0
    %2574 = vmatpush1.xpose.msra.mxu0 %v2557
    %2575 = vmatprep.subr.mxu0 0.0
    %2576 = vmatpush1.xpose.msra.mxu0 %v2559
    %2577 = vmatprep.subr.mxu0 0.0
    %2578 = vmatpush1.xpose.msra.mxu0 %v2561
    %2579 = vmatprep.subr.mxu0 0.0
    %2580 = vmatpush1.xpose.msra.mxu0 0.0
    %2581 = vmatprep.subr.mxu0 0.0
    %2582 = vmatpush1.xpose.msra.mxu0 0.0
    %2583 = vmatprep.subr.mxu0 0.0
    %2584 = vmatpush1.xpose.msra.mxu0 0.0
    %2585 = vmatprep.subr.mxu0 0.0
    %2586 = vmatpush1.xpose.msra.mxu0 0.0
    %2587 = vmatprep.subr.mxu0 0.0
    %2588 = vmatpush1.xpose.msra.mxu0 0.0
    %2589 = vmatprep.subr.mxu0 0.0
    %2590 = vmatpush1.xpose.msra.mxu0 0.0
    %2591 = vmatprep.subr.mxu0 0.0
    %2592 = vmatpush1.xpose.msra.mxu0 0.0
    %2593 = vmatprep.subr.mxu0 0.0
    %2594 = vmatpush1.xpose.msra.mxu0 0.0
    %2595 = vmatprep.subr.mxu0 0.0
    %2596 = vmatpush1.xpose.msra.mxu0 0.0
    %2597 = vmatprep.subr.mxu0 0.0
    %2598 = vmatpush1.xpose.msra.mxu0 0.0
    %2599 = vmatprep.subr.mxu0 0.0
    %2600 = vmatpush1.xpose.msra.mxu0 0.0
    %2601 = vmatprep.subr.mxu0 0.0
    %2602 = vmatpush1.xpose.msra.mxu0 0.0
    %2603 = vmatprep.subr.mxu0 0.0
    %2604 = vmatpush1.xpose.msra.mxu0 0.0
    %2605 = vmatprep.subr.mxu0 0.0
    %2606 = vmatpush1.xpose.msra.mxu0 0.0
    %2607 = vmatprep.subr.mxu0 0.0
    %2608 = vmatpush1.xpose.msra.mxu0 0.0
    %2609 = vmatprep.subr.mxu0 0.0
    %2610 = vmatpush1.xpose.msra.mxu0 0.0
    %2611 = vmatprep.subr.mxu0 0.0
    %2612 = vmatpush1.xpose.msra.mxu0 0.0
    %2613 = vmatprep.subr.mxu0 0.0
    %2614 = vmatpush1.xpose.msra.mxu0 0.0
    %2615 = vmatprep.subr.mxu0 0.0
    %2616 = vmatpush1.xpose.msra.mxu0 0.0
    %2617 = vmatprep.subr.mxu0 0.0
    %2618 = vmatpush1.xpose.msra.mxu0 0.0
    %2619 = vmatprep.subr.mxu0 0.0
    %2620 = vmatpush1.xpose.msra.mxu0 0.0
    %2621 = vmatprep.subr.mxu0 0.0
    %2622 = vmatpush1.xpose.msra.mxu0 0.0
    %2623 = vmatprep.subr.mxu0 0.0
    %2624 = vmatpush1.xpose.msra.mxu0 0.0
    %2625 = vmatprep.subr.mxu0 0.0
    %2626 = vmatpush1.xpose.msra.mxu0 0.0
    %2627 = vmatprep.mubr.f32.mxu0 0.0
    %2628 = vmatmul.mubr.f32.gmra.mrb[0].mxu0 %v2531
    %v2629 = vpop.f32.mrb[0].mxu0
    %v2630 = vadd.f32 0.0, %v2629
    %v2631 = vpop.f32.mrb[0].mxu0
    %2632 = vmatprep.mubr.f32.mxu0 0.0
    %2633 = vmatmul.mubr.f32.gmra.mrb[0].mxu0 %v2533
    %v2634 = vpop.f32.mrb[0].mxu0
    %v2635 = vadd.f32 0.0, %v2634
    %v2636 = vpop.f32.mrb[0].mxu0
    %2637 = vmatprep.mubr.f32.mxu0 0.0
    %2638 = vmatmul.mubr.f32.gmra.mrb[0].mxu0 %v2535
    %v2639 = vpop.f32.mrb[0].mxu0
    %v2640 = vadd.f32 0.0, %v2639
    %v2641 = vpop.f32.mrb[0].mxu0
    %2642 = vmatprep.mubr.f32.mxu0 0.0
    %2643 = vmatmul.mubr.f32.gmra.mrb[0].mxu0 %v2537
    %v2644 = vpop.f32.mrb[0].mxu0
    %v2645 = vadd.f32 0.0, %v2644
    %v2646 = vpop.f32.mrb[0].mxu0
    %2647 = vmatprep.mubr.f32.mxu0 0.0
    %2648 = vmatmul.mubr.f32.gmra.mrb[0].mxu0 %v2539
    %v2649 = vpop.f32.mrb[0].mxu0
    %v2650 = vadd.f32 0.0, %v2649
    %v2651 = vpop.f32.mrb[0].mxu0
    %2652 = vmatprep.mubr.f32.mxu0 0.0
    %2653 = vmatmul.mubr.f32.gmra.mrb[0].mxu0 %v2541
    %v2654 = vpop.f32.mrb[0].mxu0
    %v2655 = vadd.f32 0.0, %v2654
    %v2656 = vpop.f32.mrb[0].mxu0
    %2657 = vmatprep.mubr.f32.mxu0 0.0
    %2658 = vmatmul.mubr.f32.gmra.mrb[0].mxu0 %v2543
    %v2659 = vpop.f32.mrb[0].mxu0
    %v2660 = vadd.f32 0.0, %v2659
    %v2661 = vpop.f32.mrb[0].mxu0
    %2662 = vmatprep.mubr.f32.mxu0 0.0
    %2663 = vmatmul.mubr.f32.gmra.mrb[0].mxu0 %v2545
    %v2664 = vpop.f32.mrb[0].mxu0
    %v2665 = vadd.f32 0.0, %v2664
    %v2666 = vpop.f32.mrb[0].mxu0
    %2667 = vdwg.mxu0
    %v2668 = vsel %vm1042, %v2630, -inf
    %2669 = vmax.xlane.f32.xlu0 %v2668
    %v2670 = vpop.xlane.xlu0 %2669
    %v2671 = vsel %vm1042, %v2635, -inf
    %2672 = vmax.xlane.f32.xlu0 %v2671
    %v2673 = vpop.xlane.xlu0 %2672
    %v2674 = vsel %vm1042, %v2640, -inf
    %2675 = vmax.xlane.f32.xlu0 %v2674
    %v2676 = vpop.xlane.xlu0 %2675
    %v2677 = vsel %vm1042, %v2645, -inf
    %2678 = vmax.xlane.f32.xlu0 %v2677
    %v2679 = vpop.xlane.xlu0 %2678
    %v2680 = vsel %vm1042, %v2650, -inf
    %2681 = vmax.xlane.f32.xlu0 %v2680
    %v2682 = vpop.xlane.xlu0 %2681
    %v2683 = vsel %vm1042, %v2655, -inf
    %2684 = vmax.xlane.f32.xlu0 %v2683
    %v2685 = vpop.xlane.xlu0 %2684
    %v2686 = vsel %vm1042, %v2660, -inf
    %2687 = vmax.xlane.f32.xlu0 %v2686
    %v2688 = vpop.xlane.xlu0 %2687
    %v2689 = vsel %vm1042, %v2665, -inf
    %2690 = vmax.xlane.f32.xlu0 %v2689
    %v2691 = vpop.xlane.xlu0 %2690
    %v2692 = vsub.f32 %v2630, %v2670
    %v2693 = vsub.f32 %v2635, %v2673
    %v2694 = vsub.f32 %v2640, %v2676
    %v2695 = vsub.f32 %v2645, %v2679
    %v2696 = vsub.f32 %v2650, %v2682
    %v2697 = vsub.f32 %v2655, %v2685
    %v2698 = vsub.f32 %v2660, %v2688
    %v2699 = vsub.f32 %v2665, %v2691
    %v2700 = vmul.f32 %v2692, 1.442695
    %v2701 = vpow.pop %v2700
    %v2702 = vmul.f32 %v2693, 1.442695
    %v2703 = vpow.pop %v2702
    %v2704 = vmul.f32 %v2694, 1.442695
    %v2705 = vpow.pop %v2704
    %v2706 = vmul.f32 %v2695, 1.442695
    %v2707 = vpow.pop %v2706
    %v2708 = vmul.f32 %v2696, 1.442695
    %v2709 = vpow.pop %v2708
    %v2710 = vmul.f32 %v2697, 1.442695
    %v2711 = vpow.pop %v2710
    %v2712 = vmul.f32 %v2698, 1.442695
    %v2713 = vpow.pop %v2712
    %v2714 = vmul.f32 %v2699, 1.442695
    %v2715 = vpow.pop %v2714
    %2716 = vrot.lane.b32.xlu0 %v796, 32
    %v2717 = vpop.permute.xlu0 %2716
    %2718 = vrot.lane.b32.xlu0 %v801, 32
    %v2719 = vpop.permute.xlu0 %2718
    %2720 = vrot.lane.b32.xlu0 %v806, 32
    %v2721 = vpop.permute.xlu0 %2720
    %2722 = vrot.lane.b32.xlu0 %v811, 32
    %v2723 = vpop.permute.xlu0 %2722
    %2724 = vrot.lane.b32.xlu0 %v816, 32
    %v2725 = vpop.permute.xlu0 %2724
    %2726 = vrot.lane.b32.xlu0 %v821, 32
    %v2727 = vpop.permute.xlu0 %2726
    %2728 = vrot.lane.b32.xlu0 %v826, 32
    %v2729 = vpop.permute.xlu0 %2728
    %2730 = vrot.lane.b32.xlu0 %v831, 32
    %v2731 = vpop.permute.xlu0 %2730
    %v2741 = vsel %vm1042, %v2701, 0
    %v2744 = vsel %vm1042, %v2703, 0
    %v2747 = vsel %vm1042, %v2705, 0
    %v2750 = vsel %vm1042, %v2707, 0
    %v2753 = vsel %vm1042, %v2709, 0
    %v2756 = vsel %vm1042, %v2711, 0
    %v2759 = vsel %vm1042, %v2713, 0
    %v2762 = vsel %vm1042, %v2715, 0
    %2764 = vmatprep.subr.mxu0 0.0
    %2765 = vmatpush1.msra.mxu0 %v2717
    %2766 = vmatprep.subr.mxu0 0.0
    %2767 = vmatpush1.msra.mxu0 %v2719
    %2768 = vmatprep.subr.mxu0 0.0
    %2769 = vmatpush1.msra.mxu0 %v2721
    %2770 = vmatprep.subr.mxu0 0.0
    %2771 = vmatpush1.msra.mxu0 %v2723
    %2772 = vmatprep.subr.mxu0 0.0
    %2773 = vmatpush1.msra.mxu0 %v2725
    %2774 = vmatprep.subr.mxu0 0.0
    %2775 = vmatpush1.msra.mxu0 %v2727
    %2776 = vmatprep.subr.mxu0 0.0
    %2777 = vmatpush1.msra.mxu0 %v2729
    %2778 = vmatprep.subr.mxu0 0.0
    %2779 = vmatpush1.msra.mxu0 %v2731
    %2780 = vmatprep.subr.mxu0 0.0
    %2781 = vmatpush1.msra.mxu0 0.0
    %2782 = vmatprep.subr.mxu0 0.0
    %2783 = vmatpush1.msra.mxu0 0.0
    %2784 = vmatprep.subr.mxu0 0.0
    %2785 = vmatpush1.msra.mxu0 0.0
    %2786 = vmatprep.subr.mxu0 0.0
    %2787 = vmatpush1.msra.mxu0 0.0
    %2788 = vmatprep.subr.mxu0 0.0
    %2789 = vmatpush1.msra.mxu0 0.0
    %2790 = vmatprep.subr.mxu0 0.0
    %2791 = vmatpush1.msra.mxu0 0.0
    %2792 = vmatprep.subr.mxu0 0.0
    %2793 = vmatpush1.msra.mxu0 0.0
    %2794 = vmatprep.subr.mxu0 0.0
    %2795 = vmatpush1.msra.mxu0 0.0
    %2796 = vmatprep.subr.mxu0 0.0
    %2797 = vmatpush1.msra.mxu0 0.0
    %2798 = vmatprep.subr.mxu0 0.0
    %2799 = vmatpush1.msra.mxu0 0.0
    %2800 = vmatprep.subr.mxu0 0.0
    %2801 = vmatpush1.msra.mxu0 0.0
    %2802 = vmatprep.subr.mxu0 0.0
    %2803 = vmatpush1.msra.mxu0 0.0
    %2804 = vmatprep.subr.mxu0 0.0
    %2805 = vmatpush1.msra.mxu0 0.0
    %2806 = vmatprep.subr.mxu0 0.0
    %2807 = vmatpush1.msra.mxu0 0.0
    %2808 = vmatprep.subr.mxu0 0.0
    %2809 = vmatpush1.msra.mxu0 0.0
    %2810 = vmatprep.subr.mxu0 0.0
    %2811 = vmatpush1.msra.mxu0 0.0
    %2812 = vmatprep.subr.mxu0 0.0
    %2813 = vmatpush1.msra.mxu0 0.0
    %2814 = vmatprep.subr.mxu0 0.0
    %2815 = vmatpush1.msra.mxu0 0.0
    %2816 = vmatprep.subr.mxu0 0.0
    %2817 = vmatpush1.msra.mxu0 0.0
    %2818 = vmatprep.subr.mxu0 0.0
    %2819 = vmatpush1.msra.mxu0 0.0
    %2820 = vmatprep.subr.mxu0 0.0
    %2821 = vmatpush1.msra.mxu0 0.0
    %2822 = vmatprep.subr.mxu0 0.0
    %2823 = vmatpush1.msra.mxu0 0.0
    %2824 = vmatprep.subr.mxu0 0.0
    %2825 = vmatpush1.msra.mxu0 0.0
    %2826 = vmatprep.subr.mxu0 0.0
    %2827 = vmatpush1.msra.mxu0 0.0
    %2828 = vmatprep.mubr.f32.mxu0 0.0
    %2829 = vmatmul.mubr.f32.gmra.mrb[0].mxu0 %v2741
    %v2830 = vpop.f32.mrb[0].mxu0
    %v2831 = vadd.f32 0.0, %v2830
    %v2832 = vpop.f32.mrb[0].mxu0
    %2833 = vmatprep.mubr.f32.mxu0 0.0
    %2834 = vmatmul.mubr.f32.gmra.mrb[0].mxu0 %v2744
    %v2835 = vpop.f32.mrb[0].mxu0
    %v2836 = vadd.f32 0.0, %v2835
    %v2837 = vpop.f32.mrb[0].mxu0
    %2838 = vmatprep.mubr.f32.mxu0 0.0
    %2839 = vmatmul.mubr.f32.gmra.mrb[0].mxu0 %v2747
    %v2840 = vpop.f32.mrb[0].mxu0
    %v2841 = vadd.f32 0.0, %v2840
    %v2842 = vpop.f32.mrb[0].mxu0
    %2843 = vmatprep.mubr.f32.mxu0 0.0
    %2844 = vmatmul.mubr.f32.gmra.mrb[0].mxu0 %v2750
    %v2845 = vpop.f32.mrb[0].mxu0
    %v2846 = vadd.f32 0.0, %v2845
    %v2847 = vpop.f32.mrb[0].mxu0
    %2848 = vmatprep.mubr.f32.mxu0 0.0
    %2849 = vmatmul.mubr.f32.gmra.mrb[0].mxu0 %v2753
    %v2850 = vpop.f32.mrb[0].mxu0
    %v2851 = vadd.f32 0.0, %v2850
    %v2852 = vpop.f32.mrb[0].mxu0
    %2853 = vmatprep.mubr.f32.mxu0 0.0
    %2854 = vmatmul.mubr.f32.gmra.mrb[0].mxu0 %v2756
    %v2855 = vpop.f32.mrb[0].mxu0
    %v2856 = vadd.f32 0.0, %v2855
    %v2857 = vpop.f32.mrb[0].mxu0
    %2858 = vmatprep.mubr.f32.mxu0 0.0
    %2859 = vmatmul.mubr.f32.gmra.mrb[0].mxu0 %v2759
    %v2860 = vpop.f32.mrb[0].mxu0
    %v2861 = vadd.f32 0.0, %v2860
    %v2862 = vpop.f32.mrb[0].mxu0
    %2863 = vmatprep.mubr.f32.mxu0 0.0
    %2864 = vmatmul.mubr.f32.gmra.mrb[0].mxu0 %v2762
    %v2865 = vpop.f32.mrb[0].mxu0
    %v2866 = vadd.f32 0.0, %v2865
    %v2867 = vpop.f32.mrb[0].mxu0
    %2868 = vdwg.mxu0
    %v2869 = vsel %vm1042, %v2701, 0.0
    %2870 = vadd.xlane.f32.xlu0 %v2869
    %v2871 = vpop.xlane.xlu0 %2870
    %v2872 = vsel %vm1042, %v2703, 0.0
    %2873 = vadd.xlane.f32.xlu0 %v2872
    %v2874 = vpop.xlane.xlu0 %2873
    %v2875 = vsel %vm1042, %v2705, 0.0
    %2876 = vadd.xlane.f32.xlu0 %v2875
    %v2877 = vpop.xlane.xlu0 %2876
    %v2878 = vsel %vm1042, %v2707, 0.0
    %2879 = vadd.xlane.f32.xlu0 %v2878
    %v2880 = vpop.xlane.xlu0 %2879
    %v2881 = vsel %vm1042, %v2709, 0.0
    %2882 = vadd.xlane.f32.xlu0 %v2881
    %v2883 = vpop.xlane.xlu0 %2882
    %v2884 = vsel %vm1042, %v2711, 0.0
    %2885 = vadd.xlane.f32.xlu0 %v2884
    %v2886 = vpop.xlane.xlu0 %2885
    %v2887 = vsel %vm1042, %v2713, 0.0
    %2888 = vadd.xlane.f32.xlu0 %v2887
    %v2889 = vpop.xlane.xlu0 %2888
    %v2890 = vsel %vm1042, %v2715, 0.0
    %2891 = vadd.xlane.f32.xlu0 %v2890
    %v2892 = vpop.xlane.xlu0 %2891
    %v2893 = vrcp.pop %v2871
    %v2894 = vrcp.pop %v2874
    %v2895 = vrcp.pop %v2877
    %v2896 = vrcp.pop %v2880
    %v2897 = vrcp.pop %v2883
    %v2898 = vrcp.pop %v2886
    %v2899 = vrcp.pop %v2889
    %v2900 = vrcp.pop %v2892
    %v2901 = vmul.f32 %v2831, %v2893
    %v2902 = vmul.f32 %v2836, %v2894
    %v2903 = vmul.f32 %v2841, %v2895
    %v2904 = vmul.f32 %v2846, %v2896
    %v2905 = vmul.f32 %v2851, %v2897
    %v2906 = vmul.f32 %v2856, %v2898
    %v2907 = vmul.f32 %v2861, %v2899
    %v2908 = vmul.f32 %v2866, %v2900
    %v2910 = vsel %vm888, %v2901, 0
    %v2913 = vsel %vm888, %v2902, 0
    %v2916 = vsel %vm888, %v2903, 0
    %v2919 = vsel %vm888, %v2904, 0
    %v2922 = vsel %vm888, %v2905, 0
    %v2925 = vsel %vm888, %v2906, 0
    %v2928 = vsel %vm888, %v2907, 0
    %v2931 = vsel %vm888, %v2908, 0
    %2933 = vmatprep.subr.mxu0 0.0
    %2934 = vmatpush1.msra.mxu0 %v397
    %2935 = vmatprep.subr.mxu0 0.0
    %2936 = vmatpush1.msra.mxu0 %v398
    %2937 = vmatprep.subr.mxu0 0.0
    %2938 = vmatpush1.msra.mxu0 %v399
    %2939 = vmatprep.subr.mxu0 0.0
    %2940 = vmatpush1.msra.mxu0 %v400
    %2941 = vmatprep.subr.mxu0 0.0
    %2942 = vmatpush1.msra.mxu0 0.0
    %2943 = vmatprep.subr.mxu0 0.0
    %2944 = vmatpush1.msra.mxu0 0.0
    %2945 = vmatprep.subr.mxu0 0.0
    %2946 = vmatpush1.msra.mxu0 0.0
    %2947 = vmatprep.subr.mxu0 0.0
    %2948 = vmatpush1.msra.mxu0 0.0
    %2949 = vmatprep.subr.mxu0 0.0
    %2950 = vmatpush1.msra.mxu0 0.0
    %2951 = vmatprep.subr.mxu0 0.0
    %2952 = vmatpush1.msra.mxu0 0.0
    %2953 = vmatprep.subr.mxu0 0.0
    %2954 = vmatpush1.msra.mxu0 0.0
    %2955 = vmatprep.subr.mxu0 0.0
    %2956 = vmatpush1.msra.mxu0 0.0
    %2957 = vmatprep.subr.mxu0 0.0
    %2958 = vmatpush1.msra.mxu0 0.0
    %2959 = vmatprep.subr.mxu0 0.0
    %2960 = vmatpush1.msra.mxu0 0.0
    %2961 = vmatprep.subr.mxu0 0.0
    %2962 = vmatpush1.msra.mxu0 0.0
    %2963 = vmatprep.subr.mxu0 0.0
    %2964 = vmatpush1.msra.mxu0 0.0
    %2965 = vmatprep.subr.mxu0 0.0
    %2966 = vmatpush1.msra.mxu0 0.0
    %2967 = vmatprep.subr.mxu0 0.0
    %2968 = vmatpush1.msra.mxu0 0.0
    %2969 = vmatprep.subr.mxu0 0.0
    %2970 = vmatpush1.msra.mxu0 0.0
    %2971 = vmatprep.subr.mxu0 0.0
    %2972 = vmatpush1.msra.mxu0 0.0
    %2973 = vmatprep.subr.mxu0 0.0
    %2974 = vmatpush1.msra.mxu0 0.0
    %2975 = vmatprep.subr.mxu0 0.0
    %2976 = vmatpush1.msra.mxu0 0.0
    %2977 = vmatprep.subr.mxu0 0.0
    %2978 = vmatpush1.msra.mxu0 0.0
    %2979 = vmatprep.subr.mxu0 0.0
    %2980 = vmatpush1.msra.mxu0 0.0
    %2981 = vmatprep.subr.mxu0 0.0
    %2982 = vmatpush1.msra.mxu0 0.0
    %2983 = vmatprep.subr.mxu0 0.0
    %2984 = vmatpush1.msra.mxu0 0.0
    %2985 = vmatprep.subr.mxu0 0.0
    %2986 = vmatpush1.msra.mxu0 0.0
    %2987 = vmatprep.subr.mxu0 0.0
    %2988 = vmatpush1.msra.mxu0 0.0
    %2989 = vmatprep.subr.mxu0 0.0
    %2990 = vmatpush1.msra.mxu0 0.0
    %2991 = vmatprep.subr.mxu0 0.0
    %2992 = vmatpush1.msra.mxu0 0.0
    %2993 = vmatprep.subr.mxu0 0.0
    %2994 = vmatpush1.msra.mxu0 0.0
    %2995 = vmatprep.subr.mxu0 0.0
    %2996 = vmatpush1.msra.mxu0 0.0
    %2997 = vmatprep.mubr.f32.mxu0 0.0
    %2998 = vmatmul.mubr.f32.gmra.mrb[0].mxu0 %v2910
    %v2999 = vpop.f32.mrb[0].mxu0
    %v3000 = vadd.f32 0.0, %v2999
    %v3001 = vpop.f32.mrb[0].mxu0
    %3002 = vmatprep.mubr.f32.mxu0 0.0
    %3003 = vmatmul.mubr.f32.gmra.mrb[0].mxu0 %v2913
    %v3004 = vpop.f32.mrb[0].mxu0
    %v3005 = vadd.f32 0.0, %v3004
    %v3006 = vpop.f32.mrb[0].mxu0
    %3007 = vmatprep.mubr.f32.mxu0 0.0
    %3008 = vmatmul.mubr.f32.gmra.mrb[0].mxu0 %v2916
    %v3009 = vpop.f32.mrb[0].mxu0
    %v3010 = vadd.f32 0.0, %v3009
    %v3011 = vpop.f32.mrb[0].mxu0
    %3012 = vmatprep.mubr.f32.mxu0 0.0
    %3013 = vmatmul.mubr.f32.gmra.mrb[0].mxu0 %v2919
    %v3014 = vpop.f32.mrb[0].mxu0
    %v3015 = vadd.f32 0.0, %v3014
    %v3016 = vpop.f32.mrb[0].mxu0
    %3017 = vmatprep.mubr.f32.mxu0 0.0
    %3018 = vmatmul.mubr.f32.gmra.mrb[0].mxu0 %v2922
    %v3019 = vpop.f32.mrb[0].mxu0
    %v3020 = vadd.f32 0.0, %v3019
    %v3021 = vpop.f32.mrb[0].mxu0
    %3022 = vmatprep.mubr.f32.mxu0 0.0
    %3023 = vmatmul.mubr.f32.gmra.mrb[0].mxu0 %v2925
    %v3024 = vpop.f32.mrb[0].mxu0
    %v3025 = vadd.f32 0.0, %v3024
    %v3026 = vpop.f32.mrb[0].mxu0
    %3027 = vmatprep.mubr.f32.mxu0 0.0
    %3028 = vmatmul.mubr.f32.gmra.mrb[0].mxu0 %v2928
    %v3029 = vpop.f32.mrb[0].mxu0
    %v3030 = vadd.f32 0.0, %v3029
    %v3031 = vpop.f32.mrb[0].mxu0
    %3032 = vmatprep.mubr.f32.mxu0 0.0
    %3033 = vmatmul.mubr.f32.gmra.mrb[0].mxu0 %v2931
    %v3034 = vpop.f32.mrb[0].mxu0
    %v3035 = vadd.f32 0.0, %v3034
    %v3036 = vpop.f32.mrb[0].mxu0
    %3037 = vdwg.mxu0
    %v3038 = vadd.f32 %v2491, %v3000
    %v3039 = vadd.f32 %v2492, %v3005
    %v3040 = vadd.f32 %v2493, %v3010
    %v3041 = vadd.f32 %v2494, %v3015
    %v3042 = vadd.f32 %v2495, %v3020
    %v3043 = vadd.f32 %v2496, %v3025
    %v3044 = vadd.f32 %v2497, %v3030
    %v3045 = vadd.f32 %v2498, %v3035
    %3046 = vst [vmem:[#allocation2] sm:$0xff] %v3038
    %3047 = vst [vmem:[#allocation2 + $0x8] sm:$0xff] %v3039
    %3048 = vst [vmem:[#allocation2 + $0x10] sm:$0xff] %v3040
    %3049 = vst [vmem:[#allocation2 + $0x18] sm:$0xff] %v3041
    %3050 = vst [vmem:[#allocation2 + $0x20] sm:$0xff] %v3042
    %3051 = vst [vmem:[#allocation2 + $0x28] sm:$0xff] %v3043
    %3052 = vst [vmem:[#allocation2 + $0x30] sm:$0xff] %v3044
    %3053 = vst [vmem:[#allocation2 + $0x38] sm:$0xff] %v3045
    %v3054 = vadd.f32 %v329, %v878
    %v3055 = vadd.f32 %v330, %v878
    %v3056 = vadd.f32 %v331, %v878
    %v3057 = vadd.f32 %v332, %v878
    %v3058 = vadd.f32 %v333, %v878
    %v3059 = vadd.f32 %v334, %v878
    %v3060 = vadd.f32 %v335, %v878
    %v3061 = vadd.f32 %v336, %v878
    %v3063 = vsel %vm888, %v532, 0
    %v3066 = vsel %vm888, %v537, 0
    %v3069 = vsel %vm888, %v542, 0
    %v3072 = vsel %vm888, %v547, 0
    %v3075 = vsel %vm888, %v552, 0
    %v3078 = vsel %vm888, %v557, 0
    %v3081 = vsel %vm888, %v562, 0
    %v3084 = vsel %vm888, %v567, 0
    %v3087 = vsel %vm888, %v684, 0
    %v3090 = vsel %vm888, %v689, 0
    %v3093 = vsel %vm888, %v694, 0
    %v3096 = vsel %vm888, %v699, 0
    %v3099 = vsel %vm888, %v704, 0
    %v3102 = vsel %vm888, %v709, 0
    %v3105 = vsel %vm888, %v714, 0
    %v3108 = vsel %vm888, %v719, 0
    %3110 = vmatprep.subr.mxu0 0.0
    %3111 = vmatpush1.xpose.msra.mxu0 %v3087
    %3112 = vmatprep.subr.mxu0 0.0
    %3113 = vmatpush1.xpose.msra.mxu0 %v3090
    %3114 = vmatprep.subr.mxu0 0.0
    %3115 = vmatpush1.xpose.msra.mxu0 %v3093
    %3116 = vmatprep.subr.mxu0 0.0
    %3117 = vmatpush1.xpose.msra.mxu0 %v3096
    %3118 = vmatprep.subr.mxu0 0.0
    %3119 = vmatpush1.xpose.msra.mxu0 %v3099
    %3120 = vmatprep.subr.mxu0 0.0
    %3121 = vmatpush1.xpose.msra.mxu0 %v3102
    %3122 = vmatprep.subr.mxu0 0.0
    %3123 = vmatpush1.xpose.msra.mxu0 %v3105
    %3124 = vmatprep.subr.mxu0 0.0
    %3125 = vmatpush1.xpose.msra.mxu0 %v3108
    %3126 = vmatprep.subr.mxu0 0.0
    %3127 = vmatpush1.xpose.msra.mxu0 0.0
    %3128 = vmatprep.subr.mxu0 0.0
    %3129 = vmatpush1.xpose.msra.mxu0 0.0
    %3130 = vmatprep.subr.mxu0 0.0
    %3131 = vmatpush1.xpose.msra.mxu0 0.0
    %3132 = vmatprep.subr.mxu0 0.0
    %3133 = vmatpush1.xpose.msra.mxu0 0.0
    %3134 = vmatprep.subr.mxu0 0.0
    %3135 = vmatpush1.xpose.msra.mxu0 0.0
    %3136 = vmatprep.subr.mxu0 0.0
    %3137 = vmatpush1.xpose.msra.mxu0 0.0
    %3138 = vmatprep.subr.mxu0 0.0
    %3139 = vmatpush1.xpose.msra.mxu0 0.0
    %3140 = vmatprep.subr.mxu0 0.0
    %3141 = vmatpush1.xpose.msra.mxu0 0.0
    %3142 = vmatprep.subr.mxu0 0.0
    %3143 = vmatpush1.xpose.msra.mxu0 0.0
    %3144 = vmatprep.subr.mxu0 0.0
    %3145 = vmatpush1.xpose.msra.mxu0 0.0
    %3146 = vmatprep.subr.mxu0 0.0
    %3147 = vmatpush1.xpose.msra.mxu0 0.0
    %3148 = vmatprep.subr.mxu0 0.0
    %3149 = vmatpush1.xpose.msra.mxu0 0.0
    %3150 = vmatprep.subr.mxu0 0.0
    %3151 = vmatpush1.xpose.msra.mxu0 0.0
    %3152 = vmatprep.subr.mxu0 0.0
    %3153 = vmatpush1.xpose.msra.mxu0 0.0
    %3154 = vmatprep.subr.mxu0 0.0
    %3155 = vmatpush1.xpose.msra.mxu0 0.0
    %3156 = vmatprep.subr.mxu0 0.0
    %3157 = vmatpush1.xpose.msra.mxu0 0.0
    %3158 = vmatprep.subr.mxu0 0.0
    %3159 = vmatpush1.xpose.msra.mxu0 0.0
    %3160 = vmatprep.subr.mxu0 0.0
    %3161 = vmatpush1.xpose.msra.mxu0 0.0
    %3162 = vmatprep.subr.mxu0 0.0
    %3163 = vmatpush1.xpose.msra.mxu0 0.0
    %3164 = vmatprep.subr.mxu0 0.0
    %3165 = vmatpush1.xpose.msra.mxu0 0.0
    %3166 = vmatprep.subr.mxu0 0.0
    %3167 = vmatpush1.xpose.msra.mxu0 0.0
    %3168 = vmatprep.subr.mxu0 0.0
    %3169 = vmatpush1.xpose.msra.mxu0 0.0
    %3170 = vmatprep.subr.mxu0 0.0
    %3171 = vmatpush1.xpose.msra.mxu0 0.0
    %3172 = vmatprep.subr.mxu0 0.0
    %3173 = vmatpush1.xpose.msra.mxu0 0.0
    %3174 = vmatprep.mubr.f32.mxu0 0.0
    %3175 = vmatmul.mubr.f32.gmra.mrb[0].mxu0 %v3063
    %v3176 = vpop.f32.mrb[0].mxu0
    %v3177 = vadd.f32 0.0, %v3176
    %v3178 = vpop.f32.mrb[0].mxu0
    %3179 = vmatprep.mubr.f32.mxu0 0.0
    %3180 = vmatmul.mubr.f32.gmra.mrb[0].mxu0 %v3066
    %v3181 = vpop.f32.mrb[0].mxu0
    %v3182 = vadd.f32 0.0, %v3181
    %v3183 = vpop.f32.mrb[0].mxu0
    %3184 = vmatprep.mubr.f32.mxu0 0.0
    %3185 = vmatmul.mubr.f32.gmra.mrb[0].mxu0 %v3069
    %v3186 = vpop.f32.mrb[0].mxu0
    %v3187 = vadd.f32 0.0, %v3186
    %v3188 = vpop.f32.mrb[0].mxu0
    %3189 = vmatprep.mubr.f32.mxu0 0.0
    %3190 = vmatmul.mubr.f32.gmra.mrb[0].mxu0 %v3072
    %v3191 = vpop.f32.mrb[0].mxu0
    %v3192 = vadd.f32 0.0, %v3191
    %v3193 = vpop.f32.mrb[0].mxu0
    %3194 = vmatprep.mubr.f32.mxu0 0.0
    %3195 = vmatmul.mubr.f32.gmra.mrb[0].mxu0 %v3075
    %v3196 = vpop.f32.mrb[0].mxu0
    %v3197 = vadd.f32 0.0, %v3196
    %v3198 = vpop.f32.mrb[0].mxu0
    %3199 = vmatprep.mubr.f32.mxu0 0.0
    %3200 = vmatmul.mubr.f32.gmra.mrb[0].mxu0 %v3078
    %v3201 = vpop.f32.mrb[0].mxu0
    %v3202 = vadd.f32 0.0, %v3201
    %v3203 = vpop.f32.mrb[0].mxu0
    %3204 = vmatprep.mubr.f32.mxu0 0.0
    %3205 = vmatmul.mubr.f32.gmra.mrb[0].mxu0 %v3081
    %v3206 = vpop.f32.mrb[0].mxu0
    %v3207 = vadd.f32 0.0, %v3206
    %v3208 = vpop.f32.mrb[0].mxu0
    %3209 = vmatprep.mubr.f32.mxu0 0.0
    %3210 = vmatmul.mubr.f32.gmra.mrb[0].mxu0 %v3084
    %v3211 = vpop.f32.mrb[0].mxu0
    %v3212 = vadd.f32 0.0, %v3211
    %v3213 = vpop.f32.mrb[0].mxu0
    %3214 = vdwg.mxu0
    %v3215 = vsel %vm1042, %v3177, -inf
    %3216 = vmax.xlane.f32.xlu0 %v3215
    %v3217 = vpop.xlane.xlu0 %3216
    %v3218 = vsel %vm1042, %v3182, -inf
    %3219 = vmax.xlane.f32.xlu0 %v3218
    %v3220 = vpop.xlane.xlu0 %3219
    %v3221 = vsel %vm1042, %v3187, -inf
    %3222 = vmax.xlane.f32.xlu0 %v3221
    %v3223 = vpop.xlane.xlu0 %3222
    %v3224 = vsel %vm1042, %v3192, -inf
    %3225 = vmax.xlane.f32.xlu0 %v3224
    %v3226 = vpop.xlane.xlu0 %3225
    %v3227 = vsel %vm1042, %v3197, -inf
    %3228 = vmax.xlane.f32.xlu0 %v3227
    %v3229 = vpop.xlane.xlu0 %3228
    %v3230 = vsel %vm1042, %v3202, -inf
    %3231 = vmax.xlane.f32.xlu0 %v3230
    %v3232 = vpop.xlane.xlu0 %3231
    %v3233 = vsel %vm1042, %v3207, -inf
    %3234 = vmax.xlane.f32.xlu0 %v3233
    %v3235 = vpop.xlane.xlu0 %3234
    %v3236 = vsel %vm1042, %v3212, -inf
    %3237 = vmax.xlane.f32.xlu0 %v3236
    %v3238 = vpop.xlane.xlu0 %3237
    %v3239 = vsub.f32 %v3177, %v3217
    %v3240 = vsub.f32 %v3182, %v3220
    %v3241 = vsub.f32 %v3187, %v3223
    %v3242 = vsub.f32 %v3192, %v3226
    %v3243 = vsub.f32 %v3197, %v3229
    %v3244 = vsub.f32 %v3202, %v3232
    %v3245 = vsub.f32 %v3207, %v3235
    %v3246 = vsub.f32 %v3212, %v3238
    %v3247 = vmul.f32 %v3239, 1.442695
    %v3248 = vpow.pop %v3247
    %v3249 = vmul.f32 %v3240, 1.442695
    %v3250 = vpow.pop %v3249
    %v3251 = vmul.f32 %v3241, 1.442695
    %v3252 = vpow.pop %v3251
    %v3253 = vmul.f32 %v3242, 1.442695
    %v3254 = vpow.pop %v3253
    %v3255 = vmul.f32 %v3243, 1.442695
    %v3256 = vpow.pop %v3255
    %v3257 = vmul.f32 %v3244, 1.442695
    %v3258 = vpow.pop %v3257
    %v3259 = vmul.f32 %v3245, 1.442695
    %v3260 = vpow.pop %v3259
    %v3261 = vmul.f32 %v3246, 1.442695
    %v3262 = vpow.pop %v3261
    %v3264 = vsel %vm1042, %v3248, 0
    %v3267 = vsel %vm1042, %v3250, 0
    %v3270 = vsel %vm1042, %v3252, 0
    %v3273 = vsel %vm1042, %v3254, 0
    %v3276 = vsel %vm1042, %v3256, 0
    %v3279 = vsel %vm1042, %v3258, 0
    %v3282 = vsel %vm1042, %v3260, 0
    %v3285 = vsel %vm1042, %v3262, 0
    %3287 = vmatprep.subr.mxu0 0.0
    %3288 = vmatpush1.msra.mxu0 %v836
    %3289 = vmatprep.subr.mxu0 0.0
    %3290 = vmatpush1.msra.mxu0 %v841
    %3291 = vmatprep.subr.mxu0 0.0
    %3292 = vmatpush1.msra.mxu0 %v846
    %3293 = vmatprep.subr.mxu0 0.0
    %3294 = vmatpush1.msra.mxu0 %v851
    %3295 = vmatprep.subr.mxu0 0.0
    %3296 = vmatpush1.msra.mxu0 %v856
    %3297 = vmatprep.subr.mxu0 0.0
    %3298 = vmatpush1.msra.mxu0 %v861
    %3299 = vmatprep.subr.mxu0 0.0
    %3300 = vmatpush1.msra.mxu0 %v866
    %3301 = vmatprep.subr.mxu0 0.0
    %3302 = vmatpush1.msra.mxu0 %v871
    %3303 = vmatprep.subr.mxu0 0.0
    %3304 = vmatpush1.msra.mxu0 0.0
    %3305 = vmatprep.subr.mxu0 0.0
    %3306 = vmatpush1.msra.mxu0 0.0
    %3307 = vmatprep.subr.mxu0 0.0
    %3308 = vmatpush1.msra.mxu0 0.0
    %3309 = vmatprep.subr.mxu0 0.0
    %3310 = vmatpush1.msra.mxu0 0.0
    %3311 = vmatprep.subr.mxu0 0.0
    %3312 = vmatpush1.msra.mxu0 0.0
    %3313 = vmatprep.subr.mxu0 0.0
    %3314 = vmatpush1.msra.mxu0 0.0
    %3315 = vmatprep.subr.mxu0 0.0
    %3316 = vmatpush1.msra.mxu0 0.0
    %3317 = vmatprep.subr.mxu0 0.0
    %3318 = vmatpush1.msra.mxu0 0.0
    %3319 = vmatprep.subr.mxu0 0.0
    %3320 = vmatpush1.msra.mxu0 0.0
    %3321 = vmatprep.subr.mxu0 0.0
    %3322 = vmatpush1.msra.mxu0 0.0
    %3323 = vmatprep.subr.mxu0 0.0
    %3324 = vmatpush1.msra.mxu0 0.0
    %3325 = vmatprep.subr.mxu0 0.0
    %3326 = vmatpush1.msra.mxu0 0.0
    %3327 = vmatprep.subr.mxu0 0.0
    %3328 = vmatpush1.msra.mxu0 0.0
    %3329 = vmatprep.subr.mxu0 0.0
    %3330 = vmatpush1.msra.mxu0 0.0
    %3331 = vmatprep.subr.mxu0 0.0
    %3332 = vmatpush1.msra.mxu0 0.0
    %3333 = vmatprep.subr.mxu0 0.0
    %3334 = vmatpush1.msra.mxu0 0.0
    %3335 = vmatprep.subr.mxu0 0.0
    %3336 = vmatpush1.msra.mxu0 0.0
    %3337 = vmatprep.subr.mxu0 0.0
    %3338 = vmatpush1.msra.mxu0 0.0
    %3339 = vmatprep.subr.mxu0 0.0
    %3340 = vmatpush1.msra.mxu0 0.0
    %3341 = vmatprep.subr.mxu0 0.0
    %3342 = vmatpush1.msra.mxu0 0.0
    %3343 = vmatprep.subr.mxu0 0.0
    %3344 = vmatpush1.msra.mxu0 0.0
    %3345 = vmatprep.subr.mxu0 0.0
    %3346 = vmatpush1.msra.mxu0 0.0
    %3347 = vmatprep.subr.mxu0 0.0
    %3348 = vmatpush1.msra.mxu0 0.0
    %3349 = vmatprep.subr.mxu0 0.0
    %3350 = vmatpush1.msra.mxu0 0.0
    %3351 = vmatprep.mubr.f32.mxu0 0.0
    %3352 = vmatmul.mubr.f32.gmra.mrb[0].mxu0 %v3264
    %v3353 = vpop.f32.mrb[0].mxu0
    %v3354 = vadd.f32 0.0, %v3353
    %v3355 = vpop.f32.mrb[0].mxu0
    %3356 = vmatprep.mubr.f32.mxu0 0.0
    %3357 = vmatmul.mubr.f32.gmra.mrb[0].mxu0 %v3267
    %v3358 = vpop.f32.mrb[0].mxu0
    %v3359 = vadd.f32 0.0, %v3358
    %v3360 = vpop.f32.mrb[0].mxu0
    %3361 = vmatprep.mubr.f32.mxu0 0.0
    %3362 = vmatmul.mubr.f32.gmra.mrb[0].mxu0 %v3270
    %v3363 = vpop.f32.mrb[0].mxu0
    %v3364 = vadd.f32 0.0, %v3363
    %v3365 = vpop.f32.mrb[0].mxu0
    %3366 = vmatprep.mubr.f32.mxu0 0.0
    %3367 = vmatmul.mubr.f32.gmra.mrb[0].mxu0 %v3273
    %v3368 = vpop.f32.mrb[0].mxu0
    %v3369 = vadd.f32 0.0, %v3368
    %v3370 = vpop.f32.mrb[0].mxu0
    %3371 = vmatprep.mubr.f32.mxu0 0.0
    %3372 = vmatmul.mubr.f32.gmra.mrb[0].mxu0 %v3276
    %v3373 = vpop.f32.mrb[0].mxu0
    %v3374 = vadd.f32 0.0, %v3373
    %v3375 = vpop.f32.mrb[0].mxu0
    %3376 = vmatprep.mubr.f32.mxu0 0.0
    %3377 = vmatmul.mubr.f32.gmra.mrb[0].mxu0 %v3279
    %v3378 = vpop.f32.mrb[0].mxu0
    %v3379 = vadd.f32 0.0, %v3378
    %v3380 = vpop.f32.mrb[0].mxu0
    %3381 = vmatprep.mubr.f32.mxu0 0.0
    %3382 = vmatmul.mubr.f32.gmra.mrb[0].mxu0 %v3282
    %v3383 = vpop.f32.mrb[0].mxu0
    %v3384 = vadd.f32 0.0, %v3383
    %v3385 = vpop.f32.mrb[0].mxu0
    %3386 = vmatprep.mubr.f32.mxu0 0.0
    %3387 = vmatmul.mubr.f32.gmra.mrb[0].mxu0 %v3285
    %v3388 = vpop.f32.mrb[0].mxu0
    %v3389 = vadd.f32 0.0, %v3388
    %v3390 = vpop.f32.mrb[0].mxu0
    %3391 = vdwg.mxu0
    %v3392 = vsel %vm1042, %v3248, 0.0
    %3393 = vadd.xlane.f32.xlu0 %v3392
    %v3394 = vpop.xlane.xlu0 %3393
    %v3395 = vsel %vm1042, %v3250, 0.0
    %3396 = vadd.xlane.f32.xlu0 %v3395
    %v3397 = vpop.xlane.xlu0 %3396
    %v3398 = vsel %vm1042, %v3252, 0.0
    %3399 = vadd.xlane.f32.xlu0 %v3398
    %v3400 = vpop.xlane.xlu0 %3399
    %v3401 = vsel %vm1042, %v3254, 0.0
    %3402 = vadd.xlane.f32.xlu0 %v3401
    %v3403 = vpop.xlane.xlu0 %3402
    %v3404 = vsel %vm1042, %v3256, 0.0
    %3405 = vadd.xlane.f32.xlu0 %v3404
    %v3406 = vpop.xlane.xlu0 %3405
    %v3407 = vsel %vm1042, %v3258, 0.0
    %3408 = vadd.xlane.f32.xlu0 %v3407
    %v3409 = vpop.xlane.xlu0 %3408
    %v3410 = vsel %vm1042, %v3260, 0.0
    %3411 = vadd.xlane.f32.xlu0 %v3410
    %v3412 = vpop.xlane.xlu0 %3411
    %v3413 = vsel %vm1042, %v3262, 0.0
    %3414 = vadd.xlane.f32.xlu0 %v3413
    %v3415 = vpop.xlane.xlu0 %3414
    %v3416 = vrcp.pop %v3394
    %v3417 = vrcp.pop %v3397
    %v3418 = vrcp.pop %v3400
    %v3419 = vrcp.pop %v3403
    %v3420 = vrcp.pop %v3406
    %v3421 = vrcp.pop %v3409
    %v3422 = vrcp.pop %v3412
    %v3423 = vrcp.pop %v3415
    %v3424 = vmul.f32 %v3354, %v3416
    %v3425 = vmul.f32 %v3359, %v3417
    %v3426 = vmul.f32 %v3364, %v3418
    %v3427 = vmul.f32 %v3369, %v3419
    %v3428 = vmul.f32 %v3374, %v3420
    %v3429 = vmul.f32 %v3379, %v3421
    %v3430 = vmul.f32 %v3384, %v3422
    %v3431 = vmul.f32 %v3389, %v3423
    %v3433 = vsel %vm888, %v3424, 0
    %v3436 = vsel %vm888, %v3425, 0
    %v3439 = vsel %vm888, %v3426, 0
    %v3442 = vsel %vm888, %v3427, 0
    %v3445 = vsel %vm888, %v3428, 0
    %v3448 = vsel %vm888, %v3429, 0
    %v3451 = vsel %vm888, %v3430, 0
    %v3454 = vsel %vm888, %v3431, 0
    %3456 = vmatprep.subr.mxu0 0.0
    %3457 = vmatpush1.msra.mxu0 %v385
    %3458 = vmatprep.subr.mxu0 0.0
    %3459 = vmatpush1.msra.mxu0 %v386
    %3460 = vmatprep.subr.mxu0 0.0
    %3461 = vmatpush1.msra.mxu0 %v387
    %3462 = vmatprep.subr.mxu0 0.0
    %3463 = vmatpush1.msra.mxu0 %v388
    %3464 = vmatprep.subr.mxu0 0.0
    %3465 = vmatpush1.msra.mxu0 0.0
    %3466 = vmatprep.subr.mxu0 0.0
    %3467 = vmatpush1.msra.mxu0 0.0
    %3468 = vmatprep.subr.mxu0 0.0
    %3469 = vmatpush1.msra.mxu0 0.0
    %3470 = vmatprep.subr.mxu0 0.0
    %3471 = vmatpush1.msra.mxu0 0.0
    %3472 = vmatprep.subr.mxu0 0.0
    %3473 = vmatpush1.msra.mxu0 0.0
    %3474 = vmatprep.subr.mxu0 0.0
    %3475 = vmatpush1.msra.mxu0 0.0
    %3476 = vmatprep.subr.mxu0 0.0
    %3477 = vmatpush1.msra.mxu0 0.0
    %3478 = vmatprep.subr.mxu0 0.0
    %3479 = vmatpush1.msra.mxu0 0.0
    %3480 = vmatprep.subr.mxu0 0.0
    %3481 = vmatpush1.msra.mxu0 0.0
    %3482 = vmatprep.subr.mxu0 0.0
    %3483 = vmatpush1.msra.mxu0 0.0
    %3484 = vmatprep.subr.mxu0 0.0
    %3485 = vmatpush1.msra.mxu0 0.0
    %3486 = vmatprep.subr.mxu0 0.0
    %3487 = vmatpush1.msra.mxu0 0.0
    %3488 = vmatprep.subr.mxu0 0.0
    %3489 = vmatpush1.msra.mxu0 0.0
    %3490 = vmatprep.subr.mxu0 0.0
    %3491 = vmatpush1.msra.mxu0 0.0
    %3492 = vmatprep.subr.mxu0 0.0
    %3493 = vmatpush1.msra.mxu0 0.0
    %3494 = vmatprep.subr.mxu0 0.0
    %3495 = vmatpush1.msra.mxu0 0.0
    %3496 = vmatprep.subr.mxu0 0.0
    %3497 = vmatpush1.msra.mxu0 0.0
    %3498 = vmatprep.subr.mxu0 0.0
    %3499 = vmatpush1.msra.mxu0 0.0
    %3500 = vmatprep.subr.mxu0 0.0
    %3501 = vmatpush1.msra.mxu0 0.0
    %3502 = vmatprep.subr.mxu0 0.0
    %3503 = vmatpush1.msra.mxu0 0.0
    %3504 = vmatprep.subr.mxu0 0.0
    %3505 = vmatpush1.msra.mxu0 0.0
    %3506 = vmatprep.subr.mxu0 0.0
    %3507 = vmatpush1.msra.mxu0 0.0
    %3508 = vmatprep.subr.mxu0 0.0
    %3509 = vmatpush1.msra.mxu0 0.0
    %3510 = vmatprep.subr.mxu0 0.0
    %3511 = vmatpush1.msra.mxu0 0.0
    %3512 = vmatprep.subr.mxu0 0.0
    %3513 = vmatpush1.msra.mxu0 0.0
    %3514 = vmatprep.subr.mxu0 0.0
    %3515 = vmatpush1.msra.mxu0 0.0
    %3516 = vmatprep.subr.mxu0 0.0
    %3517 = vmatpush1.msra.mxu0 0.0
    %3518 = vmatprep.subr.mxu0 0.0
    %3519 = vmatpush1.msra.mxu0 0.0
    %3520 = vmatprep.mubr.f32.mxu0 0.0
    %3521 = vmatmul.mubr.f32.gmra.mrb[0].mxu0 %v3433
    %v3522 = vpop.f32.mrb[0].mxu0
    %v3523 = vadd.f32 0.0, %v3522
    %v3524 = vpop.f32.mrb[0].mxu0
    %3525 = vmatprep.mubr.f32.mxu0 0.0
    %3526 = vmatmul.mubr.f32.gmra.mrb[0].mxu0 %v3436
    %v3527 = vpop.f32.mrb[0].mxu0
    %v3528 = vadd.f32 0.0, %v3527
    %v3529 = vpop.f32.mrb[0].mxu0
    %3530 = vmatprep.mubr.f32.mxu0 0.0
    %3531 = vmatmul.mubr.f32.gmra.mrb[0].mxu0 %v3439
    %v3532 = vpop.f32.mrb[0].mxu0
    %v3533 = vadd.f32 0.0, %v3532
    %v3534 = vpop.f32.mrb[0].mxu0
    %3535 = vmatprep.mubr.f32.mxu0 0.0
    %3536 = vmatmul.mubr.f32.gmra.mrb[0].mxu0 %v3442
    %v3537 = vpop.f32.mrb[0].mxu0
    %v3538 = vadd.f32 0.0, %v3537
    %v3539 = vpop.f32.mrb[0].mxu0
    %3540 = vmatprep.mubr.f32.mxu0 0.0
    %3541 = vmatmul.mubr.f32.gmra.mrb[0].mxu0 %v3445
    %v3542 = vpop.f32.mrb[0].mxu0
    %v3543 = vadd.f32 0.0, %v3542
    %v3544 = vpop.f32.mrb[0].mxu0
    %3545 = vmatprep.mubr.f32.mxu0 0.0
    %3546 = vmatmul.mubr.f32.gmra.mrb[0].mxu0 %v3448
    %v3547 = vpop.f32.mrb[0].mxu0
    %v3548 = vadd.f32 0.0, %v3547
    %v3549 = vpop.f32.mrb[0].mxu0
    %3550 = vmatprep.mubr.f32.mxu0 0.0
    %3551 = vmatmul.mubr.f32.gmra.mrb[0].mxu0 %v3451
    %v3552 = vpop.f32.mrb[0].mxu0
    %v3553 = vadd.f32 0.0, %v3552
    %v3554 = vpop.f32.mrb[0].mxu0
    %3555 = vmatprep.mubr.f32.mxu0 0.0
    %3556 = vmatmul.mubr.f32.gmra.mrb[0].mxu0 %v3454
    %v3557 = vpop.f32.mrb[0].mxu0
    %v3558 = vadd.f32 0.0, %v3557
    %v3559 = vpop.f32.mrb[0].mxu0
    %3560 = vdwg.mxu0
    %v3561 = vadd.f32 %v3054, %v3523
    %v3562 = vadd.f32 %v3055, %v3528
    %v3563 = vadd.f32 %v3056, %v3533
    %v3564 = vadd.f32 %v3057, %v3538
    %v3565 = vadd.f32 %v3058, %v3543
    %v3566 = vadd.f32 %v3059, %v3548
    %v3567 = vadd.f32 %v3060, %v3553
    %v3568 = vadd.f32 %v3061, %v3558
    %3569 = vrot.lane.b32.xlu0 %v532, 96
    %v3570 = vpop.permute.xlu0 %3569
    %3571 = vrot.lane.b32.xlu0 %v537, 96
    %v3572 = vpop.permute.xlu0 %3571
    %3573 = vrot.lane.b32.xlu0 %v542, 96
    %v3574 = vpop.permute.xlu0 %3573
    %3575 = vrot.lane.b32.xlu0 %v547, 96
    %v3576 = vpop.permute.xlu0 %3575
    %3577 = vrot.lane.b32.xlu0 %v552, 96
    %v3578 = vpop.permute.xlu0 %3577
    %3579 = vrot.lane.b32.xlu0 %v557, 96
    %v3580 = vpop.permute.xlu0 %3579
    %3581 = vrot.lane.b32.xlu0 %v562, 96
    %v3582 = vpop.permute.xlu0 %3581
    %3583 = vrot.lane.b32.xlu0 %v567, 96
    %v3584 = vpop.permute.xlu0 %3583
    %3585 = vrot.lane.b32.xlu0 %v684, 96
    %v3586 = vpop.permute.xlu0 %3585
    %3587 = vrot.lane.b32.xlu0 %v689, 96
    %v3588 = vpop.permute.xlu0 %3587
    %3589 = vrot.lane.b32.xlu0 %v694, 96
    %v3590 = vpop.permute.xlu0 %3589
    %3591 = vrot.lane.b32.xlu0 %v699, 96
    %v3592 = vpop.permute.xlu0 %3591
    %3593 = vrot.lane.b32.xlu0 %v704, 96
    %v3594 = vpop.permute.xlu0 %3593
    %3595 = vrot.lane.b32.xlu0 %v709, 96
    %v3596 = vpop.permute.xlu0 %3595
    %3597 = vrot.lane.b32.xlu0 %v714, 96
    %v3598 = vpop.permute.xlu0 %3597
    %3599 = vrot.lane.b32.xlu0 %v719, 96
    %v3600 = vpop.permute.xlu0 %3599
    %v3601 = vsel %vm888, %v3570, 0
    %v3603 = vsel %vm888, %v3572, 0
    %v3605 = vsel %vm888, %v3574, 0
    %v3607 = vsel %vm888, %v3576, 0
    %v3609 = vsel %vm888, %v3578, 0
    %v3611 = vsel %vm888, %v3580, 0
    %v3613 = vsel %vm888, %v3582, 0
    %v3615 = vsel %vm888, %v3584, 0
    %v3617 = vsel %vm888, %v3586, 0
    %v3619 = vsel %vm888, %v3588, 0
    %v3621 = vsel %vm888, %v3590, 0
    %v3623 = vsel %vm888, %v3592, 0
    %v3625 = vsel %vm888, %v3594, 0
    %v3627 = vsel %vm888, %v3596, 0
    %v3629 = vsel %vm888, %v3598, 0
    %v3631 = vsel %vm888, %v3600, 0
    %3633 = vmatprep.subr.mxu0 0.0
    %3634 = vmatpush1.xpose.msra.mxu0 %v3617
    %3635 = vmatprep.subr.mxu0 0.0
    %3636 = vmatpush1.xpose.msra.mxu0 %v3619
    %3637 = vmatprep.subr.mxu0 0.0
    %3638 = vmatpush1.xpose.msra.mxu0 %v3621
    %3639 = vmatprep.subr.mxu0 0.0
    %3640 = vmatpush1.xpose.msra.mxu0 %v3623
    %3641 = vmatprep.subr.mxu0 0.0
    %3642 = vmatpush1.xpose.msra.mxu0 %v3625
    %3643 = vmatprep.subr.mxu0 0.0
    %3644 = vmatpush1.xpose.msra.mxu0 %v3627
    %3645 = vmatprep.subr.mxu0 0.0
    %3646 = vmatpush1.xpose.msra.mxu0 %v3629
    %3647 = vmatprep.subr.mxu0 0.0
    %3648 = vmatpush1.xpose.msra.mxu0 %v3631
    %3649 = vmatprep.subr.mxu0 0.0
    %3650 = vmatpush1.xpose.msra.mxu0 0.0
    %3651 = vmatprep.subr.mxu0 0.0
    %3652 = vmatpush1.xpose.msra.mxu0 0.0
    %3653 = vmatprep.subr.mxu0 0.0
    %3654 = vmatpush1.xpose.msra.mxu0 0.0
    %3655 = vmatprep.subr.mxu0 0.0
    %3656 = vmatpush1.xpose.msra.mxu0 0.0
    %3657 = vmatprep.subr.mxu0 0.0
    %3658 = vmatpush1.xpose.msra.mxu0 0.0
    %3659 = vmatprep.subr.mxu0 0.0
    %3660 = vmatpush1.xpose.msra.mxu0 0.0
    %3661 = vmatprep.subr.mxu0 0.0
    %3662 = vmatpush1.xpose.msra.mxu0 0.0
    %3663 = vmatprep.subr.mxu0 0.0
    %3664 = vmatpush1.xpose.msra.mxu0 0.0
    %3665 = vmatprep.subr.mxu0 0.0
    %3666 = vmatpush1.xpose.msra.mxu0 0.0
    %3667 = vmatprep.subr.mxu0 0.0
    %3668 = vmatpush1.xpose.msra.mxu0 0.0
    %3669 = vmatprep.subr.mxu0 0.0
    %3670 = vmatpush1.xpose.msra.mxu0 0.0
    %3671 = vmatprep.subr.mxu0 0.0
    %3672 = vmatpush1.xpose.msra.mxu0 0.0
    %3673 = vmatprep.subr.mxu0 0.0
    %3674 = vmatpush1.xpose.msra.mxu0 0.0
    %3675 = vmatprep.subr.mxu0 0.0
    %3676 = vmatpush1.xpose.msra.mxu0 0.0
    %3677 = vmatprep.subr.mxu0 0.0
    %3678 = vmatpush1.xpose.msra.mxu0 0.0
    %3679 = vmatprep.subr.mxu0 0.0
    %3680 = vmatpush1.xpose.msra.mxu0 0.0
    %3681 = vmatprep.subr.mxu0 0.0
    %3682 = vmatpush1.xpose.msra.mxu0 0.0
    %3683 = vmatprep.subr.mxu0 0.0
    %3684 = vmatpush1.xpose.msra.mxu0 0.0
    %3685 = vmatprep.subr.mxu0 0.0
    %3686 = vmatpush1.xpose.msra.mxu0 0.0
    %3687 = vmatprep.subr.mxu0 0.0
    %3688 = vmatpush1.xpose.msra.mxu0 0.0
    %3689 = vmatprep.subr.mxu0 0.0
    %3690 = vmatpush1.xpose.msra.mxu0 0.0
    %3691 = vmatprep.subr.mxu0 0.0
    %3692 = vmatpush1.xpose.msra.mxu0 0.0
    %3693 = vmatprep.subr.mxu0 0.0
    %3694 = vmatpush1.xpose.msra.mxu0 0.0
    %3695 = vmatprep.subr.mxu0 0.0
    %3696 = vmatpush1.xpose.msra.mxu0 0.0
    %3697 = vmatprep.mubr.f32.mxu0 0.0
    %3698 = vmatmul.mubr.f32.gmra.mrb[0].mxu0 %v3601
    %v3699 = vpop.f32.mrb[0].mxu0
    %v3700 = vadd.f32 0.0, %v3699
    %v3701 = vpop.f32.mrb[0].mxu0
    %3702 = vmatprep.mubr.f32.mxu0 0.0
    %3703 = vmatmul.mubr.f32.gmra.mrb[0].mxu0 %v3603
    %v3704 = vpop.f32.mrb[0].mxu0
    %v3705 = vadd.f32 0.0, %v3704
    %v3706 = vpop.f32.mrb[0].mxu0
    %3707 = vmatprep.mubr.f32.mxu0 0.0
    %3708 = vmatmul.mubr.f32.gmra.mrb[0].mxu0 %v3605
    %v3709 = vpop.f32.mrb[0].mxu0
    %v3710 = vadd.f32 0.0, %v3709
    %v3711 = vpop.f32.mrb[0].mxu0
    %3712 = vmatprep.mubr.f32.mxu0 0.0
    %3713 = vmatmul.mubr.f32.gmra.mrb[0].mxu0 %v3607
    %v3714 = vpop.f32.mrb[0].mxu0
    %v3715 = vadd.f32 0.0, %v3714
    %v3716 = vpop.f32.mrb[0].mxu0
    %3717 = vmatprep.mubr.f32.mxu0 0.0
    %3718 = vmatmul.mubr.f32.gmra.mrb[0].mxu0 %v3609
    %v3719 = vpop.f32.mrb[0].mxu0
    %v3720 = vadd.f32 0.0, %v3719
    %v3721 = vpop.f32.mrb[0].mxu0
    %3722 = vmatprep.mubr.f32.mxu0 0.0
    %3723 = vmatmul.mubr.f32.gmra.mrb[0].mxu0 %v3611
    %v3724 = vpop.f32.mrb[0].mxu0
    %v3725 = vadd.f32 0.0, %v3724
    %v3726 = vpop.f32.mrb[0].mxu0
    %3727 = vmatprep.mubr.f32.mxu0 0.0
    %3728 = vmatmul.mubr.f32.gmra.mrb[0].mxu0 %v3613
    %v3729 = vpop.f32.mrb[0].mxu0
    %v3730 = vadd.f32 0.0, %v3729
    %v3731 = vpop.f32.mrb[0].mxu0
    %3732 = vmatprep.mubr.f32.mxu0 0.0
    %3733 = vmatmul.mubr.f32.gmra.mrb[0].mxu0 %v3615
    %v3734 = vpop.f32.mrb[0].mxu0
    %v3735 = vadd.f32 0.0, %v3734
    %v3736 = vpop.f32.mrb[0].mxu0
    %3737 = vdwg.mxu0
    %v3738 = vsel %vm1042, %v3700, -inf
    %3739 = vmax.xlane.f32.xlu0 %v3738
    %v3740 = vpop.xlane.xlu0 %3739
    %v3741 = vsel %vm1042, %v3705, -inf
    %3742 = vmax.xlane.f32.xlu0 %v3741
    %v3743 = vpop.xlane.xlu0 %3742
    %v3744 = vsel %vm1042, %v3710, -inf
    %3745 = vmax.xlane.f32.xlu0 %v3744
    %v3746 = vpop.xlane.xlu0 %3745
    %v3747 = vsel %vm1042, %v3715, -inf
    %3748 = vmax.xlane.f32.xlu0 %v3747
    %v3749 = vpop.xlane.xlu0 %3748
    %v3750 = vsel %vm1042, %v3720, -inf
    %3751 = vmax.xlane.f32.xlu0 %v3750
    %v3752 = vpop.xlane.xlu0 %3751
    %v3753 = vsel %vm1042, %v3725, -inf
    %3754 = vmax.xlane.f32.xlu0 %v3753
    %v3755 = vpop.xlane.xlu0 %3754
    %v3756 = vsel %vm1042, %v3730, -inf
    %3757 = vmax.xlane.f32.xlu0 %v3756
    %v3758 = vpop.xlane.xlu0 %3757
    %v3759 = vsel %vm1042, %v3735, -inf
    %3760 = vmax.xlane.f32.xlu0 %v3759
    %v3761 = vpop.xlane.xlu0 %3760
    %v3762 = vsub.f32 %v3700, %v3740
    %v3763 = vsub.f32 %v3705, %v3743
    %v3764 = vsub.f32 %v3710, %v3746
    %v3765 = vsub.f32 %v3715, %v3749
    %v3766 = vsub.f32 %v3720, %v3752
    %v3767 = vsub.f32 %v3725, %v3755
    %v3768 = vsub.f32 %v3730, %v3758
    %v3769 = vsub.f32 %v3735, %v3761
    %v3770 = vmul.f32 %v3762, 1.442695
    %v3771 = vpow.pop %v3770
    %v3772 = vmul.f32 %v3763, 1.442695
    %v3773 = vpow.pop %v3772
    %v3774 = vmul.f32 %v3764, 1.442695
    %v3775 = vpow.pop %v3774
    %v3776 = vmul.f32 %v3765, 1.442695
    %v3777 = vpow.pop %v3776
    %v3778 = vmul.f32 %v3766, 1.442695
    %v3779 = vpow.pop %v3778
    %v3780 = vmul.f32 %v3767, 1.442695
    %v3781 = vpow.pop %v3780
    %v3782 = vmul.f32 %v3768, 1.442695
    %v3783 = vpow.pop %v3782
    %v3784 = vmul.f32 %v3769, 1.442695
    %v3785 = vpow.pop %v3784
    %3794 = vrot.lane.b32.xlu0 %v836, 96
    %v3795 = vpop.permute.xlu0 %3794
    %3796 = vrot.lane.b32.xlu0 %v841, 96
    %v3797 = vpop.permute.xlu0 %3796
    %3798 = vrot.lane.b32.xlu0 %v846, 96
    %v3799 = vpop.permute.xlu0 %3798
    %3800 = vrot.lane.b32.xlu0 %v851, 96
    %v3801 = vpop.permute.xlu0 %3800
    %3802 = vrot.lane.b32.xlu0 %v856, 96
    %v3803 = vpop.permute.xlu0 %3802
    %3804 = vrot.lane.b32.xlu0 %v861, 96
    %v3805 = vpop.permute.xlu0 %3804
    %3806 = vrot.lane.b32.xlu0 %v866, 96
    %v3807 = vpop.permute.xlu0 %3806
    %3808 = vrot.lane.b32.xlu0 %v871, 96
    %v3809 = vpop.permute.xlu0 %3808
    %v3819 = vsel %vm1042, %v3771, 0
    %v3822 = vsel %vm1042, %v3773, 0
    %v3825 = vsel %vm1042, %v3775, 0
    %v3828 = vsel %vm1042, %v3777, 0
    %v3831 = vsel %vm1042, %v3779, 0
    %v3834 = vsel %vm1042, %v3781, 0
    %v3837 = vsel %vm1042, %v3783, 0
    %v3840 = vsel %vm1042, %v3785, 0
    %3842 = vmatprep.subr.mxu0 0.0
    %3843 = vmatpush1.msra.mxu0 %v3795
    %3844 = vmatprep.subr.mxu0 0.0
    %3845 = vmatpush1.msra.mxu0 %v3797
    %3846 = vmatprep.subr.mxu0 0.0
    %3847 = vmatpush1.msra.mxu0 %v3799
    %3848 = vmatprep.subr.mxu0 0.0
    %3849 = vmatpush1.msra.mxu0 %v3801
    %3850 = vmatprep.subr.mxu0 0.0
    %3851 = vmatpush1.msra.mxu0 %v3803
    %3852 = vmatprep.subr.mxu0 0.0
    %3853 = vmatpush1.msra.mxu0 %v3805
    %3854 = vmatprep.subr.mxu0 0.0
    %3855 = vmatpush1.msra.mxu0 %v3807
    %3856 = vmatprep.subr.mxu0 0.0
    %3857 = vmatpush1.msra.mxu0 %v3809
    %3858 = vmatprep.subr.mxu0 0.0
    %3859 = vmatpush1.msra.mxu0 0.0
    %3860 = vmatprep.subr.mxu0 0.0
    %3861 = vmatpush1.msra.mxu0 0.0
    %3862 = vmatprep.subr.mxu0 0.0
    %3863 = vmatpush1.msra.mxu0 0.0
    %3864 = vmatprep.subr.mxu0 0.0
    %3865 = vmatpush1.msra.mxu0 0.0
    %3866 = vmatprep.subr.mxu0 0.0
    %3867 = vmatpush1.msra.mxu0 0.0
    %3868 = vmatprep.subr.mxu0 0.0
    %3869 = vmatpush1.msra.mxu0 0.0
    %3870 = vmatprep.subr.mxu0 0.0
    %3871 = vmatpush1.msra.mxu0 0.0
    %3872 = vmatprep.subr.mxu0 0.0
    %3873 = vmatpush1.msra.mxu0 0.0
    %3874 = vmatprep.subr.mxu0 0.0
    %3875 = vmatpush1.msra.mxu0 0.0
    %3876 = vmatprep.subr.mxu0 0.0
    %3877 = vmatpush1.msra.mxu0 0.0
    %3878 = vmatprep.subr.mxu0 0.0
    %3879 = vmatpush1.msra.mxu0 0.0
    %3880 = vmatprep.subr.mxu0 0.0
    %3881 = vmatpush1.msra.mxu0 0.0
    %3882 = vmatprep.subr.mxu0 0.0
    %3883 = vmatpush1.msra.mxu0 0.0
    %3884 = vmatprep.subr.mxu0 0.0
    %3885 = vmatpush1.msra.mxu0 0.0
    %3886 = vmatprep.subr.mxu0 0.0
    %3887 = vmatpush1.msra.mxu0 0.0
    %3888 = vmatprep.subr.mxu0 0.0
    %3889 = vmatpush1.msra.mxu0 0.0
    %3890 = vmatprep.subr.mxu0 0.0
    %3891 = vmatpush1.msra.mxu0 0.0
    %3892 = vmatprep.subr.mxu0 0.0
    %3893 = vmatpush1.msra.mxu0 0.0
    %3894 = vmatprep.subr.mxu0 0.0
    %3895 = vmatpush1.msra.mxu0 0.0
    %3896 = vmatprep.subr.mxu0 0.0
    %3897 = vmatpush1.msra.mxu0 0.0
    %3898 = vmatprep.subr.mxu0 0.0
    %3899 = vmatpush1.msra.mxu0 0.0
    %3900 = vmatprep.subr.mxu0 0.0
    %3901 = vmatpush1.msra.mxu0 0.0
    %3902 = vmatprep.subr.mxu0 0.0
    %3903 = vmatpush1.msra.mxu0 0.0
    %3904 = vmatprep.subr.mxu0 0.0
    %3905 = vmatpush1.msra.mxu0 0.0
    %3906 = vmatprep.mubr.f32.mxu0 0.0
    %3907 = vmatmul.mubr.f32.gmra.mrb[0].mxu0 %v3819
    %v3908 = vpop.f32.mrb[0].mxu0
    %v3909 = vadd.f32 0.0, %v3908
    %v3910 = vpop.f32.mrb[0].mxu0
    %3911 = vmatprep.mubr.f32.mxu0 0.0
    %3912 = vmatmul.mubr.f32.gmra.mrb[0].mxu0 %v3822
    %v3913 = vpop.f32.mrb[0].mxu0
    %v3914 = vadd.f32 0.0, %v3913
    %v3915 = vpop.f32.mrb[0].mxu0
    %3916 = vmatprep.mubr.f32.mxu0 0.0
    %3917 = vmatmul.mubr.f32.gmra.mrb[0].mxu0 %v3825
    %v3918 = vpop.f32.mrb[0].mxu0
    %v3919 = vadd.f32 0.0, %v3918
    %v3920 = vpop.f32.mrb[0].mxu0
    %3921 = vmatprep.mubr.f32.mxu0 0.0
    %3922 = vmatmul.mubr.f32.gmra.mrb[0].mxu0 %v3828
    %v3923 = vpop.f32.mrb[0].mxu0
    %v3924 = vadd.f32 0.0, %v3923
    %v3925 = vpop.f32.mrb[0].mxu0
    %3926 = vmatprep.mubr.f32.mxu0 0.0
    %3927 = vmatmul.mubr.f32.gmra.mrb[0].mxu0 %v3831
    %v3928 = vpop.f32.mrb[0].mxu0
    %v3929 = vadd.f32 0.0, %v3928
    %v3930 = vpop.f32.mrb[0].mxu0
    %3931 = vmatprep.mubr.f32.mxu0 0.0
    %3932 = vmatmul.mubr.f32.gmra.mrb[0].mxu0 %v3834
    %v3933 = vpop.f32.mrb[0].mxu0
    %v3934 = vadd.f32 0.0, %v3933
    %v3935 = vpop.f32.mrb[0].mxu0
    %3936 = vmatprep.mubr.f32.mxu0 0.0
    %3937 = vmatmul.mubr.f32.gmra.mrb[0].mxu0 %v3837
    %v3938 = vpop.f32.mrb[0].mxu0
    %v3939 = vadd.f32 0.0, %v3938
    %v3940 = vpop.f32.mrb[0].mxu0
    %3941 = vmatprep.mubr.f32.mxu0 0.0
    %3942 = vmatmul.mubr.f32.gmra.mrb[0].mxu0 %v3840
    %v3943 = vpop.f32.mrb[0].mxu0
    %v3944 = vadd.f32 0.0, %v3943
    %v3945 = vpop.f32.mrb[0].mxu0
    %3946 = vdwg.mxu0
    %v3947 = vsel %vm1042, %v3771, 0.0
    %3948 = vadd.xlane.f32.xlu0 %v3947
    %v3949 = vpop.xlane.xlu0 %3948
    %v3950 = vsel %vm1042, %v3773, 0.0
    %3951 = vadd.xlane.f32.xlu0 %v3950
    %v3952 = vpop.xlane.xlu0 %3951
    %v3953 = vsel %vm1042, %v3775, 0.0
    %3954 = vadd.xlane.f32.xlu0 %v3953
    %v3955 = vpop.xlane.xlu0 %3954
    %v3956 = vsel %vm1042, %v3777, 0.0
    %3957 = vadd.xlane.f32.xlu0 %v3956
    %v3958 = vpop.xlane.xlu0 %3957
    %v3959 = vsel %vm1042, %v3779, 0.0
    %3960 = vadd.xlane.f32.xlu0 %v3959
    %v3961 = vpop.xlane.xlu0 %3960
    %v3962 = vsel %vm1042, %v3781, 0.0
    %3963 = vadd.xlane.f32.xlu0 %v3962
    %v3964 = vpop.xlane.xlu0 %3963
    %v3965 = vsel %vm1042, %v3783, 0.0
    %3966 = vadd.xlane.f32.xlu0 %v3965
    %v3967 = vpop.xlane.xlu0 %3966
    %v3968 = vsel %vm1042, %v3785, 0.0
    %3969 = vadd.xlane.f32.xlu0 %v3968
    %v3970 = vpop.xlane.xlu0 %3969
    %v3971 = vrcp.pop %v3949
    %v3972 = vrcp.pop %v3952
    %v3973 = vrcp.pop %v3955
    %v3974 = vrcp.pop %v3958
    %v3975 = vrcp.pop %v3961
    %v3976 = vrcp.pop %v3964
    %v3977 = vrcp.pop %v3967
    %v3978 = vrcp.pop %v3970
    %v3979 = vmul.f32 %v3909, %v3971
    %v3980 = vmul.f32 %v3914, %v3972
    %v3981 = vmul.f32 %v3919, %v3973
    %v3982 = vmul.f32 %v3924, %v3974
    %v3983 = vmul.f32 %v3929, %v3975
    %v3984 = vmul.f32 %v3934, %v3976
    %v3985 = vmul.f32 %v3939, %v3977
    %v3986 = vmul.f32 %v3944, %v3978
    %v3988 = vsel %vm888, %v3979, 0
    %v3991 = vsel %vm888, %v3980, 0
    %v3994 = vsel %vm888, %v3981, 0
    %v3997 = vsel %vm888, %v3982, 0
    %v4000 = vsel %vm888, %v3983, 0
    %v4003 = vsel %vm888, %v3984, 0
    %v4006 = vsel %vm888, %v3985, 0
    %v4009 = vsel %vm888, %v3986, 0
    %4011 = vmatprep.subr.mxu0 0.0
    %4012 = vmatpush1.msra.mxu0 %v389
    %4013 = vmatprep.subr.mxu0 0.0
    %4014 = vmatpush1.msra.mxu0 %v390
    %4015 = vmatprep.subr.mxu0 0.0
    %4016 = vmatpush1.msra.mxu0 %v391
    %4017 = vmatprep.subr.mxu0 0.0
    %4018 = vmatpush1.msra.mxu0 %v392
    %4019 = vmatprep.subr.mxu0 0.0
    %4020 = vmatpush1.msra.mxu0 0.0
    %4021 = vmatprep.subr.mxu0 0.0
    %4022 = vmatpush1.msra.mxu0 0.0
    %4023 = vmatprep.subr.mxu0 0.0
    %4024 = vmatpush1.msra.mxu0 0.0
    %4025 = vmatprep.subr.mxu0 0.0
    %4026 = vmatpush1.msra.mxu0 0.0
    %4027 = vmatprep.subr.mxu0 0.0
    %4028 = vmatpush1.msra.mxu0 0.0
    %4029 = vmatprep.subr.mxu0 0.0
    %4030 = vmatpush1.msra.mxu0 0.0
    %4031 = vmatprep.subr.mxu0 0.0
    %4032 = vmatpush1.msra.mxu0 0.0
    %4033 = vmatprep.subr.mxu0 0.0
    %4034 = vmatpush1.msra.mxu0 0.0
    %4035 = vmatprep.subr.mxu0 0.0
    %4036 = vmatpush1.msra.mxu0 0.0
    %4037 = vmatprep.subr.mxu0 0.0
    %4038 = vmatpush1.msra.mxu0 0.0
    %4039 = vmatprep.subr.mxu0 0.0
    %4040 = vmatpush1.msra.mxu0 0.0
    %4041 = vmatprep.subr.mxu0 0.0
    %4042 = vmatpush1.msra.mxu0 0.0
    %4043 = vmatprep.subr.mxu0 0.0
    %4044 = vmatpush1.msra.mxu0 0.0
    %4045 = vmatprep.subr.mxu0 0.0
    %4046 = vmatpush1.msra.mxu0 0.0
    %4047 = vmatprep.subr.mxu0 0.0
    %4048 = vmatpush1.msra.mxu0 0.0
    %4049 = vmatprep.subr.mxu0 0.0
    %4050 = vmatpush1.msra.mxu0 0.0
    %4051 = vmatprep.subr.mxu0 0.0
    %4052 = vmatpush1.msra.mxu0 0.0
    %4053 = vmatprep.subr.mxu0 0.0
    %4054 = vmatpush1.msra.mxu0 0.0
    %4055 = vmatprep.subr.mxu0 0.0
    %4056 = vmatpush1.msra.mxu0 0.0
    %4057 = vmatprep.subr.mxu0 0.0
    %4058 = vmatpush1.msra.mxu0 0.0
    %4059 = vmatprep.subr.mxu0 0.0
    %4060 = vmatpush1.msra.mxu0 0.0
    %4061 = vmatprep.subr.mxu0 0.0
    %4062 = vmatpush1.msra.mxu0 0.0
    %4063 = vmatprep.subr.mxu0 0.0
    %4064 = vmatpush1.msra.mxu0 0.0
    %4065 = vmatprep.subr.mxu0 0.0
    %4066 = vmatpush1.msra.mxu0 0.0
    %4067 = vmatprep.subr.mxu0 0.0
    %4068 = vmatpush1.msra.mxu0 0.0
    %4069 = vmatprep.subr.mxu0 0.0
    %4070 = vmatpush1.msra.mxu0 0.0
    %4071 = vmatprep.subr.mxu0 0.0
    %4072 = vmatpush1.msra.mxu0 0.0
    %4073 = vmatprep.subr.mxu0 0.0
    %4074 = vmatpush1.msra.mxu0 0.0
    %4075 = vmatprep.mubr.f32.mxu0 0.0
    %4076 = vmatmul.mubr.f32.gmra.mrb[0].mxu0 %v3988
    %v4077 = vpop.f32.mrb[0].mxu0
    %v4078 = vadd.f32 0.0, %v4077
    %v4079 = vpop.f32.mrb[0].mxu0
    %4080 = vmatprep.mubr.f32.mxu0 0.0
    %4081 = vmatmul.mubr.f32.gmra.mrb[0].mxu0 %v3991
    %v4082 = vpop.f32.mrb[0].mxu0
    %v4083 = vadd.f32 0.0, %v4082
    %v4084 = vpop.f32.mrb[0].mxu0
    %4085 = vmatprep.mubr.f32.mxu0 0.0
    %4086 = vmatmul.mubr.f32.gmra.mrb[0].mxu0 %v3994
    %v4087 = vpop.f32.mrb[0].mxu0
    %v4088 = vadd.f32 0.0, %v4087
    %v4089 = vpop.f32.mrb[0].mxu0
    %4090 = vmatprep.mubr.f32.mxu0 0.0
    %4091 = vmatmul.mubr.f32.gmra.mrb[0].mxu0 %v3997
    %v4092 = vpop.f32.mrb[0].mxu0
    %v4093 = vadd.f32 0.0, %v4092
    %v4094 = vpop.f32.mrb[0].mxu0
    %4095 = vmatprep.mubr.f32.mxu0 0.0
    %4096 = vmatmul.mubr.f32.gmra.mrb[0].mxu0 %v4000
    %v4097 = vpop.f32.mrb[0].mxu0
    %v4098 = vadd.f32 0.0, %v4097
    %v4099 = vpop.f32.mrb[0].mxu0
    %4100 = vmatprep.mubr.f32.mxu0 0.0
    %4101 = vmatmul.mubr.f32.gmra.mrb[0].mxu0 %v4003
    %v4102 = vpop.f32.mrb[0].mxu0
    %v4103 = vadd.f32 0.0, %v4102
    %v4104 = vpop.f32.mrb[0].mxu0
    %4105 = vmatprep.mubr.f32.mxu0 0.0
    %4106 = vmatmul.mubr.f32.gmra.mrb[0].mxu0 %v4006
    %v4107 = vpop.f32.mrb[0].mxu0
    %v4108 = vadd.f32 0.0, %v4107
    %v4109 = vpop.f32.mrb[0].mxu0
    %4110 = vmatprep.mubr.f32.mxu0 0.0
    %4111 = vmatmul.mubr.f32.gmra.mrb[0].mxu0 %v4009
    %v4112 = vpop.f32.mrb[0].mxu0
    %v4113 = vadd.f32 0.0, %v4112
    %v4114 = vpop.f32.mrb[0].mxu0
    %4115 = vdwg.mxu0
    %v4116 = vadd.f32 %v3561, %v4078
    %v4117 = vadd.f32 %v3562, %v4083
    %v4118 = vadd.f32 %v3563, %v4088
    %v4119 = vadd.f32 %v3564, %v4093
    %v4120 = vadd.f32 %v3565, %v4098
    %v4121 = vadd.f32 %v3566, %v4103
    %v4122 = vadd.f32 %v3567, %v4108
    %v4123 = vadd.f32 %v3568, %v4113
    %4124 = vrot.lane.b32.xlu0 %v532, 64
    %v4125 = vpop.permute.xlu0 %4124
    %4126 = vrot.lane.b32.xlu0 %v537, 64
    %v4127 = vpop.permute.xlu0 %4126
    %4128 = vrot.lane.b32.xlu0 %v542, 64
    %v4129 = vpop.permute.xlu0 %4128
    %4130 = vrot.lane.b32.xlu0 %v547, 64
    %v4131 = vpop.permute.xlu0 %4130
    %4132 = vrot.lane.b32.xlu0 %v552, 64
    %v4133 = vpop.permute.xlu0 %4132
    %4134 = vrot.lane.b32.xlu0 %v557, 64
    %v4135 = vpop.permute.xlu0 %4134
    %4136 = vrot.lane.b32.xlu0 %v562, 64
    %v4137 = vpop.permute.xlu0 %4136
    %4138 = vrot.lane.b32.xlu0 %v567, 64
    %v4139 = vpop.permute.xlu0 %4138
    %4140 = vrot.lane.b32.xlu0 %v684, 64
    %v4141 = vpop.permute.xlu0 %4140
    %4142 = vrot.lane.b32.xlu0 %v689, 64
    %v4143 = vpop.permute.xlu0 %4142
    %4144 = vrot.lane.b32.xlu0 %v694, 64
    %v4145 = vpop.permute.xlu0 %4144
    %4146 = vrot.lane.b32.xlu0 %v699, 64
    %v4147 = vpop.permute.xlu0 %4146
    %4148 = vrot.lane.b32.xlu0 %v704, 64
    %v4149 = vpop.permute.xlu0 %4148
    %4150 = vrot.lane.b32.xlu0 %v709, 64
    %v4151 = vpop.permute.xlu0 %4150
    %4152 = vrot.lane.b32.xlu0 %v714, 64
    %v4153 = vpop.permute.xlu0 %4152
    %4154 = vrot.lane.b32.xlu0 %v719, 64
    %v4155 = vpop.permute.xlu0 %4154
    %v4156 = vsel %vm888, %v4125, 0
    %v4158 = vsel %vm888, %v4127, 0
    %v4160 = vsel %vm888, %v4129, 0
    %v4162 = vsel %vm888, %v4131, 0
    %v4164 = vsel %vm888, %v4133, 0
    %v4166 = vsel %vm888, %v4135, 0
    %v4168 = vsel %vm888, %v4137, 0
    %v4170 = vsel %vm888, %v4139, 0
    %v4172 = vsel %vm888, %v4141, 0
    %v4174 = vsel %vm888, %v4143, 0
    %v4176 = vsel %vm888, %v4145, 0
    %v4178 = vsel %vm888, %v4147, 0
    %v4180 = vsel %vm888, %v4149, 0
    %v4182 = vsel %vm888, %v4151, 0
    %v4184 = vsel %vm888, %v4153, 0
    %v4186 = vsel %vm888, %v4155, 0
    %4188 = vmatprep.subr.mxu0 0.0
    %4189 = vmatpush1.xpose.msra.mxu0 %v4172
    %4190 = vmatprep.subr.mxu0 0.0
    %4191 = vmatpush1.xpose.msra.mxu0 %v4174
    %4192 = vmatprep.subr.mxu0 0.0
    %4193 = vmatpush1.xpose.msra.mxu0 %v4176
    %4194 = vmatprep.subr.mxu0 0.0
    %4195 = vmatpush1.xpose.msra.mxu0 %v4178
    %4196 = vmatprep.subr.mxu0 0.0
    %4197 = vmatpush1.xpose.msra.mxu0 %v4180
    %4198 = vmatprep.subr.mxu0 0.0
    %4199 = vmatpush1.xpose.msra.mxu0 %v4182
    %4200 = vmatprep.subr.mxu0 0.0
    %4201 = vmatpush1.xpose.msra.mxu0 %v4184
    %4202 = vmatprep.subr.mxu0 0.0
    %4203 = vmatpush1.xpose.msra.mxu0 %v4186
    %4204 = vmatprep.subr.mxu0 0.0
    %4205 = vmatpush1.xpose.msra.mxu0 0.0
    %4206 = vmatprep.subr.mxu0 0.0
    %4207 = vmatpush1.xpose.msra.mxu0 0.0
    %4208 = vmatprep.subr.mxu0 0.0
    %4209 = vmatpush1.xpose.msra.mxu0 0.0
    %4210 = vmatprep.subr.mxu0 0.0
    %4211 = vmatpush1.xpose.msra.mxu0 0.0
    %4212 = vmatprep.subr.mxu0 0.0
    %4213 = vmatpush1.xpose.msra.mxu0 0.0
    %4214 = vmatprep.subr.mxu0 0.0
    %4215 = vmatpush1.xpose.msra.mxu0 0.0
    %4216 = vmatprep.subr.mxu0 0.0
    %4217 = vmatpush1.xpose.msra.mxu0 0.0
    %4218 = vmatprep.subr.mxu0 0.0
    %4219 = vmatpush1.xpose.msra.mxu0 0.0
    %4220 = vmatprep.subr.mxu0 0.0
    %4221 = vmatpush1.xpose.msra.mxu0 0.0
    %4222 = vmatprep.subr.mxu0 0.0
    %4223 = vmatpush1.xpose.msra.mxu0 0.0
    %4224 = vmatprep.subr.mxu0 0.0
    %4225 = vmatpush1.xpose.msra.mxu0 0.0
    %4226 = vmatprep.subr.mxu0 0.0
    %4227 = vmatpush1.xpose.msra.mxu0 0.0
    %4228 = vmatprep.subr.mxu0 0.0
    %4229 = vmatpush1.xpose.msra.mxu0 0.0
    %4230 = vmatprep.subr.mxu0 0.0
    %4231 = vmatpush1.xpose.msra.mxu0 0.0
    %4232 = vmatprep.subr.mxu0 0.0
    %4233 = vmatpush1.xpose.msra.mxu0 0.0
    %4234 = vmatprep.subr.mxu0 0.0
    %4235 = vmatpush1.xpose.msra.mxu0 0.0
    %4236 = vmatprep.subr.mxu0 0.0
    %4237 = vmatpush1.xpose.msra.mxu0 0.0
    %4238 = vmatprep.subr.mxu0 0.0
    %4239 = vmatpush1.xpose.msra.mxu0 0.0
    %4240 = vmatprep.subr.mxu0 0.0
    %4241 = vmatpush1.xpose.msra.mxu0 0.0
    %4242 = vmatprep.subr.mxu0 0.0
    %4243 = vmatpush1.xpose.msra.mxu0 0.0
    %4244 = vmatprep.subr.mxu0 0.0
    %4245 = vmatpush1.xpose.msra.mxu0 0.0
    %4246 = vmatprep.subr.mxu0 0.0
    %4247 = vmatpush1.xpose.msra.mxu0 0.0
    %4248 = vmatprep.subr.mxu0 0.0
    %4249 = vmatpush1.xpose.msra.mxu0 0.0
    %4250 = vmatprep.subr.mxu0 0.0
    %4251 = vmatpush1.xpose.msra.mxu0 0.0
    %4252 = vmatprep.mubr.f32.mxu0 0.0
    %4253 = vmatmul.mubr.f32.gmra.mrb[0].mxu0 %v4156
    %v4254 = vpop.f32.mrb[0].mxu0
    %v4255 = vadd.f32 0.0, %v4254
    %v4256 = vpop.f32.mrb[0].mxu0
    %4257 = vmatprep.mubr.f32.mxu0 0.0
    %4258 = vmatmul.mubr.f32.gmra.mrb[0].mxu0 %v4158
    %v4259 = vpop.f32.mrb[0].mxu0
    %v4260 = vadd.f32 0.0, %v4259
    %v4261 = vpop.f32.mrb[0].mxu0
    %4262 = vmatprep.mubr.f32.mxu0 0.0
    %4263 = vmatmul.mubr.f32.gmra.mrb[0].mxu0 %v4160
    %v4264 = vpop.f32.mrb[0].mxu0
    %v4265 = vadd.f32 0.0, %v4264
    %v4266 = vpop.f32.mrb[0].mxu0
    %4267 = vmatprep.mubr.f32.mxu0 0.0
    %4268 = vmatmul.mubr.f32.gmra.mrb[0].mxu0 %v4162
    %v4269 = vpop.f32.mrb[0].mxu0
    %v4270 = vadd.f32 0.0, %v4269
    %v4271 = vpop.f32.mrb[0].mxu0
    %4272 = vmatprep.mubr.f32.mxu0 0.0
    %4273 = vmatmul.mubr.f32.gmra.mrb[0].mxu0 %v4164
    %v4274 = vpop.f32.mrb[0].mxu0
    %v4275 = vadd.f32 0.0, %v4274
    %v4276 = vpop.f32.mrb[0].mxu0
    %4277 = vmatprep.mubr.f32.mxu0 0.0
    %4278 = vmatmul.mubr.f32.gmra.mrb[0].mxu0 %v4166
    %v4279 = vpop.f32.mrb[0].mxu0
    %v4280 = vadd.f32 0.0, %v4279
    %v4281 = vpop.f32.mrb[0].mxu0
    %4282 = vmatprep.mubr.f32.mxu0 0.0
    %4283 = vmatmul.mubr.f32.gmra.mrb[0].mxu0 %v4168
    %v4284 = vpop.f32.mrb[0].mxu0
    %v4285 = vadd.f32 0.0, %v4284
    %v4286 = vpop.f32.mrb[0].mxu0
    %4287 = vmatprep.mubr.f32.mxu0 0.0
    %4288 = vmatmul.mubr.f32.gmra.mrb[0].mxu0 %v4170
    %v4289 = vpop.f32.mrb[0].mxu0
    %v4290 = vadd.f32 0.0, %v4289
    %v4291 = vpop.f32.mrb[0].mxu0
    %4292 = vdwg.mxu0
    %v4293 = vsel %vm1042, %v4255, -inf
    %4294 = vmax.xlane.f32.xlu0 %v4293
    %v4295 = vpop.xlane.xlu0 %4294
    %v4296 = vsel %vm1042, %v4260, -inf
    %4297 = vmax.xlane.f32.xlu0 %v4296
    %v4298 = vpop.xlane.xlu0 %4297
    %v4299 = vsel %vm1042, %v4265, -inf
    %4300 = vmax.xlane.f32.xlu0 %v4299
    %v4301 = vpop.xlane.xlu0 %4300
    %v4302 = vsel %vm1042, %v4270, -inf
    %4303 = vmax.xlane.f32.xlu0 %v4302
    %v4304 = vpop.xlane.xlu0 %4303
    %v4305 = vsel %vm1042, %v4275, -inf
    %4306 = vmax.xlane.f32.xlu0 %v4305
    %v4307 = vpop.xlane.xlu0 %4306
    %v4308 = vsel %vm1042, %v4280, -inf
    %4309 = vmax.xlane.f32.xlu0 %v4308
    %v4310 = vpop.xlane.xlu0 %4309
    %v4311 = vsel %vm1042, %v4285, -inf
    %4312 = vmax.xlane.f32.xlu0 %v4311
    %v4313 = vpop.xlane.xlu0 %4312
    %v4314 = vsel %vm1042, %v4290, -inf
    %4315 = vmax.xlane.f32.xlu0 %v4314
    %v4316 = vpop.xlane.xlu0 %4315
    %v4317 = vsub.f32 %v4255, %v4295
    %v4318 = vsub.f32 %v4260, %v4298
    %v4319 = vsub.f32 %v4265, %v4301
    %v4320 = vsub.f32 %v4270, %v4304
    %v4321 = vsub.f32 %v4275, %v4307
    %v4322 = vsub.f32 %v4280, %v4310
    %v4323 = vsub.f32 %v4285, %v4313
    %v4324 = vsub.f32 %v4290, %v4316
    %v4325 = vmul.f32 %v4317, 1.442695
    %v4326 = vpow.pop %v4325
    %v4327 = vmul.f32 %v4318, 1.442695
    %v4328 = vpow.pop %v4327
    %v4329 = vmul.f32 %v4319, 1.442695
    %v4330 = vpow.pop %v4329
    %v4331 = vmul.f32 %v4320, 1.442695
    %v4332 = vpow.pop %v4331
    %v4333 = vmul.f32 %v4321, 1.442695
    %v4334 = vpow.pop %v4333
    %v4335 = vmul.f32 %v4322, 1.442695
    %v4336 = vpow.pop %v4335
    %v4337 = vmul.f32 %v4323, 1.442695
    %v4338 = vpow.pop %v4337
    %v4339 = vmul.f32 %v4324, 1.442695
    %v4340 = vpow.pop %v4339
    %4341 = vrot.lane.b32.xlu0 %v836, 64
    %v4342 = vpop.permute.xlu0 %4341
    %4343 = vrot.lane.b32.xlu0 %v841, 64
    %v4344 = vpop.permute.xlu0 %4343
    %4345 = vrot.lane.b32.xlu0 %v846, 64
    %v4346 = vpop.permute.xlu0 %4345
    %4347 = vrot.lane.b32.xlu0 %v851, 64
    %v4348 = vpop.permute.xlu0 %4347
    %4349 = vrot.lane.b32.xlu0 %v856, 64
    %v4350 = vpop.permute.xlu0 %4349
    %4351 = vrot.lane.b32.xlu0 %v861, 64
    %v4352 = vpop.permute.xlu0 %4351
    %4353 = vrot.lane.b32.xlu0 %v866, 64
    %v4354 = vpop.permute.xlu0 %4353
    %4355 = vrot.lane.b32.xlu0 %v871, 64
    %v4356 = vpop.permute.xlu0 %4355
    %v4366 = vsel %vm1042, %v4326, 0
    %v4369 = vsel %vm1042, %v4328, 0
    %v4372 = vsel %vm1042, %v4330, 0
    %v4375 = vsel %vm1042, %v4332, 0
    %v4378 = vsel %vm1042, %v4334, 0
    %v4381 = vsel %vm1042, %v4336, 0
    %v4384 = vsel %vm1042, %v4338, 0
    %v4387 = vsel %vm1042, %v4340, 0
    %4389 = vmatprep.subr.mxu0 0.0
    %4390 = vmatpush1.msra.mxu0 %v4342
    %4391 = vmatprep.subr.mxu0 0.0
    %4392 = vmatpush1.msra.mxu0 %v4344
    %4393 = vmatprep.subr.mxu0 0.0
    %4394 = vmatpush1.msra.mxu0 %v4346
    %4395 = vmatprep.subr.mxu0 0.0
    %4396 = vmatpush1.msra.mxu0 %v4348
    %4397 = vmatprep.subr.mxu0 0.0
    %4398 = vmatpush1.msra.mxu0 %v4350
    %4399 = vmatprep.subr.mxu0 0.0
    %4400 = vmatpush1.msra.mxu0 %v4352
    %4401 = vmatprep.subr.mxu0 0.0
    %4402 = vmatpush1.msra.mxu0 %v4354
    %4403 = vmatprep.subr.mxu0 0.0
    %4404 = vmatpush1.msra.mxu0 %v4356
    %4405 = vmatprep.subr.mxu0 0.0
    %4406 = vmatpush1.msra.mxu0 0.0
    %4407 = vmatprep.subr.mxu0 0.0
    %4408 = vmatpush1.msra.mxu0 0.0
    %4409 = vmatprep.subr.mxu0 0.0
    %4410 = vmatpush1.msra.mxu0 0.0
    %4411 = vmatprep.subr.mxu0 0.0
    %4412 = vmatpush1.msra.mxu0 0.0
    %4413 = vmatprep.subr.mxu0 0.0
    %4414 = vmatpush1.msra.mxu0 0.0
    %4415 = vmatprep.subr.mxu0 0.0
    %4416 = vmatpush1.msra.mxu0 0.0
    %4417 = vmatprep.subr.mxu0 0.0
    %4418 = vmatpush1.msra.mxu0 0.0
    %4419 = vmatprep.subr.mxu0 0.0
    %4420 = vmatpush1.msra.mxu0 0.0
    %4421 = vmatprep.subr.mxu0 0.0
    %4422 = vmatpush1.msra.mxu0 0.0
    %4423 = vmatprep.subr.mxu0 0.0
    %4424 = vmatpush1.msra.mxu0 0.0
    %4425 = vmatprep.subr.mxu0 0.0
    %4426 = vmatpush1.msra.mxu0 0.0
    %4427 = vmatprep.subr.mxu0 0.0
    %4428 = vmatpush1.msra.mxu0 0.0
    %4429 = vmatprep.subr.mxu0 0.0
    %4430 = vmatpush1.msra.mxu0 0.0
    %4431 = vmatprep.subr.mxu0 0.0
    %4432 = vmatpush1.msra.mxu0 0.0
    %4433 = vmatprep.subr.mxu0 0.0
    %4434 = vmatpush1.msra.mxu0 0.0
    %4435 = vmatprep.subr.mxu0 0.0
    %4436 = vmatpush1.msra.mxu0 0.0
    %4437 = vmatprep.subr.mxu0 0.0
    %4438 = vmatpush1.msra.mxu0 0.0
    %4439 = vmatprep.subr.mxu0 0.0
    %4440 = vmatpush1.msra.mxu0 0.0
    %4441 = vmatprep.subr.mxu0 0.0
    %4442 = vmatpush1.msra.mxu0 0.0
    %4443 = vmatprep.subr.mxu0 0.0
    %4444 = vmatpush1.msra.mxu0 0.0
    %4445 = vmatprep.subr.mxu0 0.0
    %4446 = vmatpush1.msra.mxu0 0.0
    %4447 = vmatprep.subr.mxu0 0.0
    %4448 = vmatpush1.msra.mxu0 0.0
    %4449 = vmatprep.subr.mxu0 0.0
    %4450 = vmatpush1.msra.mxu0 0.0
    %4451 = vmatprep.subr.mxu0 0.0
    %4452 = vmatpush1.msra.mxu0 0.0
    %4453 = vmatprep.mubr.f32.mxu0 0.0
    %4454 = vmatmul.mubr.f32.gmra.mrb[0].mxu0 %v4366
    %v4455 = vpop.f32.mrb[0].mxu0
    %v4456 = vadd.f32 0.0, %v4455
    %v4457 = vpop.f32.mrb[0].mxu0
    %4458 = vmatprep.mubr.f32.mxu0 0.0
    %4459 = vmatmul.mubr.f32.gmra.mrb[0].mxu0 %v4369
    %v4460 = vpop.f32.mrb[0].mxu0
    %v4461 = vadd.f32 0.0, %v4460
    %v4462 = vpop.f32.mrb[0].mxu0
    %4463 = vmatprep.mubr.f32.mxu0 0.0
    %4464 = vmatmul.mubr.f32.gmra.mrb[0].mxu0 %v4372
    %v4465 = vpop.f32.mrb[0].mxu0
    %v4466 = vadd.f32 0.0, %v4465
    %v4467 = vpop.f32.mrb[0].mxu0
    %4468 = vmatprep.mubr.f32.mxu0 0.0
    %4469 = vmatmul.mubr.f32.gmra.mrb[0].mxu0 %v4375
    %v4470 = vpop.f32.mrb[0].mxu0
    %v4471 = vadd.f32 0.0, %v4470
    %v4472 = vpop.f32.mrb[0].mxu0
    %4473 = vmatprep.mubr.f32.mxu0 0.0
    %4474 = vmatmul.mubr.f32.gmra.mrb[0].mxu0 %v4378
    %v4475 = vpop.f32.mrb[0].mxu0
    %v4476 = vadd.f32 0.0, %v4475
    %v4477 = vpop.f32.mrb[0].mxu0
    %4478 = vmatprep.mubr.f32.mxu0 0.0
    %4479 = vmatmul.mubr.f32.gmra.mrb[0].mxu0 %v4381
    %v4480 = vpop.f32.mrb[0].mxu0
    %v4481 = vadd.f32 0.0, %v4480
    %v4482 = vpop.f32.mrb[0].mxu0
    %4483 = vmatprep.mubr.f32.mxu0 0.0
    %4484 = vmatmul.mubr.f32.gmra.mrb[0].mxu0 %v4384
    %v4485 = vpop.f32.mrb[0].mxu0
    %v4486 = vadd.f32 0.0, %v4485
    %v4487 = vpop.f32.mrb[0].mxu0
    %4488 = vmatprep.mubr.f32.mxu0 0.0
    %4489 = vmatmul.mubr.f32.gmra.mrb[0].mxu0 %v4387
    %v4490 = vpop.f32.mrb[0].mxu0
    %v4491 = vadd.f32 0.0, %v4490
    %v4492 = vpop.f32.mrb[0].mxu0
    %4493 = vdwg.mxu0
    %v4494 = vsel %vm1042, %v4326, 0.0
    %4495 = vadd.xlane.f32.xlu0 %v4494
    %v4496 = vpop.xlane.xlu0 %4495
    %v4497 = vsel %vm1042, %v4328, 0.0
    %4498 = vadd.xlane.f32.xlu0 %v4497
    %v4499 = vpop.xlane.xlu0 %4498
    %v4500 = vsel %vm1042, %v4330, 0.0
    %4501 = vadd.xlane.f32.xlu0 %v4500
    %v4502 = vpop.xlane.xlu0 %4501
    %v4503 = vsel %vm1042, %v4332, 0.0
    %4504 = vadd.xlane.f32.xlu0 %v4503
    %v4505 = vpop.xlane.xlu0 %4504
    %v4506 = vsel %vm1042, %v4334, 0.0
    %4507 = vadd.xlane.f32.xlu0 %v4506
    %v4508 = vpop.xlane.xlu0 %4507
    %v4509 = vsel %vm1042, %v4336, 0.0
    %4510 = vadd.xlane.f32.xlu0 %v4509
    %v4511 = vpop.xlane.xlu0 %4510
    %v4512 = vsel %vm1042, %v4338, 0.0
    %4513 = vadd.xlane.f32.xlu0 %v4512
    %v4514 = vpop.xlane.xlu0 %4513
    %v4515 = vsel %vm1042, %v4340, 0.0
    %4516 = vadd.xlane.f32.xlu0 %v4515
    %v4517 = vpop.xlane.xlu0 %4516
    %v4518 = vrcp.pop %v4496
    %v4519 = vrcp.pop %v4499
    %v4520 = vrcp.pop %v4502
    %v4521 = vrcp.pop %v4505
    %v4522 = vrcp.pop %v4508
    %v4523 = vrcp.pop %v4511
    %v4524 = vrcp.pop %v4514
    %v4525 = vrcp.pop %v4517
    %v4526 = vmul.f32 %v4456, %v4518
    %v4527 = vmul.f32 %v4461, %v4519
    %v4528 = vmul.f32 %v4466, %v4520
    %v4529 = vmul.f32 %v4471, %v4521
    %v4530 = vmul.f32 %v4476, %v4522
    %v4531 = vmul.f32 %v4481, %v4523
    %v4532 = vmul.f32 %v4486, %v4524
    %v4533 = vmul.f32 %v4491, %v4525
    %v4535 = vsel %vm888, %v4526, 0
    %v4538 = vsel %vm888, %v4527, 0
    %v4541 = vsel %vm888, %v4528, 0
    %v4544 = vsel %vm888, %v4529, 0
    %v4547 = vsel %vm888, %v4530, 0
    %v4550 = vsel %vm888, %v4531, 0
    %v4553 = vsel %vm888, %v4532, 0
    %v4556 = vsel %vm888, %v4533, 0
    %4558 = vmatprep.subr.mxu0 0.0
    %4559 = vmatpush1.msra.mxu0 %v393
    %4560 = vmatprep.subr.mxu0 0.0
    %4561 = vmatpush1.msra.mxu0 %v394
    %4562 = vmatprep.subr.mxu0 0.0
    %4563 = vmatpush1.msra.mxu0 %v395
    %4564 = vmatprep.subr.mxu0 0.0
    %4565 = vmatpush1.msra.mxu0 %v396
    %4566 = vmatprep.subr.mxu0 0.0
    %4567 = vmatpush1.msra.mxu0 0.0
    %4568 = vmatprep.subr.mxu0 0.0
    %4569 = vmatpush1.msra.mxu0 0.0
    %4570 = vmatprep.subr.mxu0 0.0
    %4571 = vmatpush1.msra.mxu0 0.0
    %4572 = vmatprep.subr.mxu0 0.0
    %4573 = vmatpush1.msra.mxu0 0.0
    %4574 = vmatprep.subr.mxu0 0.0
    %4575 = vmatpush1.msra.mxu0 0.0
    %4576 = vmatprep.subr.mxu0 0.0
    %4577 = vmatpush1.msra.mxu0 0.0
    %4578 = vmatprep.subr.mxu0 0.0
    %4579 = vmatpush1.msra.mxu0 0.0
    %4580 = vmatprep.subr.mxu0 0.0
    %4581 = vmatpush1.msra.mxu0 0.0
    %4582 = vmatprep.subr.mxu0 0.0
    %4583 = vmatpush1.msra.mxu0 0.0
    %4584 = vmatprep.subr.mxu0 0.0
    %4585 = vmatpush1.msra.mxu0 0.0
    %4586 = vmatprep.subr.mxu0 0.0
    %4587 = vmatpush1.msra.mxu0 0.0
    %4588 = vmatprep.subr.mxu0 0.0
    %4589 = vmatpush1.msra.mxu0 0.0
    %4590 = vmatprep.subr.mxu0 0.0
    %4591 = vmatpush1.msra.mxu0 0.0
    %4592 = vmatprep.subr.mxu0 0.0
    %4593 = vmatpush1.msra.mxu0 0.0
    %4594 = vmatprep.subr.mxu0 0.0
    %4595 = vmatpush1.msra.mxu0 0.0
    %4596 = vmatprep.subr.mxu0 0.0
    %4597 = vmatpush1.msra.mxu0 0.0
    %4598 = vmatprep.subr.mxu0 0.0
    %4599 = vmatpush1.msra.mxu0 0.0
    %4600 = vmatprep.subr.mxu0 0.0
    %4601 = vmatpush1.msra.mxu0 0.0
    %4602 = vmatprep.subr.mxu0 0.0
    %4603 = vmatpush1.msra.mxu0 0.0
    %4604 = vmatprep.subr.mxu0 0.0
    %4605 = vmatpush1.msra.mxu0 0.0
    %4606 = vmatprep.subr.mxu0 0.0
    %4607 = vmatpush1.msra.mxu0 0.0
    %4608 = vmatprep.subr.mxu0 0.0
    %4609 = vmatpush1.msra.mxu0 0.0
    %4610 = vmatprep.subr.mxu0 0.0
    %4611 = vmatpush1.msra.mxu0 0.0
    %4612 = vmatprep.subr.mxu0 0.0
    %4613 = vmatpush1.msra.mxu0 0.0
    %4614 = vmatprep.subr.mxu0 0.0
    %4615 = vmatpush1.msra.mxu0 0.0
    %4616 = vmatprep.subr.mxu0 0.0
    %4617 = vmatpush1.msra.mxu0 0.0
    %4618 = vmatprep.subr.mxu0 0.0
    %4619 = vmatpush1.msra.mxu0 0.0
    %4620 = vmatprep.subr.mxu0 0.0
    %4621 = vmatpush1.msra.mxu0 0.0
    %4622 = vmatprep.mubr.f32.mxu0 0.0
    %4623 = vmatmul.mubr.f32.gmra.mrb[0].mxu0 %v4535
    %v4624 = vpop.f32.mrb[0].mxu0
    %v4625 = vadd.f32 0.0, %v4624
    %v4626 = vpop.f32.mrb[0].mxu0
    %4627 = vmatprep.mubr.f32.mxu0 0.0
    %4628 = vmatmul.mubr.f32.gmra.mrb[0].mxu0 %v4538
    %v4629 = vpop.f32.mrb[0].mxu0
    %v4630 = vadd.f32 0.0, %v4629
    %v4631 = vpop.f32.mrb[0].mxu0
    %4632 = vmatprep.mubr.f32.mxu0 0.0
    %4633 = vmatmul.mubr.f32.gmra.mrb[0].mxu0 %v4541
    %v4634 = vpop.f32.mrb[0].mxu0
    %v4635 = vadd.f32 0.0, %v4634
    %v4636 = vpop.f32.mrb[0].mxu0
    %4637 = vmatprep.mubr.f32.mxu0 0.0
    %4638 = vmatmul.mubr.f32.gmra.mrb[0].mxu0 %v4544
    %v4639 = vpop.f32.mrb[0].mxu0
    %v4640 = vadd.f32 0.0, %v4639
    %v4641 = vpop.f32.mrb[0].mxu0
    %4642 = vmatprep.mubr.f32.mxu0 0.0
    %4643 = vmatmul.mubr.f32.gmra.mrb[0].mxu0 %v4547
    %v4644 = vpop.f32.mrb[0].mxu0
    %v4645 = vadd.f32 0.0, %v4644
    %v4646 = vpop.f32.mrb[0].mxu0
    %4647 = vmatprep.mubr.f32.mxu0 0.0
    %4648 = vmatmul.mubr.f32.gmra.mrb[0].mxu0 %v4550
    %v4649 = vpop.f32.mrb[0].mxu0
    %v4650 = vadd.f32 0.0, %v4649
    %v4651 = vpop.f32.mrb[0].mxu0
    %4652 = vmatprep.mubr.f32.mxu0 0.0
    %4653 = vmatmul.mubr.f32.gmra.mrb[0].mxu0 %v4553
    %v4654 = vpop.f32.mrb[0].mxu0
    %v4655 = vadd.f32 0.0, %v4654
    %v4656 = vpop.f32.mrb[0].mxu0
    %4657 = vmatprep.mubr.f32.mxu0 0.0
    %4658 = vmatmul.mubr.f32.gmra.mrb[0].mxu0 %v4556
    %v4659 = vpop.f32.mrb[0].mxu0
    %v4660 = vadd.f32 0.0, %v4659
    %v4661 = vpop.f32.mrb[0].mxu0
    %4662 = vdwg.mxu0
    %v4663 = vadd.f32 %v4116, %v4625
    %v4664 = vadd.f32 %v4117, %v4630
    %v4665 = vadd.f32 %v4118, %v4635
    %v4666 = vadd.f32 %v4119, %v4640
    %v4667 = vadd.f32 %v4120, %v4645
    %v4668 = vadd.f32 %v4121, %v4650
    %v4669 = vadd.f32 %v4122, %v4655
    %v4670 = vadd.f32 %v4123, %v4660
    %4671 = vrot.lane.b32.xlu0 %v532, 32
    %v4672 = vpop.permute.xlu0 %4671
    %4673 = vrot.lane.b32.xlu0 %v537, 32
    %v4674 = vpop.permute.xlu0 %4673
    %4675 = vrot.lane.b32.xlu0 %v542, 32
    %v4676 = vpop.permute.xlu0 %4675
    %4677 = vrot.lane.b32.xlu0 %v547, 32
    %v4678 = vpop.permute.xlu0 %4677
    %4679 = vrot.lane.b32.xlu0 %v552, 32
    %v4680 = vpop.permute.xlu0 %4679
    %4681 = vrot.lane.b32.xlu0 %v557, 32
    %v4682 = vpop.permute.xlu0 %4681
    %4683 = vrot.lane.b32.xlu0 %v562, 32
    %v4684 = vpop.permute.xlu0 %4683
    %4685 = vrot.lane.b32.xlu0 %v567, 32
    %v4686 = vpop.permute.xlu0 %4685
    %4687 = vrot.lane.b32.xlu0 %v684, 32
    %v4688 = vpop.permute.xlu0 %4687
    %4689 = vrot.lane.b32.xlu0 %v689, 32
    %v4690 = vpop.permute.xlu0 %4689
    %4691 = vrot.lane.b32.xlu0 %v694, 32
    %v4692 = vpop.permute.xlu0 %4691
    %4693 = vrot.lane.b32.xlu0 %v699, 32
    %v4694 = vpop.permute.xlu0 %4693
    %4695 = vrot.lane.b32.xlu0 %v704, 32
    %v4696 = vpop.permute.xlu0 %4695
    %4697 = vrot.lane.b32.xlu0 %v709, 32
    %v4698 = vpop.permute.xlu0 %4697
    %4699 = vrot.lane.b32.xlu0 %v714, 32
    %v4700 = vpop.permute.xlu0 %4699
    %4701 = vrot.lane.b32.xlu0 %v719, 32
    %v4702 = vpop.permute.xlu0 %4701
    %v4703 = vsel %vm888, %v4672, 0
    %v4705 = vsel %vm888, %v4674, 0
    %v4707 = vsel %vm888, %v4676, 0
    %v4709 = vsel %vm888, %v4678, 0
    %v4711 = vsel %vm888, %v4680, 0
    %v4713 = vsel %vm888, %v4682, 0
    %v4715 = vsel %vm888, %v4684, 0
    %v4717 = vsel %vm888, %v4686, 0
    %v4719 = vsel %vm888, %v4688, 0
    %v4721 = vsel %vm888, %v4690, 0
    %v4723 = vsel %vm888, %v4692, 0
    %v4725 = vsel %vm888, %v4694, 0
    %v4727 = vsel %vm888, %v4696, 0
    %v4729 = vsel %vm888, %v4698, 0
    %v4731 = vsel %vm888, %v4700, 0
    %v4733 = vsel %vm888, %v4702, 0
    %4735 = vmatprep.subr.mxu0 0.0
    %4736 = vmatpush1.xpose.msra.mxu0 %v4719
    %4737 = vmatprep.subr.mxu0 0.0
    %4738 = vmatpush1.xpose.msra.mxu0 %v4721
    %4739 = vmatprep.subr.mxu0 0.0
    %4740 = vmatpush1.xpose.msra.mxu0 %v4723
    %4741 = vmatprep.subr.mxu0 0.0
    %4742 = vmatpush1.xpose.msra.mxu0 %v4725
    %4743 = vmatprep.subr.mxu0 0.0
    %4744 = vmatpush1.xpose.msra.mxu0 %v4727
    %4745 = vmatprep.subr.mxu0 0.0
    %4746 = vmatpush1.xpose.msra.mxu0 %v4729
    %4747 = vmatprep.subr.mxu0 0.0
    %4748 = vmatpush1.xpose.msra.mxu0 %v4731
    %4749 = vmatprep.subr.mxu0 0.0
    %4750 = vmatpush1.xpose.msra.mxu0 %v4733
    %4751 = vmatprep.subr.mxu0 0.0
    %4752 = vmatpush1.xpose.msra.mxu0 0.0
    %4753 = vmatprep.subr.mxu0 0.0
    %4754 = vmatpush1.xpose.msra.mxu0 0.0
    %4755 = vmatprep.subr.mxu0 0.0
    %4756 = vmatpush1.xpose.msra.mxu0 0.0
    %4757 = vmatprep.subr.mxu0 0.0
    %4758 = vmatpush1.xpose.msra.mxu0 0.0
    %4759 = vmatprep.subr.mxu0 0.0
    %4760 = vmatpush1.xpose.msra.mxu0 0.0
    %4761 = vmatprep.subr.mxu0 0.0
    %4762 = vmatpush1.xpose.msra.mxu0 0.0
    %4763 = vmatprep.subr.mxu0 0.0
    %4764 = vmatpush1.xpose.msra.mxu0 0.0
    %4765 = vmatprep.subr.mxu0 0.0
    %4766 = vmatpush1.xpose.msra.mxu0 0.0
    %4767 = vmatprep.subr.mxu0 0.0
    %4768 = vmatpush1.xpose.msra.mxu0 0.0
    %4769 = vmatprep.subr.mxu0 0.0
    %4770 = vmatpush1.xpose.msra.mxu0 0.0
    %4771 = vmatprep.subr.mxu0 0.0
    %4772 = vmatpush1.xpose.msra.mxu0 0.0
    %4773 = vmatprep.subr.mxu0 0.0
    %4774 = vmatpush1.xpose.msra.mxu0 0.0
    %4775 = vmatprep.subr.mxu0 0.0
    %4776 = vmatpush1.xpose.msra.mxu0 0.0
    %4777 = vmatprep.subr.mxu0 0.0
    %4778 = vmatpush1.xpose.msra.mxu0 0.0
    %4779 = vmatprep.subr.mxu0 0.0
    %4780 = vmatpush1.xpose.msra.mxu0 0.0
    %4781 = vmatprep.subr.mxu0 0.0
    %4782 = vmatpush1.xpose.msra.mxu0 0.0
    %4783 = vmatprep.subr.mxu0 0.0
    %4784 = vmatpush1.xpose.msra.mxu0 0.0
    %4785 = vmatprep.subr.mxu0 0.0
    %4786 = vmatpush1.xpose.msra.mxu0 0.0
    %4787 = vmatprep.subr.mxu0 0.0
    %4788 = vmatpush1.xpose.msra.mxu0 0.0
    %4789 = vmatprep.subr.mxu0 0.0
    %4790 = vmatpush1.xpose.msra.mxu0 0.0
    %4791 = vmatprep.subr.mxu0 0.0
    %4792 = vmatpush1.xpose.msra.mxu0 0.0
    %4793 = vmatprep.subr.mxu0 0.0
    %4794 = vmatpush1.xpose.msra.mxu0 0.0
    %4795 = vmatprep.subr.mxu0 0.0
    %4796 = vmatpush1.xpose.msra.mxu0 0.0
    %4797 = vmatprep.subr.mxu0 0.0
    %4798 = vmatpush1.xpose.msra.mxu0 0.0
    %4799 = vmatprep.mubr.f32.mxu0 0.0
    %4800 = vmatmul.mubr.f32.gmra.mrb[0].mxu0 %v4703
    %v4801 = vpop.f32.mrb[0].mxu0
    %v4802 = vadd.f32 0.0, %v4801
    %v4803 = vpop.f32.mrb[0].mxu0
    %4804 = vmatprep.mubr.f32.mxu0 0.0
    %4805 = vmatmul.mubr.f32.gmra.mrb[0].mxu0 %v4705
    %v4806 = vpop.f32.mrb[0].mxu0
    %v4807 = vadd.f32 0.0, %v4806
    %v4808 = vpop.f32.mrb[0].mxu0
    %4809 = vmatprep.mubr.f32.mxu0 0.0
    %4810 = vmatmul.mubr.f32.gmra.mrb[0].mxu0 %v4707
    %v4811 = vpop.f32.mrb[0].mxu0
    %v4812 = vadd.f32 0.0, %v4811
    %v4813 = vpop.f32.mrb[0].mxu0
    %4814 = vmatprep.mubr.f32.mxu0 0.0
    %4815 = vmatmul.mubr.f32.gmra.mrb[0].mxu0 %v4709
    %v4816 = vpop.f32.mrb[0].mxu0
    %v4817 = vadd.f32 0.0, %v4816
    %v4818 = vpop.f32.mrb[0].mxu0
    %4819 = vmatprep.mubr.f32.mxu0 0.0
    %4820 = vmatmul.mubr.f32.gmra.mrb[0].mxu0 %v4711
    %v4821 = vpop.f32.mrb[0].mxu0
    %v4822 = vadd.f32 0.0, %v4821
    %v4823 = vpop.f32.mrb[0].mxu0
    %4824 = vmatprep.mubr.f32.mxu0 0.0
    %4825 = vmatmul.mubr.f32.gmra.mrb[0].mxu0 %v4713
    %v4826 = vpop.f32.mrb[0].mxu0
    %v4827 = vadd.f32 0.0, %v4826
    %v4828 = vpop.f32.mrb[0].mxu0
    %4829 = vmatprep.mubr.f32.mxu0 0.0
    %4830 = vmatmul.mubr.f32.gmra.mrb[0].mxu0 %v4715
    %v4831 = vpop.f32.mrb[0].mxu0
    %v4832 = vadd.f32 0.0, %v4831
    %v4833 = vpop.f32.mrb[0].mxu0
    %4834 = vmatprep.mubr.f32.mxu0 0.0
    %4835 = vmatmul.mubr.f32.gmra.mrb[0].mxu0 %v4717
    %v4836 = vpop.f32.mrb[0].mxu0
    %v4837 = vadd.f32 0.0, %v4836
    %v4838 = vpop.f32.mrb[0].mxu0
    %4839 = vdwg.mxu0
    %v4840 = vsel %vm1042, %v4802, -inf
    %4841 = vmax.xlane.f32.xlu0 %v4840
    %v4842 = vpop.xlane.xlu0 %4841
    %v4843 = vsel %vm1042, %v4807, -inf
    %4844 = vmax.xlane.f32.xlu0 %v4843
    %v4845 = vpop.xlane.xlu0 %4844
    %v4846 = vsel %vm1042, %v4812, -inf
    %4847 = vmax.xlane.f32.xlu0 %v4846
    %v4848 = vpop.xlane.xlu0 %4847
    %v4849 = vsel %vm1042, %v4817, -inf
    %4850 = vmax.xlane.f32.xlu0 %v4849
    %v4851 = vpop.xlane.xlu0 %4850
    %v4852 = vsel %vm1042, %v4822, -inf
    %4853 = vmax.xlane.f32.xlu0 %v4852
    %v4854 = vpop.xlane.xlu0 %4853
    %v4855 = vsel %vm1042, %v4827, -inf
    %4856 = vmax.xlane.f32.xlu0 %v4855
    %v4857 = vpop.xlane.xlu0 %4856
    %v4858 = vsel %vm1042, %v4832, -inf
    %4859 = vmax.xlane.f32.xlu0 %v4858
    %v4860 = vpop.xlane.xlu0 %4859
    %v4861 = vsel %vm1042, %v4837, -inf
    %4862 = vmax.xlane.f32.xlu0 %v4861
    %v4863 = vpop.xlane.xlu0 %4862
    %v4864 = vsub.f32 %v4802, %v4842
    %v4865 = vsub.f32 %v4807, %v4845
    %v4866 = vsub.f32 %v4812, %v4848
    %v4867 = vsub.f32 %v4817, %v4851
    %v4868 = vsub.f32 %v4822, %v4854
    %v4869 = vsub.f32 %v4827, %v4857
    %v4870 = vsub.f32 %v4832, %v4860
    %v4871 = vsub.f32 %v4837, %v4863
    %v4872 = vmul.f32 %v4864, 1.442695
    %v4873 = vpow.pop %v4872
    %v4874 = vmul.f32 %v4865, 1.442695
    %v4875 = vpow.pop %v4874
    %v4876 = vmul.f32 %v4866, 1.442695
    %v4877 = vpow.pop %v4876
    %v4878 = vmul.f32 %v4867, 1.442695
    %v4879 = vpow.pop %v4878
    %v4880 = vmul.f32 %v4868, 1.442695
    %v4881 = vpow.pop %v4880
    %v4882 = vmul.f32 %v4869, 1.442695
    %v4883 = vpow.pop %v4882
    %v4884 = vmul.f32 %v4870, 1.442695
    %v4885 = vpow.pop %v4884
    %v4886 = vmul.f32 %v4871, 1.442695
    %v4887 = vpow.pop %v4886
    %4888 = vrot.lane.b32.xlu0 %v836, 32
    %v4889 = vpop.permute.xlu0 %4888
    %4890 = vrot.lane.b32.xlu0 %v841, 32
    %v4891 = vpop.permute.xlu0 %4890
    %4892 = vrot.lane.b32.xlu0 %v846, 32
    %v4893 = vpop.permute.xlu0 %4892
    %4894 = vrot.lane.b32.xlu0 %v851, 32
    %v4895 = vpop.permute.xlu0 %4894
    %4896 = vrot.lane.b32.xlu0 %v856, 32
    %v4897 = vpop.permute.xlu0 %4896
    %4898 = vrot.lane.b32.xlu0 %v861, 32
    %v4899 = vpop.permute.xlu0 %4898
    %4900 = vrot.lane.b32.xlu0 %v866, 32
    %v4901 = vpop.permute.xlu0 %4900
    %4902 = vrot.lane.b32.xlu0 %v871, 32
    %v4903 = vpop.permute.xlu0 %4902
    %v4913 = vsel %vm1042, %v4873, 0
    %v4916 = vsel %vm1042, %v4875, 0
    %v4919 = vsel %vm1042, %v4877, 0
    %v4922 = vsel %vm1042, %v4879, 0
    %v4925 = vsel %vm1042, %v4881, 0
    %v4928 = vsel %vm1042, %v4883, 0
    %v4931 = vsel %vm1042, %v4885, 0
    %v4934 = vsel %vm1042, %v4887, 0
    %4936 = vmatprep.subr.mxu0 0.0
    %4937 = vmatpush1.msra.mxu0 %v4889
    %4938 = vmatprep.subr.mxu0 0.0
    %4939 = vmatpush1.msra.mxu0 %v4891
    %4940 = vmatprep.subr.mxu0 0.0
    %4941 = vmatpush1.msra.mxu0 %v4893
    %4942 = vmatprep.subr.mxu0 0.0
    %4943 = vmatpush1.msra.mxu0 %v4895
    %4944 = vmatprep.subr.mxu0 0.0
    %4945 = vmatpush1.msra.mxu0 %v4897
    %4946 = vmatprep.subr.mxu0 0.0
    %4947 = vmatpush1.msra.mxu0 %v4899
    %4948 = vmatprep.subr.mxu0 0.0
    %4949 = vmatpush1.msra.mxu0 %v4901
    %4950 = vmatprep.subr.mxu0 0.0
    %4951 = vmatpush1.msra.mxu0 %v4903
    %4952 = vmatprep.subr.mxu0 0.0
    %4953 = vmatpush1.msra.mxu0 0.0
    %4954 = vmatprep.subr.mxu0 0.0
    %4955 = vmatpush1.msra.mxu0 0.0
    %4956 = vmatprep.subr.mxu0 0.0
    %4957 = vmatpush1.msra.mxu0 0.0
    %4958 = vmatprep.subr.mxu0 0.0
    %4959 = vmatpush1.msra.mxu0 0.0
    %4960 = vmatprep.subr.mxu0 0.0
    %4961 = vmatpush1.msra.mxu0 0.0
    %4962 = vmatprep.subr.mxu0 0.0
    %4963 = vmatpush1.msra.mxu0 0.0
    %4964 = vmatprep.subr.mxu0 0.0
    %4965 = vmatpush1.msra.mxu0 0.0
    %4966 = vmatprep.subr.mxu0 0.0
    %4967 = vmatpush1.msra.mxu0 0.0
    %4968 = vmatprep.subr.mxu0 0.0
    %4969 = vmatpush1.msra.mxu0 0.0
    %4970 = vmatprep.subr.mxu0 0.0
    %4971 = vmatpush1.msra.mxu0 0.0
    %4972 = vmatprep.subr.mxu0 0.0
    %4973 = vmatpush1.msra.mxu0 0.0
    %4974 = vmatprep.subr.mxu0 0.0
    %4975 = vmatpush1.msra.mxu0 0.0
    %4976 = vmatprep.subr.mxu0 0.0
    %4977 = vmatpush1.msra.mxu0 0.0
    %4978 = vmatprep.subr.mxu0 0.0
    %4979 = vmatpush1.msra.mxu0 0.0
    %4980 = vmatprep.subr.mxu0 0.0
    %4981 = vmatpush1.msra.mxu0 0.0
    %4982 = vmatprep.subr.mxu0 0.0
    %4983 = vmatpush1.msra.mxu0 0.0
    %4984 = vmatprep.subr.mxu0 0.0
    %4985 = vmatpush1.msra.mxu0 0.0
    %4986 = vmatprep.subr.mxu0 0.0
    %4987 = vmatpush1.msra.mxu0 0.0
    %4988 = vmatprep.subr.mxu0 0.0
    %4989 = vmatpush1.msra.mxu0 0.0
    %4990 = vmatprep.subr.mxu0 0.0
    %4991 = vmatpush1.msra.mxu0 0.0
    %4992 = vmatprep.subr.mxu0 0.0
    %4993 = vmatpush1.msra.mxu0 0.0
    %4994 = vmatprep.subr.mxu0 0.0
    %4995 = vmatpush1.msra.mxu0 0.0
    %4996 = vmatprep.subr.mxu0 0.0
    %4997 = vmatpush1.msra.mxu0 0.0
    %4998 = vmatprep.subr.mxu0 0.0
    %4999 = vmatpush1.msra.mxu0 0.0
    %5000 = vmatprep.mubr.f32.mxu0 0.0
    %5001 = vmatmul.mubr.f32.gmra.mrb[0].mxu0 %v4913
    %v5002 = vpop.f32.mrb[0].mxu0
    %v5003 = vadd.f32 0.0, %v5002
    %v5004 = vpop.f32.mrb[0].mxu0
    %5005 = vmatprep.mubr.f32.mxu0 0.0
    %5006 = vmatmul.mubr.f32.gmra.mrb[0].mxu0 %v4916
    %v5007 = vpop.f32.mrb[0].mxu0
    %v5008 = vadd.f32 0.0, %v5007
    %v5009 = vpop.f32.mrb[0].mxu0
    %5010 = vmatprep.mubr.f32.mxu0 0.0
    %5011 = vmatmul.mubr.f32.gmra.mrb[0].mxu0 %v4919
    %v5012 = vpop.f32.mrb[0].mxu0
    %v5013 = vadd.f32 0.0, %v5012
    %v5014 = vpop.f32.mrb[0].mxu0
    %5015 = vmatprep.mubr.f32.mxu0 0.0
    %5016 = vmatmul.mubr.f32.gmra.mrb[0].mxu0 %v4922
    %v5017 = vpop.f32.mrb[0].mxu0
    %v5018 = vadd.f32 0.0, %v5017
    %v5019 = vpop.f32.mrb[0].mxu0
    %5020 = vmatprep.mubr.f32.mxu0 0.0
    %5021 = vmatmul.mubr.f32.gmra.mrb[0].mxu0 %v4925
    %v5022 = vpop.f32.mrb[0].mxu0
    %v5023 = vadd.f32 0.0, %v5022
    %v5024 = vpop.f32.mrb[0].mxu0
    %5025 = vmatprep.mubr.f32.mxu0 0.0
    %5026 = vmatmul.mubr.f32.gmra.mrb[0].mxu0 %v4928
    %v5027 = vpop.f32.mrb[0].mxu0
    %v5028 = vadd.f32 0.0, %v5027
    %v5029 = vpop.f32.mrb[0].mxu0
    %5030 = vmatprep.mubr.f32.mxu0 0.0
    %5031 = vmatmul.mubr.f32.gmra.mrb[0].mxu0 %v4931
    %v5032 = vpop.f32.mrb[0].mxu0
    %v5033 = vadd.f32 0.0, %v5032
    %v5034 = vpop.f32.mrb[0].mxu0
    %5035 = vmatprep.mubr.f32.mxu0 0.0
    %5036 = vmatmul.mubr.f32.gmra.mrb[0].mxu0 %v4934
    %v5037 = vpop.f32.mrb[0].mxu0
    %v5038 = vadd.f32 0.0, %v5037
    %v5039 = vpop.f32.mrb[0].mxu0
    %5040 = vdwg.mxu0
    %v5041 = vsel %vm1042, %v4873, 0.0
    %5042 = vadd.xlane.f32.xlu0 %v5041
    %v5043 = vpop.xlane.xlu0 %5042
    %v5044 = vsel %vm1042, %v4875, 0.0
    %5045 = vadd.xlane.f32.xlu0 %v5044
    %v5046 = vpop.xlane.xlu0 %5045
    %v5047 = vsel %vm1042, %v4877, 0.0
    %5048 = vadd.xlane.f32.xlu0 %v5047
    %v5049 = vpop.xlane.xlu0 %5048
    %v5050 = vsel %vm1042, %v4879, 0.0
    %5051 = vadd.xlane.f32.xlu0 %v5050
    %v5052 = vpop.xlane.xlu0 %5051
    %v5053 = vsel %vm1042, %v4881, 0.0
    %5054 = vadd.xlane.f32.xlu0 %v5053
    %v5055 = vpop.xlane.xlu0 %5054
    %v5056 = vsel %vm1042, %v4883, 0.0
    %5057 = vadd.xlane.f32.xlu0 %v5056
    %v5058 = vpop.xlane.xlu0 %5057
    %v5059 = vsel %vm1042, %v4885, 0.0
    %5060 = vadd.xlane.f32.xlu0 %v5059
    %v5061 = vpop.xlane.xlu0 %5060
    %v5062 = vsel %vm1042, %v4887, 0.0
    %5063 = vadd.xlane.f32.xlu0 %v5062
    %v5064 = vpop.xlane.xlu0 %5063
    %v5065 = vrcp.pop %v5043
    %v5066 = vrcp.pop %v5046
    %v5067 = vrcp.pop %v5049
    %v5068 = vrcp.pop %v5052
    %v5069 = vrcp.pop %v5055
    %v5070 = vrcp.pop %v5058
    %v5071 = vrcp.pop %v5061
    %v5072 = vrcp.pop %v5064
    %v5073 = vmul.f32 %v5003, %v5065
    %v5074 = vmul.f32 %v5008, %v5066
    %v5075 = vmul.f32 %v5013, %v5067
    %v5076 = vmul.f32 %v5018, %v5068
    %v5077 = vmul.f32 %v5023, %v5069
    %v5078 = vmul.f32 %v5028, %v5070
    %v5079 = vmul.f32 %v5033, %v5071
    %v5080 = vmul.f32 %v5038, %v5072
    %v5082 = vsel %vm888, %v5073, 0
    %v5085 = vsel %vm888, %v5074, 0
    %v5088 = vsel %vm888, %v5075, 0
    %v5091 = vsel %vm888, %v5076, 0
    %v5094 = vsel %vm888, %v5077, 0
    %v5097 = vsel %vm888, %v5078, 0
    %v5100 = vsel %vm888, %v5079, 0
    %v5103 = vsel %vm888, %v5080, 0
    %5105 = vmatprep.subr.mxu0 0.0
    %5106 = vmatpush1.msra.mxu0 %v397
    %5107 = vmatprep.subr.mxu0 0.0
    %5108 = vmatpush1.msra.mxu0 %v398
    %5109 = vmatprep.subr.mxu0 0.0
    %5110 = vmatpush1.msra.mxu0 %v399
    %5111 = vmatprep.subr.mxu0 0.0
    %5112 = vmatpush1.msra.mxu0 %v400
    %5113 = vmatprep.subr.mxu0 0.0
    %5114 = vmatpush1.msra.mxu0 0.0
    %5115 = vmatprep.subr.mxu0 0.0
    %5116 = vmatpush1.msra.mxu0 0.0
    %5117 = vmatprep.subr.mxu0 0.0
    %5118 = vmatpush1.msra.mxu0 0.0
    %5119 = vmatprep.subr.mxu0 0.0
    %5120 = vmatpush1.msra.mxu0 0.0
    %5121 = vmatprep.subr.mxu0 0.0
    %5122 = vmatpush1.msra.mxu0 0.0
    %5123 = vmatprep.subr.mxu0 0.0
    %5124 = vmatpush1.msra.mxu0 0.0
    %5125 = vmatprep.subr.mxu0 0.0
    %5126 = vmatpush1.msra.mxu0 0.0
    %5127 = vmatprep.subr.mxu0 0.0
    %5128 = vmatpush1.msra.mxu0 0.0
    %5129 = vmatprep.subr.mxu0 0.0
    %5130 = vmatpush1.msra.mxu0 0.0
    %5131 = vmatprep.subr.mxu0 0.0
    %5132 = vmatpush1.msra.mxu0 0.0
    %5133 = vmatprep.subr.mxu0 0.0
    %5134 = vmatpush1.msra.mxu0 0.0
    %5135 = vmatprep.subr.mxu0 0.0
    %5136 = vmatpush1.msra.mxu0 0.0
    %5137 = vmatprep.subr.mxu0 0.0
    %5138 = vmatpush1.msra.mxu0 0.0
    %5139 = vmatprep.subr.mxu0 0.0
    %5140 = vmatpush1.msra.mxu0 0.0
    %5141 = vmatprep.subr.mxu0 0.0
    %5142 = vmatpush1.msra.mxu0 0.0
    %5143 = vmatprep.subr.mxu0 0.0
    %5144 = vmatpush1.msra.mxu0 0.0
    %5145 = vmatprep.subr.mxu0 0.0
    %5146 = vmatpush1.msra.mxu0 0.0
    %5147 = vmatprep.subr.mxu0 0.0
    %5148 = vmatpush1.msra.mxu0 0.0
    %5149 = vmatprep.subr.mxu0 0.0
    %5150 = vmatpush1.msra.mxu0 0.0
    %5151 = vmatprep.subr.mxu0 0.0
    %5152 = vmatpush1.msra.mxu0 0.0
    %5153 = vmatprep.subr.mxu0 0.0
    %5154 = vmatpush1.msra.mxu0 0.0
    %5155 = vmatprep.subr.mxu0 0.0
    %5156 = vmatpush1.msra.mxu0 0.0
    %5157 = vmatprep.subr.mxu0 0.0
    %5158 = vmatpush1.msra.mxu0 0.0
    %5159 = vmatprep.subr.mxu0 0.0
    %5160 = vmatpush1.msra.mxu0 0.0
    %5161 = vmatprep.subr.mxu0 0.0
    %5162 = vmatpush1.msra.mxu0 0.0
    %5163 = vmatprep.subr.mxu0 0.0
    %5164 = vmatpush1.msra.mxu0 0.0
    %5165 = vmatprep.subr.mxu0 0.0
    %5166 = vmatpush1.msra.mxu0 0.0
    %5167 = vmatprep.subr.mxu0 0.0
    %5168 = vmatpush1.msra.mxu0 0.0
    %5169 = vmatprep.mubr.f32.mxu0 0.0
    %5170 = vmatmul.mubr.f32.gmra.mrb[0].mxu0 %v5082
    %v5171 = vpop.f32.mrb[0].mxu0
    %v5172 = vadd.f32 0.0, %v5171
    %v5173 = vpop.f32.mrb[0].mxu0
    %5174 = vmatprep.mubr.f32.mxu0 0.0
    %5175 = vmatmul.mubr.f32.gmra.mrb[0].mxu0 %v5085
    %v5176 = vpop.f32.mrb[0].mxu0
    %v5177 = vadd.f32 0.0, %v5176
    %v5178 = vpop.f32.mrb[0].mxu0
    %5179 = vmatprep.mubr.f32.mxu0 0.0
    %5180 = vmatmul.mubr.f32.gmra.mrb[0].mxu0 %v5088
    %v5181 = vpop.f32.mrb[0].mxu0
    %v5182 = vadd.f32 0.0, %v5181
    %v5183 = vpop.f32.mrb[0].mxu0
    %5184 = vmatprep.mubr.f32.mxu0 0.0
    %5185 = vmatmul.mubr.f32.gmra.mrb[0].mxu0 %v5091
    %v5186 = vpop.f32.mrb[0].mxu0
    %v5187 = vadd.f32 0.0, %v5186
    %v5188 = vpop.f32.mrb[0].mxu0
    %5189 = vmatprep.mubr.f32.mxu0 0.0
    %5190 = vmatmul.mubr.f32.gmra.mrb[0].mxu0 %v5094
    %v5191 = vpop.f32.mrb[0].mxu0
    %v5192 = vadd.f32 0.0, %v5191
    %v5193 = vpop.f32.mrb[0].mxu0
    %5194 = vmatprep.mubr.f32.mxu0 0.0
    %5195 = vmatmul.mubr.f32.gmra.mrb[0].mxu0 %v5097
    %v5196 = vpop.f32.mrb[0].mxu0
    %v5197 = vadd.f32 0.0, %v5196
    %v5198 = vpop.f32.mrb[0].mxu0
    %5199 = vmatprep.mubr.f32.mxu0 0.0
    %5200 = vmatmul.mubr.f32.gmra.mrb[0].mxu0 %v5100
    %v5201 = vpop.f32.mrb[0].mxu0
    %v5202 = vadd.f32 0.0, %v5201
    %v5203 = vpop.f32.mrb[0].mxu0
    %5204 = vmatprep.mubr.f32.mxu0 0.0
    %5205 = vmatmul.mubr.f32.gmra.mrb[0].mxu0 %v5103
    %v5206 = vpop.f32.mrb[0].mxu0
    %v5207 = vadd.f32 0.0, %v5206
    %v5208 = vpop.f32.mrb[0].mxu0
    %5209 = vdwg.mxu0
    %v5210 = vadd.f32 %v4663, %v5172
    %v5211 = vadd.f32 %v4664, %v5177
    %v5212 = vadd.f32 %v4665, %v5182
    %v5213 = vadd.f32 %v4666, %v5187
    %v5214 = vadd.f32 %v4667, %v5192
    %v5215 = vadd.f32 %v4668, %v5197
    %v5216 = vadd.f32 %v4669, %v5202
    %v5217 = vadd.f32 %v4670, %v5207
    %5218 = vst [vmem:[#allocation2 + $0x40] sm:$0xff] %v5210
    %5219 = vst [vmem:[#allocation2 + $0x48] sm:$0xff] %v5211
    %5220 = vst [vmem:[#allocation2 + $0x50] sm:$0xff] %v5212
    %5221 = vst [vmem:[#allocation2 + $0x58] sm:$0xff] %v5213
    %5222 = vst [vmem:[#allocation2 + $0x60] sm:$0xff] %v5214
    %5223 = vst [vmem:[#allocation2 + $0x68] sm:$0xff] %v5215
    %5224 = vst [vmem:[#allocation2 + $0x70] sm:$0xff] %v5216
    %5225 = vst [vmem:[#allocation2 + $0x78] sm:$0xff] %v5217
    %v5226 = vld [vmem:[#allocation2] sm:$0xff]
    %v5227 = vld [vmem:[#allocation2 + $0x8] sm:$0xff]
    %v5228 = vld [vmem:[#allocation2 + $0x10] sm:$0xff]
    %v5229 = vld [vmem:[#allocation2 + $0x18] sm:$0xff]
    %v5230 = vld [vmem:[#allocation2 + $0x20] sm:$0xff]
    %v5231 = vld [vmem:[#allocation2 + $0x28] sm:$0xff]
    %v5232 = vld [vmem:[#allocation2 + $0x30] sm:$0xff]
    %v5233 = vld [vmem:[#allocation2 + $0x38] sm:$0xff]
    %v5234 = vld [vmem:[#allocation2 + $0x40] sm:$0xff]
    %v5235 = vld [vmem:[#allocation2 + $0x48] sm:$0xff]
    %v5236 = vld [vmem:[#allocation2 + $0x50] sm:$0xff]
    %v5237 = vld [vmem:[#allocation2 + $0x58] sm:$0xff]
    %v5238 = vld [vmem:[#allocation2 + $0x60] sm:$0xff]
    %v5239 = vld [vmem:[#allocation2 + $0x68] sm:$0xff]
    %v5240 = vld [vmem:[#allocation2 + $0x70] sm:$0xff]
    %v5241 = vld [vmem:[#allocation2 + $0x78] sm:$0xff]
    %5242 = vmatprep.subr.mxu0 0.0
    %5243 = vmatpush1.msra.mxu0 %v401
    %5244 = vmatprep.subr.mxu0 0.0
    %5245 = vmatpush1.msra.mxu0 %v402
    %5246 = vmatprep.subr.mxu0 0.0
    %5247 = vmatpush1.msra.mxu0 %v403
    %5248 = vmatprep.subr.mxu0 0.0
    %5249 = vmatpush1.msra.mxu0 %v404
    %5250 = vmatprep.subr.mxu0 0.0
    %5251 = vmatpush1.msra.mxu0 %v405
    %5252 = vmatprep.subr.mxu0 0.0
    %5253 = vmatpush1.msra.mxu0 %v406
    %5254 = vmatprep.subr.mxu0 0.0
    %5255 = vmatpush1.msra.mxu0 %v407
    %5256 = vmatprep.subr.mxu0 0.0
    %5257 = vmatpush1.msra.mxu0 %v408
    %5258 = vmatprep.subr.mxu0 0.0
    %5259 = vmatpush1.msra.mxu0 %v409
    %5260 = vmatprep.subr.mxu0 0.0
    %5261 = vmatpush1.msra.mxu0 %v410
    %5262 = vmatprep.subr.mxu0 0.0
    %5263 = vmatpush1.msra.mxu0 %v411
    %5264 = vmatprep.subr.mxu0 0.0
    %5265 = vmatpush1.msra.mxu0 %v412
    %5266 = vmatprep.subr.mxu0 0.0
    %5267 = vmatpush1.msra.mxu0 %v413
    %5268 = vmatprep.subr.mxu0 0.0
    %5269 = vmatpush1.msra.mxu0 %v414
    %5270 = vmatprep.subr.mxu0 0.0
    %5271 = vmatpush1.msra.mxu0 %v415
    %5272 = vmatprep.subr.mxu0 0.0
    %5273 = vmatpush1.msra.mxu0 %v416
    %5274 = vmatprep.subr.mxu0 0.0
    %5275 = vmatpush1.msra.mxu0 0.0
    %5276 = vmatprep.subr.mxu0 0.0
    %5277 = vmatpush1.msra.mxu0 0.0
    %5278 = vmatprep.subr.mxu0 0.0
    %5279 = vmatpush1.msra.mxu0 0.0
    %5280 = vmatprep.subr.mxu0 0.0
    %5281 = vmatpush1.msra.mxu0 0.0
    %5282 = vmatprep.subr.mxu0 0.0
    %5283 = vmatpush1.msra.mxu0 0.0
    %5284 = vmatprep.subr.mxu0 0.0
    %5285 = vmatpush1.msra.mxu0 0.0
    %5286 = vmatprep.subr.mxu0 0.0
    %5287 = vmatpush1.msra.mxu0 0.0
    %5288 = vmatprep.subr.mxu0 0.0
    %5289 = vmatpush1.msra.mxu0 0.0
    %5290 = vmatprep.subr.mxu0 0.0
    %5291 = vmatpush1.msra.mxu0 0.0
    %5292 = vmatprep.subr.mxu0 0.0
    %5293 = vmatpush1.msra.mxu0 0.0
    %5294 = vmatprep.subr.mxu0 0.0
    %5295 = vmatpush1.msra.mxu0 0.0
    %5296 = vmatprep.subr.mxu0 0.0
    %5297 = vmatpush1.msra.mxu0 0.0
    %5298 = vmatprep.subr.mxu0 0.0
    %5299 = vmatpush1.msra.mxu0 0.0
    %5300 = vmatprep.subr.mxu0 0.0
    %5301 = vmatpush1.msra.mxu0 0.0
    %5302 = vmatprep.subr.mxu0 0.0
    %5303 = vmatpush1.msra.mxu0 0.0
    %5304 = vmatprep.subr.mxu0 0.0
    %5305 = vmatpush1.msra.mxu0 0.0
    %5306 = vmatprep.mubr.f32.mxu0 0.0
    %5307 = vmatmul.mubr.f32.gmra.mrb[0].mxu0 %v5226
    %v5308 = vpop.f32.mrb[0].mxu0
    %v5309 = vadd.f32 %v5226, %v5308
    %v5310 = vpop.f32.mrb[0].mxu0
    %5311 = vmatprep.mubr.f32.mxu0 0.0
    %5312 = vmatmul.mubr.f32.gmra.mrb[0].mxu0 %v5227
    %v5313 = vpop.f32.mrb[0].mxu0
    %v5314 = vadd.f32 %v5227, %v5313
    %v5315 = vpop.f32.mrb[0].mxu0
    %5316 = vmatprep.mubr.f32.mxu0 0.0
    %5317 = vmatmul.mubr.f32.gmra.mrb[0].mxu0 %v5228
    %v5318 = vpop.f32.mrb[0].mxu0
    %v5319 = vadd.f32 %v5228, %v5318
    %v5320 = vpop.f32.mrb[0].mxu0
    %5321 = vmatprep.mubr.f32.mxu0 0.0
    %5322 = vmatmul.mubr.f32.gmra.mrb[0].mxu0 %v5229
    %v5323 = vpop.f32.mrb[0].mxu0
    %v5324 = vadd.f32 %v5229, %v5323
    %v5325 = vpop.f32.mrb[0].mxu0
    %5326 = vmatprep.mubr.f32.mxu0 0.0
    %5327 = vmatmul.mubr.f32.gmra.mrb[0].mxu0 %v5230
    %v5328 = vpop.f32.mrb[0].mxu0
    %v5329 = vadd.f32 %v5230, %v5328
    %v5330 = vpop.f32.mrb[0].mxu0
    %5331 = vmatprep.mubr.f32.mxu0 0.0
    %5332 = vmatmul.mubr.f32.gmra.mrb[0].mxu0 %v5231
    %v5333 = vpop.f32.mrb[0].mxu0
    %v5334 = vadd.f32 %v5231, %v5333
    %v5335 = vpop.f32.mrb[0].mxu0
    %5336 = vmatprep.mubr.f32.mxu0 0.0
    %5337 = vmatmul.mubr.f32.gmra.mrb[0].mxu0 %v5232
    %v5338 = vpop.f32.mrb[0].mxu0
    %v5339 = vadd.f32 %v5232, %v5338
    %v5340 = vpop.f32.mrb[0].mxu0
    %5341 = vmatprep.mubr.f32.mxu0 0.0
    %5342 = vmatmul.mubr.f32.gmra.mrb[0].mxu0 %v5233
    %v5343 = vpop.f32.mrb[0].mxu0
    %v5344 = vadd.f32 %v5233, %v5343
    %v5345 = vpop.f32.mrb[0].mxu0
    %5346 = vmatprep.mubr.f32.mxu0 0.0
    %5347 = vmatmul.mubr.f32.gmra.mrb[0].mxu0 %v5234
    %v5348 = vpop.f32.mrb[0].mxu0
    %v5349 = vadd.f32 %v5234, %v5348
    %v5350 = vpop.f32.mrb[0].mxu0
    %5351 = vmatprep.mubr.f32.mxu0 0.0
    %5352 = vmatmul.mubr.f32.gmra.mrb[0].mxu0 %v5235
    %v5353 = vpop.f32.mrb[0].mxu0
    %v5354 = vadd.f32 %v5235, %v5353
    %v5355 = vpop.f32.mrb[0].mxu0
    %5356 = vmatprep.mubr.f32.mxu0 0.0
    %5357 = vmatmul.mubr.f32.gmra.mrb[0].mxu0 %v5236
    %v5358 = vpop.f32.mrb[0].mxu0
    %v5359 = vadd.f32 %v5236, %v5358
    %v5360 = vpop.f32.mrb[0].mxu0
    %5361 = vmatprep.mubr.f32.mxu0 0.0
    %5362 = vmatmul.mubr.f32.gmra.mrb[0].mxu0 %v5237
    %v5363 = vpop.f32.mrb[0].mxu0
    %v5364 = vadd.f32 %v5237, %v5363
    %v5365 = vpop.f32.mrb[0].mxu0
    %5366 = vmatprep.mubr.f32.mxu0 0.0
    %5367 = vmatmul.mubr.f32.gmra.mrb[0].mxu0 %v5238
    %v5368 = vpop.f32.mrb[0].mxu0
    %v5369 = vadd.f32 %v5238, %v5368
    %v5370 = vpop.f32.mrb[0].mxu0
    %5371 = vmatprep.mubr.f32.mxu0 0.0
    %5372 = vmatmul.mubr.f32.gmra.mrb[0].mxu0 %v5239
    %v5373 = vpop.f32.mrb[0].mxu0
    %v5374 = vadd.f32 %v5239, %v5373
    %v5375 = vpop.f32.mrb[0].mxu0
    %5376 = vmatprep.mubr.f32.mxu0 0.0
    %5377 = vmatmul.mubr.f32.gmra.mrb[0].mxu0 %v5240
    %v5378 = vpop.f32.mrb[0].mxu0
    %v5379 = vadd.f32 %v5240, %v5378
    %v5380 = vpop.f32.mrb[0].mxu0
    %5381 = vmatprep.mubr.f32.mxu0 0.0
    %5382 = vmatmul.mubr.f32.gmra.mrb[0].mxu0 %v5241
    %v5383 = vpop.f32.mrb[0].mxu0
    %v5384 = vadd.f32 %v5241, %v5383
    %v5385 = vpop.f32.mrb[0].mxu0
    %5386 = vdwg.mxu0
    %s5387 = scalar_lea.vmem [#allocation8], 128
    %v5388 = vld [vmem:[%s5387] sm:$0xff]
    %v5389 = vld [vmem:[%s5387 + $0x8] sm:$0xff]
    %v5390 = vld [vmem:[%s5387 + $0x10] sm:$0xff]
    %v5391 = vld [vmem:[%s5387 + $0x18] sm:$0xff]
    %v5392 = vld [vmem:[%s5387 + $0x20] sm:$0xff]
    %v5393 = vld [vmem:[%s5387 + $0x28] sm:$0xff]
    %v5394 = vld [vmem:[%s5387 + $0x30] sm:$0xff]
    %v5395 = vld [vmem:[%s5387 + $0x38] sm:$0xff]
    %v5396 = vld [vmem:[%s5387 + $0x40] sm:$0xff]
    %v5397 = vld [vmem:[%s5387 + $0x48] sm:$0xff]
    %v5398 = vld [vmem:[%s5387 + $0x50] sm:$0xff]
    %v5399 = vld [vmem:[%s5387 + $0x58] sm:$0xff]
    %v5400 = vld [vmem:[%s5387 + $0x60] sm:$0xff]
    %v5401 = vld [vmem:[%s5387 + $0x68] sm:$0xff]
    %v5402 = vld [vmem:[%s5387 + $0x70] sm:$0xff]
    %v5403 = vld [vmem:[%s5387 + $0x78] sm:$0xff]
    %s5404 = scalar_lea.vmem [#allocation9], 128
    %v5405 = vld [vmem:[%s5404] sm:$0xff]
    %v5406 = vld [vmem:[%s5404 + $0x8] sm:$0xff]
    %v5407 = vld [vmem:[%s5404 + $0x10] sm:$0xff]
    %v5408 = vld [vmem:[%s5404 + $0x18] sm:$0xff]
    %v5409 = vld [vmem:[%s5404 + $0x20] sm:$0xff]
    %v5410 = vld [vmem:[%s5404 + $0x28] sm:$0xff]
    %v5411 = vld [vmem:[%s5404 + $0x30] sm:$0xff]
    %v5412 = vld [vmem:[%s5404 + $0x38] sm:$0xff]
    %v5413 = vld [vmem:[%s5404 + $0x40] sm:$0xff]
    %v5414 = vld [vmem:[%s5404 + $0x48] sm:$0xff]
    %v5415 = vld [vmem:[%s5404 + $0x50] sm:$0xff]
    %v5416 = vld [vmem:[%s5404 + $0x58] sm:$0xff]
    %v5417 = vld [vmem:[%s5404 + $0x60] sm:$0xff]
    %v5418 = vld [vmem:[%s5404 + $0x68] sm:$0xff]
    %v5419 = vld [vmem:[%s5404 + $0x70] sm:$0xff]
    %v5420 = vld [vmem:[%s5404 + $0x78] sm:$0xff]
    %s5421 = scalar_lea.vmem [#allocation11], 128
    %v5422 = vld [vmem:[%s5421] sm:$0xff]
    %v5423 = vld [vmem:[%s5421 + $0x8] sm:$0xff]
    %v5424 = vld [vmem:[%s5421 + $0x10] sm:$0xff]
    %v5425 = vld [vmem:[%s5421 + $0x18] sm:$0xff]
    %v5426 = vld [vmem:[%s5421 + $0x20] sm:$0xff]
    %v5427 = vld [vmem:[%s5421 + $0x28] sm:$0xff]
    %v5428 = vld [vmem:[%s5421 + $0x30] sm:$0xff]
    %v5429 = vld [vmem:[%s5421 + $0x38] sm:$0xff]
    %v5430 = vld [vmem:[%s5421 + $0x40] sm:$0xff]
    %v5431 = vld [vmem:[%s5421 + $0x48] sm:$0xff]
    %v5432 = vld [vmem:[%s5421 + $0x50] sm:$0xff]
    %v5433 = vld [vmem:[%s5421 + $0x58] sm:$0xff]
    %v5434 = vld [vmem:[%s5421 + $0x60] sm:$0xff]
    %v5435 = vld [vmem:[%s5421 + $0x68] sm:$0xff]
    %v5436 = vld [vmem:[%s5421 + $0x70] sm:$0xff]
    %v5437 = vld [vmem:[%s5421 + $0x78] sm:$0xff]
    %s5438 = scalar_lea.vmem [#allocation12], 128
    %v5439 = vld [vmem:[%s5438] sm:$0xff]
    %v5440 = vld [vmem:[%s5438 + $0x8] sm:$0xff]
    %v5441 = vld [vmem:[%s5438 + $0x10] sm:$0xff]
    %v5442 = vld [vmem:[%s5438 + $0x18] sm:$0xff]
    %v5443 = vld [vmem:[%s5438 + $0x20] sm:$0xff]
    %v5444 = vld [vmem:[%s5438 + $0x28] sm:$0xff]
    %v5445 = vld [vmem:[%s5438 + $0x30] sm:$0xff]
    %v5446 = vld [vmem:[%s5438 + $0x38] sm:$0xff]
    %v5447 = vld [vmem:[%s5438 + $0x40] sm:$0xff]
    %v5448 = vld [vmem:[%s5438 + $0x48] sm:$0xff]
    %v5449 = vld [vmem:[%s5438 + $0x50] sm:$0xff]
    %v5450 = vld [vmem:[%s5438 + $0x58] sm:$0xff]
    %v5451 = vld [vmem:[%s5438 + $0x60] sm:$0xff]
    %v5452 = vld [vmem:[%s5438 + $0x68] sm:$0xff]
    %v5453 = vld [vmem:[%s5438 + $0x70] sm:$0xff]
    %v5454 = vld [vmem:[%s5438 + $0x78] sm:$0xff]
    %s5455 = scalar_lea.vmem [#allocation14], 128
    %v5456 = vld [vmem:[%s5455] sm:$0xff]
    %v5457 = vld [vmem:[%s5455 + $0x8] sm:$0xff]
    %v5458 = vld [vmem:[%s5455 + $0x10] sm:$0xff]
    %v5459 = vld [vmem:[%s5455 + $0x18] sm:$0xff]
    %v5460 = vld [vmem:[%s5455 + $0x20] sm:$0xff]
    %v5461 = vld [vmem:[%s5455 + $0x28] sm:$0xff]
    %v5462 = vld [vmem:[%s5455 + $0x30] sm:$0xff]
    %v5463 = vld [vmem:[%s5455 + $0x38] sm:$0xff]
    %v5464 = vld [vmem:[%s5455 + $0x40] sm:$0xff]
    %v5465 = vld [vmem:[%s5455 + $0x48] sm:$0xff]
    %v5466 = vld [vmem:[%s5455 + $0x50] sm:$0xff]
    %v5467 = vld [vmem:[%s5455 + $0x58] sm:$0xff]
    %v5468 = vld [vmem:[%s5455 + $0x60] sm:$0xff]
    %v5469 = vld [vmem:[%s5455 + $0x68] sm:$0xff]
    %v5470 = vld [vmem:[%s5455 + $0x70] sm:$0xff]
    %v5471 = vld [vmem:[%s5455 + $0x78] sm:$0xff]
    %s5472 = scalar_lea.vmem %s10, 1
    %v5473 = vld [vmem:[%s5472] sm:$0x1]
    %s5474 = scalar_lea.vmem %s6, 1
    %v5475 = vld [vmem:[%s5474] sm:$0x1]
    %v5477 = vlaneseq
    %v5478 = vshrl.u32 %v5477, 7
    %v5479 = vsub.s32 0, %v5478
    %v5480 = vrot.slane %v5475, %v5479
    %5482 = vmatprep.subr.mxu0 0.0
    %5483 = vmatpush1.msra.mxu0 %v5388
    %5484 = vmatprep.subr.mxu0 0.0
    %5485 = vmatpush1.msra.mxu0 %v5389
    %5486 = vmatprep.subr.mxu0 0.0
    %5487 = vmatpush1.msra.mxu0 %v5390
    %5488 = vmatprep.subr.mxu0 0.0
    %5489 = vmatpush1.msra.mxu0 %v5391
    %5490 = vmatprep.subr.mxu0 0.0
    %5491 = vmatpush1.msra.mxu0 %v5392
    %5492 = vmatprep.subr.mxu0 0.0
    %5493 = vmatpush1.msra.mxu0 %v5393
    %5494 = vmatprep.subr.mxu0 0.0
    %5495 = vmatpush1.msra.mxu0 %v5394
    %5496 = vmatprep.subr.mxu0 0.0
    %5497 = vmatpush1.msra.mxu0 %v5395
    %5498 = vmatprep.subr.mxu0 0.0
    %5499 = vmatpush1.msra.mxu0 %v5396
    %5500 = vmatprep.subr.mxu0 0.0
    %5501 = vmatpush1.msra.mxu0 %v5397
    %5502 = vmatprep.subr.mxu0 0.0
    %5503 = vmatpush1.msra.mxu0 %v5398
    %5504 = vmatprep.subr.mxu0 0.0
    %5505 = vmatpush1.msra.mxu0 %v5399
    %5506 = vmatprep.subr.mxu0 0.0
    %5507 = vmatpush1.msra.mxu0 %v5400
    %5508 = vmatprep.subr.mxu0 0.0
    %5509 = vmatpush1.msra.mxu0 %v5401
    %5510 = vmatprep.subr.mxu0 0.0
    %5511 = vmatpush1.msra.mxu0 %v5402
    %5512 = vmatprep.subr.mxu0 0.0
    %5513 = vmatpush1.msra.mxu0 %v5403
    %5514 = vmatprep.subr.mxu0 0.0
    %5515 = vmatpush1.msra.mxu0 0.0
    %5516 = vmatprep.subr.mxu0 0.0
    %5517 = vmatpush1.msra.mxu0 0.0
    %5518 = vmatprep.subr.mxu0 0.0
    %5519 = vmatpush1.msra.mxu0 0.0
    %5520 = vmatprep.subr.mxu0 0.0
    %5521 = vmatpush1.msra.mxu0 0.0
    %5522 = vmatprep.subr.mxu0 0.0
    %5523 = vmatpush1.msra.mxu0 0.0
    %5524 = vmatprep.subr.mxu0 0.0
    %5525 = vmatpush1.msra.mxu0 0.0
    %5526 = vmatprep.subr.mxu0 0.0
    %5527 = vmatpush1.msra.mxu0 0.0
    %5528 = vmatprep.subr.mxu0 0.0
    %5529 = vmatpush1.msra.mxu0 0.0
    %5530 = vmatprep.subr.mxu0 0.0
    %5531 = vmatpush1.msra.mxu0 0.0
    %5532 = vmatprep.subr.mxu0 0.0
    %5533 = vmatpush1.msra.mxu0 0.0
    %5534 = vmatprep.subr.mxu0 0.0
    %5535 = vmatpush1.msra.mxu0 0.0
    %5536 = vmatprep.subr.mxu0 0.0
    %5537 = vmatpush1.msra.mxu0 0.0
    %5538 = vmatprep.subr.mxu0 0.0
    %5539 = vmatpush1.msra.mxu0 0.0
    %5540 = vmatprep.subr.mxu0 0.0
    %5541 = vmatpush1.msra.mxu0 0.0
    %5542 = vmatprep.subr.mxu0 0.0
    %5543 = vmatpush1.msra.mxu0 0.0
    %5544 = vmatprep.subr.mxu0 0.0
    %5545 = vmatpush1.msra.mxu0 0.0
    %5546 = vmatprep.mubr.f32.mxu0 0.0
    %5547 = vmatmul.mubr.f32.gmra.mrb[0].mxu0 %v5309
    %v5548 = vpop.f32.mrb[0].mxu0
    %v5549 = vadd.f32 %v5480, %v5548
    %v5550 = vpop.f32.mrb[0].mxu0
    %5551 = vmatprep.mubr.f32.mxu0 0.0
    %5552 = vmatmul.mubr.f32.gmra.mrb[0].mxu0 %v5314
    %v5553 = vpop.f32.mrb[0].mxu0
    %v5554 = vadd.f32 %v5480, %v5553
    %v5555 = vpop.f32.mrb[0].mxu0
    %5556 = vmatprep.mubr.f32.mxu0 0.0
    %5557 = vmatmul.mubr.f32.gmra.mrb[0].mxu0 %v5319
    %v5558 = vpop.f32.mrb[0].mxu0
    %v5559 = vadd.f32 %v5480, %v5558
    %v5560 = vpop.f32.mrb[0].mxu0
    %5561 = vmatprep.mubr.f32.mxu0 0.0
    %5562 = vmatmul.mubr.f32.gmra.mrb[0].mxu0 %v5324
    %v5563 = vpop.f32.mrb[0].mxu0
    %v5564 = vadd.f32 %v5480, %v5563
    %v5565 = vpop.f32.mrb[0].mxu0
    %5566 = vmatprep.mubr.f32.mxu0 0.0
    %5567 = vmatmul.mubr.f32.gmra.mrb[0].mxu0 %v5329
    %v5568 = vpop.f32.mrb[0].mxu0
    %v5569 = vadd.f32 %v5480, %v5568
    %v5570 = vpop.f32.mrb[0].mxu0
    %5571 = vmatprep.mubr.f32.mxu0 0.0
    %5572 = vmatmul.mubr.f32.gmra.mrb[0].mxu0 %v5334
    %v5573 = vpop.f32.mrb[0].mxu0
    %v5574 = vadd.f32 %v5480, %v5573
    %v5575 = vpop.f32.mrb[0].mxu0
    %5576 = vmatprep.mubr.f32.mxu0 0.0
    %5577 = vmatmul.mubr.f32.gmra.mrb[0].mxu0 %v5339
    %v5578 = vpop.f32.mrb[0].mxu0
    %v5579 = vadd.f32 %v5480, %v5578
    %v5580 = vpop.f32.mrb[0].mxu0
    %5581 = vmatprep.mubr.f32.mxu0 0.0
    %5582 = vmatmul.mubr.f32.gmra.mrb[0].mxu0 %v5344
    %v5583 = vpop.f32.mrb[0].mxu0
    %v5584 = vadd.f32 %v5480, %v5583
    %v5585 = vpop.f32.mrb[0].mxu0
    %5586 = vmatprep.mubr.f32.mxu0 0.0
    %5587 = vmatmul.mubr.f32.gmra.mrb[0].mxu0 %v5349
    %v5588 = vpop.f32.mrb[0].mxu0
    %v5589 = vadd.f32 %v5480, %v5588
    %v5590 = vpop.f32.mrb[0].mxu0
    %5591 = vmatprep.mubr.f32.mxu0 0.0
    %5592 = vmatmul.mubr.f32.gmra.mrb[0].mxu0 %v5354
    %v5593 = vpop.f32.mrb[0].mxu0
    %v5594 = vadd.f32 %v5480, %v5593
    %v5595 = vpop.f32.mrb[0].mxu0
    %5596 = vmatprep.mubr.f32.mxu0 0.0
    %5597 = vmatmul.mubr.f32.gmra.mrb[0].mxu0 %v5359
    %v5598 = vpop.f32.mrb[0].mxu0
    %v5599 = vadd.f32 %v5480, %v5598
    %v5600 = vpop.f32.mrb[0].mxu0
    %5601 = vmatprep.mubr.f32.mxu0 0.0
    %5602 = vmatmul.mubr.f32.gmra.mrb[0].mxu0 %v5364
    %v5603 = vpop.f32.mrb[0].mxu0
    %v5604 = vadd.f32 %v5480, %v5603
    %v5605 = vpop.f32.mrb[0].mxu0
    %5606 = vmatprep.mubr.f32.mxu0 0.0
    %5607 = vmatmul.mubr.f32.gmra.mrb[0].mxu0 %v5369
    %v5608 = vpop.f32.mrb[0].mxu0
    %v5609 = vadd.f32 %v5480, %v5608
    %v5610 = vpop.f32.mrb[0].mxu0
    %5611 = vmatprep.mubr.f32.mxu0 0.0
    %5612 = vmatmul.mubr.f32.gmra.mrb[0].mxu0 %v5374
    %v5613 = vpop.f32.mrb[0].mxu0
    %v5614 = vadd.f32 %v5480, %v5613
    %v5615 = vpop.f32.mrb[0].mxu0
    %5616 = vmatprep.mubr.f32.mxu0 0.0
    %5617 = vmatmul.mubr.f32.gmra.mrb[0].mxu0 %v5379
    %v5618 = vpop.f32.mrb[0].mxu0
    %v5619 = vadd.f32 %v5480, %v5618
    %v5620 = vpop.f32.mrb[0].mxu0
    %5621 = vmatprep.mubr.f32.mxu0 0.0
    %5622 = vmatmul.mubr.f32.gmra.mrb[0].mxu0 %v5384
    %v5623 = vpop.f32.mrb[0].mxu0
    %v5624 = vadd.f32 %v5480, %v5623
    %v5625 = vpop.f32.mrb[0].mxu0
    %5626 = vdwg.mxu0
    %s5627 = scalar_lea.vmem %s7, 1
    %v5628 = vld [vmem:[%s5627] sm:$0x1]
    %v5630 = vlaneseq
    %v5631 = vshrl.u32 %v5630, 7
    %v5632 = vsub.s32 0, %v5631
    %v5633 = vrot.slane %v5628, %v5632
    %5635 = vmatprep.subr.mxu0 0.0
    %5636 = vmatpush1.msra.mxu0 %v5405
    %5637 = vmatprep.subr.mxu0 0.0
    %5638 = vmatpush1.msra.mxu0 %v5406
    %5639 = vmatprep.subr.mxu0 0.0
    %5640 = vmatpush1.msra.mxu0 %v5407
    %5641 = vmatprep.subr.mxu0 0.0
    %5642 = vmatpush1.msra.mxu0 %v5408
    %5643 = vmatprep.subr.mxu0 0.0
    %5644 = vmatpush1.msra.mxu0 %v5409
    %5645 = vmatprep.subr.mxu0 0.0
    %5646 = vmatpush1.msra.mxu0 %v5410
    %5647 = vmatprep.subr.mxu0 0.0
    %5648 = vmatpush1.msra.mxu0 %v5411
    %5649 = vmatprep.subr.mxu0 0.0
    %5650 = vmatpush1.msra.mxu0 %v5412
    %5651 = vmatprep.subr.mxu0 0.0
    %5652 = vmatpush1.msra.mxu0 %v5413
    %5653 = vmatprep.subr.mxu0 0.0
    %5654 = vmatpush1.msra.mxu0 %v5414
    %5655 = vmatprep.subr.mxu0 0.0
    %5656 = vmatpush1.msra.mxu0 %v5415
    %5657 = vmatprep.subr.mxu0 0.0
    %5658 = vmatpush1.msra.mxu0 %v5416
    %5659 = vmatprep.subr.mxu0 0.0
    %5660 = vmatpush1.msra.mxu0 %v5417
    %5661 = vmatprep.subr.mxu0 0.0
    %5662 = vmatpush1.msra.mxu0 %v5418
    %5663 = vmatprep.subr.mxu0 0.0
    %5664 = vmatpush1.msra.mxu0 %v5419
    %5665 = vmatprep.subr.mxu0 0.0
    %5666 = vmatpush1.msra.mxu0 %v5420
    %5667 = vmatprep.subr.mxu0 0.0
    %5668 = vmatpush1.msra.mxu0 0.0
    %5669 = vmatprep.subr.mxu0 0.0
    %5670 = vmatpush1.msra.mxu0 0.0
    %5671 = vmatprep.subr.mxu0 0.0
    %5672 = vmatpush1.msra.mxu0 0.0
    %5673 = vmatprep.subr.mxu0 0.0
    %5674 = vmatpush1.msra.mxu0 0.0
    %5675 = vmatprep.subr.mxu0 0.0
    %5676 = vmatpush1.msra.mxu0 0.0
    %5677 = vmatprep.subr.mxu0 0.0
    %5678 = vmatpush1.msra.mxu0 0.0
    %5679 = vmatprep.subr.mxu0 0.0
    %5680 = vmatpush1.msra.mxu0 0.0
    %5681 = vmatprep.subr.mxu0 0.0
    %5682 = vmatpush1.msra.mxu0 0.0
    %5683 = vmatprep.subr.mxu0 0.0
    %5684 = vmatpush1.msra.mxu0 0.0
    %5685 = vmatprep.subr.mxu0 0.0
    %5686 = vmatpush1.msra.mxu0 0.0
    %5687 = vmatprep.subr.mxu0 0.0
    %5688 = vmatpush1.msra.mxu0 0.0
    %5689 = vmatprep.subr.mxu0 0.0
    %5690 = vmatpush1.msra.mxu0 0.0
    %5691 = vmatprep.subr.mxu0 0.0
    %5692 = vmatpush1.msra.mxu0 0.0
    %5693 = vmatprep.subr.mxu0 0.0
    %5694 = vmatpush1.msra.mxu0 0.0
    %5695 = vmatprep.subr.mxu0 0.0
    %5696 = vmatpush1.msra.mxu0 0.0
    %5697 = vmatprep.subr.mxu0 0.0
    %5698 = vmatpush1.msra.mxu0 0.0
    %5699 = vmatprep.mubr.f32.mxu0 0.0
    %5700 = vmatmul.mubr.f32.gmra.mrb[0].mxu0 %v5309
    %v5701 = vpop.f32.mrb[0].mxu0
    %v5702 = vadd.f32 %v5633, %v5701
    %v5703 = vpop.f32.mrb[0].mxu0
    %5704 = vmatprep.mubr.f32.mxu0 0.0
    %5705 = vmatmul.mubr.f32.gmra.mrb[0].mxu0 %v5314
    %v5706 = vpop.f32.mrb[0].mxu0
    %v5707 = vadd.f32 %v5633, %v5706
    %v5708 = vpop.f32.mrb[0].mxu0
    %5709 = vmatprep.mubr.f32.mxu0 0.0
    %5710 = vmatmul.mubr.f32.gmra.mrb[0].mxu0 %v5319
    %v5711 = vpop.f32.mrb[0].mxu0
    %v5712 = vadd.f32 %v5633, %v5711
    %v5713 = vpop.f32.mrb[0].mxu0
    %5714 = vmatprep.mubr.f32.mxu0 0.0
    %5715 = vmatmul.mubr.f32.gmra.mrb[0].mxu0 %v5324
    %v5716 = vpop.f32.mrb[0].mxu0
    %v5717 = vadd.f32 %v5633, %v5716
    %v5718 = vpop.f32.mrb[0].mxu0
    %5719 = vmatprep.mubr.f32.mxu0 0.0
    %5720 = vmatmul.mubr.f32.gmra.mrb[0].mxu0 %v5329
    %v5721 = vpop.f32.mrb[0].mxu0
    %v5722 = vadd.f32 %v5633, %v5721
    %v5723 = vpop.f32.mrb[0].mxu0
    %5724 = vmatprep.mubr.f32.mxu0 0.0
    %5725 = vmatmul.mubr.f32.gmra.mrb[0].mxu0 %v5334
    %v5726 = vpop.f32.mrb[0].mxu0
    %v5727 = vadd.f32 %v5633, %v5726
    %v5728 = vpop.f32.mrb[0].mxu0
    %5729 = vmatprep.mubr.f32.mxu0 0.0
    %5730 = vmatmul.mubr.f32.gmra.mrb[0].mxu0 %v5339
    %v5731 = vpop.f32.mrb[0].mxu0
    %v5732 = vadd.f32 %v5633, %v5731
    %v5733 = vpop.f32.mrb[0].mxu0
    %5734 = vmatprep.mubr.f32.mxu0 0.0
    %5735 = vmatmul.mubr.f32.gmra.mrb[0].mxu0 %v5344
    %v5736 = vpop.f32.mrb[0].mxu0
    %v5737 = vadd.f32 %v5633, %v5736
    %v5738 = vpop.f32.mrb[0].mxu0
    %5739 = vmatprep.mubr.f32.mxu0 0.0
    %5740 = vmatmul.mubr.f32.gmra.mrb[0].mxu0 %v5349
    %v5741 = vpop.f32.mrb[0].mxu0
    %v5742 = vadd.f32 %v5633, %v5741
    %v5743 = vpop.f32.mrb[0].mxu0
    %5744 = vmatprep.mubr.f32.mxu0 0.0
    %5745 = vmatmul.mubr.f32.gmra.mrb[0].mxu0 %v5354
    %v5746 = vpop.f32.mrb[0].mxu0
    %v5747 = vadd.f32 %v5633, %v5746
    %v5748 = vpop.f32.mrb[0].mxu0
    %5749 = vmatprep.mubr.f32.mxu0 0.0
    %5750 = vmatmul.mubr.f32.gmra.mrb[0].mxu0 %v5359
    %v5751 = vpop.f32.mrb[0].mxu0
    %v5752 = vadd.f32 %v5633, %v5751
    %v5753 = vpop.f32.mrb[0].mxu0
    %5754 = vmatprep.mubr.f32.mxu0 0.0
    %5755 = vmatmul.mubr.f32.gmra.mrb[0].mxu0 %v5364
    %v5756 = vpop.f32.mrb[0].mxu0
    %v5757 = vadd.f32 %v5633, %v5756
    %v5758 = vpop.f32.mrb[0].mxu0
    %5759 = vmatprep.mubr.f32.mxu0 0.0
    %5760 = vmatmul.mubr.f32.gmra.mrb[0].mxu0 %v5369
    %v5761 = vpop.f32.mrb[0].mxu0
    %v5762 = vadd.f32 %v5633, %v5761
    %v5763 = vpop.f32.mrb[0].mxu0
    %5764 = vmatprep.mubr.f32.mxu0 0.0
    %5765 = vmatmul.mubr.f32.gmra.mrb[0].mxu0 %v5374
    %v5766 = vpop.f32.mrb[0].mxu0
    %v5767 = vadd.f32 %v5633, %v5766
    %v5768 = vpop.f32.mrb[0].mxu0
    %5769 = vmatprep.mubr.f32.mxu0 0.0
    %5770 = vmatmul.mubr.f32.gmra.mrb[0].mxu0 %v5379
    %v5771 = vpop.f32.mrb[0].mxu0
    %v5772 = vadd.f32 %v5633, %v5771
    %v5773 = vpop.f32.mrb[0].mxu0
    %5774 = vmatprep.mubr.f32.mxu0 0.0
    %5775 = vmatmul.mubr.f32.gmra.mrb[0].mxu0 %v5384
    %v5776 = vpop.f32.mrb[0].mxu0
    %v5777 = vadd.f32 %v5633, %v5776
    %v5778 = vpop.f32.mrb[0].mxu0
    %5779 = vdwg.mxu0
    %s5780 = scalar_lea.vmem %s8, 1
    %v5781 = vld [vmem:[%s5780] sm:$0x1]
    %v5783 = vlaneseq
    %v5784 = vshrl.u32 %v5783, 7
    %v5785 = vsub.s32 0, %v5784
    %v5786 = vrot.slane %v5781, %v5785
    %5788 = vmatprep.subr.mxu0 0.0
    %5789 = vmatpush1.msra.mxu0 %v5422
    %5790 = vmatprep.subr.mxu0 0.0
    %5791 = vmatpush1.msra.mxu0 %v5423
    %5792 = vmatprep.subr.mxu0 0.0
    %5793 = vmatpush1.msra.mxu0 %v5424
    %5794 = vmatprep.subr.mxu0 0.0
    %5795 = vmatpush1.msra.mxu0 %v5425
    %5796 = vmatprep.subr.mxu0 0.0
    %5797 = vmatpush1.msra.mxu0 %v5426
    %5798 = vmatprep.subr.mxu0 0.0
    %5799 = vmatpush1.msra.mxu0 %v5427
    %5800 = vmatprep.subr.mxu0 0.0
    %5801 = vmatpush1.msra.mxu0 %v5428
    %5802 = vmatprep.subr.mxu0 0.0
    %5803 = vmatpush1.msra.mxu0 %v5429
    %5804 = vmatprep.subr.mxu0 0.0
    %5805 = vmatpush1.msra.mxu0 %v5430
    %5806 = vmatprep.subr.mxu0 0.0
    %5807 = vmatpush1.msra.mxu0 %v5431
    %5808 = vmatprep.subr.mxu0 0.0
    %5809 = vmatpush1.msra.mxu0 %v5432
    %5810 = vmatprep.subr.mxu0 0.0
    %5811 = vmatpush1.msra.mxu0 %v5433
    %5812 = vmatprep.subr.mxu0 0.0
    %5813 = vmatpush1.msra.mxu0 %v5434
    %5814 = vmatprep.subr.mxu0 0.0
    %5815 = vmatpush1.msra.mxu0 %v5435
    %5816 = vmatprep.subr.mxu0 0.0
    %5817 = vmatpush1.msra.mxu0 %v5436
    %5818 = vmatprep.subr.mxu0 0.0
    %5819 = vmatpush1.msra.mxu0 %v5437
    %5820 = vmatprep.subr.mxu0 0.0
    %5821 = vmatpush1.msra.mxu0 0.0
    %5822 = vmatprep.subr.mxu0 0.0
    %5823 = vmatpush1.msra.mxu0 0.0
    %5824 = vmatprep.subr.mxu0 0.0
    %5825 = vmatpush1.msra.mxu0 0.0
    %5826 = vmatprep.subr.mxu0 0.0
    %5827 = vmatpush1.msra.mxu0 0.0
    %5828 = vmatprep.subr.mxu0 0.0
    %5829 = vmatpush1.msra.mxu0 0.0
    %5830 = vmatprep.subr.mxu0 0.0
    %5831 = vmatpush1.msra.mxu0 0.0
    %5832 = vmatprep.subr.mxu0 0.0
    %5833 = vmatpush1.msra.mxu0 0.0
    %5834 = vmatprep.subr.mxu0 0.0
    %5835 = vmatpush1.msra.mxu0 0.0
    %5836 = vmatprep.subr.mxu0 0.0
    %5837 = vmatpush1.msra.mxu0 0.0
    %5838 = vmatprep.subr.mxu0 0.0
    %5839 = vmatpush1.msra.mxu0 0.0
    %5840 = vmatprep.subr.mxu0 0.0
    %5841 = vmatpush1.msra.mxu0 0.0
    %5842 = vmatprep.subr.mxu0 0.0
    %5843 = vmatpush1.msra.mxu0 0.0
    %5844 = vmatprep.subr.mxu0 0.0
    %5845 = vmatpush1.msra.mxu0 0.0
    %5846 = vmatprep.subr.mxu0 0.0
    %5847 = vmatpush1.msra.mxu0 0.0
    %5848 = vmatprep.subr.mxu0 0.0
    %5849 = vmatpush1.msra.mxu0 0.0
    %5850 = vmatprep.subr.mxu0 0.0
    %5851 = vmatpush1.msra.mxu0 0.0
    %5852 = vmatprep.mubr.f32.mxu0 0.0
    %5853 = vmatmul.mubr.f32.gmra.mrb[0].mxu0 %v5309
    %v5854 = vpop.f32.mrb[0].mxu0
    %v5855 = vadd.f32 %v5786, %v5854
    %v5856 = vpop.f32.mrb[0].mxu0
    %5857 = vmatprep.mubr.f32.mxu0 0.0
    %5858 = vmatmul.mubr.f32.gmra.mrb[0].mxu0 %v5314
    %v5859 = vpop.f32.mrb[0].mxu0
    %v5860 = vadd.f32 %v5786, %v5859
    %v5861 = vpop.f32.mrb[0].mxu0
    %5862 = vmatprep.mubr.f32.mxu0 0.0
    %5863 = vmatmul.mubr.f32.gmra.mrb[0].mxu0 %v5319
    %v5864 = vpop.f32.mrb[0].mxu0
    %v5865 = vadd.f32 %v5786, %v5864
    %v5866 = vpop.f32.mrb[0].mxu0
    %5867 = vmatprep.mubr.f32.mxu0 0.0
    %5868 = vmatmul.mubr.f32.gmra.mrb[0].mxu0 %v5324
    %v5869 = vpop.f32.mrb[0].mxu0
    %v5870 = vadd.f32 %v5786, %v5869
    %v5871 = vpop.f32.mrb[0].mxu0
    %5872 = vmatprep.mubr.f32.mxu0 0.0
    %5873 = vmatmul.mubr.f32.gmra.mrb[0].mxu0 %v5329
    %v5874 = vpop.f32.mrb[0].mxu0
    %v5875 = vadd.f32 %v5786, %v5874
    %v5876 = vpop.f32.mrb[0].mxu0
    %5877 = vmatprep.mubr.f32.mxu0 0.0
    %5878 = vmatmul.mubr.f32.gmra.mrb[0].mxu0 %v5334
    %v5879 = vpop.f32.mrb[0].mxu0
    %v5880 = vadd.f32 %v5786, %v5879
    %v5881 = vpop.f32.mrb[0].mxu0
    %5882 = vmatprep.mubr.f32.mxu0 0.0
    %5883 = vmatmul.mubr.f32.gmra.mrb[0].mxu0 %v5339
    %v5884 = vpop.f32.mrb[0].mxu0
    %v5885 = vadd.f32 %v5786, %v5884
    %v5886 = vpop.f32.mrb[0].mxu0
    %5887 = vmatprep.mubr.f32.mxu0 0.0
    %5888 = vmatmul.mubr.f32.gmra.mrb[0].mxu0 %v5344
    %v5889 = vpop.f32.mrb[0].mxu0
    %v5890 = vadd.f32 %v5786, %v5889
    %v5891 = vpop.f32.mrb[0].mxu0
    %5892 = vmatprep.mubr.f32.mxu0 0.0
    %5893 = vmatmul.mubr.f32.gmra.mrb[0].mxu0 %v5349
    %v5894 = vpop.f32.mrb[0].mxu0
    %v5895 = vadd.f32 %v5786, %v5894
    %v5896 = vpop.f32.mrb[0].mxu0
    %5897 = vmatprep.mubr.f32.mxu0 0.0
    %5898 = vmatmul.mubr.f32.gmra.mrb[0].mxu0 %v5354
    %v5899 = vpop.f32.mrb[0].mxu0
    %v5900 = vadd.f32 %v5786, %v5899
    %v5901 = vpop.f32.mrb[0].mxu0
    %5902 = vmatprep.mubr.f32.mxu0 0.0
    %5903 = vmatmul.mubr.f32.gmra.mrb[0].mxu0 %v5359
    %v5904 = vpop.f32.mrb[0].mxu0
    %v5905 = vadd.f32 %v5786, %v5904
    %v5906 = vpop.f32.mrb[0].mxu0
    %5907 = vmatprep.mubr.f32.mxu0 0.0
    %5908 = vmatmul.mubr.f32.gmra.mrb[0].mxu0 %v5364
    %v5909 = vpop.f32.mrb[0].mxu0
    %v5910 = vadd.f32 %v5786, %v5909
    %v5911 = vpop.f32.mrb[0].mxu0
    %5912 = vmatprep.mubr.f32.mxu0 0.0
    %5913 = vmatmul.mubr.f32.gmra.mrb[0].mxu0 %v5369
    %v5914 = vpop.f32.mrb[0].mxu0
    %v5915 = vadd.f32 %v5786, %v5914
    %v5916 = vpop.f32.mrb[0].mxu0
    %5917 = vmatprep.mubr.f32.mxu0 0.0
    %5918 = vmatmul.mubr.f32.gmra.mrb[0].mxu0 %v5374
    %v5919 = vpop.f32.mrb[0].mxu0
    %v5920 = vadd.f32 %v5786, %v5919
    %v5921 = vpop.f32.mrb[0].mxu0
    %5922 = vmatprep.mubr.f32.mxu0 0.0
    %5923 = vmatmul.mubr.f32.gmra.mrb[0].mxu0 %v5379
    %v5924 = vpop.f32.mrb[0].mxu0
    %v5925 = vadd.f32 %v5786, %v5924
    %v5926 = vpop.f32.mrb[0].mxu0
    %5927 = vmatprep.mubr.f32.mxu0 0.0
    %5928 = vmatmul.mubr.f32.gmra.mrb[0].mxu0 %v5384
    %v5929 = vpop.f32.mrb[0].mxu0
    %v5930 = vadd.f32 %v5786, %v5929
    %v5931 = vpop.f32.mrb[0].mxu0
    %5932 = vdwg.mxu0
    %v5934 = vlaneseq
    %v5935 = vshrl.u32 %v5934, 7
    %v5936 = vsub.s32 0, %v5935
    %v5937 = vrot.slane %v5473, %v5936
    %v5939 = vadd.f32 %v5309, %v5937
    %v5940 = vadd.f32 %v5314, %v5937
    %v5941 = vadd.f32 %v5319, %v5937
    %v5942 = vadd.f32 %v5324, %v5937
    %v5943 = vadd.f32 %v5329, %v5937
    %v5944 = vadd.f32 %v5334, %v5937
    %v5945 = vadd.f32 %v5339, %v5937
    %v5946 = vadd.f32 %v5344, %v5937
    %v5948 = vsel %vm888, %v5549, 0
    %v5951 = vsel %vm888, %v5554, 0
    %v5954 = vsel %vm888, %v5559, 0
    %v5957 = vsel %vm888, %v5564, 0
    %v5960 = vsel %vm888, %v5569, 0
    %v5963 = vsel %vm888, %v5574, 0
    %v5966 = vsel %vm888, %v5579, 0
    %v5969 = vsel %vm888, %v5584, 0
    %v5972 = vsel %vm888, %v5702, 0
    %v5975 = vsel %vm888, %v5707, 0
    %v5978 = vsel %vm888, %v5712, 0
    %v5981 = vsel %vm888, %v5717, 0
    %v5984 = vsel %vm888, %v5722, 0
    %v5987 = vsel %vm888, %v5727, 0
    %v5990 = vsel %vm888, %v5732, 0
    %v5993 = vsel %vm888, %v5737, 0
    %5995 = vmatprep.subr.mxu0 0.0
    %5996 = vmatpush1.xpose.msra.mxu0 %v5972
    %5997 = vmatprep.subr.mxu0 0.0
    %5998 = vmatpush1.xpose.msra.mxu0 %v5975
    %5999 = vmatprep.subr.mxu0 0.0
    %6000 = vmatpush1.xpose.msra.mxu0 %v5978
    %6001 = vmatprep.subr.mxu0 0.0
    %6002 = vmatpush1.xpose.msra.mxu0 %v5981
    %6003 = vmatprep.subr.mxu0 0.0
    %6004 = vmatpush1.xpose.msra.mxu0 %v5984
    %6005 = vmatprep.subr.mxu0 0.0
    %6006 = vmatpush1.xpose.msra.mxu0 %v5987
    %6007 = vmatprep.subr.mxu0 0.0
    %6008 = vmatpush1.xpose.msra.mxu0 %v5990
    %6009 = vmatprep.subr.mxu0 0.0
    %6010 = vmatpush1.xpose.msra.mxu0 %v5993
    %6011 = vmatprep.subr.mxu0 0.0
    %6012 = vmatpush1.xpose.msra.mxu0 0.0
    %6013 = vmatprep.subr.mxu0 0.0
    %6014 = vmatpush1.xpose.msra.mxu0 0.0
    %6015 = vmatprep.subr.mxu0 0.0
    %6016 = vmatpush1.xpose.msra.mxu0 0.0
    %6017 = vmatprep.subr.mxu0 0.0
    %6018 = vmatpush1.xpose.msra.mxu0 0.0
    %6019 = vmatprep.subr.mxu0 0.0
    %6020 = vmatpush1.xpose.msra.mxu0 0.0
    %6021 = vmatprep.subr.mxu0 0.0
    %6022 = vmatpush1.xpose.msra.mxu0 0.0
    %6023 = vmatprep.subr.mxu0 0.0
    %6024 = vmatpush1.xpose.msra.mxu0 0.0
    %6025 = vmatprep.subr.mxu0 0.0
    %6026 = vmatpush1.xpose.msra.mxu0 0.0
    %6027 = vmatprep.subr.mxu0 0.0
    %6028 = vmatpush1.xpose.msra.mxu0 0.0
    %6029 = vmatprep.subr.mxu0 0.0
    %6030 = vmatpush1.xpose.msra.mxu0 0.0
    %6031 = vmatprep.subr.mxu0 0.0
    %6032 = vmatpush1.xpose.msra.mxu0 0.0
    %6033 = vmatprep.subr.mxu0 0.0
    %6034 = vmatpush1.xpose.msra.mxu0 0.0
    %6035 = vmatprep.subr.mxu0 0.0
    %6036 = vmatpush1.xpose.msra.mxu0 0.0
    %6037 = vmatprep.subr.mxu0 0.0
    %6038 = vmatpush1.xpose.msra.mxu0 0.0
    %6039 = vmatprep.subr.mxu0 0.0
    %6040 = vmatpush1.xpose.msra.mxu0 0.0
    %6041 = vmatprep.subr.mxu0 0.0
    %6042 = vmatpush1.xpose.msra.mxu0 0.0
    %6043 = vmatprep.subr.mxu0 0.0
    %6044 = vmatpush1.xpose.msra.mxu0 0.0
    %6045 = vmatprep.subr.mxu0 0.0
    %6046 = vmatpush1.xpose.msra.mxu0 0.0
    %6047 = vmatprep.subr.mxu0 0.0
    %6048 = vmatpush1.xpose.msra.mxu0 0.0
    %6049 = vmatprep.subr.mxu0 0.0
    %6050 = vmatpush1.xpose.msra.mxu0 0.0
    %6051 = vmatprep.subr.mxu0 0.0
    %6052 = vmatpush1.xpose.msra.mxu0 0.0
    %6053 = vmatprep.subr.mxu0 0.0
    %6054 = vmatpush1.xpose.msra.mxu0 0.0
    %6055 = vmatprep.subr.mxu0 0.0
    %6056 = vmatpush1.xpose.msra.mxu0 0.0
    %6057 = vmatprep.subr.mxu0 0.0
    %6058 = vmatpush1.xpose.msra.mxu0 0.0
    %6059 = vmatprep.mubr.f32.mxu0 0.0
    %6060 = vmatmul.mubr.f32.gmra.mrb[0].mxu0 %v5948
    %v6061 = vpop.f32.mrb[0].mxu0
    %v6062 = vadd.f32 0.0, %v6061
    %v6063 = vpop.f32.mrb[0].mxu0
    %6064 = vmatprep.mubr.f32.mxu0 0.0
    %6065 = vmatmul.mubr.f32.gmra.mrb[0].mxu0 %v5951
    %v6066 = vpop.f32.mrb[0].mxu0
    %v6067 = vadd.f32 0.0, %v6066
    %v6068 = vpop.f32.mrb[0].mxu0
    %6069 = vmatprep.mubr.f32.mxu0 0.0
    %6070 = vmatmul.mubr.f32.gmra.mrb[0].mxu0 %v5954
    %v6071 = vpop.f32.mrb[0].mxu0
    %v6072 = vadd.f32 0.0, %v6071
    %v6073 = vpop.f32.mrb[0].mxu0
    %6074 = vmatprep.mubr.f32.mxu0 0.0
    %6075 = vmatmul.mubr.f32.gmra.mrb[0].mxu0 %v5957
    %v6076 = vpop.f32.mrb[0].mxu0
    %v6077 = vadd.f32 0.0, %v6076
    %v6078 = vpop.f32.mrb[0].mxu0
    %6079 = vmatprep.mubr.f32.mxu0 0.0
    %6080 = vmatmul.mubr.f32.gmra.mrb[0].mxu0 %v5960
    %v6081 = vpop.f32.mrb[0].mxu0
    %v6082 = vadd.f32 0.0, %v6081
    %v6083 = vpop.f32.mrb[0].mxu0
    %6084 = vmatprep.mubr.f32.mxu0 0.0
    %6085 = vmatmul.mubr.f32.gmra.mrb[0].mxu0 %v5963
    %v6086 = vpop.f32.mrb[0].mxu0
    %v6087 = vadd.f32 0.0, %v6086
    %v6088 = vpop.f32.mrb[0].mxu0
    %6089 = vmatprep.mubr.f32.mxu0 0.0
    %6090 = vmatmul.mubr.f32.gmra.mrb[0].mxu0 %v5966
    %v6091 = vpop.f32.mrb[0].mxu0
    %v6092 = vadd.f32 0.0, %v6091
    %v6093 = vpop.f32.mrb[0].mxu0
    %6094 = vmatprep.mubr.f32.mxu0 0.0
    %6095 = vmatmul.mubr.f32.gmra.mrb[0].mxu0 %v5969
    %v6096 = vpop.f32.mrb[0].mxu0
    %v6097 = vadd.f32 0.0, %v6096
    %v6098 = vpop.f32.mrb[0].mxu0
    %6099 = vdwg.mxu0
    %v6100 = vsel %vm1042, %v6062, -inf
    %6101 = vmax.xlane.f32.xlu0 %v6100
    %v6102 = vpop.xlane.xlu0 %6101
    %v6103 = vsel %vm1042, %v6067, -inf
    %6104 = vmax.xlane.f32.xlu0 %v6103
    %v6105 = vpop.xlane.xlu0 %6104
    %v6106 = vsel %vm1042, %v6072, -inf
    %6107 = vmax.xlane.f32.xlu0 %v6106
    %v6108 = vpop.xlane.xlu0 %6107
    %v6109 = vsel %vm1042, %v6077, -inf
    %6110 = vmax.xlane.f32.xlu0 %v6109
    %v6111 = vpop.xlane.xlu0 %6110
    %v6112 = vsel %vm1042, %v6082, -inf
    %6113 = vmax.xlane.f32.xlu0 %v6112
    %v6114 = vpop.xlane.xlu0 %6113
    %v6115 = vsel %vm1042, %v6087, -inf
    %6116 = vmax.xlane.f32.xlu0 %v6115
    %v6117 = vpop.xlane.xlu0 %6116
    %v6118 = vsel %vm1042, %v6092, -inf
    %6119 = vmax.xlane.f32.xlu0 %v6118
    %v6120 = vpop.xlane.xlu0 %6119
    %v6121 = vsel %vm1042, %v6097, -inf
    %6122 = vmax.xlane.f32.xlu0 %v6121
    %v6123 = vpop.xlane.xlu0 %6122
    %v6124 = vsub.f32 %v6062, %v6102
    %v6125 = vsub.f32 %v6067, %v6105
    %v6126 = vsub.f32 %v6072, %v6108
    %v6127 = vsub.f32 %v6077, %v6111
    %v6128 = vsub.f32 %v6082, %v6114
    %v6129 = vsub.f32 %v6087, %v6117
    %v6130 = vsub.f32 %v6092, %v6120
    %v6131 = vsub.f32 %v6097, %v6123
    %v6132 = vmul.f32 %v6124, 1.442695
    %v6133 = vpow.pop %v6132
    %v6134 = vmul.f32 %v6125, 1.442695
    %v6135 = vpow.pop %v6134
    %v6136 = vmul.f32 %v6126, 1.442695
    %v6137 = vpow.pop %v6136
    %v6138 = vmul.f32 %v6127, 1.442695
    %v6139 = vpow.pop %v6138
    %v6140 = vmul.f32 %v6128, 1.442695
    %v6141 = vpow.pop %v6140
    %v6142 = vmul.f32 %v6129, 1.442695
    %v6143 = vpow.pop %v6142
    %v6144 = vmul.f32 %v6130, 1.442695
    %v6145 = vpow.pop %v6144
    %v6146 = vmul.f32 %v6131, 1.442695
    %v6147 = vpow.pop %v6146
    %v6149 = vsel %vm1042, %v6133, 0
    %v6152 = vsel %vm1042, %v6135, 0
    %v6155 = vsel %vm1042, %v6137, 0
    %v6158 = vsel %vm1042, %v6139, 0
    %v6161 = vsel %vm1042, %v6141, 0
    %v6164 = vsel %vm1042, %v6143, 0
    %v6167 = vsel %vm1042, %v6145, 0
    %v6170 = vsel %vm1042, %v6147, 0
    %6172 = vmatprep.subr.mxu0 0.0
    %6173 = vmatpush1.msra.mxu0 %v5855
    %6174 = vmatprep.subr.mxu0 0.0
    %6175 = vmatpush1.msra.mxu0 %v5860
    %6176 = vmatprep.subr.mxu0 0.0
    %6177 = vmatpush1.msra.mxu0 %v5865
    %6178 = vmatprep.subr.mxu0 0.0
    %6179 = vmatpush1.msra.mxu0 %v5870
    %6180 = vmatprep.subr.mxu0 0.0
    %6181 = vmatpush1.msra.mxu0 %v5875
    %6182 = vmatprep.subr.mxu0 0.0
    %6183 = vmatpush1.msra.mxu0 %v5880
    %6184 = vmatprep.subr.mxu0 0.0
    %6185 = vmatpush1.msra.mxu0 %v5885
    %6186 = vmatprep.subr.mxu0 0.0
    %6187 = vmatpush1.msra.mxu0 %v5890
    %6188 = vmatprep.subr.mxu0 0.0
    %6189 = vmatpush1.msra.mxu0 0.0
    %6190 = vmatprep.subr.mxu0 0.0
    %6191 = vmatpush1.msra.mxu0 0.0
    %6192 = vmatprep.subr.mxu0 0.0
    %6193 = vmatpush1.msra.mxu0 0.0
    %6194 = vmatprep.subr.mxu0 0.0
    %6195 = vmatpush1.msra.mxu0 0.0
    %6196 = vmatprep.subr.mxu0 0.0
    %6197 = vmatpush1.msra.mxu0 0.0
    %6198 = vmatprep.subr.mxu0 0.0
    %6199 = vmatpush1.msra.mxu0 0.0
    %6200 = vmatprep.subr.mxu0 0.0
    %6201 = vmatpush1.msra.mxu0 0.0
    %6202 = vmatprep.subr.mxu0 0.0
    %6203 = vmatpush1.msra.mxu0 0.0
    %6204 = vmatprep.subr.mxu0 0.0
    %6205 = vmatpush1.msra.mxu0 0.0
    %6206 = vmatprep.subr.mxu0 0.0
    %6207 = vmatpush1.msra.mxu0 0.0
    %6208 = vmatprep.subr.mxu0 0.0
    %6209 = vmatpush1.msra.mxu0 0.0
    %6210 = vmatprep.subr.mxu0 0.0
    %6211 = vmatpush1.msra.mxu0 0.0
    %6212 = vmatprep.subr.mxu0 0.0
    %6213 = vmatpush1.msra.mxu0 0.0
    %6214 = vmatprep.subr.mxu0 0.0
    %6215 = vmatpush1.msra.mxu0 0.0
    %6216 = vmatprep.subr.mxu0 0.0
    %6217 = vmatpush1.msra.mxu0 0.0
    %6218 = vmatprep.subr.mxu0 0.0
    %6219 = vmatpush1.msra.mxu0 0.0
    %6220 = vmatprep.subr.mxu0 0.0
    %6221 = vmatpush1.msra.mxu0 0.0
    %6222 = vmatprep.subr.mxu0 0.0
    %6223 = vmatpush1.msra.mxu0 0.0
    %6224 = vmatprep.subr.mxu0 0.0
    %6225 = vmatpush1.msra.mxu0 0.0
    %6226 = vmatprep.subr.mxu0 0.0
    %6227 = vmatpush1.msra.mxu0 0.0
    %6228 = vmatprep.subr.mxu0 0.0
    %6229 = vmatpush1.msra.mxu0 0.0
    %6230 = vmatprep.subr.mxu0 0.0
    %6231 = vmatpush1.msra.mxu0 0.0
    %6232 = vmatprep.subr.mxu0 0.0
    %6233 = vmatpush1.msra.mxu0 0.0
    %6234 = vmatprep.subr.mxu0 0.0
    %6235 = vmatpush1.msra.mxu0 0.0
    %6236 = vmatprep.mubr.f32.mxu0 0.0
    %6237 = vmatmul.mubr.f32.gmra.mrb[0].mxu0 %v6149
    %v6238 = vpop.f32.mrb[0].mxu0
    %v6239 = vadd.f32 0.0, %v6238
    %v6240 = vpop.f32.mrb[0].mxu0
    %6241 = vmatprep.mubr.f32.mxu0 0.0
    %6242 = vmatmul.mubr.f32.gmra.mrb[0].mxu0 %v6152
    %v6243 = vpop.f32.mrb[0].mxu0
    %v6244 = vadd.f32 0.0, %v6243
    %v6245 = vpop.f32.mrb[0].mxu0
    %6246 = vmatprep.mubr.f32.mxu0 0.0
    %6247 = vmatmul.mubr.f32.gmra.mrb[0].mxu0 %v6155
    %v6248 = vpop.f32.mrb[0].mxu0
    %v6249 = vadd.f32 0.0, %v6248
    %v6250 = vpop.f32.mrb[0].mxu0
    %6251 = vmatprep.mubr.f32.mxu0 0.0
    %6252 = vmatmul.mubr.f32.gmra.mrb[0].mxu0 %v6158
    %v6253 = vpop.f32.mrb[0].mxu0
    %v6254 = vadd.f32 0.0, %v6253
    %v6255 = vpop.f32.mrb[0].mxu0
    %6256 = vmatprep.mubr.f32.mxu0 0.0
    %6257 = vmatmul.mubr.f32.gmra.mrb[0].mxu0 %v6161
    %v6258 = vpop.f32.mrb[0].mxu0
    %v6259 = vadd.f32 0.0, %v6258
    %v6260 = vpop.f32.mrb[0].mxu0
    %6261 = vmatprep.mubr.f32.mxu0 0.0
    %6262 = vmatmul.mubr.f32.gmra.mrb[0].mxu0 %v6164
    %v6263 = vpop.f32.mrb[0].mxu0
    %v6264 = vadd.f32 0.0, %v6263
    %v6265 = vpop.f32.mrb[0].mxu0
    %6266 = vmatprep.mubr.f32.mxu0 0.0
    %6267 = vmatmul.mubr.f32.gmra.mrb[0].mxu0 %v6167
    %v6268 = vpop.f32.mrb[0].mxu0
    %v6269 = vadd.f32 0.0, %v6268
    %v6270 = vpop.f32.mrb[0].mxu0
    %6271 = vmatprep.mubr.f32.mxu0 0.0
    %6272 = vmatmul.mubr.f32.gmra.mrb[0].mxu0 %v6170
    %v6273 = vpop.f32.mrb[0].mxu0
    %v6274 = vadd.f32 0.0, %v6273
    %v6275 = vpop.f32.mrb[0].mxu0
    %6276 = vdwg.mxu0
    %v6277 = vsel %vm1042, %v6133, 0.0
    %6278 = vadd.xlane.f32.xlu0 %v6277
    %v6279 = vpop.xlane.xlu0 %6278
    %v6280 = vsel %vm1042, %v6135, 0.0
    %6281 = vadd.xlane.f32.xlu0 %v6280
    %v6282 = vpop.xlane.xlu0 %6281
    %v6283 = vsel %vm1042, %v6137, 0.0
    %6284 = vadd.xlane.f32.xlu0 %v6283
    %v6285 = vpop.xlane.xlu0 %6284
    %v6286 = vsel %vm1042, %v6139, 0.0
    %6287 = vadd.xlane.f32.xlu0 %v6286
    %v6288 = vpop.xlane.xlu0 %6287
    %v6289 = vsel %vm1042, %v6141, 0.0
    %6290 = vadd.xlane.f32.xlu0 %v6289
    %v6291 = vpop.xlane.xlu0 %6290
    %v6292 = vsel %vm1042, %v6143, 0.0
    %6293 = vadd.xlane.f32.xlu0 %v6292
    %v6294 = vpop.xlane.xlu0 %6293
    %v6295 = vsel %vm1042, %v6145, 0.0
    %6296 = vadd.xlane.f32.xlu0 %v6295
    %v6297 = vpop.xlane.xlu0 %6296
    %v6298 = vsel %vm1042, %v6147, 0.0
    %6299 = vadd.xlane.f32.xlu0 %v6298
    %v6300 = vpop.xlane.xlu0 %6299
    %v6301 = vrcp.pop %v6279
    %v6302 = vrcp.pop %v6282
    %v6303 = vrcp.pop %v6285
    %v6304 = vrcp.pop %v6288
    %v6305 = vrcp.pop %v6291
    %v6306 = vrcp.pop %v6294
    %v6307 = vrcp.pop %v6297
    %v6308 = vrcp.pop %v6300
    %v6309 = vmul.f32 %v6239, %v6301
    %v6310 = vmul.f32 %v6244, %v6302
    %v6311 = vmul.f32 %v6249, %v6303
    %v6312 = vmul.f32 %v6254, %v6304
    %v6313 = vmul.f32 %v6259, %v6305
    %v6314 = vmul.f32 %v6264, %v6306
    %v6315 = vmul.f32 %v6269, %v6307
    %v6316 = vmul.f32 %v6274, %v6308
    %v6318 = vsel %vm888, %v6309, 0
    %v6321 = vsel %vm888, %v6310, 0
    %v6324 = vsel %vm888, %v6311, 0
    %v6327 = vsel %vm888, %v6312, 0
    %v6330 = vsel %vm888, %v6313, 0
    %v6333 = vsel %vm888, %v6314, 0
    %v6336 = vsel %vm888, %v6315, 0
    %v6339 = vsel %vm888, %v6316, 0
    %6341 = vmatprep.subr.mxu0 0.0
    %6342 = vmatpush1.msra.mxu0 %v5439
    %6343 = vmatprep.subr.mxu0 0.0
    %6344 = vmatpush1.msra.mxu0 %v5440
    %6345 = vmatprep.subr.mxu0 0.0
    %6346 = vmatpush1.msra.mxu0 %v5441
    %6347 = vmatprep.subr.mxu0 0.0
    %6348 = vmatpush1.msra.mxu0 %v5442
    %6349 = vmatprep.subr.mxu0 0.0
    %6350 = vmatpush1.msra.mxu0 0.0
    %6351 = vmatprep.subr.mxu0 0.0
    %6352 = vmatpush1.msra.mxu0 0.0
    %6353 = vmatprep.subr.mxu0 0.0
    %6354 = vmatpush1.msra.mxu0 0.0
    %6355 = vmatprep.subr.mxu0 0.0
    %6356 = vmatpush1.msra.mxu0 0.0
    %6357 = vmatprep.subr.mxu0 0.0
    %6358 = vmatpush1.msra.mxu0 0.0
    %6359 = vmatprep.subr.mxu0 0.0
    %6360 = vmatpush1.msra.mxu0 0.0
    %6361 = vmatprep.subr.mxu0 0.0
    %6362 = vmatpush1.msra.mxu0 0.0
    %6363 = vmatprep.subr.mxu0 0.0
    %6364 = vmatpush1.msra.mxu0 0.0
    %6365 = vmatprep.subr.mxu0 0.0
    %6366 = vmatpush1.msra.mxu0 0.0
    %6367 = vmatprep.subr.mxu0 0.0
    %6368 = vmatpush1.msra.mxu0 0.0
    %6369 = vmatprep.subr.mxu0 0.0
    %6370 = vmatpush1.msra.mxu0 0.0
    %6371 = vmatprep.subr.mxu0 0.0
    %6372 = vmatpush1.msra.mxu0 0.0
    %6373 = vmatprep.subr.mxu0 0.0
    %6374 = vmatpush1.msra.mxu0 0.0
    %6375 = vmatprep.subr.mxu0 0.0
    %6376 = vmatpush1.msra.mxu0 0.0
    %6377 = vmatprep.subr.mxu0 0.0
    %6378 = vmatpush1.msra.mxu0 0.0
    %6379 = vmatprep.subr.mxu0 0.0
    %6380 = vmatpush1.msra.mxu0 0.0
    %6381 = vmatprep.subr.mxu0 0.0
    %6382 = vmatpush1.msra.mxu0 0.0
    %6383 = vmatprep.subr.mxu0 0.0
    %6384 = vmatpush1.msra.mxu0 0.0
    %6385 = vmatprep.subr.mxu0 0.0
    %6386 = vmatpush1.msra.mxu0 0.0
    %6387 = vmatprep.subr.mxu0 0.0
    %6388 = vmatpush1.msra.mxu0 0.0
    %6389 = vmatprep.subr.mxu0 0.0
    %6390 = vmatpush1.msra.mxu0 0.0
    %6391 = vmatprep.subr.mxu0 0.0
    %6392 = vmatpush1.msra.mxu0 0.0
    %6393 = vmatprep.subr.mxu0 0.0
    %6394 = vmatpush1.msra.mxu0 0.0
    %6395 = vmatprep.subr.mxu0 0.0
    %6396 = vmatpush1.msra.mxu0 0.0
    %6397 = vmatprep.subr.mxu0 0.0
    %6398 = vmatpush1.msra.mxu0 0.0
    %6399 = vmatprep.subr.mxu0 0.0
    %6400 = vmatpush1.msra.mxu0 0.0
    %6401 = vmatprep.subr.mxu0 0.0
    %6402 = vmatpush1.msra.mxu0 0.0
    %6403 = vmatprep.subr.mxu0 0.0
    %6404 = vmatpush1.msra.mxu0 0.0
    %6405 = vmatprep.mubr.f32.mxu0 0.0
    %6406 = vmatmul.mubr.f32.gmra.mrb[0].mxu0 %v6318
    %v6407 = vpop.f32.mrb[0].mxu0
    %v6408 = vadd.f32 0.0, %v6407
    %v6409 = vpop.f32.mrb[0].mxu0
    %6410 = vmatprep.mubr.f32.mxu0 0.0
    %6411 = vmatmul.mubr.f32.gmra.mrb[0].mxu0 %v6321
    %v6412 = vpop.f32.mrb[0].mxu0
    %v6413 = vadd.f32 0.0, %v6412
    %v6414 = vpop.f32.mrb[0].mxu0
    %6415 = vmatprep.mubr.f32.mxu0 0.0
    %6416 = vmatmul.mubr.f32.gmra.mrb[0].mxu0 %v6324
    %v6417 = vpop.f32.mrb[0].mxu0
    %v6418 = vadd.f32 0.0, %v6417
    %v6419 = vpop.f32.mrb[0].mxu0
    %6420 = vmatprep.mubr.f32.mxu0 0.0
    %6421 = vmatmul.mubr.f32.gmra.mrb[0].mxu0 %v6327
    %v6422 = vpop.f32.mrb[0].mxu0
    %v6423 = vadd.f32 0.0, %v6422
    %v6424 = vpop.f32.mrb[0].mxu0
    %6425 = vmatprep.mubr.f32.mxu0 0.0
    %6426 = vmatmul.mubr.f32.gmra.mrb[0].mxu0 %v6330
    %v6427 = vpop.f32.mrb[0].mxu0
    %v6428 = vadd.f32 0.0, %v6427
    %v6429 = vpop.f32.mrb[0].mxu0
    %6430 = vmatprep.mubr.f32.mxu0 0.0
    %6431 = vmatmul.mubr.f32.gmra.mrb[0].mxu0 %v6333
    %v6432 = vpop.f32.mrb[0].mxu0
    %v6433 = vadd.f32 0.0, %v6432
    %v6434 = vpop.f32.mrb[0].mxu0
    %6435 = vmatprep.mubr.f32.mxu0 0.0
    %6436 = vmatmul.mubr.f32.gmra.mrb[0].mxu0 %v6336
    %v6437 = vpop.f32.mrb[0].mxu0
    %v6438 = vadd.f32 0.0, %v6437
    %v6439 = vpop.f32.mrb[0].mxu0
    %6440 = vmatprep.mubr.f32.mxu0 0.0
    %6441 = vmatmul.mubr.f32.gmra.mrb[0].mxu0 %v6339
    %v6442 = vpop.f32.mrb[0].mxu0
    %v6443 = vadd.f32 0.0, %v6442
    %v6444 = vpop.f32.mrb[0].mxu0
    %6445 = vdwg.mxu0
    %v6446 = vadd.f32 %v5939, %v6408
    %v6447 = vadd.f32 %v5940, %v6413
    %v6448 = vadd.f32 %v5941, %v6418
    %v6449 = vadd.f32 %v5942, %v6423
    %v6450 = vadd.f32 %v5943, %v6428
    %v6451 = vadd.f32 %v5944, %v6433
    %v6452 = vadd.f32 %v5945, %v6438
    %v6453 = vadd.f32 %v5946, %v6443
    %6454 = vrot.lane.b32.xlu0 %v5549, 96
    %v6455 = vpop.permute.xlu0 %6454
    %6456 = vrot.lane.b32.xlu0 %v5554, 96
    %v6457 = vpop.permute.xlu0 %6456
    %6458 = vrot.lane.b32.xlu0 %v5559, 96
    %v6459 = vpop.permute.xlu0 %6458
    %6460 = vrot.lane.b32.xlu0 %v5564, 96
    %v6461 = vpop.permute.xlu0 %6460
    %6462 = vrot.lane.b32.xlu0 %v5569, 96
    %v6463 = vpop.permute.xlu0 %6462
    %6464 = vrot.lane.b32.xlu0 %v5574, 96
    %v6465 = vpop.permute.xlu0 %6464
    %6466 = vrot.lane.b32.xlu0 %v5579, 96
    %v6467 = vpop.permute.xlu0 %6466
    %6468 = vrot.lane.b32.xlu0 %v5584, 96
    %v6469 = vpop.permute.xlu0 %6468
    %6470 = vrot.lane.b32.xlu0 %v5702, 96
    %v6471 = vpop.permute.xlu0 %6470
    %6472 = vrot.lane.b32.xlu0 %v5707, 96
    %v6473 = vpop.permute.xlu0 %6472
    %6474 = vrot.lane.b32.xlu0 %v5712, 96
    %v6475 = vpop.permute.xlu0 %6474
    %6476 = vrot.lane.b32.xlu0 %v5717, 96
    %v6477 = vpop.permute.xlu0 %6476
    %6478 = vrot.lane.b32.xlu0 %v5722, 96
    %v6479 = vpop.permute.xlu0 %6478
    %6480 = vrot.lane.b32.xlu0 %v5727, 96
    %v6481 = vpop.permute.xlu0 %6480
    %6482 = vrot.lane.b32.xlu0 %v5732, 96
    %v6483 = vpop.permute.xlu0 %6482
    %6484 = vrot.lane.b32.xlu0 %v5737, 96
    %v6485 = vpop.permute.xlu0 %6484
    %v6486 = vsel %vm888, %v6455, 0
    %v6488 = vsel %vm888, %v6457, 0
    %v6490 = vsel %vm888, %v6459, 0
    %v6492 = vsel %vm888, %v6461, 0
    %v6494 = vsel %vm888, %v6463, 0
    %v6496 = vsel %vm888, %v6465, 0
    %v6498 = vsel %vm888, %v6467, 0
    %v6500 = vsel %vm888, %v6469, 0
    %v6502 = vsel %vm888, %v6471, 0
    %v6504 = vsel %vm888, %v6473, 0
    %v6506 = vsel %vm888, %v6475, 0
    %v6508 = vsel %vm888, %v6477, 0
    %v6510 = vsel %vm888, %v6479, 0
    %v6512 = vsel %vm888, %v6481, 0
    %v6514 = vsel %vm888, %v6483, 0
    %v6516 = vsel %vm888, %v6485, 0
    %6518 = vmatprep.subr.mxu0 0.0
    %6519 = vmatpush1.xpose.msra.mxu0 %v6502
    %6520 = vmatprep.subr.mxu0 0.0
    %6521 = vmatpush1.xpose.msra.mxu0 %v6504
    %6522 = vmatprep.subr.mxu0 0.0
    %6523 = vmatpush1.xpose.msra.mxu0 %v6506
    %6524 = vmatprep.subr.mxu0 0.0
    %6525 = vmatpush1.xpose.msra.mxu0 %v6508
    %6526 = vmatprep.subr.mxu0 0.0
    %6527 = vmatpush1.xpose.msra.mxu0 %v6510
    %6528 = vmatprep.subr.mxu0 0.0
    %6529 = vmatpush1.xpose.msra.mxu0 %v6512
    %6530 = vmatprep.subr.mxu0 0.0
    %6531 = vmatpush1.xpose.msra.mxu0 %v6514
    %6532 = vmatprep.subr.mxu0 0.0
    %6533 = vmatpush1.xpose.msra.mxu0 %v6516
    %6534 = vmatprep.subr.mxu0 0.0
    %6535 = vmatpush1.xpose.msra.mxu0 0.0
    %6536 = vmatprep.subr.mxu0 0.0
    %6537 = vmatpush1.xpose.msra.mxu0 0.0
    %6538 = vmatprep.subr.mxu0 0.0
    %6539 = vmatpush1.xpose.msra.mxu0 0.0
    %6540 = vmatprep.subr.mxu0 0.0
    %6541 = vmatpush1.xpose.msra.mxu0 0.0
    %6542 = vmatprep.subr.mxu0 0.0
    %6543 = vmatpush1.xpose.msra.mxu0 0.0
    %6544 = vmatprep.subr.mxu0 0.0
    %6545 = vmatpush1.xpose.msra.mxu0 0.0
    %6546 = vmatprep.subr.mxu0 0.0
    %6547 = vmatpush1.xpose.msra.mxu0 0.0
    %6548 = vmatprep.subr.mxu0 0.0
    %6549 = vmatpush1.xpose.msra.mxu0 0.0
    %6550 = vmatprep.subr.mxu0 0.0
    %6551 = vmatpush1.xpose.msra.mxu0 0.0
    %6552 = vmatprep.subr.mxu0 0.0
    %6553 = vmatpush1.xpose.msra.mxu0 0.0
    %6554 = vmatprep.subr.mxu0 0.0
    %6555 = vmatpush1.xpose.msra.mxu0 0.0
    %6556 = vmatprep.subr.mxu0 0.0
    %6557 = vmatpush1.xpose.msra.mxu0 0.0
    %6558 = vmatprep.subr.mxu0 0.0
    %6559 = vmatpush1.xpose.msra.mxu0 0.0
    %6560 = vmatprep.subr.mxu0 0.0
    %6561 = vmatpush1.xpose.msra.mxu0 0.0
    %6562 = vmatprep.subr.mxu0 0.0
    %6563 = vmatpush1.xpose.msra.mxu0 0.0
    %6564 = vmatprep.subr.mxu0 0.0
    %6565 = vmatpush1.xpose.msra.mxu0 0.0
    %6566 = vmatprep.subr.mxu0 0.0
    %6567 = vmatpush1.xpose.msra.mxu0 0.0
    %6568 = vmatprep.subr.mxu0 0.0
    %6569 = vmatpush1.xpose.msra.mxu0 0.0
    %6570 = vmatprep.subr.mxu0 0.0
    %6571 = vmatpush1.xpose.msra.mxu0 0.0
    %6572 = vmatprep.subr.mxu0 0.0
    %6573 = vmatpush1.xpose.msra.mxu0 0.0
    %6574 = vmatprep.subr.mxu0 0.0
    %6575 = vmatpush1.xpose.msra.mxu0 0.0
    %6576 = vmatprep.subr.mxu0 0.0
    %6577 = vmatpush1.xpose.msra.mxu0 0.0
    %6578 = vmatprep.subr.mxu0 0.0
    %6579 = vmatpush1.xpose.msra.mxu0 0.0
    %6580 = vmatprep.subr.mxu0 0.0
    %6581 = vmatpush1.xpose.msra.mxu0 0.0
    %6582 = vmatprep.mubr.f32.mxu0 0.0
    %6583 = vmatmul.mubr.f32.gmra.mrb[0].mxu0 %v6486
    %v6584 = vpop.f32.mrb[0].mxu0
    %v6585 = vadd.f32 0.0, %v6584
    %v6586 = vpop.f32.mrb[0].mxu0
    %6587 = vmatprep.mubr.f32.mxu0 0.0
    %6588 = vmatmul.mubr.f32.gmra.mrb[0].mxu0 %v6488
    %v6589 = vpop.f32.mrb[0].mxu0
    %v6590 = vadd.f32 0.0, %v6589
    %v6591 = vpop.f32.mrb[0].mxu0
    %6592 = vmatprep.mubr.f32.mxu0 0.0
    %6593 = vmatmul.mubr.f32.gmra.mrb[0].mxu0 %v6490
    %v6594 = vpop.f32.mrb[0].mxu0
    %v6595 = vadd.f32 0.0, %v6594
    %v6596 = vpop.f32.mrb[0].mxu0
    %6597 = vmatprep.mubr.f32.mxu0 0.0
    %6598 = vmatmul.mubr.f32.gmra.mrb[0].mxu0 %v6492
    %v6599 = vpop.f32.mrb[0].mxu0
    %v6600 = vadd.f32 0.0, %v6599
    %v6601 = vpop.f32.mrb[0].mxu0
    %6602 = vmatprep.mubr.f32.mxu0 0.0
    %6603 = vmatmul.mubr.f32.gmra.mrb[0].mxu0 %v6494
    %v6604 = vpop.f32.mrb[0].mxu0
    %v6605 = vadd.f32 0.0, %v6604
    %v6606 = vpop.f32.mrb[0].mxu0
    %6607 = vmatprep.mubr.f32.mxu0 0.0
    %6608 = vmatmul.mubr.f32.gmra.mrb[0].mxu0 %v6496
    %v6609 = vpop.f32.mrb[0].mxu0
    %v6610 = vadd.f32 0.0, %v6609
    %v6611 = vpop.f32.mrb[0].mxu0
    %6612 = vmatprep.mubr.f32.mxu0 0.0
    %6613 = vmatmul.mubr.f32.gmra.mrb[0].mxu0 %v6498
    %v6614 = vpop.f32.mrb[0].mxu0
    %v6615 = vadd.f32 0.0, %v6614
    %v6616 = vpop.f32.mrb[0].mxu0
    %6617 = vmatprep.mubr.f32.mxu0 0.0
    %6618 = vmatmul.mubr.f32.gmra.mrb[0].mxu0 %v6500
    %v6619 = vpop.f32.mrb[0].mxu0
    %v6620 = vadd.f32 0.0, %v6619
    %v6621 = vpop.f32.mrb[0].mxu0
    %6622 = vdwg.mxu0
    %v6623 = vsel %vm1042, %v6585, -inf
    %6624 = vmax.xlane.f32.xlu0 %v6623
    %v6625 = vpop.xlane.xlu0 %6624
    %v6626 = vsel %vm1042, %v6590, -inf
    %6627 = vmax.xlane.f32.xlu0 %v6626
    %v6628 = vpop.xlane.xlu0 %6627
    %v6629 = vsel %vm1042, %v6595, -inf
    %6630 = vmax.xlane.f32.xlu0 %v6629
    %v6631 = vpop.xlane.xlu0 %6630
    %v6632 = vsel %vm1042, %v6600, -inf
    %6633 = vmax.xlane.f32.xlu0 %v6632
    %v6634 = vpop.xlane.xlu0 %6633
    %v6635 = vsel %vm1042, %v6605, -inf
    %6636 = vmax.xlane.f32.xlu0 %v6635
    %v6637 = vpop.xlane.xlu0 %6636
    %v6638 = vsel %vm1042, %v6610, -inf
    %6639 = vmax.xlane.f32.xlu0 %v6638
    %v6640 = vpop.xlane.xlu0 %6639
    %v6641 = vsel %vm1042, %v6615, -inf
    %6642 = vmax.xlane.f32.xlu0 %v6641
    %v6643 = vpop.xlane.xlu0 %6642
    %v6644 = vsel %vm1042, %v6620, -inf
    %6645 = vmax.xlane.f32.xlu0 %v6644
    %v6646 = vpop.xlane.xlu0 %6645
    %v6647 = vsub.f32 %v6585, %v6625
    %v6648 = vsub.f32 %v6590, %v6628
    %v6649 = vsub.f32 %v6595, %v6631
    %v6650 = vsub.f32 %v6600, %v6634
    %v6651 = vsub.f32 %v6605, %v6637
    %v6652 = vsub.f32 %v6610, %v6640
    %v6653 = vsub.f32 %v6615, %v6643
    %v6654 = vsub.f32 %v6620, %v6646
    %v6655 = vmul.f32 %v6647, 1.442695
    %v6656 = vpow.pop %v6655
    %v6657 = vmul.f32 %v6648, 1.442695
    %v6658 = vpow.pop %v6657
    %v6659 = vmul.f32 %v6649, 1.442695
    %v6660 = vpow.pop %v6659
    %v6661 = vmul.f32 %v6650, 1.442695
    %v6662 = vpow.pop %v6661
    %v6663 = vmul.f32 %v6651, 1.442695
    %v6664 = vpow.pop %v6663
    %v6665 = vmul.f32 %v6652, 1.442695
    %v6666 = vpow.pop %v6665
    %v6667 = vmul.f32 %v6653, 1.442695
    %v6668 = vpow.pop %v6667
    %v6669 = vmul.f32 %v6654, 1.442695
    %v6670 = vpow.pop %v6669
    %6679 = vrot.lane.b32.xlu0 %v5855, 96
    %v6680 = vpop.permute.xlu0 %6679
    %6681 = vrot.lane.b32.xlu0 %v5860, 96
    %v6682 = vpop.permute.xlu0 %6681
    %6683 = vrot.lane.b32.xlu0 %v5865, 96
    %v6684 = vpop.permute.xlu0 %6683
    %6685 = vrot.lane.b32.xlu0 %v5870, 96
    %v6686 = vpop.permute.xlu0 %6685
    %6687 = vrot.lane.b32.xlu0 %v5875, 96
    %v6688 = vpop.permute.xlu0 %6687
    %6689 = vrot.lane.b32.xlu0 %v5880, 96
    %v6690 = vpop.permute.xlu0 %6689
    %6691 = vrot.lane.b32.xlu0 %v5885, 96
    %v6692 = vpop.permute.xlu0 %6691
    %6693 = vrot.lane.b32.xlu0 %v5890, 96
    %v6694 = vpop.permute.xlu0 %6693
    %v6704 = vsel %vm1042, %v6656, 0
    %v6707 = vsel %vm1042, %v6658, 0
    %v6710 = vsel %vm1042, %v6660, 0
    %v6713 = vsel %vm1042, %v6662, 0
    %v6716 = vsel %vm1042, %v6664, 0
    %v6719 = vsel %vm1042, %v6666, 0
    %v6722 = vsel %vm1042, %v6668, 0
    %v6725 = vsel %vm1042, %v6670, 0
    %6727 = vmatprep.subr.mxu0 0.0
    %6728 = vmatpush1.msra.mxu0 %v6680
    %6729 = vmatprep.subr.mxu0 0.0
    %6730 = vmatpush1.msra.mxu0 %v6682
    %6731 = vmatprep.subr.mxu0 0.0
    %6732 = vmatpush1.msra.mxu0 %v6684
    %6733 = vmatprep.subr.mxu0 0.0
    %6734 = vmatpush1.msra.mxu0 %v6686
    %6735 = vmatprep.subr.mxu0 0.0
    %6736 = vmatpush1.msra.mxu0 %v6688
    %6737 = vmatprep.subr.mxu0 0.0
    %6738 = vmatpush1.msra.mxu0 %v6690
    %6739 = vmatprep.subr.mxu0 0.0
    %6740 = vmatpush1.msra.mxu0 %v6692
    %6741 = vmatprep.subr.mxu0 0.0
    %6742 = vmatpush1.msra.mxu0 %v6694
    %6743 = vmatprep.subr.mxu0 0.0
    %6744 = vmatpush1.msra.mxu0 0.0
    %6745 = vmatprep.subr.mxu0 0.0
    %6746 = vmatpush1.msra.mxu0 0.0
    %6747 = vmatprep.subr.mxu0 0.0
    %6748 = vmatpush1.msra.mxu0 0.0
    %6749 = vmatprep.subr.mxu0 0.0
    %6750 = vmatpush1.msra.mxu0 0.0
    %6751 = vmatprep.subr.mxu0 0.0
    %6752 = vmatpush1.msra.mxu0 0.0
    %6753 = vmatprep.subr.mxu0 0.0
    %6754 = vmatpush1.msra.mxu0 0.0
    %6755 = vmatprep.subr.mxu0 0.0
    %6756 = vmatpush1.msra.mxu0 0.0
    %6757 = vmatprep.subr.mxu0 0.0
    %6758 = vmatpush1.msra.mxu0 0.0
    %6759 = vmatprep.subr.mxu0 0.0
    %6760 = vmatpush1.msra.mxu0 0.0
    %6761 = vmatprep.subr.mxu0 0.0
    %6762 = vmatpush1.msra.mxu0 0.0
    %6763 = vmatprep.subr.mxu0 0.0
    %6764 = vmatpush1.msra.mxu0 0.0
    %6765 = vmatprep.subr.mxu0 0.0
    %6766 = vmatpush1.msra.mxu0 0.0
    %6767 = vmatprep.subr.mxu0 0.0
    %6768 = vmatpush1.msra.mxu0 0.0
    %6769 = vmatprep.subr.mxu0 0.0
    %6770 = vmatpush1.msra.mxu0 0.0
    %6771 = vmatprep.subr.mxu0 0.0
    %6772 = vmatpush1.msra.mxu0 0.0
    %6773 = vmatprep.subr.mxu0 0.0
    %6774 = vmatpush1.msra.mxu0 0.0
    %6775 = vmatprep.subr.mxu0 0.0
    %6776 = vmatpush1.msra.mxu0 0.0
    %6777 = vmatprep.subr.mxu0 0.0
    %6778 = vmatpush1.msra.mxu0 0.0
    %6779 = vmatprep.subr.mxu0 0.0
    %6780 = vmatpush1.msra.mxu0 0.0
    %6781 = vmatprep.subr.mxu0 0.0
    %6782 = vmatpush1.msra.mxu0 0.0
    %6783 = vmatprep.subr.mxu0 0.0
    %6784 = vmatpush1.msra.mxu0 0.0
    %6785 = vmatprep.subr.mxu0 0.0
    %6786 = vmatpush1.msra.mxu0 0.0
    %6787 = vmatprep.subr.mxu0 0.0
    %6788 = vmatpush1.msra.mxu0 0.0
    %6789 = vmatprep.subr.mxu0 0.0
    %6790 = vmatpush1.msra.mxu0 0.0
    %6791 = vmatprep.mubr.f32.mxu0 0.0
    %6792 = vmatmul.mubr.f32.gmra.mrb[0].mxu0 %v6704
    %v6793 = vpop.f32.mrb[0].mxu0
    %v6794 = vadd.f32 0.0, %v6793
    %v6795 = vpop.f32.mrb[0].mxu0
    %6796 = vmatprep.mubr.f32.mxu0 0.0
    %6797 = vmatmul.mubr.f32.gmra.mrb[0].mxu0 %v6707
    %v6798 = vpop.f32.mrb[0].mxu0
    %v6799 = vadd.f32 0.0, %v6798
    %v6800 = vpop.f32.mrb[0].mxu0
    %6801 = vmatprep.mubr.f32.mxu0 0.0
    %6802 = vmatmul.mubr.f32.gmra.mrb[0].mxu0 %v6710
    %v6803 = vpop.f32.mrb[0].mxu0
    %v6804 = vadd.f32 0.0, %v6803
    %v6805 = vpop.f32.mrb[0].mxu0
    %6806 = vmatprep.mubr.f32.mxu0 0.0
    %6807 = vmatmul.mubr.f32.gmra.mrb[0].mxu0 %v6713
    %v6808 = vpop.f32.mrb[0].mxu0
    %v6809 = vadd.f32 0.0, %v6808
    %v6810 = vpop.f32.mrb[0].mxu0
    %6811 = vmatprep.mubr.f32.mxu0 0.0
    %6812 = vmatmul.mubr.f32.gmra.mrb[0].mxu0 %v6716
    %v6813 = vpop.f32.mrb[0].mxu0
    %v6814 = vadd.f32 0.0, %v6813
    %v6815 = vpop.f32.mrb[0].mxu0
    %6816 = vmatprep.mubr.f32.mxu0 0.0
    %6817 = vmatmul.mubr.f32.gmra.mrb[0].mxu0 %v6719
    %v6818 = vpop.f32.mrb[0].mxu0
    %v6819 = vadd.f32 0.0, %v6818
    %v6820 = vpop.f32.mrb[0].mxu0
    %6821 = vmatprep.mubr.f32.mxu0 0.0
    %6822 = vmatmul.mubr.f32.gmra.mrb[0].mxu0 %v6722
    %v6823 = vpop.f32.mrb[0].mxu0
    %v6824 = vadd.f32 0.0, %v6823
    %v6825 = vpop.f32.mrb[0].mxu0
    %6826 = vmatprep.mubr.f32.mxu0 0.0
    %6827 = vmatmul.mubr.f32.gmra.mrb[0].mxu0 %v6725
    %v6828 = vpop.f32.mrb[0].mxu0
    %v6829 = vadd.f32 0.0, %v6828
    %v6830 = vpop.f32.mrb[0].mxu0
    %6831 = vdwg.mxu0
    %v6832 = vsel %vm1042, %v6656, 0.0
    %6833 = vadd.xlane.f32.xlu0 %v6832
    %v6834 = vpop.xlane.xlu0 %6833
    %v6835 = vsel %vm1042, %v6658, 0.0
    %6836 = vadd.xlane.f32.xlu0 %v6835
    %v6837 = vpop.xlane.xlu0 %6836
    %v6838 = vsel %vm1042, %v6660, 0.0
    %6839 = vadd.xlane.f32.xlu0 %v6838
    %v6840 = vpop.xlane.xlu0 %6839
    %v6841 = vsel %vm1042, %v6662, 0.0
    %6842 = vadd.xlane.f32.xlu0 %v6841
    %v6843 = vpop.xlane.xlu0 %6842
    %v6844 = vsel %vm1042, %v6664, 0.0
    %6845 = vadd.xlane.f32.xlu0 %v6844
    %v6846 = vpop.xlane.xlu0 %6845
    %v6847 = vsel %vm1042, %v6666, 0.0
    %6848 = vadd.xlane.f32.xlu0 %v6847
    %v6849 = vpop.xlane.xlu0 %6848
    %v6850 = vsel %vm1042, %v6668, 0.0
    %6851 = vadd.xlane.f32.xlu0 %v6850
    %v6852 = vpop.xlane.xlu0 %6851
    %v6853 = vsel %vm1042, %v6670, 0.0
    %6854 = vadd.xlane.f32.xlu0 %v6853
    %v6855 = vpop.xlane.xlu0 %6854
    %v6856 = vrcp.pop %v6834
    %v6857 = vrcp.pop %v6837
    %v6858 = vrcp.pop %v6840
    %v6859 = vrcp.pop %v6843
    %v6860 = vrcp.pop %v6846
    %v6861 = vrcp.pop %v6849
    %v6862 = vrcp.pop %v6852
    %v6863 = vrcp.pop %v6855
    %v6864 = vmul.f32 %v6794, %v6856
    %v6865 = vmul.f32 %v6799, %v6857
    %v6866 = vmul.f32 %v6804, %v6858
    %v6867 = vmul.f32 %v6809, %v6859
    %v6868 = vmul.f32 %v6814, %v6860
    %v6869 = vmul.f32 %v6819, %v6861
    %v6870 = vmul.f32 %v6824, %v6862
    %v6871 = vmul.f32 %v6829, %v6863
    %v6873 = vsel %vm888, %v6864, 0
    %v6876 = vsel %vm888, %v6865, 0
    %v6879 = vsel %vm888, %v6866, 0
    %v6882 = vsel %vm888, %v6867, 0
    %v6885 = vsel %vm888, %v6868, 0
    %v6888 = vsel %vm888, %v6869, 0
    %v6891 = vsel %vm888, %v6870, 0
    %v6894 = vsel %vm888, %v6871, 0
    %6896 = vmatprep.subr.mxu0 0.0
    %6897 = vmatpush1.msra.mxu0 %v5443
    %6898 = vmatprep.subr.mxu0 0.0
    %6899 = vmatpush1.msra.mxu0 %v5444
    %6900 = vmatprep.subr.mxu0 0.0
    %6901 = vmatpush1.msra.mxu0 %v5445
    %6902 = vmatprep.subr.mxu0 0.0
    %6903 = vmatpush1.msra.mxu0 %v5446
    %6904 = vmatprep.subr.mxu0 0.0
    %6905 = vmatpush1.msra.mxu0 0.0
    %6906 = vmatprep.subr.mxu0 0.0
    %6907 = vmatpush1.msra.mxu0 0.0
    %6908 = vmatprep.subr.mxu0 0.0
    %6909 = vmatpush1.msra.mxu0 0.0
    %6910 = vmatprep.subr.mxu0 0.0
    %6911 = vmatpush1.msra.mxu0 0.0
    %6912 = vmatprep.subr.mxu0 0.0
    %6913 = vmatpush1.msra.mxu0 0.0
    %6914 = vmatprep.subr.mxu0 0.0
    %6915 = vmatpush1.msra.mxu0 0.0
    %6916 = vmatprep.subr.mxu0 0.0
    %6917 = vmatpush1.msra.mxu0 0.0
    %6918 = vmatprep.subr.mxu0 0.0
    %6919 = vmatpush1.msra.mxu0 0.0
    %6920 = vmatprep.subr.mxu0 0.0
    %6921 = vmatpush1.msra.mxu0 0.0
    %6922 = vmatprep.subr.mxu0 0.0
    %6923 = vmatpush1.msra.mxu0 0.0
    %6924 = vmatprep.subr.mxu0 0.0
    %6925 = vmatpush1.msra.mxu0 0.0
    %6926 = vmatprep.subr.mxu0 0.0
    %6927 = vmatpush1.msra.mxu0 0.0
    %6928 = vmatprep.subr.mxu0 0.0
    %6929 = vmatpush1.msra.mxu0 0.0
    %6930 = vmatprep.subr.mxu0 0.0
    %6931 = vmatpush1.msra.mxu0 0.0
    %6932 = vmatprep.subr.mxu0 0.0
    %6933 = vmatpush1.msra.mxu0 0.0
    %6934 = vmatprep.subr.mxu0 0.0
    %6935 = vmatpush1.msra.mxu0 0.0
    %6936 = vmatprep.subr.mxu0 0.0
    %6937 = vmatpush1.msra.mxu0 0.0
    %6938 = vmatprep.subr.mxu0 0.0
    %6939 = vmatpush1.msra.mxu0 0.0
    %6940 = vmatprep.subr.mxu0 0.0
    %6941 = vmatpush1.msra.mxu0 0.0
    %6942 = vmatprep.subr.mxu0 0.0
    %6943 = vmatpush1.msra.mxu0 0.0
    %6944 = vmatprep.subr.mxu0 0.0
    %6945 = vmatpush1.msra.mxu0 0.0
    %6946 = vmatprep.subr.mxu0 0.0
    %6947 = vmatpush1.msra.mxu0 0.0
    %6948 = vmatprep.subr.mxu0 0.0
    %6949 = vmatpush1.msra.mxu0 0.0
    %6950 = vmatprep.subr.mxu0 0.0
    %6951 = vmatpush1.msra.mxu0 0.0
    %6952 = vmatprep.subr.mxu0 0.0
    %6953 = vmatpush1.msra.mxu0 0.0
    %6954 = vmatprep.subr.mxu0 0.0
    %6955 = vmatpush1.msra.mxu0 0.0
    %6956 = vmatprep.subr.mxu0 0.0
    %6957 = vmatpush1.msra.mxu0 0.0
    %6958 = vmatprep.subr.mxu0 0.0
    %6959 = vmatpush1.msra.mxu0 0.0
    %6960 = vmatprep.mubr.f32.mxu0 0.0
    %6961 = vmatmul.mubr.f32.gmra.mrb[0].mxu0 %v6873
    %v6962 = vpop.f32.mrb[0].mxu0
    %v6963 = vadd.f32 0.0, %v6962
    %v6964 = vpop.f32.mrb[0].mxu0
    %6965 = vmatprep.mubr.f32.mxu0 0.0
    %6966 = vmatmul.mubr.f32.gmra.mrb[0].mxu0 %v6876
    %v6967 = vpop.f32.mrb[0].mxu0
    %v6968 = vadd.f32 0.0, %v6967
    %v6969 = vpop.f32.mrb[0].mxu0
    %6970 = vmatprep.mubr.f32.mxu0 0.0
    %6971 = vmatmul.mubr.f32.gmra.mrb[0].mxu0 %v6879
    %v6972 = vpop.f32.mrb[0].mxu0
    %v6973 = vadd.f32 0.0, %v6972
    %v6974 = vpop.f32.mrb[0].mxu0
    %6975 = vmatprep.mubr.f32.mxu0 0.0
    %6976 = vmatmul.mubr.f32.gmra.mrb[0].mxu0 %v6882
    %v6977 = vpop.f32.mrb[0].mxu0
    %v6978 = vadd.f32 0.0, %v6977
    %v6979 = vpop.f32.mrb[0].mxu0
    %6980 = vmatprep.mubr.f32.mxu0 0.0
    %6981 = vmatmul.mubr.f32.gmra.mrb[0].mxu0 %v6885
    %v6982 = vpop.f32.mrb[0].mxu0
    %v6983 = vadd.f32 0.0, %v6982
    %v6984 = vpop.f32.mrb[0].mxu0
    %6985 = vmatprep.mubr.f32.mxu0 0.0
    %6986 = vmatmul.mubr.f32.gmra.mrb[0].mxu0 %v6888
    %v6987 = vpop.f32.mrb[0].mxu0
    %v6988 = vadd.f32 0.0, %v6987
    %v6989 = vpop.f32.mrb[0].mxu0
    %6990 = vmatprep.mubr.f32.mxu0 0.0
    %6991 = vmatmul.mubr.f32.gmra.mrb[0].mxu0 %v6891
    %v6992 = vpop.f32.mrb[0].mxu0
    %v6993 = vadd.f32 0.0, %v6992
    %v6994 = vpop.f32.mrb[0].mxu0
    %6995 = vmatprep.mubr.f32.mxu0 0.0
    %6996 = vmatmul.mubr.f32.gmra.mrb[0].mxu0 %v6894
    %v6997 = vpop.f32.mrb[0].mxu0
    %v6998 = vadd.f32 0.0, %v6997
    %v6999 = vpop.f32.mrb[0].mxu0
    %7000 = vdwg.mxu0
    %v7001 = vadd.f32 %v6446, %v6963
    %v7002 = vadd.f32 %v6447, %v6968
    %v7003 = vadd.f32 %v6448, %v6973
    %v7004 = vadd.f32 %v6449, %v6978
    %v7005 = vadd.f32 %v6450, %v6983
    %v7006 = vadd.f32 %v6451, %v6988
    %v7007 = vadd.f32 %v6452, %v6993
    %v7008 = vadd.f32 %v6453, %v6998
    %7009 = vrot.lane.b32.xlu0 %v5549, 64
    %v7010 = vpop.permute.xlu0 %7009
    %7011 = vrot.lane.b32.xlu0 %v5554, 64
    %v7012 = vpop.permute.xlu0 %7011
    %7013 = vrot.lane.b32.xlu0 %v5559, 64
    %v7014 = vpop.permute.xlu0 %7013
    %7015 = vrot.lane.b32.xlu0 %v5564, 64
    %v7016 = vpop.permute.xlu0 %7015
    %7017 = vrot.lane.b32.xlu0 %v5569, 64
    %v7018 = vpop.permute.xlu0 %7017
    %7019 = vrot.lane.b32.xlu0 %v5574, 64
    %v7020 = vpop.permute.xlu0 %7019
    %7021 = vrot.lane.b32.xlu0 %v5579, 64
    %v7022 = vpop.permute.xlu0 %7021
    %7023 = vrot.lane.b32.xlu0 %v5584, 64
    %v7024 = vpop.permute.xlu0 %7023
    %7025 = vrot.lane.b32.xlu0 %v5702, 64
    %v7026 = vpop.permute.xlu0 %7025
    %7027 = vrot.lane.b32.xlu0 %v5707, 64
    %v7028 = vpop.permute.xlu0 %7027
    %7029 = vrot.lane.b32.xlu0 %v5712, 64
    %v7030 = vpop.permute.xlu0 %7029
    %7031 = vrot.lane.b32.xlu0 %v5717, 64
    %v7032 = vpop.permute.xlu0 %7031
    %7033 = vrot.lane.b32.xlu0 %v5722, 64
    %v7034 = vpop.permute.xlu0 %7033
    %7035 = vrot.lane.b32.xlu0 %v5727, 64
    %v7036 = vpop.permute.xlu0 %7035
    %7037 = vrot.lane.b32.xlu0 %v5732, 64
    %v7038 = vpop.permute.xlu0 %7037
    %7039 = vrot.lane.b32.xlu0 %v5737, 64
    %v7040 = vpop.permute.xlu0 %7039
    %v7041 = vsel %vm888, %v7010, 0
    %v7043 = vsel %vm888, %v7012, 0
    %v7045 = vsel %vm888, %v7014, 0
    %v7047 = vsel %vm888, %v7016, 0
    %v7049 = vsel %vm888, %v7018, 0
    %v7051 = vsel %vm888, %v7020, 0
    %v7053 = vsel %vm888, %v7022, 0
    %v7055 = vsel %vm888, %v7024, 0
    %v7057 = vsel %vm888, %v7026, 0
    %v7059 = vsel %vm888, %v7028, 0
    %v7061 = vsel %vm888, %v7030, 0
    %v7063 = vsel %vm888, %v7032, 0
    %v7065 = vsel %vm888, %v7034, 0
    %v7067 = vsel %vm888, %v7036, 0
    %v7069 = vsel %vm888, %v7038, 0
    %v7071 = vsel %vm888, %v7040, 0
    %7073 = vmatprep.subr.mxu0 0.0
    %7074 = vmatpush1.xpose.msra.mxu0 %v7057
    %7075 = vmatprep.subr.mxu0 0.0
    %7076 = vmatpush1.xpose.msra.mxu0 %v7059
    %7077 = vmatprep.subr.mxu0 0.0
    %7078 = vmatpush1.xpose.msra.mxu0 %v7061
    %7079 = vmatprep.subr.mxu0 0.0
    %7080 = vmatpush1.xpose.msra.mxu0 %v7063
    %7081 = vmatprep.subr.mxu0 0.0
    %7082 = vmatpush1.xpose.msra.mxu0 %v7065
    %7083 = vmatprep.subr.mxu0 0.0
    %7084 = vmatpush1.xpose.msra.mxu0 %v7067
    %7085 = vmatprep.subr.mxu0 0.0
    %7086 = vmatpush1.xpose.msra.mxu0 %v7069
    %7087 = vmatprep.subr.mxu0 0.0
    %7088 = vmatpush1.xpose.msra.mxu0 %v7071
    %7089 = vmatprep.subr.mxu0 0.0
    %7090 = vmatpush1.xpose.msra.mxu0 0.0
    %7091 = vmatprep.subr.mxu0 0.0
    %7092 = vmatpush1.xpose.msra.mxu0 0.0
    %7093 = vmatprep.subr.mxu0 0.0
    %7094 = vmatpush1.xpose.msra.mxu0 0.0
    %7095 = vmatprep.subr.mxu0 0.0
    %7096 = vmatpush1.xpose.msra.mxu0 0.0
    %7097 = vmatprep.subr.mxu0 0.0
    %7098 = vmatpush1.xpose.msra.mxu0 0.0
    %7099 = vmatprep.subr.mxu0 0.0
    %7100 = vmatpush1.xpose.msra.mxu0 0.0
    %7101 = vmatprep.subr.mxu0 0.0
    %7102 = vmatpush1.xpose.msra.mxu0 0.0
    %7103 = vmatprep.subr.mxu0 0.0
    %7104 = vmatpush1.xpose.msra.mxu0 0.0
    %7105 = vmatprep.subr.mxu0 0.0
    %7106 = vmatpush1.xpose.msra.mxu0 0.0
    %7107 = vmatprep.subr.mxu0 0.0
    %7108 = vmatpush1.xpose.msra.mxu0 0.0
    %7109 = vmatprep.subr.mxu0 0.0
    %7110 = vmatpush1.xpose.msra.mxu0 0.0
    %7111 = vmatprep.subr.mxu0 0.0
    %7112 = vmatpush1.xpose.msra.mxu0 0.0
    %7113 = vmatprep.subr.mxu0 0.0
    %7114 = vmatpush1.xpose.msra.mxu0 0.0
    %7115 = vmatprep.subr.mxu0 0.0
    %7116 = vmatpush1.xpose.msra.mxu0 0.0
    %7117 = vmatprep.subr.mxu0 0.0
    %7118 = vmatpush1.xpose.msra.mxu0 0.0
    %7119 = vmatprep.subr.mxu0 0.0
    %7120 = vmatpush1.xpose.msra.mxu0 0.0
    %7121 = vmatprep.subr.mxu0 0.0
    %7122 = vmatpush1.xpose.msra.mxu0 0.0
    %7123 = vmatprep.subr.mxu0 0.0
    %7124 = vmatpush1.xpose.msra.mxu0 0.0
    %7125 = vmatprep.subr.mxu0 0.0
    %7126 = vmatpush1.xpose.msra.mxu0 0.0
    %7127 = vmatprep.subr.mxu0 0.0
    %7128 = vmatpush1.xpose.msra.mxu0 0.0
    %7129 = vmatprep.subr.mxu0 0.0
    %7130 = vmatpush1.xpose.msra.mxu0 0.0
    %7131 = vmatprep.subr.mxu0 0.0
    %7132 = vmatpush1.xpose.msra.mxu0 0.0
    %7133 = vmatprep.subr.mxu0 0.0
    %7134 = vmatpush1.xpose.msra.mxu0 0.0
    %7135 = vmatprep.subr.mxu0 0.0
    %7136 = vmatpush1.xpose.msra.mxu0 0.0
    %7137 = vmatprep.mubr.f32.mxu0 0.0
    %7138 = vmatmul.mubr.f32.gmra.mrb[0].mxu0 %v7041
    %v7139 = vpop.f32.mrb[0].mxu0
    %v7140 = vadd.f32 0.0, %v7139
    %v7141 = vpop.f32.mrb[0].mxu0
    %7142 = vmatprep.mubr.f32.mxu0 0.0
    %7143 = vmatmul.mubr.f32.gmra.mrb[0].mxu0 %v7043
    %v7144 = vpop.f32.mrb[0].mxu0
    %v7145 = vadd.f32 0.0, %v7144
    %v7146 = vpop.f32.mrb[0].mxu0
    %7147 = vmatprep.mubr.f32.mxu0 0.0
    %7148 = vmatmul.mubr.f32.gmra.mrb[0].mxu0 %v7045
    %v7149 = vpop.f32.mrb[0].mxu0
    %v7150 = vadd.f32 0.0, %v7149
    %v7151 = vpop.f32.mrb[0].mxu0
    %7152 = vmatprep.mubr.f32.mxu0 0.0
    %7153 = vmatmul.mubr.f32.gmra.mrb[0].mxu0 %v7047
    %v7154 = vpop.f32.mrb[0].mxu0
    %v7155 = vadd.f32 0.0, %v7154
    %v7156 = vpop.f32.mrb[0].mxu0
    %7157 = vmatprep.mubr.f32.mxu0 0.0
    %7158 = vmatmul.mubr.f32.gmra.mrb[0].mxu0 %v7049
    %v7159 = vpop.f32.mrb[0].mxu0
    %v7160 = vadd.f32 0.0, %v7159
    %v7161 = vpop.f32.mrb[0].mxu0
    %7162 = vmatprep.mubr.f32.mxu0 0.0
    %7163 = vmatmul.mubr.f32.gmra.mrb[0].mxu0 %v7051
    %v7164 = vpop.f32.mrb[0].mxu0
    %v7165 = vadd.f32 0.0, %v7164
    %v7166 = vpop.f32.mrb[0].mxu0
    %7167 = vmatprep.mubr.f32.mxu0 0.0
    %7168 = vmatmul.mubr.f32.gmra.mrb[0].mxu0 %v7053
    %v7169 = vpop.f32.mrb[0].mxu0
    %v7170 = vadd.f32 0.0, %v7169
    %v7171 = vpop.f32.mrb[0].mxu0
    %7172 = vmatprep.mubr.f32.mxu0 0.0
    %7173 = vmatmul.mubr.f32.gmra.mrb[0].mxu0 %v7055
    %v7174 = vpop.f32.mrb[0].mxu0
    %v7175 = vadd.f32 0.0, %v7174
    %v7176 = vpop.f32.mrb[0].mxu0
    %7177 = vdwg.mxu0
    %v7178 = vsel %vm1042, %v7140, -inf
    %7179 = vmax.xlane.f32.xlu0 %v7178
    %v7180 = vpop.xlane.xlu0 %7179
    %v7181 = vsel %vm1042, %v7145, -inf
    %7182 = vmax.xlane.f32.xlu0 %v7181
    %v7183 = vpop.xlane.xlu0 %7182
    %v7184 = vsel %vm1042, %v7150, -inf
    %7185 = vmax.xlane.f32.xlu0 %v7184
    %v7186 = vpop.xlane.xlu0 %7185
    %v7187 = vsel %vm1042, %v7155, -inf
    %7188 = vmax.xlane.f32.xlu0 %v7187
    %v7189 = vpop.xlane.xlu0 %7188
    %v7190 = vsel %vm1042, %v7160, -inf
    %7191 = vmax.xlane.f32.xlu0 %v7190
    %v7192 = vpop.xlane.xlu0 %7191
    %v7193 = vsel %vm1042, %v7165, -inf
    %7194 = vmax.xlane.f32.xlu0 %v7193
    %v7195 = vpop.xlane.xlu0 %7194
    %v7196 = vsel %vm1042, %v7170, -inf
    %7197 = vmax.xlane.f32.xlu0 %v7196
    %v7198 = vpop.xlane.xlu0 %7197
    %v7199 = vsel %vm1042, %v7175, -inf
    %7200 = vmax.xlane.f32.xlu0 %v7199
    %v7201 = vpop.xlane.xlu0 %7200
    %v7202 = vsub.f32 %v7140, %v7180
    %v7203 = vsub.f32 %v7145, %v7183
    %v7204 = vsub.f32 %v7150, %v7186
    %v7205 = vsub.f32 %v7155, %v7189
    %v7206 = vsub.f32 %v7160, %v7192
    %v7207 = vsub.f32 %v7165, %v7195
    %v7208 = vsub.f32 %v7170, %v7198
    %v7209 = vsub.f32 %v7175, %v7201
    %v7210 = vmul.f32 %v7202, 1.442695
    %v7211 = vpow.pop %v7210
    %v7212 = vmul.f32 %v7203, 1.442695
    %v7213 = vpow.pop %v7212
    %v7214 = vmul.f32 %v7204, 1.442695
    %v7215 = vpow.pop %v7214
    %v7216 = vmul.f32 %v7205, 1.442695
    %v7217 = vpow.pop %v7216
    %v7218 = vmul.f32 %v7206, 1.442695
    %v7219 = vpow.pop %v7218
    %v7220 = vmul.f32 %v7207, 1.442695
    %v7221 = vpow.pop %v7220
    %v7222 = vmul.f32 %v7208, 1.442695
    %v7223 = vpow.pop %v7222
    %v7224 = vmul.f32 %v7209, 1.442695
    %v7225 = vpow.pop %v7224
    %7226 = vrot.lane.b32.xlu0 %v5855, 64
    %v7227 = vpop.permute.xlu0 %7226
    %7228 = vrot.lane.b32.xlu0 %v5860, 64
    %v7229 = vpop.permute.xlu0 %7228
    %7230 = vrot.lane.b32.xlu0 %v5865, 64
    %v7231 = vpop.permute.xlu0 %7230
    %7232 = vrot.lane.b32.xlu0 %v5870, 64
    %v7233 = vpop.permute.xlu0 %7232
    %7234 = vrot.lane.b32.xlu0 %v5875, 64
    %v7235 = vpop.permute.xlu0 %7234
    %7236 = vrot.lane.b32.xlu0 %v5880, 64
    %v7237 = vpop.permute.xlu0 %7236
    %7238 = vrot.lane.b32.xlu0 %v5885, 64
    %v7239 = vpop.permute.xlu0 %7238
    %7240 = vrot.lane.b32.xlu0 %v5890, 64
    %v7241 = vpop.permute.xlu0 %7240
    %v7251 = vsel %vm1042, %v7211, 0
    %v7254 = vsel %vm1042, %v7213, 0
    %v7257 = vsel %vm1042, %v7215, 0
    %v7260 = vsel %vm1042, %v7217, 0
    %v7263 = vsel %vm1042, %v7219, 0
    %v7266 = vsel %vm1042, %v7221, 0
    %v7269 = vsel %vm1042, %v7223, 0
    %v7272 = vsel %vm1042, %v7225, 0
    %7274 = vmatprep.subr.mxu0 0.0
    %7275 = vmatpush1.msra.mxu0 %v7227
    %7276 = vmatprep.subr.mxu0 0.0
    %7277 = vmatpush1.msra.mxu0 %v7229
    %7278 = vmatprep.subr.mxu0 0.0
    %7279 = vmatpush1.msra.mxu0 %v7231
    %7280 = vmatprep.subr.mxu0 0.0
    %7281 = vmatpush1.msra.mxu0 %v7233
    %7282 = vmatprep.subr.mxu0 0.0
    %7283 = vmatpush1.msra.mxu0 %v7235
    %7284 = vmatprep.subr.mxu0 0.0
    %7285 = vmatpush1.msra.mxu0 %v7237
    %7286 = vmatprep.subr.mxu0 0.0
    %7287 = vmatpush1.msra.mxu0 %v7239
    %7288 = vmatprep.subr.mxu0 0.0
    %7289 = vmatpush1.msra.mxu0 %v7241
    %7290 = vmatprep.subr.mxu0 0.0
    %7291 = vmatpush1.msra.mxu0 0.0
    %7292 = vmatprep.subr.mxu0 0.0
    %7293 = vmatpush1.msra.mxu0 0.0
    %7294 = vmatprep.subr.mxu0 0.0
    %7295 = vmatpush1.msra.mxu0 0.0
    %7296 = vmatprep.subr.mxu0 0.0
    %7297 = vmatpush1.msra.mxu0 0.0
    %7298 = vmatprep.subr.mxu0 0.0
    %7299 = vmatpush1.msra.mxu0 0.0
    %7300 = vmatprep.subr.mxu0 0.0
    %7301 = vmatpush1.msra.mxu0 0.0
    %7302 = vmatprep.subr.mxu0 0.0
    %7303 = vmatpush1.msra.mxu0 0.0
    %7304 = vmatprep.subr.mxu0 0.0
    %7305 = vmatpush1.msra.mxu0 0.0
    %7306 = vmatprep.subr.mxu0 0.0
    %7307 = vmatpush1.msra.mxu0 0.0
    %7308 = vmatprep.subr.mxu0 0.0
    %7309 = vmatpush1.msra.mxu0 0.0
    %7310 = vmatprep.subr.mxu0 0.0
    %7311 = vmatpush1.msra.mxu0 0.0
    %7312 = vmatprep.subr.mxu0 0.0
    %7313 = vmatpush1.msra.mxu0 0.0
    %7314 = vmatprep.subr.mxu0 0.0
    %7315 = vmatpush1.msra.mxu0 0.0
    %7316 = vmatprep.subr.mxu0 0.0
    %7317 = vmatpush1.msra.mxu0 0.0
    %7318 = vmatprep.subr.mxu0 0.0
    %7319 = vmatpush1.msra.mxu0 0.0
    %7320 = vmatprep.subr.mxu0 0.0
    %7321 = vmatpush1.msra.mxu0 0.0
    %7322 = vmatprep.subr.mxu0 0.0
    %7323 = vmatpush1.msra.mxu0 0.0
    %7324 = vmatprep.subr.mxu0 0.0
    %7325 = vmatpush1.msra.mxu0 0.0
    %7326 = vmatprep.subr.mxu0 0.0
    %7327 = vmatpush1.msra.mxu0 0.0
    %7328 = vmatprep.subr.mxu0 0.0
    %7329 = vmatpush1.msra.mxu0 0.0
    %7330 = vmatprep.subr.mxu0 0.0
    %7331 = vmatpush1.msra.mxu0 0.0
    %7332 = vmatprep.subr.mxu0 0.0
    %7333 = vmatpush1.msra.mxu0 0.0
    %7334 = vmatprep.subr.mxu0 0.0
    %7335 = vmatpush1.msra.mxu0 0.0
    %7336 = vmatprep.subr.mxu0 0.0
    %7337 = vmatpush1.msra.mxu0 0.0
    %7338 = vmatprep.mubr.f32.mxu0 0.0
    %7339 = vmatmul.mubr.f32.gmra.mrb[0].mxu0 %v7251
    %v7340 = vpop.f32.mrb[0].mxu0
    %v7341 = vadd.f32 0.0, %v7340
    %v7342 = vpop.f32.mrb[0].mxu0
    %7343 = vmatprep.mubr.f32.mxu0 0.0
    %7344 = vmatmul.mubr.f32.gmra.mrb[0].mxu0 %v7254
    %v7345 = vpop.f32.mrb[0].mxu0
    %v7346 = vadd.f32 0.0, %v7345
    %v7347 = vpop.f32.mrb[0].mxu0
    %7348 = vmatprep.mubr.f32.mxu0 0.0
    %7349 = vmatmul.mubr.f32.gmra.mrb[0].mxu0 %v7257
    %v7350 = vpop.f32.mrb[0].mxu0
    %v7351 = vadd.f32 0.0, %v7350
    %v7352 = vpop.f32.mrb[0].mxu0
    %7353 = vmatprep.mubr.f32.mxu0 0.0
    %7354 = vmatmul.mubr.f32.gmra.mrb[0].mxu0 %v7260
    %v7355 = vpop.f32.mrb[0].mxu0
    %v7356 = vadd.f32 0.0, %v7355
    %v7357 = vpop.f32.mrb[0].mxu0
    %7358 = vmatprep.mubr.f32.mxu0 0.0
    %7359 = vmatmul.mubr.f32.gmra.mrb[0].mxu0 %v7263
    %v7360 = vpop.f32.mrb[0].mxu0
    %v7361 = vadd.f32 0.0, %v7360
    %v7362 = vpop.f32.mrb[0].mxu0
    %7363 = vmatprep.mubr.f32.mxu0 0.0
    %7364 = vmatmul.mubr.f32.gmra.mrb[0].mxu0 %v7266
    %v7365 = vpop.f32.mrb[0].mxu0
    %v7366 = vadd.f32 0.0, %v7365
    %v7367 = vpop.f32.mrb[0].mxu0
    %7368 = vmatprep.mubr.f32.mxu0 0.0
    %7369 = vmatmul.mubr.f32.gmra.mrb[0].mxu0 %v7269
    %v7370 = vpop.f32.mrb[0].mxu0
    %v7371 = vadd.f32 0.0, %v7370
    %v7372 = vpop.f32.mrb[0].mxu0
    %7373 = vmatprep.mubr.f32.mxu0 0.0
    %7374 = vmatmul.mubr.f32.gmra.mrb[0].mxu0 %v7272
    %v7375 = vpop.f32.mrb[0].mxu0
    %v7376 = vadd.f32 0.0, %v7375
    %v7377 = vpop.f32.mrb[0].mxu0
    %7378 = vdwg.mxu0
    %v7379 = vsel %vm1042, %v7211, 0.0
    %7380 = vadd.xlane.f32.xlu0 %v7379
    %v7381 = vpop.xlane.xlu0 %7380
    %v7382 = vsel %vm1042, %v7213, 0.0
    %7383 = vadd.xlane.f32.xlu0 %v7382
    %v7384 = vpop.xlane.xlu0 %7383
    %v7385 = vsel %vm1042, %v7215, 0.0
    %7386 = vadd.xlane.f32.xlu0 %v7385
    %v7387 = vpop.xlane.xlu0 %7386
    %v7388 = vsel %vm1042, %v7217, 0.0
    %7389 = vadd.xlane.f32.xlu0 %v7388
    %v7390 = vpop.xlane.xlu0 %7389
    %v7391 = vsel %vm1042, %v7219, 0.0
    %7392 = vadd.xlane.f32.xlu0 %v7391
    %v7393 = vpop.xlane.xlu0 %7392
    %v7394 = vsel %vm1042, %v7221, 0.0
    %7395 = vadd.xlane.f32.xlu0 %v7394
    %v7396 = vpop.xlane.xlu0 %7395
    %v7397 = vsel %vm1042, %v7223, 0.0
    %7398 = vadd.xlane.f32.xlu0 %v7397
    %v7399 = vpop.xlane.xlu0 %7398
    %v7400 = vsel %vm1042, %v7225, 0.0
    %7401 = vadd.xlane.f32.xlu0 %v7400
    %v7402 = vpop.xlane.xlu0 %7401
    %v7403 = vrcp.pop %v7381
    %v7404 = vrcp.pop %v7384
    %v7405 = vrcp.pop %v7387
    %v7406 = vrcp.pop %v7390
    %v7407 = vrcp.pop %v7393
    %v7408 = vrcp.pop %v7396
    %v7409 = vrcp.pop %v7399
    %v7410 = vrcp.pop %v7402
    %v7411 = vmul.f32 %v7341, %v7403
    %v7412 = vmul.f32 %v7346, %v7404
    %v7413 = vmul.f32 %v7351, %v7405
    %v7414 = vmul.f32 %v7356, %v7406
    %v7415 = vmul.f32 %v7361, %v7407
    %v7416 = vmul.f32 %v7366, %v7408
    %v7417 = vmul.f32 %v7371, %v7409
    %v7418 = vmul.f32 %v7376, %v7410
    %v7420 = vsel %vm888, %v7411, 0
    %v7423 = vsel %vm888, %v7412, 0
    %v7426 = vsel %vm888, %v7413, 0
    %v7429 = vsel %vm888, %v7414, 0
    %v7432 = vsel %vm888, %v7415, 0
    %v7435 = vsel %vm888, %v7416, 0
    %v7438 = vsel %vm888, %v7417, 0
    %v7441 = vsel %vm888, %v7418, 0
    %7443 = vmatprep.subr.mxu0 0.0
    %7444 = vmatpush1.msra.mxu0 %v5447
    %7445 = vmatprep.subr.mxu0 0.0
    %7446 = vmatpush1.msra.mxu0 %v5448
    %7447 = vmatprep.subr.mxu0 0.0
    %7448 = vmatpush1.msra.mxu0 %v5449
    %7449 = vmatprep.subr.mxu0 0.0
    %7450 = vmatpush1.msra.mxu0 %v5450
    %7451 = vmatprep.subr.mxu0 0.0
    %7452 = vmatpush1.msra.mxu0 0.0
    %7453 = vmatprep.subr.mxu0 0.0
    %7454 = vmatpush1.msra.mxu0 0.0
    %7455 = vmatprep.subr.mxu0 0.0
    %7456 = vmatpush1.msra.mxu0 0.0
    %7457 = vmatprep.subr.mxu0 0.0
    %7458 = vmatpush1.msra.mxu0 0.0
    %7459 = vmatprep.subr.mxu0 0.0
    %7460 = vmatpush1.msra.mxu0 0.0
    %7461 = vmatprep.subr.mxu0 0.0
    %7462 = vmatpush1.msra.mxu0 0.0
    %7463 = vmatprep.subr.mxu0 0.0
    %7464 = vmatpush1.msra.mxu0 0.0
    %7465 = vmatprep.subr.mxu0 0.0
    %7466 = vmatpush1.msra.mxu0 0.0
    %7467 = vmatprep.subr.mxu0 0.0
    %7468 = vmatpush1.msra.mxu0 0.0
    %7469 = vmatprep.subr.mxu0 0.0
    %7470 = vmatpush1.msra.mxu0 0.0
    %7471 = vmatprep.subr.mxu0 0.0
    %7472 = vmatpush1.msra.mxu0 0.0
    %7473 = vmatprep.subr.mxu0 0.0
    %7474 = vmatpush1.msra.mxu0 0.0
    %7475 = vmatprep.subr.mxu0 0.0
    %7476 = vmatpush1.msra.mxu0 0.0
    %7477 = vmatprep.subr.mxu0 0.0
    %7478 = vmatpush1.msra.mxu0 0.0
    %7479 = vmatprep.subr.mxu0 0.0
    %7480 = vmatpush1.msra.mxu0 0.0
    %7481 = vmatprep.subr.mxu0 0.0
    %7482 = vmatpush1.msra.mxu0 0.0
    %7483 = vmatprep.subr.mxu0 0.0
    %7484 = vmatpush1.msra.mxu0 0.0
    %7485 = vmatprep.subr.mxu0 0.0
    %7486 = vmatpush1.msra.mxu0 0.0
    %7487 = vmatprep.subr.mxu0 0.0
    %7488 = vmatpush1.msra.mxu0 0.0
    %7489 = vmatprep.subr.mxu0 0.0
    %7490 = vmatpush1.msra.mxu0 0.0
    %7491 = vmatprep.subr.mxu0 0.0
    %7492 = vmatpush1.msra.mxu0 0.0
    %7493 = vmatprep.subr.mxu0 0.0
    %7494 = vmatpush1.msra.mxu0 0.0
    %7495 = vmatprep.subr.mxu0 0.0
    %7496 = vmatpush1.msra.mxu0 0.0
    %7497 = vmatprep.subr.mxu0 0.0
    %7498 = vmatpush1.msra.mxu0 0.0
    %7499 = vmatprep.subr.mxu0 0.0
    %7500 = vmatpush1.msra.mxu0 0.0
    %7501 = vmatprep.subr.mxu0 0.0
    %7502 = vmatpush1.msra.mxu0 0.0
    %7503 = vmatprep.subr.mxu0 0.0
    %7504 = vmatpush1.msra.mxu0 0.0
    %7505 = vmatprep.subr.mxu0 0.0
    %7506 = vmatpush1.msra.mxu0 0.0
    %7507 = vmatprep.mubr.f32.mxu0 0.0
    %7508 = vmatmul.mubr.f32.gmra.mrb[0].mxu0 %v7420
    %v7509 = vpop.f32.mrb[0].mxu0
    %v7510 = vadd.f32 0.0, %v7509
    %v7511 = vpop.f32.mrb[0].mxu0
    %7512 = vmatprep.mubr.f32.mxu0 0.0
    %7513 = vmatmul.mubr.f32.gmra.mrb[0].mxu0 %v7423
    %v7514 = vpop.f32.mrb[0].mxu0
    %v7515 = vadd.f32 0.0, %v7514
    %v7516 = vpop.f32.mrb[0].mxu0
    %7517 = vmatprep.mubr.f32.mxu0 0.0
    %7518 = vmatmul.mubr.f32.gmra.mrb[0].mxu0 %v7426
    %v7519 = vpop.f32.mrb[0].mxu0
    %v7520 = vadd.f32 0.0, %v7519
    %v7521 = vpop.f32.mrb[0].mxu0
    %7522 = vmatprep.mubr.f32.mxu0 0.0
    %7523 = vmatmul.mubr.f32.gmra.mrb[0].mxu0 %v7429
    %v7524 = vpop.f32.mrb[0].mxu0
    %v7525 = vadd.f32 0.0, %v7524
    %v7526 = vpop.f32.mrb[0].mxu0
    %7527 = vmatprep.mubr.f32.mxu0 0.0
    %7528 = vmatmul.mubr.f32.gmra.mrb[0].mxu0 %v7432
    %v7529 = vpop.f32.mrb[0].mxu0
    %v7530 = vadd.f32 0.0, %v7529
    %v7531 = vpop.f32.mrb[0].mxu0
    %7532 = vmatprep.mubr.f32.mxu0 0.0
    %7533 = vmatmul.mubr.f32.gmra.mrb[0].mxu0 %v7435
    %v7534 = vpop.f32.mrb[0].mxu0
    %v7535 = vadd.f32 0.0, %v7534
    %v7536 = vpop.f32.mrb[0].mxu0
    %7537 = vmatprep.mubr.f32.mxu0 0.0
    %7538 = vmatmul.mubr.f32.gmra.mrb[0].mxu0 %v7438
    %v7539 = vpop.f32.mrb[0].mxu0
    %v7540 = vadd.f32 0.0, %v7539
    %v7541 = vpop.f32.mrb[0].mxu0
    %7542 = vmatprep.mubr.f32.mxu0 0.0
    %7543 = vmatmul.mubr.f32.gmra.mrb[0].mxu0 %v7441
    %v7544 = vpop.f32.mrb[0].mxu0
    %v7545 = vadd.f32 0.0, %v7544
    %v7546 = vpop.f32.mrb[0].mxu0
    %7547 = vdwg.mxu0
    %v7548 = vadd.f32 %v7001, %v7510
    %v7549 = vadd.f32 %v7002, %v7515
    %v7550 = vadd.f32 %v7003, %v7520
    %v7551 = vadd.f32 %v7004, %v7525
    %v7552 = vadd.f32 %v7005, %v7530
    %v7553 = vadd.f32 %v7006, %v7535
    %v7554 = vadd.f32 %v7007, %v7540
    %v7555 = vadd.f32 %v7008, %v7545
    %7556 = vrot.lane.b32.xlu0 %v5549, 32
    %v7557 = vpop.permute.xlu0 %7556
    %7558 = vrot.lane.b32.xlu0 %v5554, 32
    %v7559 = vpop.permute.xlu0 %7558
    %7560 = vrot.lane.b32.xlu0 %v5559, 32
    %v7561 = vpop.permute.xlu0 %7560
    %7562 = vrot.lane.b32.xlu0 %v5564, 32
    %v7563 = vpop.permute.xlu0 %7562
    %7564 = vrot.lane.b32.xlu0 %v5569, 32
    %v7565 = vpop.permute.xlu0 %7564
    %7566 = vrot.lane.b32.xlu0 %v5574, 32
    %v7567 = vpop.permute.xlu0 %7566
    %7568 = vrot.lane.b32.xlu0 %v5579, 32
    %v7569 = vpop.permute.xlu0 %7568
    %7570 = vrot.lane.b32.xlu0 %v5584, 32
    %v7571 = vpop.permute.xlu0 %7570
    %7572 = vrot.lane.b32.xlu0 %v5702, 32
    %v7573 = vpop.permute.xlu0 %7572
    %7574 = vrot.lane.b32.xlu0 %v5707, 32
    %v7575 = vpop.permute.xlu0 %7574
    %7576 = vrot.lane.b32.xlu0 %v5712, 32
    %v7577 = vpop.permute.xlu0 %7576
    %7578 = vrot.lane.b32.xlu0 %v5717, 32
    %v7579 = vpop.permute.xlu0 %7578
    %7580 = vrot.lane.b32.xlu0 %v5722, 32
    %v7581 = vpop.permute.xlu0 %7580
    %7582 = vrot.lane.b32.xlu0 %v5727, 32
    %v7583 = vpop.permute.xlu0 %7582
    %7584 = vrot.lane.b32.xlu0 %v5732, 32
    %v7585 = vpop.permute.xlu0 %7584
    %7586 = vrot.lane.b32.xlu0 %v5737, 32
    %v7587 = vpop.permute.xlu0 %7586
    %v7588 = vsel %vm888, %v7557, 0
    %v7590 = vsel %vm888, %v7559, 0
    %v7592 = vsel %vm888, %v7561, 0
    %v7594 = vsel %vm888, %v7563, 0
    %v7596 = vsel %vm888, %v7565, 0
    %v7598 = vsel %vm888, %v7567, 0
    %v7600 = vsel %vm888, %v7569, 0
    %v7602 = vsel %vm888, %v7571, 0
    %v7604 = vsel %vm888, %v7573, 0
    %v7606 = vsel %vm888, %v7575, 0
    %v7608 = vsel %vm888, %v7577, 0
    %v7610 = vsel %vm888, %v7579, 0
    %v7612 = vsel %vm888, %v7581, 0
    %v7614 = vsel %vm888, %v7583, 0
    %v7616 = vsel %vm888, %v7585, 0
    %v7618 = vsel %vm888, %v7587, 0
    %7620 = vmatprep.subr.mxu0 0.0
    %7621 = vmatpush1.xpose.msra.mxu0 %v7604
    %7622 = vmatprep.subr.mxu0 0.0
    %7623 = vmatpush1.xpose.msra.mxu0 %v7606
    %7624 = vmatprep.subr.mxu0 0.0
    %7625 = vmatpush1.xpose.msra.mxu0 %v7608
    %7626 = vmatprep.subr.mxu0 0.0
    %7627 = vmatpush1.xpose.msra.mxu0 %v7610
    %7628 = vmatprep.subr.mxu0 0.0
    %7629 = vmatpush1.xpose.msra.mxu0 %v7612
    %7630 = vmatprep.subr.mxu0 0.0
    %7631 = vmatpush1.xpose.msra.mxu0 %v7614
    %7632 = vmatprep.subr.mxu0 0.0
    %7633 = vmatpush1.xpose.msra.mxu0 %v7616
    %7634 = vmatprep.subr.mxu0 0.0
    %7635 = vmatpush1.xpose.msra.mxu0 %v7618
    %7636 = vmatprep.subr.mxu0 0.0
    %7637 = vmatpush1.xpose.msra.mxu0 0.0
    %7638 = vmatprep.subr.mxu0 0.0
    %7639 = vmatpush1.xpose.msra.mxu0 0.0
    %7640 = vmatprep.subr.mxu0 0.0
    %7641 = vmatpush1.xpose.msra.mxu0 0.0
    %7642 = vmatprep.subr.mxu0 0.0
    %7643 = vmatpush1.xpose.msra.mxu0 0.0
    %7644 = vmatprep.subr.mxu0 0.0
    %7645 = vmatpush1.xpose.msra.mxu0 0.0
    %7646 = vmatprep.subr.mxu0 0.0
    %7647 = vmatpush1.xpose.msra.mxu0 0.0
    %7648 = vmatprep.subr.mxu0 0.0
    %7649 = vmatpush1.xpose.msra.mxu0 0.0
    %7650 = vmatprep.subr.mxu0 0.0
    %7651 = vmatpush1.xpose.msra.mxu0 0.0
    %7652 = vmatprep.subr.mxu0 0.0
    %7653 = vmatpush1.xpose.msra.mxu0 0.0
    %7654 = vmatprep.subr.mxu0 0.0
    %7655 = vmatpush1.xpose.msra.mxu0 0.0
    %7656 = vmatprep.subr.mxu0 0.0
    %7657 = vmatpush1.xpose.msra.mxu0 0.0
    %7658 = vmatprep.subr.mxu0 0.0
    %7659 = vmatpush1.xpose.msra.mxu0 0.0
    %7660 = vmatprep.subr.mxu0 0.0
    %7661 = vmatpush1.xpose.msra.mxu0 0.0
    %7662 = vmatprep.subr.mxu0 0.0
    %7663 = vmatpush1.xpose.msra.mxu0 0.0
    %7664 = vmatprep.subr.mxu0 0.0
    %7665 = vmatpush1.xpose.msra.mxu0 0.0
    %7666 = vmatprep.subr.mxu0 0.0
    %7667 = vmatpush1.xpose.msra.mxu0 0.0
    %7668 = vmatprep.subr.mxu0 0.0
    %7669 = vmatpush1.xpose.msra.mxu0 0.0
    %7670 = vmatprep.subr.mxu0 0.0
    %7671 = vmatpush1.xpose.msra.mxu0 0.0
    %7672 = vmatprep.subr.mxu0 0.0
    %7673 = vmatpush1.xpose.msra.mxu0 0.0
    %7674 = vmatprep.subr.mxu0 0.0
    %7675 = vmatpush1.xpose.msra.mxu0 0.0
    %7676 = vmatprep.subr.mxu0 0.0
    %7677 = vmatpush1.xpose.msra.mxu0 0.0
    %7678 = vmatprep.subr.mxu0 0.0
    %7679 = vmatpush1.xpose.msra.mxu0 0.0
    %7680 = vmatprep.subr.mxu0 0.0
    %7681 = vmatpush1.xpose.msra.mxu0 0.0
    %7682 = vmatprep.subr.mxu0 0.0
    %7683 = vmatpush1.xpose.msra.mxu0 0.0
    %7684 = vmatprep.mubr.f32.mxu0 0.0
    %7685 = vmatmul.mubr.f32.gmra.mrb[0].mxu0 %v7588
    %v7686 = vpop.f32.mrb[0].mxu0
    %v7687 = vadd.f32 0.0, %v7686
    %v7688 = vpop.f32.mrb[0].mxu0
    %7689 = vmatprep.mubr.f32.mxu0 0.0
    %7690 = vmatmul.mubr.f32.gmra.mrb[0].mxu0 %v7590
    %v7691 = vpop.f32.mrb[0].mxu0
    %v7692 = vadd.f32 0.0, %v7691
    %v7693 = vpop.f32.mrb[0].mxu0
    %7694 = vmatprep.mubr.f32.mxu0 0.0
    %7695 = vmatmul.mubr.f32.gmra.mrb[0].mxu0 %v7592
    %v7696 = vpop.f32.mrb[0].mxu0
    %v7697 = vadd.f32 0.0, %v7696
    %v7698 = vpop.f32.mrb[0].mxu0
    %7699 = vmatprep.mubr.f32.mxu0 0.0
    %7700 = vmatmul.mubr.f32.gmra.mrb[0].mxu0 %v7594
    %v7701 = vpop.f32.mrb[0].mxu0
    %v7702 = vadd.f32 0.0, %v7701
    %v7703 = vpop.f32.mrb[0].mxu0
    %7704 = vmatprep.mubr.f32.mxu0 0.0
    %7705 = vmatmul.mubr.f32.gmra.mrb[0].mxu0 %v7596
    %v7706 = vpop.f32.mrb[0].mxu0
    %v7707 = vadd.f32 0.0, %v7706
    %v7708 = vpop.f32.mrb[0].mxu0
    %7709 = vmatprep.mubr.f32.mxu0 0.0
    %7710 = vmatmul.mubr.f32.gmra.mrb[0].mxu0 %v7598
    %v7711 = vpop.f32.mrb[0].mxu0
    %v7712 = vadd.f32 0.0, %v7711
    %v7713 = vpop.f32.mrb[0].mxu0
    %7714 = vmatprep.mubr.f32.mxu0 0.0
    %7715 = vmatmul.mubr.f32.gmra.mrb[0].mxu0 %v7600
    %v7716 = vpop.f32.mrb[0].mxu0
    %v7717 = vadd.f32 0.0, %v7716
    %v7718 = vpop.f32.mrb[0].mxu0
    %7719 = vmatprep.mubr.f32.mxu0 0.0
    %7720 = vmatmul.mubr.f32.gmra.mrb[0].mxu0 %v7602
    %v7721 = vpop.f32.mrb[0].mxu0
    %v7722 = vadd.f32 0.0, %v7721
    %v7723 = vpop.f32.mrb[0].mxu0
    %7724 = vdwg.mxu0
    %v7725 = vsel %vm1042, %v7687, -inf
    %7726 = vmax.xlane.f32.xlu0 %v7725
    %v7727 = vpop.xlane.xlu0 %7726
    %v7728 = vsel %vm1042, %v7692, -inf
    %7729 = vmax.xlane.f32.xlu0 %v7728
    %v7730 = vpop.xlane.xlu0 %7729
    %v7731 = vsel %vm1042, %v7697, -inf
    %7732 = vmax.xlane.f32.xlu0 %v7731
    %v7733 = vpop.xlane.xlu0 %7732
    %v7734 = vsel %vm1042, %v7702, -inf
    %7735 = vmax.xlane.f32.xlu0 %v7734
    %v7736 = vpop.xlane.xlu0 %7735
    %v7737 = vsel %vm1042, %v7707, -inf
    %7738 = vmax.xlane.f32.xlu0 %v7737
    %v7739 = vpop.xlane.xlu0 %7738
    %v7740 = vsel %vm1042, %v7712, -inf
    %7741 = vmax.xlane.f32.xlu0 %v7740
    %v7742 = vpop.xlane.xlu0 %7741
    %v7743 = vsel %vm1042, %v7717, -inf
    %7744 = vmax.xlane.f32.xlu0 %v7743
    %v7745 = vpop.xlane.xlu0 %7744
    %v7746 = vsel %vm1042, %v7722, -inf
    %7747 = vmax.xlane.f32.xlu0 %v7746
    %v7748 = vpop.xlane.xlu0 %7747
    %v7749 = vsub.f32 %v7687, %v7727
    %v7750 = vsub.f32 %v7692, %v7730
    %v7751 = vsub.f32 %v7697, %v7733
    %v7752 = vsub.f32 %v7702, %v7736
    %v7753 = vsub.f32 %v7707, %v7739
    %v7754 = vsub.f32 %v7712, %v7742
    %v7755 = vsub.f32 %v7717, %v7745
    %v7756 = vsub.f32 %v7722, %v7748
    %v7757 = vmul.f32 %v7749, 1.442695
    %v7758 = vpow.pop %v7757
    %v7759 = vmul.f32 %v7750, 1.442695
    %v7760 = vpow.pop %v7759
    %v7761 = vmul.f32 %v7751, 1.442695
    %v7762 = vpow.pop %v7761
    %v7763 = vmul.f32 %v7752, 1.442695
    %v7764 = vpow.pop %v7763
    %v7765 = vmul.f32 %v7753, 1.442695
    %v7766 = vpow.pop %v7765
    %v7767 = vmul.f32 %v7754, 1.442695
    %v7768 = vpow.pop %v7767
    %v7769 = vmul.f32 %v7755, 1.442695
    %v7770 = vpow.pop %v7769
    %v7771 = vmul.f32 %v7756, 1.442695
    %v7772 = vpow.pop %v7771
    %7773 = vrot.lane.b32.xlu0 %v5855, 32
    %v7774 = vpop.permute.xlu0 %7773
    %7775 = vrot.lane.b32.xlu0 %v5860, 32
    %v7776 = vpop.permute.xlu0 %7775
    %7777 = vrot.lane.b32.xlu0 %v5865, 32
    %v7778 = vpop.permute.xlu0 %7777
    %7779 = vrot.lane.b32.xlu0 %v5870, 32
    %v7780 = vpop.permute.xlu0 %7779
    %7781 = vrot.lane.b32.xlu0 %v5875, 32
    %v7782 = vpop.permute.xlu0 %7781
    %7783 = vrot.lane.b32.xlu0 %v5880, 32
    %v7784 = vpop.permute.xlu0 %7783
    %7785 = vrot.lane.b32.xlu0 %v5885, 32
    %v7786 = vpop.permute.xlu0 %7785
    %7787 = vrot.lane.b32.xlu0 %v5890, 32
    %v7788 = vpop.permute.xlu0 %7787
    %v7798 = vsel %vm1042, %v7758, 0
    %v7801 = vsel %vm1042, %v7760, 0
    %v7804 = vsel %vm1042, %v7762, 0
    %v7807 = vsel %vm1042, %v7764, 0
    %v7810 = vsel %vm1042, %v7766, 0
    %v7813 = vsel %vm1042, %v7768, 0
    %v7816 = vsel %vm1042, %v7770, 0
    %v7819 = vsel %vm1042, %v7772, 0
    %7821 = vmatprep.subr.mxu0 0.0
    %7822 = vmatpush1.msra.mxu0 %v7774
    %7823 = vmatprep.subr.mxu0 0.0
    %7824 = vmatpush1.msra.mxu0 %v7776
    %7825 = vmatprep.subr.mxu0 0.0
    %7826 = vmatpush1.msra.mxu0 %v7778
    %7827 = vmatprep.subr.mxu0 0.0
    %7828 = vmatpush1.msra.mxu0 %v7780
    %7829 = vmatprep.subr.mxu0 0.0
    %7830 = vmatpush1.msra.mxu0 %v7782
    %7831 = vmatprep.subr.mxu0 0.0
    %7832 = vmatpush1.msra.mxu0 %v7784
    %7833 = vmatprep.subr.mxu0 0.0
    %7834 = vmatpush1.msra.mxu0 %v7786
    %7835 = vmatprep.subr.mxu0 0.0
    %7836 = vmatpush1.msra.mxu0 %v7788
    %7837 = vmatprep.subr.mxu0 0.0
    %7838 = vmatpush1.msra.mxu0 0.0
    %7839 = vmatprep.subr.mxu0 0.0
    %7840 = vmatpush1.msra.mxu0 0.0
    %7841 = vmatprep.subr.mxu0 0.0
    %7842 = vmatpush1.msra.mxu0 0.0
    %7843 = vmatprep.subr.mxu0 0.0
    %7844 = vmatpush1.msra.mxu0 0.0
    %7845 = vmatprep.subr.mxu0 0.0
    %7846 = vmatpush1.msra.mxu0 0.0
    %7847 = vmatprep.subr.mxu0 0.0
    %7848 = vmatpush1.msra.mxu0 0.0
    %7849 = vmatprep.subr.mxu0 0.0
    %7850 = vmatpush1.msra.mxu0 0.0
    %7851 = vmatprep.subr.mxu0 0.0
    %7852 = vmatpush1.msra.mxu0 0.0
    %7853 = vmatprep.subr.mxu0 0.0
    %7854 = vmatpush1.msra.mxu0 0.0
    %7855 = vmatprep.subr.mxu0 0.0
    %7856 = vmatpush1.msra.mxu0 0.0
    %7857 = vmatprep.subr.mxu0 0.0
    %7858 = vmatpush1.msra.mxu0 0.0
    %7859 = vmatprep.subr.mxu0 0.0
    %7860 = vmatpush1.msra.mxu0 0.0
    %7861 = vmatprep.subr.mxu0 0.0
    %7862 = vmatpush1.msra.mxu0 0.0
    %7863 = vmatprep.subr.mxu0 0.0
    %7864 = vmatpush1.msra.mxu0 0.0
    %7865 = vmatprep.subr.mxu0 0.0
    %7866 = vmatpush1.msra.mxu0 0.0
    %7867 = vmatprep.subr.mxu0 0.0
    %7868 = vmatpush1.msra.mxu0 0.0
    %7869 = vmatprep.subr.mxu0 0.0
    %7870 = vmatpush1.msra.mxu0 0.0
    %7871 = vmatprep.subr.mxu0 0.0
    %7872 = vmatpush1.msra.mxu0 0.0
    %7873 = vmatprep.subr.mxu0 0.0
    %7874 = vmatpush1.msra.mxu0 0.0
    %7875 = vmatprep.subr.mxu0 0.0
    %7876 = vmatpush1.msra.mxu0 0.0
    %7877 = vmatprep.subr.mxu0 0.0
    %7878 = vmatpush1.msra.mxu0 0.0
    %7879 = vmatprep.subr.mxu0 0.0
    %7880 = vmatpush1.msra.mxu0 0.0
    %7881 = vmatprep.subr.mxu0 0.0
    %7882 = vmatpush1.msra.mxu0 0.0
    %7883 = vmatprep.subr.mxu0 0.0
    %7884 = vmatpush1.msra.mxu0 0.0
    %7885 = vmatprep.mubr.f32.mxu0 0.0
    %7886 = vmatmul.mubr.f32.gmra.mrb[0].mxu0 %v7798
    %v7887 = vpop.f32.mrb[0].mxu0
    %v7888 = vadd.f32 0.0, %v7887
    %v7889 = vpop.f32.mrb[0].mxu0
    %7890 = vmatprep.mubr.f32.mxu0 0.0
    %7891 = vmatmul.mubr.f32.gmra.mrb[0].mxu0 %v7801
    %v7892 = vpop.f32.mrb[0].mxu0
    %v7893 = vadd.f32 0.0, %v7892
    %v7894 = vpop.f32.mrb[0].mxu0
    %7895 = vmatprep.mubr.f32.mxu0 0.0
    %7896 = vmatmul.mubr.f32.gmra.mrb[0].mxu0 %v7804
    %v7897 = vpop.f32.mrb[0].mxu0
    %v7898 = vadd.f32 0.0, %v7897
    %v7899 = vpop.f32.mrb[0].mxu0
    %7900 = vmatprep.mubr.f32.mxu0 0.0
    %7901 = vmatmul.mubr.f32.gmra.mrb[0].mxu0 %v7807
    %v7902 = vpop.f32.mrb[0].mxu0
    %v7903 = vadd.f32 0.0, %v7902
    %v7904 = vpop.f32.mrb[0].mxu0
    %7905 = vmatprep.mubr.f32.mxu0 0.0
    %7906 = vmatmul.mubr.f32.gmra.mrb[0].mxu0 %v7810
    %v7907 = vpop.f32.mrb[0].mxu0
    %v7908 = vadd.f32 0.0, %v7907
    %v7909 = vpop.f32.mrb[0].mxu0
    %7910 = vmatprep.mubr.f32.mxu0 0.0
    %7911 = vmatmul.mubr.f32.gmra.mrb[0].mxu0 %v7813
    %v7912 = vpop.f32.mrb[0].mxu0
    %v7913 = vadd.f32 0.0, %v7912
    %v7914 = vpop.f32.mrb[0].mxu0
    %7915 = vmatprep.mubr.f32.mxu0 0.0
    %7916 = vmatmul.mubr.f32.gmra.mrb[0].mxu0 %v7816
    %v7917 = vpop.f32.mrb[0].mxu0
    %v7918 = vadd.f32 0.0, %v7917
    %v7919 = vpop.f32.mrb[0].mxu0
    %7920 = vmatprep.mubr.f32.mxu0 0.0
    %7921 = vmatmul.mubr.f32.gmra.mrb[0].mxu0 %v7819
    %v7922 = vpop.f32.mrb[0].mxu0
    %v7923 = vadd.f32 0.0, %v7922
    %v7924 = vpop.f32.mrb[0].mxu0
    %7925 = vdwg.mxu0
    %v7926 = vsel %vm1042, %v7758, 0.0
    %7927 = vadd.xlane.f32.xlu0 %v7926
    %v7928 = vpop.xlane.xlu0 %7927
    %v7929 = vsel %vm1042, %v7760, 0.0
    %7930 = vadd.xlane.f32.xlu0 %v7929
    %v7931 = vpop.xlane.xlu0 %7930
    %v7932 = vsel %vm1042, %v7762, 0.0
    %7933 = vadd.xlane.f32.xlu0 %v7932
    %v7934 = vpop.xlane.xlu0 %7933
    %v7935 = vsel %vm1042, %v7764, 0.0
    %7936 = vadd.xlane.f32.xlu0 %v7935
    %v7937 = vpop.xlane.xlu0 %7936
    %v7938 = vsel %vm1042, %v7766, 0.0
    %7939 = vadd.xlane.f32.xlu0 %v7938
    %v7940 = vpop.xlane.xlu0 %7939
    %v7941 = vsel %vm1042, %v7768, 0.0
    %7942 = vadd.xlane.f32.xlu0 %v7941
    %v7943 = vpop.xlane.xlu0 %7942
    %v7944 = vsel %vm1042, %v7770, 0.0
    %7945 = vadd.xlane.f32.xlu0 %v7944
    %v7946 = vpop.xlane.xlu0 %7945
    %v7947 = vsel %vm1042, %v7772, 0.0
    %7948 = vadd.xlane.f32.xlu0 %v7947
    %v7949 = vpop.xlane.xlu0 %7948
    %v7950 = vrcp.pop %v7928
    %v7951 = vrcp.pop %v7931
    %v7952 = vrcp.pop %v7934
    %v7953 = vrcp.pop %v7937
    %v7954 = vrcp.pop %v7940
    %v7955 = vrcp.pop %v7943
    %v7956 = vrcp.pop %v7946
    %v7957 = vrcp.pop %v7949
    %v7958 = vmul.f32 %v7888, %v7950
    %v7959 = vmul.f32 %v7893, %v7951
    %v7960 = vmul.f32 %v7898, %v7952
    %v7961 = vmul.f32 %v7903, %v7953
    %v7962 = vmul.f32 %v7908, %v7954
    %v7963 = vmul.f32 %v7913, %v7955
    %v7964 = vmul.f32 %v7918, %v7956
    %v7965 = vmul.f32 %v7923, %v7957
    %v7967 = vsel %vm888, %v7958, 0
    %v7970 = vsel %vm888, %v7959, 0
    %v7973 = vsel %vm888, %v7960, 0
    %v7976 = vsel %vm888, %v7961, 0
    %v7979 = vsel %vm888, %v7962, 0
    %v7982 = vsel %vm888, %v7963, 0
    %v7985 = vsel %vm888, %v7964, 0
    %v7988 = vsel %vm888, %v7965, 0
    %7990 = vmatprep.subr.mxu0 0.0
    %7991 = vmatpush1.msra.mxu0 %v5451
    %7992 = vmatprep.subr.mxu0 0.0
    %7993 = vmatpush1.msra.mxu0 %v5452
    %7994 = vmatprep.subr.mxu0 0.0
    %7995 = vmatpush1.msra.mxu0 %v5453
    %7996 = vmatprep.subr.mxu0 0.0
    %7997 = vmatpush1.msra.mxu0 %v5454
    %7998 = vmatprep.subr.mxu0 0.0
    %7999 = vmatpush1.msra.mxu0 0.0
    %8000 = vmatprep.subr.mxu0 0.0
    %8001 = vmatpush1.msra.mxu0 0.0
    %8002 = vmatprep.subr.mxu0 0.0
    %8003 = vmatpush1.msra.mxu0 0.0
    %8004 = vmatprep.subr.mxu0 0.0
    %8005 = vmatpush1.msra.mxu0 0.0
    %8006 = vmatprep.subr.mxu0 0.0
    %8007 = vmatpush1.msra.mxu0 0.0
    %8008 = vmatprep.subr.mxu0 0.0
    %8009 = vmatpush1.msra.mxu0 0.0
    %8010 = vmatprep.subr.mxu0 0.0
    %8011 = vmatpush1.msra.mxu0 0.0
    %8012 = vmatprep.subr.mxu0 0.0
    %8013 = vmatpush1.msra.mxu0 0.0
    %8014 = vmatprep.subr.mxu0 0.0
    %8015 = vmatpush1.msra.mxu0 0.0
    %8016 = vmatprep.subr.mxu0 0.0
    %8017 = vmatpush1.msra.mxu0 0.0
    %8018 = vmatprep.subr.mxu0 0.0
    %8019 = vmatpush1.msra.mxu0 0.0
    %8020 = vmatprep.subr.mxu0 0.0
    %8021 = vmatpush1.msra.mxu0 0.0
    %8022 = vmatprep.subr.mxu0 0.0
    %8023 = vmatpush1.msra.mxu0 0.0
    %8024 = vmatprep.subr.mxu0 0.0
    %8025 = vmatpush1.msra.mxu0 0.0
    %8026 = vmatprep.subr.mxu0 0.0
    %8027 = vmatpush1.msra.mxu0 0.0
    %8028 = vmatprep.subr.mxu0 0.0
    %8029 = vmatpush1.msra.mxu0 0.0
    %8030 = vmatprep.subr.mxu0 0.0
    %8031 = vmatpush1.msra.mxu0 0.0
    %8032 = vmatprep.subr.mxu0 0.0
    %8033 = vmatpush1.msra.mxu0 0.0
    %8034 = vmatprep.subr.mxu0 0.0
    %8035 = vmatpush1.msra.mxu0 0.0
    %8036 = vmatprep.subr.mxu0 0.0
    %8037 = vmatpush1.msra.mxu0 0.0
    %8038 = vmatprep.subr.mxu0 0.0
    %8039 = vmatpush1.msra.mxu0 0.0
    %8040 = vmatprep.subr.mxu0 0.0
    %8041 = vmatpush1.msra.mxu0 0.0
    %8042 = vmatprep.subr.mxu0 0.0
    %8043 = vmatpush1.msra.mxu0 0.0
    %8044 = vmatprep.subr.mxu0 0.0
    %8045 = vmatpush1.msra.mxu0 0.0
    %8046 = vmatprep.subr.mxu0 0.0
    %8047 = vmatpush1.msra.mxu0 0.0
    %8048 = vmatprep.subr.mxu0 0.0
    %8049 = vmatpush1.msra.mxu0 0.0
    %8050 = vmatprep.subr.mxu0 0.0
    %8051 = vmatpush1.msra.mxu0 0.0
    %8052 = vmatprep.subr.mxu0 0.0
    %8053 = vmatpush1.msra.mxu0 0.0
    %8054 = vmatprep.mubr.f32.mxu0 0.0
    %8055 = vmatmul.mubr.f32.gmra.mrb[0].mxu0 %v7967
    %v8056 = vpop.f32.mrb[0].mxu0
    %v8057 = vadd.f32 0.0, %v8056
    %v8058 = vpop.f32.mrb[0].mxu0
    %8059 = vmatprep.mubr.f32.mxu0 0.0
    %8060 = vmatmul.mubr.f32.gmra.mrb[0].mxu0 %v7970
    %v8061 = vpop.f32.mrb[0].mxu0
    %v8062 = vadd.f32 0.0, %v8061
    %v8063 = vpop.f32.mrb[0].mxu0
    %8064 = vmatprep.mubr.f32.mxu0 0.0
    %8065 = vmatmul.mubr.f32.gmra.mrb[0].mxu0 %v7973
    %v8066 = vpop.f32.mrb[0].mxu0
    %v8067 = vadd.f32 0.0, %v8066
    %v8068 = vpop.f32.mrb[0].mxu0
    %8069 = vmatprep.mubr.f32.mxu0 0.0
    %8070 = vmatmul.mubr.f32.gmra.mrb[0].mxu0 %v7976
    %v8071 = vpop.f32.mrb[0].mxu0
    %v8072 = vadd.f32 0.0, %v8071
    %v8073 = vpop.f32.mrb[0].mxu0
    %8074 = vmatprep.mubr.f32.mxu0 0.0
    %8075 = vmatmul.mubr.f32.gmra.mrb[0].mxu0 %v7979
    %v8076 = vpop.f32.mrb[0].mxu0
    %v8077 = vadd.f32 0.0, %v8076
    %v8078 = vpop.f32.mrb[0].mxu0
    %8079 = vmatprep.mubr.f32.mxu0 0.0
    %8080 = vmatmul.mubr.f32.gmra.mrb[0].mxu0 %v7982
    %v8081 = vpop.f32.mrb[0].mxu0
    %v8082 = vadd.f32 0.0, %v8081
    %v8083 = vpop.f32.mrb[0].mxu0
    %8084 = vmatprep.mubr.f32.mxu0 0.0
    %8085 = vmatmul.mubr.f32.gmra.mrb[0].mxu0 %v7985
    %v8086 = vpop.f32.mrb[0].mxu0
    %v8087 = vadd.f32 0.0, %v8086
    %v8088 = vpop.f32.mrb[0].mxu0
    %8089 = vmatprep.mubr.f32.mxu0 0.0
    %8090 = vmatmul.mubr.f32.gmra.mrb[0].mxu0 %v7988
    %v8091 = vpop.f32.mrb[0].mxu0
    %v8092 = vadd.f32 0.0, %v8091
    %v8093 = vpop.f32.mrb[0].mxu0
    %8094 = vdwg.mxu0
    %v8095 = vadd.f32 %v7548, %v8057
    %v8096 = vadd.f32 %v7549, %v8062
    %v8097 = vadd.f32 %v7550, %v8067
    %v8098 = vadd.f32 %v7551, %v8072
    %v8099 = vadd.f32 %v7552, %v8077
    %v8100 = vadd.f32 %v7553, %v8082
    %v8101 = vadd.f32 %v7554, %v8087
    %v8102 = vadd.f32 %v7555, %v8092
    %8103 = vst [vmem:[#allocation2] sm:$0xff] %v8095
    %8104 = vst [vmem:[#allocation2 + $0x8] sm:$0xff] %v8096
    %8105 = vst [vmem:[#allocation2 + $0x10] sm:$0xff] %v8097
    %8106 = vst [vmem:[#allocation2 + $0x18] sm:$0xff] %v8098
    %8107 = vst [vmem:[#allocation2 + $0x20] sm:$0xff] %v8099
    %8108 = vst [vmem:[#allocation2 + $0x28] sm:$0xff] %v8100
    %8109 = vst [vmem:[#allocation2 + $0x30] sm:$0xff] %v8101
    %8110 = vst [vmem:[#allocation2 + $0x38] sm:$0xff] %v8102
    %v8111 = vadd.f32 %v5349, %v5937
    %v8112 = vadd.f32 %v5354, %v5937
    %v8113 = vadd.f32 %v5359, %v5937
    %v8114 = vadd.f32 %v5364, %v5937
    %v8115 = vadd.f32 %v5369, %v5937
    %v8116 = vadd.f32 %v5374, %v5937
    %v8117 = vadd.f32 %v5379, %v5937
    %v8118 = vadd.f32 %v5384, %v5937
    %v8120 = vsel %vm888, %v5589, 0
    %v8123 = vsel %vm888, %v5594, 0
    %v8126 = vsel %vm888, %v5599, 0
    %v8129 = vsel %vm888, %v5604, 0
    %v8132 = vsel %vm888, %v5609, 0
    %v8135 = vsel %vm888, %v5614, 0
    %v8138 = vsel %vm888, %v5619, 0
    %v8141 = vsel %vm888, %v5624, 0
    %v8144 = vsel %vm888, %v5742, 0
    %v8147 = vsel %vm888, %v5747, 0
    %v8150 = vsel %vm888, %v5752, 0
    %v8153 = vsel %vm888, %v5757, 0
    %v8156 = vsel %vm888, %v5762, 0
    %v8159 = vsel %vm888, %v5767, 0
    %v8162 = vsel %vm888, %v5772, 0
    %v8165 = vsel %vm888, %v5777, 0
    %8167 = vmatprep.subr.mxu0 0.0
    %8168 = vmatpush1.xpose.msra.mxu0 %v8144
    %8169 = vmatprep.subr.mxu0 0.0
    %8170 = vmatpush1.xpose.msra.mxu0 %v8147
    %8171 = vmatprep.subr.mxu0 0.0
    %8172 = vmatpush1.xpose.msra.mxu0 %v8150
    %8173 = vmatprep.subr.mxu0 0.0
    %8174 = vmatpush1.xpose.msra.mxu0 %v8153
    %8175 = vmatprep.subr.mxu0 0.0
    %8176 = vmatpush1.xpose.msra.mxu0 %v8156
    %8177 = vmatprep.subr.mxu0 0.0
    %8178 = vmatpush1.xpose.msra.mxu0 %v8159
    %8179 = vmatprep.subr.mxu0 0.0
    %8180 = vmatpush1.xpose.msra.mxu0 %v8162
    %8181 = vmatprep.subr.mxu0 0.0
    %8182 = vmatpush1.xpose.msra.mxu0 %v8165
    %8183 = vmatprep.subr.mxu0 0.0
    %8184 = vmatpush1.xpose.msra.mxu0 0.0
    %8185 = vmatprep.subr.mxu0 0.0
    %8186 = vmatpush1.xpose.msra.mxu0 0.0
    %8187 = vmatprep.subr.mxu0 0.0
    %8188 = vmatpush1.xpose.msra.mxu0 0.0
    %8189 = vmatprep.subr.mxu0 0.0
    %8190 = vmatpush1.xpose.msra.mxu0 0.0
    %8191 = vmatprep.subr.mxu0 0.0
    %8192 = vmatpush1.xpose.msra.mxu0 0.0
    %8193 = vmatprep.subr.mxu0 0.0
    %8194 = vmatpush1.xpose.msra.mxu0 0.0
    %8195 = vmatprep.subr.mxu0 0.0
    %8196 = vmatpush1.xpose.msra.mxu0 0.0
    %8197 = vmatprep.subr.mxu0 0.0
    %8198 = vmatpush1.xpose.msra.mxu0 0.0
    %8199 = vmatprep.subr.mxu0 0.0
    %8200 = vmatpush1.xpose.msra.mxu0 0.0
    %8201 = vmatprep.subr.mxu0 0.0
    %8202 = vmatpush1.xpose.msra.mxu0 0.0
    %8203 = vmatprep.subr.mxu0 0.0
    %8204 = vmatpush1.xpose.msra.mxu0 0.0
    %8205 = vmatprep.subr.mxu0 0.0
    %8206 = vmatpush1.xpose.msra.mxu0 0.0
    %8207 = vmatprep.subr.mxu0 0.0
    %8208 = vmatpush1.xpose.msra.mxu0 0.0
    %8209 = vmatprep.subr.mxu0 0.0
    %8210 = vmatpush1.xpose.msra.mxu0 0.0
    %8211 = vmatprep.subr.mxu0 0.0
    %8212 = vmatpush1.xpose.msra.mxu0 0.0
    %8213 = vmatprep.subr.mxu0 0.0
    %8214 = vmatpush1.xpose.msra.mxu0 0.0
    %8215 = vmatprep.subr.mxu0 0.0
    %8216 = vmatpush1.xpose.msra.mxu0 0.0
    %8217 = vmatprep.subr.mxu0 0.0
    %8218 = vmatpush1.xpose.msra.mxu0 0.0
    %8219 = vmatprep.subr.mxu0 0.0
    %8220 = vmatpush1.xpose.msra.mxu0 0.0
    %8221 = vmatprep.subr.mxu0 0.0
    %8222 = vmatpush1.xpose.msra.mxu0 0.0
    %8223 = vmatprep.subr.mxu0 0.0
    %8224 = vmatpush1.xpose.msra.mxu0 0.0
    %8225 = vmatprep.subr.mxu0 0.0
    %8226 = vmatpush1.xpose.msra.mxu0 0.0
    %8227 = vmatprep.subr.mxu0 0.0
    %8228 = vmatpush1.xpose.msra.mxu0 0.0
    %8229 = vmatprep.subr.mxu0 0.0
    %8230 = vmatpush1.xpose.msra.mxu0 0.0
    %8231 = vmatprep.mubr.f32.mxu0 0.0
    %8232 = vmatmul.mubr.f32.gmra.mrb[0].mxu0 %v8120
    %v8233 = vpop.f32.mrb[0].mxu0
    %v8234 = vadd.f32 0.0, %v8233
    %v8235 = vpop.f32.mrb[0].mxu0
    %8236 = vmatprep.mubr.f32.mxu0 0.0
    %8237 = vmatmul.mubr.f32.gmra.mrb[0].mxu0 %v8123
    %v8238 = vpop.f32.mrb[0].mxu0
    %v8239 = vadd.f32 0.0, %v8238
    %v8240 = vpop.f32.mrb[0].mxu0
    %8241 = vmatprep.mubr.f32.mxu0 0.0
    %8242 = vmatmul.mubr.f32.gmra.mrb[0].mxu0 %v8126
    %v8243 = vpop.f32.mrb[0].mxu0
    %v8244 = vadd.f32 0.0, %v8243
    %v8245 = vpop.f32.mrb[0].mxu0
    %8246 = vmatprep.mubr.f32.mxu0 0.0
    %8247 = vmatmul.mubr.f32.gmra.mrb[0].mxu0 %v8129
    %v8248 = vpop.f32.mrb[0].mxu0
    %v8249 = vadd.f32 0.0, %v8248
    %v8250 = vpop.f32.mrb[0].mxu0
    %8251 = vmatprep.mubr.f32.mxu0 0.0
    %8252 = vmatmul.mubr.f32.gmra.mrb[0].mxu0 %v8132
    %v8253 = vpop.f32.mrb[0].mxu0
    %v8254 = vadd.f32 0.0, %v8253
    %v8255 = vpop.f32.mrb[0].mxu0
    %8256 = vmatprep.mubr.f32.mxu0 0.0
    %8257 = vmatmul.mubr.f32.gmra.mrb[0].mxu0 %v8135
    %v8258 = vpop.f32.mrb[0].mxu0
    %v8259 = vadd.f32 0.0, %v8258
    %v8260 = vpop.f32.mrb[0].mxu0
    %8261 = vmatprep.mubr.f32.mxu0 0.0
    %8262 = vmatmul.mubr.f32.gmra.mrb[0].mxu0 %v8138
    %v8263 = vpop.f32.mrb[0].mxu0
    %v8264 = vadd.f32 0.0, %v8263
    %v8265 = vpop.f32.mrb[0].mxu0
    %8266 = vmatprep.mubr.f32.mxu0 0.0
    %8267 = vmatmul.mubr.f32.gmra.mrb[0].mxu0 %v8141
    %v8268 = vpop.f32.mrb[0].mxu0
    %v8269 = vadd.f32 0.0, %v8268
    %v8270 = vpop.f32.mrb[0].mxu0
    %8271 = vdwg.mxu0
    %v8272 = vsel %vm1042, %v8234, -inf
    %8273 = vmax.xlane.f32.xlu0 %v8272
    %v8274 = vpop.xlane.xlu0 %8273
    %v8275 = vsel %vm1042, %v8239, -inf
    %8276 = vmax.xlane.f32.xlu0 %v8275
    %v8277 = vpop.xlane.xlu0 %8276
    %v8278 = vsel %vm1042, %v8244, -inf
    %8279 = vmax.xlane.f32.xlu0 %v8278
    %v8280 = vpop.xlane.xlu0 %8279
    %v8281 = vsel %vm1042, %v8249, -inf
    %8282 = vmax.xlane.f32.xlu0 %v8281
    %v8283 = vpop.xlane.xlu0 %8282
    %v8284 = vsel %vm1042, %v8254, -inf
    %8285 = vmax.xlane.f32.xlu0 %v8284
    %v8286 = vpop.xlane.xlu0 %8285
    %v8287 = vsel %vm1042, %v8259, -inf
    %8288 = vmax.xlane.f32.xlu0 %v8287
    %v8289 = vpop.xlane.xlu0 %8288
    %v8290 = vsel %vm1042, %v8264, -inf
    %8291 = vmax.xlane.f32.xlu0 %v8290
    %v8292 = vpop.xlane.xlu0 %8291
    %v8293 = vsel %vm1042, %v8269, -inf
    %8294 = vmax.xlane.f32.xlu0 %v8293
    %v8295 = vpop.xlane.xlu0 %8294
    %v8296 = vsub.f32 %v8234, %v8274
    %v8297 = vsub.f32 %v8239, %v8277
    %v8298 = vsub.f32 %v8244, %v8280
    %v8299 = vsub.f32 %v8249, %v8283
    %v8300 = vsub.f32 %v8254, %v8286
    %v8301 = vsub.f32 %v8259, %v8289
    %v8302 = vsub.f32 %v8264, %v8292
    %v8303 = vsub.f32 %v8269, %v8295
    %v8304 = vmul.f32 %v8296, 1.442695
    %v8305 = vpow.pop %v8304
    %v8306 = vmul.f32 %v8297, 1.442695
    %v8307 = vpow.pop %v8306
    %v8308 = vmul.f32 %v8298, 1.442695
    %v8309 = vpow.pop %v8308
    %v8310 = vmul.f32 %v8299, 1.442695
    %v8311 = vpow.pop %v8310
    %v8312 = vmul.f32 %v8300, 1.442695
    %v8313 = vpow.pop %v8312
    %v8314 = vmul.f32 %v8301, 1.442695
    %v8315 = vpow.pop %v8314
    %v8316 = vmul.f32 %v8302, 1.442695
    %v8317 = vpow.pop %v8316
    %v8318 = vmul.f32 %v8303, 1.442695
    %v8319 = vpow.pop %v8318
    %v8321 = vsel %vm1042, %v8305, 0
    %v8324 = vsel %vm1042, %v8307, 0
    %v8327 = vsel %vm1042, %v8309, 0
    %v8330 = vsel %vm1042, %v8311, 0
    %v8333 = vsel %vm1042, %v8313, 0
    %v8336 = vsel %vm1042, %v8315, 0
    %v8339 = vsel %vm1042, %v8317, 0
    %v8342 = vsel %vm1042, %v8319, 0
    %8344 = vmatprep.subr.mxu0 0.0
    %8345 = vmatpush1.msra.mxu0 %v5895
    %8346 = vmatprep.subr.mxu0 0.0
    %8347 = vmatpush1.msra.mxu0 %v5900
    %8348 = vmatprep.subr.mxu0 0.0
    %8349 = vmatpush1.msra.mxu0 %v5905
    %8350 = vmatprep.subr.mxu0 0.0
    %8351 = vmatpush1.msra.mxu0 %v5910
    %8352 = vmatprep.subr.mxu0 0.0
    %8353 = vmatpush1.msra.mxu0 %v5915
    %8354 = vmatprep.subr.mxu0 0.0
    %8355 = vmatpush1.msra.mxu0 %v5920
    %8356 = vmatprep.subr.mxu0 0.0
    %8357 = vmatpush1.msra.mxu0 %v5925
    %8358 = vmatprep.subr.mxu0 0.0
    %8359 = vmatpush1.msra.mxu0 %v5930
    %8360 = vmatprep.subr.mxu0 0.0
    %8361 = vmatpush1.msra.mxu0 0.0
    %8362 = vmatprep.subr.mxu0 0.0
    %8363 = vmatpush1.msra.mxu0 0.0
    %8364 = vmatprep.subr.mxu0 0.0
    %8365 = vmatpush1.msra.mxu0 0.0
    %8366 = vmatprep.subr.mxu0 0.0
    %8367 = vmatpush1.msra.mxu0 0.0
    %8368 = vmatprep.subr.mxu0 0.0
    %8369 = vmatpush1.msra.mxu0 0.0
    %8370 = vmatprep.subr.mxu0 0.0
    %8371 = vmatpush1.msra.mxu0 0.0
    %8372 = vmatprep.subr.mxu0 0.0
    %8373 = vmatpush1.msra.mxu0 0.0
    %8374 = vmatprep.subr.mxu0 0.0
    %8375 = vmatpush1.msra.mxu0 0.0
    %8376 = vmatprep.subr.mxu0 0.0
    %8377 = vmatpush1.msra.mxu0 0.0
    %8378 = vmatprep.subr.mxu0 0.0
    %8379 = vmatpush1.msra.mxu0 0.0
    %8380 = vmatprep.subr.mxu0 0.0
    %8381 = vmatpush1.msra.mxu0 0.0
    %8382 = vmatprep.subr.mxu0 0.0
    %8383 = vmatpush1.msra.mxu0 0.0
    %8384 = vmatprep.subr.mxu0 0.0
    %8385 = vmatpush1.msra.mxu0 0.0
    %8386 = vmatprep.subr.mxu0 0.0
    %8387 = vmatpush1.msra.mxu0 0.0
    %8388 = vmatprep.subr.mxu0 0.0
    %8389 = vmatpush1.msra.mxu0 0.0
    %8390 = vmatprep.subr.mxu0 0.0
    %8391 = vmatpush1.msra.mxu0 0.0
    %8392 = vmatprep.subr.mxu0 0.0
    %8393 = vmatpush1.msra.mxu0 0.0
    %8394 = vmatprep.subr.mxu0 0.0
    %8395 = vmatpush1.msra.mxu0 0.0
    %8396 = vmatprep.subr.mxu0 0.0
    %8397 = vmatpush1.msra.mxu0 0.0
    %8398 = vmatprep.subr.mxu0 0.0
    %8399 = vmatpush1.msra.mxu0 0.0
    %8400 = vmatprep.subr.mxu0 0.0
    %8401 = vmatpush1.msra.mxu0 0.0
    %8402 = vmatprep.subr.mxu0 0.0
    %8403 = vmatpush1.msra.mxu0 0.0
    %8404 = vmatprep.subr.mxu0 0.0
    %8405 = vmatpush1.msra.mxu0 0.0
    %8406 = vmatprep.subr.mxu0 0.0
    %8407 = vmatpush1.msra.mxu0 0.0
    %8408 = vmatprep.mubr.f32.mxu0 0.0
    %8409 = vmatmul.mubr.f32.gmra.mrb[0].mxu0 %v8321
    %v8410 = vpop.f32.mrb[0].mxu0
    %v8411 = vadd.f32 0.0, %v8410
    %v8412 = vpop.f32.mrb[0].mxu0
    %8413 = vmatprep.mubr.f32.mxu0 0.0
    %8414 = vmatmul.mubr.f32.gmra.mrb[0].mxu0 %v8324
    %v8415 = vpop.f32.mrb[0].mxu0
    %v8416 = vadd.f32 0.0, %v8415
    %v8417 = vpop.f32.mrb[0].mxu0
    %8418 = vmatprep.mubr.f32.mxu0 0.0
    %8419 = vmatmul.mubr.f32.gmra.mrb[0].mxu0 %v8327
    %v8420 = vpop.f32.mrb[0].mxu0
    %v8421 = vadd.f32 0.0, %v8420
    %v8422 = vpop.f32.mrb[0].mxu0
    %8423 = vmatprep.mubr.f32.mxu0 0.0
    %8424 = vmatmul.mubr.f32.gmra.mrb[0].mxu0 %v8330
    %v8425 = vpop.f32.mrb[0].mxu0
    %v8426 = vadd.f32 0.0, %v8425
    %v8427 = vpop.f32.mrb[0].mxu0
    %8428 = vmatprep.mubr.f32.mxu0 0.0
    %8429 = vmatmul.mubr.f32.gmra.mrb[0].mxu0 %v8333
    %v8430 = vpop.f32.mrb[0].mxu0
    %v8431 = vadd.f32 0.0, %v8430
    %v8432 = vpop.f32.mrb[0].mxu0
    %8433 = vmatprep.mubr.f32.mxu0 0.0
    %8434 = vmatmul.mubr.f32.gmra.mrb[0].mxu0 %v8336
    %v8435 = vpop.f32.mrb[0].mxu0
    %v8436 = vadd.f32 0.0, %v8435
    %v8437 = vpop.f32.mrb[0].mxu0
    %8438 = vmatprep.mubr.f32.mxu0 0.0
    %8439 = vmatmul.mubr.f32.gmra.mrb[0].mxu0 %v8339
    %v8440 = vpop.f32.mrb[0].mxu0
    %v8441 = vadd.f32 0.0, %v8440
    %v8442 = vpop.f32.mrb[0].mxu0
    %8443 = vmatprep.mubr.f32.mxu0 0.0
    %8444 = vmatmul.mubr.f32.gmra.mrb[0].mxu0 %v8342
    %v8445 = vpop.f32.mrb[0].mxu0
    %v8446 = vadd.f32 0.0, %v8445
    %v8447 = vpop.f32.mrb[0].mxu0
    %8448 = vdwg.mxu0
    %v8449 = vsel %vm1042, %v8305, 0.0
    %8450 = vadd.xlane.f32.xlu0 %v8449
    %v8451 = vpop.xlane.xlu0 %8450
    %v8452 = vsel %vm1042, %v8307, 0.0
    %8453 = vadd.xlane.f32.xlu0 %v8452
    %v8454 = vpop.xlane.xlu0 %8453
    %v8455 = vsel %vm1042, %v8309, 0.0
    %8456 = vadd.xlane.f32.xlu0 %v8455
    %v8457 = vpop.xlane.xlu0 %8456
    %v8458 = vsel %vm1042, %v8311, 0.0
    %8459 = vadd.xlane.f32.xlu0 %v8458
    %v8460 = vpop.xlane.xlu0 %8459
    %v8461 = vsel %vm1042, %v8313, 0.0
    %8462 = vadd.xlane.f32.xlu0 %v8461
    %v8463 = vpop.xlane.xlu0 %8462
    %v8464 = vsel %vm1042, %v8315, 0.0
    %8465 = vadd.xlane.f32.xlu0 %v8464
    %v8466 = vpop.xlane.xlu0 %8465
    %v8467 = vsel %vm1042, %v8317, 0.0
    %8468 = vadd.xlane.f32.xlu0 %v8467
    %v8469 = vpop.xlane.xlu0 %8468
    %v8470 = vsel %vm1042, %v8319, 0.0
    %8471 = vadd.xlane.f32.xlu0 %v8470
    %v8472 = vpop.xlane.xlu0 %8471
    %v8473 = vrcp.pop %v8451
    %v8474 = vrcp.pop %v8454
    %v8475 = vrcp.pop %v8457
    %v8476 = vrcp.pop %v8460
    %v8477 = vrcp.pop %v8463
    %v8478 = vrcp.pop %v8466
    %v8479 = vrcp.pop %v8469
    %v8480 = vrcp.pop %v8472
    %v8481 = vmul.f32 %v8411, %v8473
    %v8482 = vmul.f32 %v8416, %v8474
    %v8483 = vmul.f32 %v8421, %v8475
    %v8484 = vmul.f32 %v8426, %v8476
    %v8485 = vmul.f32 %v8431, %v8477
    %v8486 = vmul.f32 %v8436, %v8478
    %v8487 = vmul.f32 %v8441, %v8479
    %v8488 = vmul.f32 %v8446, %v8480
    %v8490 = vsel %vm888, %v8481, 0
    %v8493 = vsel %vm888, %v8482, 0
    %v8496 = vsel %vm888, %v8483, 0
    %v8499 = vsel %vm888, %v8484, 0
    %v8502 = vsel %vm888, %v8485, 0
    %v8505 = vsel %vm888, %v8486, 0
    %v8508 = vsel %vm888, %v8487, 0
    %v8511 = vsel %vm888, %v8488, 0
    %8513 = vmatprep.subr.mxu0 0.0
    %8514 = vmatpush1.msra.mxu0 %v5439
    %8515 = vmatprep.subr.mxu0 0.0
    %8516 = vmatpush1.msra.mxu0 %v5440
    %8517 = vmatprep.subr.mxu0 0.0
    %8518 = vmatpush1.msra.mxu0 %v5441
    %8519 = vmatprep.subr.mxu0 0.0
    %8520 = vmatpush1.msra.mxu0 %v5442
    %8521 = vmatprep.subr.mxu0 0.0
    %8522 = vmatpush1.msra.mxu0 0.0
    %8523 = vmatprep.subr.mxu0 0.0
    %8524 = vmatpush1.msra.mxu0 0.0
    %8525 = vmatprep.subr.mxu0 0.0
    %8526 = vmatpush1.msra.mxu0 0.0
    %8527 = vmatprep.subr.mxu0 0.0
    %8528 = vmatpush1.msra.mxu0 0.0
    %8529 = vmatprep.subr.mxu0 0.0
    %8530 = vmatpush1.msra.mxu0 0.0
    %8531 = vmatprep.subr.mxu0 0.0
    %8532 = vmatpush1.msra.mxu0 0.0
    %8533 = vmatprep.subr.mxu0 0.0
    %8534 = vmatpush1.msra.mxu0 0.0
    %8535 = vmatprep.subr.mxu0 0.0
    %8536 = vmatpush1.msra.mxu0 0.0
    %8537 = vmatprep.subr.mxu0 0.0
    %8538 = vmatpush1.msra.mxu0 0.0
    %8539 = vmatprep.subr.mxu0 0.0
    %8540 = vmatpush1.msra.mxu0 0.0
    %8541 = vmatprep.subr.mxu0 0.0
    %8542 = vmatpush1.msra.mxu0 0.0
    %8543 = vmatprep.subr.mxu0 0.0
    %8544 = vmatpush1.msra.mxu0 0.0
    %8545 = vmatprep.subr.mxu0 0.0
    %8546 = vmatpush1.msra.mxu0 0.0
    %8547 = vmatprep.subr.mxu0 0.0
    %8548 = vmatpush1.msra.mxu0 0.0
    %8549 = vmatprep.subr.mxu0 0.0
    %8550 = vmatpush1.msra.mxu0 0.0
    %8551 = vmatprep.subr.mxu0 0.0
    %8552 = vmatpush1.msra.mxu0 0.0
    %8553 = vmatprep.subr.mxu0 0.0
    %8554 = vmatpush1.msra.mxu0 0.0
    %8555 = vmatprep.subr.mxu0 0.0
    %8556 = vmatpush1.msra.mxu0 0.0
    %8557 = vmatprep.subr.mxu0 0.0
    %8558 = vmatpush1.msra.mxu0 0.0
    %8559 = vmatprep.subr.mxu0 0.0
    %8560 = vmatpush1.msra.mxu0 0.0
    %8561 = vmatprep.subr.mxu0 0.0
    %8562 = vmatpush1.msra.mxu0 0.0
    %8563 = vmatprep.subr.mxu0 0.0
    %8564 = vmatpush1.msra.mxu0 0.0
    %8565 = vmatprep.subr.mxu0 0.0
    %8566 = vmatpush1.msra.mxu0 0.0
    %8567 = vmatprep.subr.mxu0 0.0
    %8568 = vmatpush1.msra.mxu0 0.0
    %8569 = vmatprep.subr.mxu0 0.0
    %8570 = vmatpush1.msra.mxu0 0.0
    %8571 = vmatprep.subr.mxu0 0.0
    %8572 = vmatpush1.msra.mxu0 0.0
    %8573 = vmatprep.subr.mxu0 0.0
    %8574 = vmatpush1.msra.mxu0 0.0
    %8575 = vmatprep.subr.mxu0 0.0
    %8576 = vmatpush1.msra.mxu0 0.0
    %8577 = vmatprep.mubr.f32.mxu0 0.0
    %8578 = vmatmul.mubr.f32.gmra.mrb[0].mxu0 %v8490
    %v8579 = vpop.f32.mrb[0].mxu0
    %v8580 = vadd.f32 0.0, %v8579
    %v8581 = vpop.f32.mrb[0].mxu0
    %8582 = vmatprep.mubr.f32.mxu0 0.0
    %8583 = vmatmul.mubr.f32.gmra.mrb[0].mxu0 %v8493
    %v8584 = vpop.f32.mrb[0].mxu0
    %v8585 = vadd.f32 0.0, %v8584
    %v8586 = vpop.f32.mrb[0].mxu0
    %8587 = vmatprep.mubr.f32.mxu0 0.0
    %8588 = vmatmul.mubr.f32.gmra.mrb[0].mxu0 %v8496
    %v8589 = vpop.f32.mrb[0].mxu0
    %v8590 = vadd.f32 0.0, %v8589
    %v8591 = vpop.f32.mrb[0].mxu0
    %8592 = vmatprep.mubr.f32.mxu0 0.0
    %8593 = vmatmul.mubr.f32.gmra.mrb[0].mxu0 %v8499
    %v8594 = vpop.f32.mrb[0].mxu0
    %v8595 = vadd.f32 0.0, %v8594
    %v8596 = vpop.f32.mrb[0].mxu0
    %8597 = vmatprep.mubr.f32.mxu0 0.0
    %8598 = vmatmul.mubr.f32.gmra.mrb[0].mxu0 %v8502
    %v8599 = vpop.f32.mrb[0].mxu0
    %v8600 = vadd.f32 0.0, %v8599
    %v8601 = vpop.f32.mrb[0].mxu0
    %8602 = vmatprep.mubr.f32.mxu0 0.0
    %8603 = vmatmul.mubr.f32.gmra.mrb[0].mxu0 %v8505
    %v8604 = vpop.f32.mrb[0].mxu0
    %v8605 = vadd.f32 0.0, %v8604
    %v8606 = vpop.f32.mrb[0].mxu0
    %8607 = vmatprep.mubr.f32.mxu0 0.0
    %8608 = vmatmul.mubr.f32.gmra.mrb[0].mxu0 %v8508
    %v8609 = vpop.f32.mrb[0].mxu0
    %v8610 = vadd.f32 0.0, %v8609
    %v8611 = vpop.f32.mrb[0].mxu0
    %8612 = vmatprep.mubr.f32.mxu0 0.0
    %8613 = vmatmul.mubr.f32.gmra.mrb[0].mxu0 %v8511
    %v8614 = vpop.f32.mrb[0].mxu0
    %v8615 = vadd.f32 0.0, %v8614
    %v8616 = vpop.f32.mrb[0].mxu0
    %8617 = vdwg.mxu0
    %v8618 = vadd.f32 %v8111, %v8580
    %v8619 = vadd.f32 %v8112, %v8585
    %v8620 = vadd.f32 %v8113, %v8590
    %v8621 = vadd.f32 %v8114, %v8595
    %v8622 = vadd.f32 %v8115, %v8600
    %v8623 = vadd.f32 %v8116, %v8605
    %v8624 = vadd.f32 %v8117, %v8610
    %v8625 = vadd.f32 %v8118, %v8615
    %8626 = vrot.lane.b32.xlu0 %v5589, 96
    %v8627 = vpop.permute.xlu0 %8626
    %8628 = vrot.lane.b32.xlu0 %v5594, 96
    %v8629 = vpop.permute.xlu0 %8628
    %8630 = vrot.lane.b32.xlu0 %v5599, 96
    %v8631 = vpop.permute.xlu0 %8630
    %8632 = vrot.lane.b32.xlu0 %v5604, 96
    %v8633 = vpop.permute.xlu0 %8632
    %8634 = vrot.lane.b32.xlu0 %v5609, 96
    %v8635 = vpop.permute.xlu0 %8634
    %8636 = vrot.lane.b32.xlu0 %v5614, 96
    %v8637 = vpop.permute.xlu0 %8636
    %8638 = vrot.lane.b32.xlu0 %v5619, 96
    %v8639 = vpop.permute.xlu0 %8638
    %8640 = vrot.lane.b32.xlu0 %v5624, 96
    %v8641 = vpop.permute.xlu0 %8640
    %8642 = vrot.lane.b32.xlu0 %v5742, 96
    %v8643 = vpop.permute.xlu0 %8642
    %8644 = vrot.lane.b32.xlu0 %v5747, 96
    %v8645 = vpop.permute.xlu0 %8644
    %8646 = vrot.lane.b32.xlu0 %v5752, 96
    %v8647 = vpop.permute.xlu0 %8646
    %8648 = vrot.lane.b32.xlu0 %v5757, 96
    %v8649 = vpop.permute.xlu0 %8648
    %8650 = vrot.lane.b32.xlu0 %v5762, 96
    %v8651 = vpop.permute.xlu0 %8650
    %8652 = vrot.lane.b32.xlu0 %v5767, 96
    %v8653 = vpop.permute.xlu0 %8652
    %8654 = vrot.lane.b32.xlu0 %v5772, 96
    %v8655 = vpop.permute.xlu0 %8654
    %8656 = vrot.lane.b32.xlu0 %v5777, 96
    %v8657 = vpop.permute.xlu0 %8656
    %v8658 = vsel %vm888, %v8627, 0
    %v8660 = vsel %vm888, %v8629, 0
    %v8662 = vsel %vm888, %v8631, 0
    %v8664 = vsel %vm888, %v8633, 0
    %v8666 = vsel %vm888, %v8635, 0
    %v8668 = vsel %vm888, %v8637, 0
    %v8670 = vsel %vm888, %v8639, 0
    %v8672 = vsel %vm888, %v8641, 0
    %v8674 = vsel %vm888, %v8643, 0
    %v8676 = vsel %vm888, %v8645, 0
    %v8678 = vsel %vm888, %v8647, 0
    %v8680 = vsel %vm888, %v8649, 0
    %v8682 = vsel %vm888, %v8651, 0
    %v8684 = vsel %vm888, %v8653, 0
    %v8686 = vsel %vm888, %v8655, 0
    %v8688 = vsel %vm888, %v8657, 0
    %8690 = vmatprep.subr.mxu0 0.0
    %8691 = vmatpush1.xpose.msra.mxu0 %v8674
    %8692 = vmatprep.subr.mxu0 0.0
    %8693 = vmatpush1.xpose.msra.mxu0 %v8676
    %8694 = vmatprep.subr.mxu0 0.0
    %8695 = vmatpush1.xpose.msra.mxu0 %v8678
    %8696 = vmatprep.subr.mxu0 0.0
    %8697 = vmatpush1.xpose.msra.mxu0 %v8680
    %8698 = vmatprep.subr.mxu0 0.0
    %8699 = vmatpush1.xpose.msra.mxu0 %v8682
    %8700 = vmatprep.subr.mxu0 0.0
    %8701 = vmatpush1.xpose.msra.mxu0 %v8684
    %8702 = vmatprep.subr.mxu0 0.0
    %8703 = vmatpush1.xpose.msra.mxu0 %v8686
    %8704 = vmatprep.subr.mxu0 0.0
    %8705 = vmatpush1.xpose.msra.mxu0 %v8688
    %8706 = vmatprep.subr.mxu0 0.0
    %8707 = vmatpush1.xpose.msra.mxu0 0.0
    %8708 = vmatprep.subr.mxu0 0.0
    %8709 = vmatpush1.xpose.msra.mxu0 0.0
    %8710 = vmatprep.subr.mxu0 0.0
    %8711 = vmatpush1.xpose.msra.mxu0 0.0
    %8712 = vmatprep.subr.mxu0 0.0
    %8713 = vmatpush1.xpose.msra.mxu0 0.0
    %8714 = vmatprep.subr.mxu0 0.0
    %8715 = vmatpush1.xpose.msra.mxu0 0.0
    %8716 = vmatprep.subr.mxu0 0.0
    %8717 = vmatpush1.xpose.msra.mxu0 0.0
    %8718 = vmatprep.subr.mxu0 0.0
    %8719 = vmatpush1.xpose.msra.mxu0 0.0
    %8720 = vmatprep.subr.mxu0 0.0
    %8721 = vmatpush1.xpose.msra.mxu0 0.0
    %8722 = vmatprep.subr.mxu0 0.0
    %8723 = vmatpush1.xpose.msra.mxu0 0.0
    %8724 = vmatprep.subr.mxu0 0.0
    %8725 = vmatpush1.xpose.msra.mxu0 0.0
    %8726 = vmatprep.subr.mxu0 0.0
    %8727 = vmatpush1.xpose.msra.mxu0 0.0
    %8728 = vmatprep.subr.mxu0 0.0
    %8729 = vmatpush1.xpose.msra.mxu0 0.0
    %8730 = vmatprep.subr.mxu0 0.0
    %8731 = vmatpush1.xpose.msra.mxu0 0.0
    %8732 = vmatprep.subr.mxu0 0.0
    %8733 = vmatpush1.xpose.msra.mxu0 0.0
    %8734 = vmatprep.subr.mxu0 0.0
    %8735 = vmatpush1.xpose.msra.mxu0 0.0
    %8736 = vmatprep.subr.mxu0 0.0
    %8737 = vmatpush1.xpose.msra.mxu0 0.0
    %8738 = vmatprep.subr.mxu0 0.0
    %8739 = vmatpush1.xpose.msra.mxu0 0.0
    %8740 = vmatprep.subr.mxu0 0.0
    %8741 = vmatpush1.xpose.msra.mxu0 0.0
    %8742 = vmatprep.subr.mxu0 0.0
    %8743 = vmatpush1.xpose.msra.mxu0 0.0
    %8744 = vmatprep.subr.mxu0 0.0
    %8745 = vmatpush1.xpose.msra.mxu0 0.0
    %8746 = vmatprep.subr.mxu0 0.0
    %8747 = vmatpush1.xpose.msra.mxu0 0.0
    %8748 = vmatprep.subr.mxu0 0.0
    %8749 = vmatpush1.xpose.msra.mxu0 0.0
    %8750 = vmatprep.subr.mxu0 0.0
    %8751 = vmatpush1.xpose.msra.mxu0 0.0
    %8752 = vmatprep.subr.mxu0 0.0
    %8753 = vmatpush1.xpose.msra.mxu0 0.0
    %8754 = vmatprep.mubr.f32.mxu0 0.0
    %8755 = vmatmul.mubr.f32.gmra.mrb[0].mxu0 %v8658
    %v8756 = vpop.f32.mrb[0].mxu0
    %v8757 = vadd.f32 0.0, %v8756
    %v8758 = vpop.f32.mrb[0].mxu0
    %8759 = vmatprep.mubr.f32.mxu0 0.0
    %8760 = vmatmul.mubr.f32.gmra.mrb[0].mxu0 %v8660
    %v8761 = vpop.f32.mrb[0].mxu0
    %v8762 = vadd.f32 0.0, %v8761
    %v8763 = vpop.f32.mrb[0].mxu0
    %8764 = vmatprep.mubr.f32.mxu0 0.0
    %8765 = vmatmul.mubr.f32.gmra.mrb[0].mxu0 %v8662
    %v8766 = vpop.f32.mrb[0].mxu0
    %v8767 = vadd.f32 0.0, %v8766
    %v8768 = vpop.f32.mrb[0].mxu0
    %8769 = vmatprep.mubr.f32.mxu0 0.0
    %8770 = vmatmul.mubr.f32.gmra.mrb[0].mxu0 %v8664
    %v8771 = vpop.f32.mrb[0].mxu0
    %v8772 = vadd.f32 0.0, %v8771
    %v8773 = vpop.f32.mrb[0].mxu0
    %8774 = vmatprep.mubr.f32.mxu0 0.0
    %8775 = vmatmul.mubr.f32.gmra.mrb[0].mxu0 %v8666
    %v8776 = vpop.f32.mrb[0].mxu0
    %v8777 = vadd.f32 0.0, %v8776
    %v8778 = vpop.f32.mrb[0].mxu0
    %8779 = vmatprep.mubr.f32.mxu0 0.0
    %8780 = vmatmul.mubr.f32.gmra.mrb[0].mxu0 %v8668
    %v8781 = vpop.f32.mrb[0].mxu0
    %v8782 = vadd.f32 0.0, %v8781
    %v8783 = vpop.f32.mrb[0].mxu0
    %8784 = vmatprep.mubr.f32.mxu0 0.0
    %8785 = vmatmul.mubr.f32.gmra.mrb[0].mxu0 %v8670
    %v8786 = vpop.f32.mrb[0].mxu0
    %v8787 = vadd.f32 0.0, %v8786
    %v8788 = vpop.f32.mrb[0].mxu0
    %8789 = vmatprep.mubr.f32.mxu0 0.0
    %8790 = vmatmul.mubr.f32.gmra.mrb[0].mxu0 %v8672
    %v8791 = vpop.f32.mrb[0].mxu0
    %v8792 = vadd.f32 0.0, %v8791
    %v8793 = vpop.f32.mrb[0].mxu0
    %8794 = vdwg.mxu0
    %v8795 = vsel %vm1042, %v8757, -inf
    %8796 = vmax.xlane.f32.xlu0 %v8795
    %v8797 = vpop.xlane.xlu0 %8796
    %v8798 = vsel %vm1042, %v8762, -inf
    %8799 = vmax.xlane.f32.xlu0 %v8798
    %v8800 = vpop.xlane.xlu0 %8799
    %v8801 = vsel %vm1042, %v8767, -inf
    %8802 = vmax.xlane.f32.xlu0 %v8801
    %v8803 = vpop.xlane.xlu0 %8802
    %v8804 = vsel %vm1042, %v8772, -inf
    %8805 = vmax.xlane.f32.xlu0 %v8804
    %v8806 = vpop.xlane.xlu0 %8805
    %v8807 = vsel %vm1042, %v8777, -inf
    %8808 = vmax.xlane.f32.xlu0 %v8807
    %v8809 = vpop.xlane.xlu0 %8808
    %v8810 = vsel %vm1042, %v8782, -inf
    %8811 = vmax.xlane.f32.xlu0 %v8810
    %v8812 = vpop.xlane.xlu0 %8811
    %v8813 = vsel %vm1042, %v8787, -inf
    %8814 = vmax.xlane.f32.xlu0 %v8813
    %v8815 = vpop.xlane.xlu0 %8814
    %v8816 = vsel %vm1042, %v8792, -inf
    %8817 = vmax.xlane.f32.xlu0 %v8816
    %v8818 = vpop.xlane.xlu0 %8817
    %v8819 = vsub.f32 %v8757, %v8797
    %v8820 = vsub.f32 %v8762, %v8800
    %v8821 = vsub.f32 %v8767, %v8803
    %v8822 = vsub.f32 %v8772, %v8806
    %v8823 = vsub.f32 %v8777, %v8809
    %v8824 = vsub.f32 %v8782, %v8812
    %v8825 = vsub.f32 %v8787, %v8815
    %v8826 = vsub.f32 %v8792, %v8818
    %v8827 = vmul.f32 %v8819, 1.442695
    %v8828 = vpow.pop %v8827
    %v8829 = vmul.f32 %v8820, 1.442695
    %v8830 = vpow.pop %v8829
    %v8831 = vmul.f32 %v8821, 1.442695
    %v8832 = vpow.pop %v8831
    %v8833 = vmul.f32 %v8822, 1.442695
    %v8834 = vpow.pop %v8833
    %v8835 = vmul.f32 %v8823, 1.442695
    %v8836 = vpow.pop %v8835
    %v8837 = vmul.f32 %v8824, 1.442695
    %v8838 = vpow.pop %v8837
    %v8839 = vmul.f32 %v8825, 1.442695
    %v8840 = vpow.pop %v8839
    %v8841 = vmul.f32 %v8826, 1.442695
    %v8842 = vpow.pop %v8841
    %8851 = vrot.lane.b32.xlu0 %v5895, 96
    %v8852 = vpop.permute.xlu0 %8851
    %8853 = vrot.lane.b32.xlu0 %v5900, 96
    %v8854 = vpop.permute.xlu0 %8853
    %8855 = vrot.lane.b32.xlu0 %v5905, 96
    %v8856 = vpop.permute.xlu0 %8855
    %8857 = vrot.lane.b32.xlu0 %v5910, 96
    %v8858 = vpop.permute.xlu0 %8857
    %8859 = vrot.lane.b32.xlu0 %v5915, 96
    %v8860 = vpop.permute.xlu0 %8859
    %8861 = vrot.lane.b32.xlu0 %v5920, 96
    %v8862 = vpop.permute.xlu0 %8861
    %8863 = vrot.lane.b32.xlu0 %v5925, 96
    %v8864 = vpop.permute.xlu0 %8863
    %8865 = vrot.lane.b32.xlu0 %v5930, 96
    %v8866 = vpop.permute.xlu0 %8865
    %v8876 = vsel %vm1042, %v8828, 0
    %v8879 = vsel %vm1042, %v8830, 0
    %v8882 = vsel %vm1042, %v8832, 0
    %v8885 = vsel %vm1042, %v8834, 0
    %v8888 = vsel %vm1042, %v8836, 0
    %v8891 = vsel %vm1042, %v8838, 0
    %v8894 = vsel %vm1042, %v8840, 0
    %v8897 = vsel %vm1042, %v8842, 0
    %8899 = vmatprep.subr.mxu0 0.0
    %8900 = vmatpush1.msra.mxu0 %v8852
    %8901 = vmatprep.subr.mxu0 0.0
    %8902 = vmatpush1.msra.mxu0 %v8854
    %8903 = vmatprep.subr.mxu0 0.0
    %8904 = vmatpush1.msra.mxu0 %v8856
    %8905 = vmatprep.subr.mxu0 0.0
    %8906 = vmatpush1.msra.mxu0 %v8858
    %8907 = vmatprep.subr.mxu0 0.0
    %8908 = vmatpush1.msra.mxu0 %v8860
    %8909 = vmatprep.subr.mxu0 0.0
    %8910 = vmatpush1.msra.mxu0 %v8862
    %8911 = vmatprep.subr.mxu0 0.0
    %8912 = vmatpush1.msra.mxu0 %v8864
    %8913 = vmatprep.subr.mxu0 0.0
    %8914 = vmatpush1.msra.mxu0 %v8866
    %8915 = vmatprep.subr.mxu0 0.0
    %8916 = vmatpush1.msra.mxu0 0.0
    %8917 = vmatprep.subr.mxu0 0.0
    %8918 = vmatpush1.msra.mxu0 0.0
    %8919 = vmatprep.subr.mxu0 0.0
    %8920 = vmatpush1.msra.mxu0 0.0
    %8921 = vmatprep.subr.mxu0 0.0
    %8922 = vmatpush1.msra.mxu0 0.0
    %8923 = vmatprep.subr.mxu0 0.0
    %8924 = vmatpush1.msra.mxu0 0.0
    %8925 = vmatprep.subr.mxu0 0.0
    %8926 = vmatpush1.msra.mxu0 0.0
    %8927 = vmatprep.subr.mxu0 0.0
    %8928 = vmatpush1.msra.mxu0 0.0
    %8929 = vmatprep.subr.mxu0 0.0
    %8930 = vmatpush1.msra.mxu0 0.0
    %8931 = vmatprep.subr.mxu0 0.0
    %8932 = vmatpush1.msra.mxu0 0.0
    %8933 = vmatprep.subr.mxu0 0.0
    %8934 = vmatpush1.msra.mxu0 0.0
    %8935 = vmatprep.subr.mxu0 0.0
    %8936 = vmatpush1.msra.mxu0 0.0
    %8937 = vmatprep.subr.mxu0 0.0
    %8938 = vmatpush1.msra.mxu0 0.0
    %8939 = vmatprep.subr.mxu0 0.0
    %8940 = vmatpush1.msra.mxu0 0.0
    %8941 = vmatprep.subr.mxu0 0.0
    %8942 = vmatpush1.msra.mxu0 0.0
    %8943 = vmatprep.subr.mxu0 0.0
    %8944 = vmatpush1.msra.mxu0 0.0
    %8945 = vmatprep.subr.mxu0 0.0
    %8946 = vmatpush1.msra.mxu0 0.0
    %8947 = vmatprep.subr.mxu0 0.0
    %8948 = vmatpush1.msra.mxu0 0.0
    %8949 = vmatprep.subr.mxu0 0.0
    %8950 = vmatpush1.msra.mxu0 0.0
    %8951 = vmatprep.subr.mxu0 0.0
    %8952 = vmatpush1.msra.mxu0 0.0
    %8953 = vmatprep.subr.mxu0 0.0
    %8954 = vmatpush1.msra.mxu0 0.0
    %8955 = vmatprep.subr.mxu0 0.0
    %8956 = vmatpush1.msra.mxu0 0.0
    %8957 = vmatprep.subr.mxu0 0.0
    %8958 = vmatpush1.msra.mxu0 0.0
    %8959 = vmatprep.subr.mxu0 0.0
    %8960 = vmatpush1.msra.mxu0 0.0
    %8961 = vmatprep.subr.mxu0 0.0
    %8962 = vmatpush1.msra.mxu0 0.0
    %8963 = vmatprep.mubr.f32.mxu0 0.0
    %8964 = vmatmul.mubr.f32.gmra.mrb[0].mxu0 %v8876
    %v8965 = vpop.f32.mrb[0].mxu0
    %v8966 = vadd.f32 0.0, %v8965
    %v8967 = vpop.f32.mrb[0].mxu0
    %8968 = vmatprep.mubr.f32.mxu0 0.0
    %8969 = vmatmul.mubr.f32.gmra.mrb[0].mxu0 %v8879
    %v8970 = vpop.f32.mrb[0].mxu0
    %v8971 = vadd.f32 0.0, %v8970
    %v8972 = vpop.f32.mrb[0].mxu0
    %8973 = vmatprep.mubr.f32.mxu0 0.0
    %8974 = vmatmul.mubr.f32.gmra.mrb[0].mxu0 %v8882
    %v8975 = vpop.f32.mrb[0].mxu0
    %v8976 = vadd.f32 0.0, %v8975
    %v8977 = vpop.f32.mrb[0].mxu0
    %8978 = vmatprep.mubr.f32.mxu0 0.0
    %8979 = vmatmul.mubr.f32.gmra.mrb[0].mxu0 %v8885
    %v8980 = vpop.f32.mrb[0].mxu0
    %v8981 = vadd.f32 0.0, %v8980
    %v8982 = vpop.f32.mrb[0].mxu0
    %8983 = vmatprep.mubr.f32.mxu0 0.0
    %8984 = vmatmul.mubr.f32.gmra.mrb[0].mxu0 %v8888
    %v8985 = vpop.f32.mrb[0].mxu0
    %v8986 = vadd.f32 0.0, %v8985
    %v8987 = vpop.f32.mrb[0].mxu0
    %8988 = vmatprep.mubr.f32.mxu0 0.0
    %8989 = vmatmul.mubr.f32.gmra.mrb[0].mxu0 %v8891
    %v8990 = vpop.f32.mrb[0].mxu0
    %v8991 = vadd.f32 0.0, %v8990
    %v8992 = vpop.f32.mrb[0].mxu0
    %8993 = vmatprep.mubr.f32.mxu0 0.0
    %8994 = vmatmul.mubr.f32.gmra.mrb[0].mxu0 %v8894
    %v8995 = vpop.f32.mrb[0].mxu0
    %v8996 = vadd.f32 0.0, %v8995
    %v8997 = vpop.f32.mrb[0].mxu0
    %8998 = vmatprep.mubr.f32.mxu0 0.0
    %8999 = vmatmul.mubr.f32.gmra.mrb[0].mxu0 %v8897
    %v9000 = vpop.f32.mrb[0].mxu0
    %v9001 = vadd.f32 0.0, %v9000
    %v9002 = vpop.f32.mrb[0].mxu0
    %9003 = vdwg.mxu0
    %v9004 = vsel %vm1042, %v8828, 0.0
    %9005 = vadd.xlane.f32.xlu0 %v9004
    %v9006 = vpop.xlane.xlu0 %9005
    %v9007 = vsel %vm1042, %v8830, 0.0
    %9008 = vadd.xlane.f32.xlu0 %v9007
    %v9009 = vpop.xlane.xlu0 %9008
    %v9010 = vsel %vm1042, %v8832, 0.0
    %9011 = vadd.xlane.f32.xlu0 %v9010
    %v9012 = vpop.xlane.xlu0 %9011
    %v9013 = vsel %vm1042, %v8834, 0.0
    %9014 = vadd.xlane.f32.xlu0 %v9013
    %v9015 = vpop.xlane.xlu0 %9014
    %v9016 = vsel %vm1042, %v8836, 0.0
    %9017 = vadd.xlane.f32.xlu0 %v9016
    %v9018 = vpop.xlane.xlu0 %9017
    %v9019 = vsel %vm1042, %v8838, 0.0
    %9020 = vadd.xlane.f32.xlu0 %v9019
    %v9021 = vpop.xlane.xlu0 %9020
    %v9022 = vsel %vm1042, %v8840, 0.0
    %9023 = vadd.xlane.f32.xlu0 %v9022
    %v9024 = vpop.xlane.xlu0 %9023
    %v9025 = vsel %vm1042, %v8842, 0.0
    %9026 = vadd.xlane.f32.xlu0 %v9025
    %v9027 = vpop.xlane.xlu0 %9026
    %v9028 = vrcp.pop %v9006
    %v9029 = vrcp.pop %v9009
    %v9030 = vrcp.pop %v9012
    %v9031 = vrcp.pop %v9015
    %v9032 = vrcp.pop %v9018
    %v9033 = vrcp.pop %v9021
    %v9034 = vrcp.pop %v9024
    %v9035 = vrcp.pop %v9027
    %v9036 = vmul.f32 %v8966, %v9028
    %v9037 = vmul.f32 %v8971, %v9029
    %v9038 = vmul.f32 %v8976, %v9030
    %v9039 = vmul.f32 %v8981, %v9031
    %v9040 = vmul.f32 %v8986, %v9032
    %v9041 = vmul.f32 %v8991, %v9033
    %v9042 = vmul.f32 %v8996, %v9034
    %v9043 = vmul.f32 %v9001, %v9035
    %v9045 = vsel %vm888, %v9036, 0
    %v9048 = vsel %vm888, %v9037, 0
    %v9051 = vsel %vm888, %v9038, 0
    %v9054 = vsel %vm888, %v9039, 0
    %v9057 = vsel %vm888, %v9040, 0
    %v9060 = vsel %vm888, %v9041, 0
    %v9063 = vsel %vm888, %v9042, 0
    %v9066 = vsel %vm888, %v9043, 0
    %9068 = vmatprep.subr.mxu0 0.0
    %9069 = vmatpush1.msra.mxu0 %v5443
    %9070 = vmatprep.subr.mxu0 0.0
    %9071 = vmatpush1.msra.mxu0 %v5444
    %9072 = vmatprep.subr.mxu0 0.0
    %9073 = vmatpush1.msra.mxu0 %v5445
    %9074 = vmatprep.subr.mxu0 0.0
    %9075 = vmatpush1.msra.mxu0 %v5446
    %9076 = vmatprep.subr.mxu0 0.0
    %9077 = vmatpush1.msra.mxu0 0.0
    %9078 = vmatprep.subr.mxu0 0.0
    %9079 = vmatpush1.msra.mxu0 0.0
    %9080 = vmatprep.subr.mxu0 0.0
    %9081 = vmatpush1.msra.mxu0 0.0
    %9082 = vmatprep.subr.mxu0 0.0
    %9083 = vmatpush1.msra.mxu0 0.0
    %9084 = vmatprep.subr.mxu0 0.0
    %9085 = vmatpush1.msra.mxu0 0.0
    %9086 = vmatprep.subr.mxu0 0.0
    %9087 = vmatpush1.msra.mxu0 0.0
    %9088 = vmatprep.subr.mxu0 0.0
    %9089 = vmatpush1.msra.mxu0 0.0
    %9090 = vmatprep.subr.mxu0 0.0
    %9091 = vmatpush1.msra.mxu0 0.0
    %9092 = vmatprep.subr.mxu0 0.0
    %9093 = vmatpush1.msra.mxu0 0.0
    %9094 = vmatprep.subr.mxu0 0.0
    %9095 = vmatpush1.msra.mxu0 0.0
    %9096 = vmatprep.subr.mxu0 0.0
    %9097 = vmatpush1.msra.mxu0 0.0
    %9098 = vmatprep.subr.mxu0 0.0
    %9099 = vmatpush1.msra.mxu0 0.0
    %9100 = vmatprep.subr.mxu0 0.0
    %9101 = vmatpush1.msra.mxu0 0.0
    %9102 = vmatprep.subr.mxu0 0.0
    %9103 = vmatpush1.msra.mxu0 0.0
    %9104 = vmatprep.subr.mxu0 0.0
    %9105 = vmatpush1.msra.mxu0 0.0
    %9106 = vmatprep.subr.mxu0 0.0
    %9107 = vmatpush1.msra.mxu0 0.0
    %9108 = vmatprep.subr.mxu0 0.0
    %9109 = vmatpush1.msra.mxu0 0.0
    %9110 = vmatprep.subr.mxu0 0.0
    %9111 = vmatpush1.msra.mxu0 0.0
    %9112 = vmatprep.subr.mxu0 0.0
    %9113 = vmatpush1.msra.mxu0 0.0
    %9114 = vmatprep.subr.mxu0 0.0
    %9115 = vmatpush1.msra.mxu0 0.0
    %9116 = vmatprep.subr.mxu0 0.0
    %9117 = vmatpush1.msra.mxu0 0.0
    %9118 = vmatprep.subr.mxu0 0.0
    %9119 = vmatpush1.msra.mxu0 0.0
    %9120 = vmatprep.subr.mxu0 0.0
    %9121 = vmatpush1.msra.mxu0 0.0
    %9122 = vmatprep.subr.mxu0 0.0
    %9123 = vmatpush1.msra.mxu0 0.0
    %9124 = vmatprep.subr.mxu0 0.0
    %9125 = vmatpush1.msra.mxu0 0.0
    %9126 = vmatprep.subr.mxu0 0.0
    %9127 = vmatpush1.msra.mxu0 0.0
    %9128 = vmatprep.subr.mxu0 0.0
    %9129 = vmatpush1.msra.mxu0 0.0
    %9130 = vmatprep.subr.mxu0 0.0
    %9131 = vmatpush1.msra.mxu0 0.0
    %9132 = vmatprep.mubr.f32.mxu0 0.0
    %9133 = vmatmul.mubr.f32.gmra.mrb[0].mxu0 %v9045
    %v9134 = vpop.f32.mrb[0].mxu0
    %v9135 = vadd.f32 0.0, %v9134
    %v9136 = vpop.f32.mrb[0].mxu0
    %9137 = vmatprep.mubr.f32.mxu0 0.0
    %9138 = vmatmul.mubr.f32.gmra.mrb[0].mxu0 %v9048
    %v9139 = vpop.f32.mrb[0].mxu0
    %v9140 = vadd.f32 0.0, %v9139
    %v9141 = vpop.f32.mrb[0].mxu0
    %9142 = vmatprep.mubr.f32.mxu0 0.0
    %9143 = vmatmul.mubr.f32.gmra.mrb[0].mxu0 %v9051
    %v9144 = vpop.f32.mrb[0].mxu0
    %v9145 = vadd.f32 0.0, %v9144
    %v9146 = vpop.f32.mrb[0].mxu0
    %9147 = vmatprep.mubr.f32.mxu0 0.0
    %9148 = vmatmul.mubr.f32.gmra.mrb[0].mxu0 %v9054
    %v9149 = vpop.f32.mrb[0].mxu0
    %v9150 = vadd.f32 0.0, %v9149
    %v9151 = vpop.f32.mrb[0].mxu0
    %9152 = vmatprep.mubr.f32.mxu0 0.0
    %9153 = vmatmul.mubr.f32.gmra.mrb[0].mxu0 %v9057
    %v9154 = vpop.f32.mrb[0].mxu0
    %v9155 = vadd.f32 0.0, %v9154
    %v9156 = vpop.f32.mrb[0].mxu0
    %9157 = vmatprep.mubr.f32.mxu0 0.0
    %9158 = vmatmul.mubr.f32.gmra.mrb[0].mxu0 %v9060
    %v9159 = vpop.f32.mrb[0].mxu0
    %v9160 = vadd.f32 0.0, %v9159
    %v9161 = vpop.f32.mrb[0].mxu0
    %9162 = vmatprep.mubr.f32.mxu0 0.0
    %9163 = vmatmul.mubr.f32.gmra.mrb[0].mxu0 %v9063
    %v9164 = vpop.f32.mrb[0].mxu0
    %v9165 = vadd.f32 0.0, %v9164
    %v9166 = vpop.f32.mrb[0].mxu0
    %9167 = vmatprep.mubr.f32.mxu0 0.0
    %9168 = vmatmul.mubr.f32.gmra.mrb[0].mxu0 %v9066
    %v9169 = vpop.f32.mrb[0].mxu0
    %v9170 = vadd.f32 0.0, %v9169
    %v9171 = vpop.f32.mrb[0].mxu0
    %9172 = vdwg.mxu0
    %v9173 = vadd.f32 %v8618, %v9135
    %v9174 = vadd.f32 %v8619, %v9140
    %v9175 = vadd.f32 %v8620, %v9145
    %v9176 = vadd.f32 %v8621, %v9150
    %v9177 = vadd.f32 %v8622, %v9155
    %v9178 = vadd.f32 %v8623, %v9160
    %v9179 = vadd.f32 %v8624, %v9165
    %v9180 = vadd.f32 %v8625, %v9170
    %9181 = vrot.lane.b32.xlu0 %v5589, 64
    %v9182 = vpop.permute.xlu0 %9181
    %9183 = vrot.lane.b32.xlu0 %v5594, 64
    %v9184 = vpop.permute.xlu0 %9183
    %9185 = vrot.lane.b32.xlu0 %v5599, 64
    %v9186 = vpop.permute.xlu0 %9185
    %9187 = vrot.lane.b32.xlu0 %v5604, 64
    %v9188 = vpop.permute.xlu0 %9187
    %9189 = vrot.lane.b32.xlu0 %v5609, 64
    %v9190 = vpop.permute.xlu0 %9189
    %9191 = vrot.lane.b32.xlu0 %v5614, 64
    %v9192 = vpop.permute.xlu0 %9191
    %9193 = vrot.lane.b32.xlu0 %v5619, 64
    %v9194 = vpop.permute.xlu0 %9193
    %9195 = vrot.lane.b32.xlu0 %v5624, 64
    %v9196 = vpop.permute.xlu0 %9195
    %9197 = vrot.lane.b32.xlu0 %v5742, 64
    %v9198 = vpop.permute.xlu0 %9197
    %9199 = vrot.lane.b32.xlu0 %v5747, 64
    %v9200 = vpop.permute.xlu0 %9199
    %9201 = vrot.lane.b32.xlu0 %v5752, 64
    %v9202 = vpop.permute.xlu0 %9201
    %9203 = vrot.lane.b32.xlu0 %v5757, 64
    %v9204 = vpop.permute.xlu0 %9203
    %9205 = vrot.lane.b32.xlu0 %v5762, 64
    %v9206 = vpop.permute.xlu0 %9205
    %9207 = vrot.lane.b32.xlu0 %v5767, 64
    %v9208 = vpop.permute.xlu0 %9207
    %9209 = vrot.lane.b32.xlu0 %v5772, 64
    %v9210 = vpop.permute.xlu0 %9209
    %9211 = vrot.lane.b32.xlu0 %v5777, 64
    %v9212 = vpop.permute.xlu0 %9211
    %v9213 = vsel %vm888, %v9182, 0
    %v9215 = vsel %vm888, %v9184, 0
    %v9217 = vsel %vm888, %v9186, 0
    %v9219 = vsel %vm888, %v9188, 0
    %v9221 = vsel %vm888, %v9190, 0
    %v9223 = vsel %vm888, %v9192, 0
    %v9225 = vsel %vm888, %v9194, 0
    %v9227 = vsel %vm888, %v9196, 0
    %v9229 = vsel %vm888, %v9198, 0
    %v9231 = vsel %vm888, %v9200, 0
    %v9233 = vsel %vm888, %v9202, 0
    %v9235 = vsel %vm888, %v9204, 0
    %v9237 = vsel %vm888, %v9206, 0
    %v9239 = vsel %vm888, %v9208, 0
    %v9241 = vsel %vm888, %v9210, 0
    %v9243 = vsel %vm888, %v9212, 0
    %9245 = vmatprep.subr.mxu0 0.0
    %9246 = vmatpush1.xpose.msra.mxu0 %v9229
    %9247 = vmatprep.subr.mxu0 0.0
    %9248 = vmatpush1.xpose.msra.mxu0 %v9231
    %9249 = vmatprep.subr.mxu0 0.0
    %9250 = vmatpush1.xpose.msra.mxu0 %v9233
    %9251 = vmatprep.subr.mxu0 0.0
    %9252 = vmatpush1.xpose.msra.mxu0 %v9235
    %9253 = vmatprep.subr.mxu0 0.0
    %9254 = vmatpush1.xpose.msra.mxu0 %v9237
    %9255 = vmatprep.subr.mxu0 0.0
    %9256 = vmatpush1.xpose.msra.mxu0 %v9239
    %9257 = vmatprep.subr.mxu0 0.0
    %9258 = vmatpush1.xpose.msra.mxu0 %v9241
    %9259 = vmatprep.subr.mxu0 0.0
    %9260 = vmatpush1.xpose.msra.mxu0 %v9243
    %9261 = vmatprep.subr.mxu0 0.0
    %9262 = vmatpush1.xpose.msra.mxu0 0.0
    %9263 = vmatprep.subr.mxu0 0.0
    %9264 = vmatpush1.xpose.msra.mxu0 0.0
    %9265 = vmatprep.subr.mxu0 0.0
    %9266 = vmatpush1.xpose.msra.mxu0 0.0
    %9267 = vmatprep.subr.mxu0 0.0
    %9268 = vmatpush1.xpose.msra.mxu0 0.0
    %9269 = vmatprep.subr.mxu0 0.0
    %9270 = vmatpush1.xpose.msra.mxu0 0.0
    %9271 = vmatprep.subr.mxu0 0.0
    %9272 = vmatpush1.xpose.msra.mxu0 0.0
    %9273 = vmatprep.subr.mxu0 0.0
    %9274 = vmatpush1.xpose.msra.mxu0 0.0
    %9275 = vmatprep.subr.mxu0 0.0
    %9276 = vmatpush1.xpose.msra.mxu0 0.0
    %9277 = vmatprep.subr.mxu0 0.0
    %9278 = vmatpush1.xpose.msra.mxu0 0.0
    %9279 = vmatprep.subr.mxu0 0.0
    %9280 = vmatpush1.xpose.msra.mxu0 0.0
    %9281 = vmatprep.subr.mxu0 0.0
    %9282 = vmatpush1.xpose.msra.mxu0 0.0
    %9283 = vmatprep.subr.mxu0 0.0
    %9284 = vmatpush1.xpose.msra.mxu0 0.0
    %9285 = vmatprep.subr.mxu0 0.0
    %9286 = vmatpush1.xpose.msra.mxu0 0.0
    %9287 = vmatprep.subr.mxu0 0.0
    %9288 = vmatpush1.xpose.msra.mxu0 0.0
    %9289 = vmatprep.subr.mxu0 0.0
    %9290 = vmatpush1.xpose.msra.mxu0 0.0
    %9291 = vmatprep.subr.mxu0 0.0
    %9292 = vmatpush1.xpose.msra.mxu0 0.0
    %9293 = vmatprep.subr.mxu0 0.0
    %9294 = vmatpush1.xpose.msra.mxu0 0.0
    %9295 = vmatprep.subr.mxu0 0.0
    %9296 = vmatpush1.xpose.msra.mxu0 0.0
    %9297 = vmatprep.subr.mxu0 0.0
    %9298 = vmatpush1.xpose.msra.mxu0 0.0
    %9299 = vmatprep.subr.mxu0 0.0
    %9300 = vmatpush1.xpose.msra.mxu0 0.0
    %9301 = vmatprep.subr.mxu0 0.0
    %9302 = vmatpush1.xpose.msra.mxu0 0.0
    %9303 = vmatprep.subr.mxu0 0.0
    %9304 = vmatpush1.xpose.msra.mxu0 0.0
    %9305 = vmatprep.subr.mxu0 0.0
    %9306 = vmatpush1.xpose.msra.mxu0 0.0
    %9307 = vmatprep.subr.mxu0 0.0
    %9308 = vmatpush1.xpose.msra.mxu0 0.0
    %9309 = vmatprep.mubr.f32.mxu0 0.0
    %9310 = vmatmul.mubr.f32.gmra.mrb[0].mxu0 %v9213
    %v9311 = vpop.f32.mrb[0].mxu0
    %v9312 = vadd.f32 0.0, %v9311
    %v9313 = vpop.f32.mrb[0].mxu0
    %9314 = vmatprep.mubr.f32.mxu0 0.0
    %9315 = vmatmul.mubr.f32.gmra.mrb[0].mxu0 %v9215
    %v9316 = vpop.f32.mrb[0].mxu0
    %v9317 = vadd.f32 0.0, %v9316
    %v9318 = vpop.f32.mrb[0].mxu0
    %9319 = vmatprep.mubr.f32.mxu0 0.0
    %9320 = vmatmul.mubr.f32.gmra.mrb[0].mxu0 %v9217
    %v9321 = vpop.f32.mrb[0].mxu0
    %v9322 = vadd.f32 0.0, %v9321
    %v9323 = vpop.f32.mrb[0].mxu0
    %9324 = vmatprep.mubr.f32.mxu0 0.0
    %9325 = vmatmul.mubr.f32.gmra.mrb[0].mxu0 %v9219
    %v9326 = vpop.f32.mrb[0].mxu0
    %v9327 = vadd.f32 0.0, %v9326
    %v9328 = vpop.f32.mrb[0].mxu0
    %9329 = vmatprep.mubr.f32.mxu0 0.0
    %9330 = vmatmul.mubr.f32.gmra.mrb[0].mxu0 %v9221
    %v9331 = vpop.f32.mrb[0].mxu0
    %v9332 = vadd.f32 0.0, %v9331
    %v9333 = vpop.f32.mrb[0].mxu0
    %9334 = vmatprep.mubr.f32.mxu0 0.0
    %9335 = vmatmul.mubr.f32.gmra.mrb[0].mxu0 %v9223
    %v9336 = vpop.f32.mrb[0].mxu0
    %v9337 = vadd.f32 0.0, %v9336
    %v9338 = vpop.f32.mrb[0].mxu0
    %9339 = vmatprep.mubr.f32.mxu0 0.0
    %9340 = vmatmul.mubr.f32.gmra.mrb[0].mxu0 %v9225
    %v9341 = vpop.f32.mrb[0].mxu0
    %v9342 = vadd.f32 0.0, %v9341
    %v9343 = vpop.f32.mrb[0].mxu0
    %9344 = vmatprep.mubr.f32.mxu0 0.0
    %9345 = vmatmul.mubr.f32.gmra.mrb[0].mxu0 %v9227
    %v9346 = vpop.f32.mrb[0].mxu0
    %v9347 = vadd.f32 0.0, %v9346
    %v9348 = vpop.f32.mrb[0].mxu0
    %9349 = vdwg.mxu0
    %v9350 = vsel %vm1042, %v9312, -inf
    %9351 = vmax.xlane.f32.xlu0 %v9350
    %v9352 = vpop.xlane.xlu0 %9351
    %v9353 = vsel %vm1042, %v9317, -inf
    %9354 = vmax.xlane.f32.xlu0 %v9353
    %v9355 = vpop.xlane.xlu0 %9354
    %v9356 = vsel %vm1042, %v9322, -inf
    %9357 = vmax.xlane.f32.xlu0 %v9356
    %v9358 = vpop.xlane.xlu0 %9357
    %v9359 = vsel %vm1042, %v9327, -inf
    %9360 = vmax.xlane.f32.xlu0 %v9359
    %v9361 = vpop.xlane.xlu0 %9360
    %v9362 = vsel %vm1042, %v9332, -inf
    %9363 = vmax.xlane.f32.xlu0 %v9362
    %v9364 = vpop.xlane.xlu0 %9363
    %v9365 = vsel %vm1042, %v9337, -inf
    %9366 = vmax.xlane.f32.xlu0 %v9365
    %v9367 = vpop.xlane.xlu0 %9366
    %v9368 = vsel %vm1042, %v9342, -inf
    %9369 = vmax.xlane.f32.xlu0 %v9368
    %v9370 = vpop.xlane.xlu0 %9369
    %v9371 = vsel %vm1042, %v9347, -inf
    %9372 = vmax.xlane.f32.xlu0 %v9371
    %v9373 = vpop.xlane.xlu0 %9372
    %v9374 = vsub.f32 %v9312, %v9352
    %v9375 = vsub.f32 %v9317, %v9355
    %v9376 = vsub.f32 %v9322, %v9358
    %v9377 = vsub.f32 %v9327, %v9361
    %v9378 = vsub.f32 %v9332, %v9364
    %v9379 = vsub.f32 %v9337, %v9367
    %v9380 = vsub.f32 %v9342, %v9370
    %v9381 = vsub.f32 %v9347, %v9373
    %v9382 = vmul.f32 %v9374, 1.442695
    %v9383 = vpow.pop %v9382
    %v9384 = vmul.f32 %v9375, 1.442695
    %v9385 = vpow.pop %v9384
    %v9386 = vmul.f32 %v9376, 1.442695
    %v9387 = vpow.pop %v9386
    %v9388 = vmul.f32 %v9377, 1.442695
    %v9389 = vpow.pop %v9388
    %v9390 = vmul.f32 %v9378, 1.442695
    %v9391 = vpow.pop %v9390
    %v9392 = vmul.f32 %v9379, 1.442695
    %v9393 = vpow.pop %v9392
    %v9394 = vmul.f32 %v9380, 1.442695
    %v9395 = vpow.pop %v9394
    %v9396 = vmul.f32 %v9381, 1.442695
    %v9397 = vpow.pop %v9396
    %9398 = vrot.lane.b32.xlu0 %v5895, 64
    %v9399 = vpop.permute.xlu0 %9398
    %9400 = vrot.lane.b32.xlu0 %v5900, 64
    %v9401 = vpop.permute.xlu0 %9400
    %9402 = vrot.lane.b32.xlu0 %v5905, 64
    %v9403 = vpop.permute.xlu0 %9402
    %9404 = vrot.lane.b32.xlu0 %v5910, 64
    %v9405 = vpop.permute.xlu0 %9404
    %9406 = vrot.lane.b32.xlu0 %v5915, 64
    %v9407 = vpop.permute.xlu0 %9406
    %9408 = vrot.lane.b32.xlu0 %v5920, 64
    %v9409 = vpop.permute.xlu0 %9408
    %9410 = vrot.lane.b32.xlu0 %v5925, 64
    %v9411 = vpop.permute.xlu0 %9410
    %9412 = vrot.lane.b32.xlu0 %v5930, 64
    %v9413 = vpop.permute.xlu0 %9412
    %v9423 = vsel %vm1042, %v9383, 0
    %v9426 = vsel %vm1042, %v9385, 0
    %v9429 = vsel %vm1042, %v9387, 0
    %v9432 = vsel %vm1042, %v9389, 0
    %v9435 = vsel %vm1042, %v9391, 0
    %v9438 = vsel %vm1042, %v9393, 0
    %v9441 = vsel %vm1042, %v9395, 0
    %v9444 = vsel %vm1042, %v9397, 0
    %9446 = vmatprep.subr.mxu0 0.0
    %9447 = vmatpush1.msra.mxu0 %v9399
    %9448 = vmatprep.subr.mxu0 0.0
    %9449 = vmatpush1.msra.mxu0 %v9401
    %9450 = vmatprep.subr.mxu0 0.0
    %9451 = vmatpush1.msra.mxu0 %v9403
    %9452 = vmatprep.subr.mxu0 0.0
    %9453 = vmatpush1.msra.mxu0 %v9405
    %9454 = vmatprep.subr.mxu0 0.0
    %9455 = vmatpush1.msra.mxu0 %v9407
    %9456 = vmatprep.subr.mxu0 0.0
    %9457 = vmatpush1.msra.mxu0 %v9409
    %9458 = vmatprep.subr.mxu0 0.0
    %9459 = vmatpush1.msra.mxu0 %v9411
    %9460 = vmatprep.subr.mxu0 0.0
    %9461 = vmatpush1.msra.mxu0 %v9413
    %9462 = vmatprep.subr.mxu0 0.0
    %9463 = vmatpush1.msra.mxu0 0.0
    %9464 = vmatprep.subr.mxu0 0.0
    %9465 = vmatpush1.msra.mxu0 0.0
    %9466 = vmatprep.subr.mxu0 0.0
    %9467 = vmatpush1.msra.mxu0 0.0
    %9468 = vmatprep.subr.mxu0 0.0
    %9469 = vmatpush1.msra.mxu0 0.0
    %9470 = vmatprep.subr.mxu0 0.0
    %9471 = vmatpush1.msra.mxu0 0.0
    %9472 = vmatprep.subr.mxu0 0.0
    %9473 = vmatpush1.msra.mxu0 0.0
    %9474 = vmatprep.subr.mxu0 0.0
    %9475 = vmatpush1.msra.mxu0 0.0
    %9476 = vmatprep.subr.mxu0 0.0
    %9477 = vmatpush1.msra.mxu0 0.0
    %9478 = vmatprep.subr.mxu0 0.0
    %9479 = vmatpush1.msra.mxu0 0.0
    %9480 = vmatprep.subr.mxu0 0.0
    %9481 = vmatpush1.msra.mxu0 0.0
    %9482 = vmatprep.subr.mxu0 0.0
    %9483 = vmatpush1.msra.mxu0 0.0
    %9484 = vmatprep.subr.mxu0 0.0
    %9485 = vmatpush1.msra.mxu0 0.0
    %9486 = vmatprep.subr.mxu0 0.0
    %9487 = vmatpush1.msra.mxu0 0.0
    %9488 = vmatprep.subr.mxu0 0.0
    %9489 = vmatpush1.msra.mxu0 0.0
    %9490 = vmatprep.subr.mxu0 0.0
    %9491 = vmatpush1.msra.mxu0 0.0
    %9492 = vmatprep.subr.mxu0 0.0
    %9493 = vmatpush1.msra.mxu0 0.0
    %9494 = vmatprep.subr.mxu0 0.0
    %9495 = vmatpush1.msra.mxu0 0.0
    %9496 = vmatprep.subr.mxu0 0.0
    %9497 = vmatpush1.msra.mxu0 0.0
    %9498 = vmatprep.subr.mxu0 0.0
    %9499 = vmatpush1.msra.mxu0 0.0
    %9500 = vmatprep.subr.mxu0 0.0
    %9501 = vmatpush1.msra.mxu0 0.0
    %9502 = vmatprep.subr.mxu0 0.0
    %9503 = vmatpush1.msra.mxu0 0.0
    %9504 = vmatprep.subr.mxu0 0.0
    %9505 = vmatpush1.msra.mxu0 0.0
    %9506 = vmatprep.subr.mxu0 0.0
    %9507 = vmatpush1.msra.mxu0 0.0
    %9508 = vmatprep.subr.mxu0 0.0
    %9509 = vmatpush1.msra.mxu0 0.0
    %9510 = vmatprep.mubr.f32.mxu0 0.0
    %9511 = vmatmul.mubr.f32.gmra.mrb[0].mxu0 %v9423
    %v9512 = vpop.f32.mrb[0].mxu0
    %v9513 = vadd.f32 0.0, %v9512
    %v9514 = vpop.f32.mrb[0].mxu0
    %9515 = vmatprep.mubr.f32.mxu0 0.0
    %9516 = vmatmul.mubr.f32.gmra.mrb[0].mxu0 %v9426
    %v9517 = vpop.f32.mrb[0].mxu0
    %v9518 = vadd.f32 0.0, %v9517
    %v9519 = vpop.f32.mrb[0].mxu0
    %9520 = vmatprep.mubr.f32.mxu0 0.0
    %9521 = vmatmul.mubr.f32.gmra.mrb[0].mxu0 %v9429
    %v9522 = vpop.f32.mrb[0].mxu0
    %v9523 = vadd.f32 0.0, %v9522
    %v9524 = vpop.f32.mrb[0].mxu0
    %9525 = vmatprep.mubr.f32.mxu0 0.0
    %9526 = vmatmul.mubr.f32.gmra.mrb[0].mxu0 %v9432
    %v9527 = vpop.f32.mrb[0].mxu0
    %v9528 = vadd.f32 0.0, %v9527
    %v9529 = vpop.f32.mrb[0].mxu0
    %9530 = vmatprep.mubr.f32.mxu0 0.0
    %9531 = vmatmul.mubr.f32.gmra.mrb[0].mxu0 %v9435
    %v9532 = vpop.f32.mrb[0].mxu0
    %v9533 = vadd.f32 0.0, %v9532
    %v9534 = vpop.f32.mrb[0].mxu0
    %9535 = vmatprep.mubr.f32.mxu0 0.0
    %9536 = vmatmul.mubr.f32.gmra.mrb[0].mxu0 %v9438
    %v9537 = vpop.f32.mrb[0].mxu0
    %v9538 = vadd.f32 0.0, %v9537
    %v9539 = vpop.f32.mrb[0].mxu0
    %9540 = vmatprep.mubr.f32.mxu0 0.0
    %9541 = vmatmul.mubr.f32.gmra.mrb[0].mxu0 %v9441
    %v9542 = vpop.f32.mrb[0].mxu0
    %v9543 = vadd.f32 0.0, %v9542
    %v9544 = vpop.f32.mrb[0].mxu0
    %9545 = vmatprep.mubr.f32.mxu0 0.0
    %9546 = vmatmul.mubr.f32.gmra.mrb[0].mxu0 %v9444
    %v9547 = vpop.f32.mrb[0].mxu0
    %v9548 = vadd.f32 0.0, %v9547
    %v9549 = vpop.f32.mrb[0].mxu0
    %9550 = vdwg.mxu0
    %v9551 = vsel %vm1042, %v9383, 0.0
    %9552 = vadd.xlane.f32.xlu0 %v9551
    %v9553 = vpop.xlane.xlu0 %9552
    %v9554 = vsel %vm1042, %v9385, 0.0
    %9555 = vadd.xlane.f32.xlu0 %v9554
    %v9556 = vpop.xlane.xlu0 %9555
    %v9557 = vsel %vm1042, %v9387, 0.0
    %9558 = vadd.xlane.f32.xlu0 %v9557
    %v9559 = vpop.xlane.xlu0 %9558
    %v9560 = vsel %vm1042, %v9389, 0.0
    %9561 = vadd.xlane.f32.xlu0 %v9560
    %v9562 = vpop.xlane.xlu0 %9561
    %v9563 = vsel %vm1042, %v9391, 0.0
    %9564 = vadd.xlane.f32.xlu0 %v9563
    %v9565 = vpop.xlane.xlu0 %9564
    %v9566 = vsel %vm1042, %v9393, 0.0
    %9567 = vadd.xlane.f32.xlu0 %v9566
    %v9568 = vpop.xlane.xlu0 %9567
    %v9569 = vsel %vm1042, %v9395, 0.0
    %9570 = vadd.xlane.f32.xlu0 %v9569
    %v9571 = vpop.xlane.xlu0 %9570
    %v9572 = vsel %vm1042, %v9397, 0.0
    %9573 = vadd.xlane.f32.xlu0 %v9572
    %v9574 = vpop.xlane.xlu0 %9573
    %v9575 = vrcp.pop %v9553
    %v9576 = vrcp.pop %v9556
    %v9577 = vrcp.pop %v9559
    %v9578 = vrcp.pop %v9562
    %v9579 = vrcp.pop %v9565
    %v9580 = vrcp.pop %v9568
    %v9581 = vrcp.pop %v9571
    %v9582 = vrcp.pop %v9574
    %v9583 = vmul.f32 %v9513, %v9575
    %v9584 = vmul.f32 %v9518, %v9576
    %v9585 = vmul.f32 %v9523, %v9577
    %v9586 = vmul.f32 %v9528, %v9578
    %v9587 = vmul.f32 %v9533, %v9579
    %v9588 = vmul.f32 %v9538, %v9580
    %v9589 = vmul.f32 %v9543, %v9581
    %v9590 = vmul.f32 %v9548, %v9582
    %v9592 = vsel %vm888, %v9583, 0
    %v9595 = vsel %vm888, %v9584, 0
    %v9598 = vsel %vm888, %v9585, 0
    %v9601 = vsel %vm888, %v9586, 0
    %v9604 = vsel %vm888, %v9587, 0
    %v9607 = vsel %vm888, %v9588, 0
    %v9610 = vsel %vm888, %v9589, 0
    %v9613 = vsel %vm888, %v9590, 0
    %9615 = vmatprep.subr.mxu0 0.0
    %9616 = vmatpush1.msra.mxu0 %v5447
    %9617 = vmatprep.subr.mxu0 0.0
    %9618 = vmatpush1.msra.mxu0 %v5448
    %9619 = vmatprep.subr.mxu0 0.0
    %9620 = vmatpush1.msra.mxu0 %v5449
    %9621 = vmatprep.subr.mxu0 0.0
    %9622 = vmatpush1.msra.mxu0 %v5450
    %9623 = vmatprep.subr.mxu0 0.0
    %9624 = vmatpush1.msra.mxu0 0.0
    %9625 = vmatprep.subr.mxu0 0.0
    %9626 = vmatpush1.msra.mxu0 0.0
    %9627 = vmatprep.subr.mxu0 0.0
    %9628 = vmatpush1.msra.mxu0 0.0
    %9629 = vmatprep.subr.mxu0 0.0
    %9630 = vmatpush1.msra.mxu0 0.0
    %9631 = vmatprep.subr.mxu0 0.0
    %9632 = vmatpush1.msra.mxu0 0.0
    %9633 = vmatprep.subr.mxu0 0.0
    %9634 = vmatpush1.msra.mxu0 0.0
    %9635 = vmatprep.subr.mxu0 0.0
    %9636 = vmatpush1.msra.mxu0 0.0
    %9637 = vmatprep.subr.mxu0 0.0
    %9638 = vmatpush1.msra.mxu0 0.0
    %9639 = vmatprep.subr.mxu0 0.0
    %9640 = vmatpush1.msra.mxu0 0.0
    %9641 = vmatprep.subr.mxu0 0.0
    %9642 = vmatpush1.msra.mxu0 0.0
    %9643 = vmatprep.subr.mxu0 0.0
    %9644 = vmatpush1.msra.mxu0 0.0
    %9645 = vmatprep.subr.mxu0 0.0
    %9646 = vmatpush1.msra.mxu0 0.0
    %9647 = vmatprep.subr.mxu0 0.0
    %9648 = vmatpush1.msra.mxu0 0.0
    %9649 = vmatprep.subr.mxu0 0.0
    %9650 = vmatpush1.msra.mxu0 0.0
    %9651 = vmatprep.subr.mxu0 0.0
    %9652 = vmatpush1.msra.mxu0 0.0
    %9653 = vmatprep.subr.mxu0 0.0
    %9654 = vmatpush1.msra.mxu0 0.0
    %9655 = vmatprep.subr.mxu0 0.0
    %9656 = vmatpush1.msra.mxu0 0.0
    %9657 = vmatprep.subr.mxu0 0.0
    %9658 = vmatpush1.msra.mxu0 0.0
    %9659 = vmatprep.subr.mxu0 0.0
    %9660 = vmatpush1.msra.mxu0 0.0
    %9661 = vmatprep.subr.mxu0 0.0
    %9662 = vmatpush1.msra.mxu0 0.0
    %9663 = vmatprep.subr.mxu0 0.0
    %9664 = vmatpush1.msra.mxu0 0.0
    %9665 = vmatprep.subr.mxu0 0.0
    %9666 = vmatpush1.msra.mxu0 0.0
    %9667 = vmatprep.subr.mxu0 0.0
    %9668 = vmatpush1.msra.mxu0 0.0
    %9669 = vmatprep.subr.mxu0 0.0
    %9670 = vmatpush1.msra.mxu0 0.0
    %9671 = vmatprep.subr.mxu0 0.0
    %9672 = vmatpush1.msra.mxu0 0.0
    %9673 = vmatprep.subr.mxu0 0.0
    %9674 = vmatpush1.msra.mxu0 0.0
    %9675 = vmatprep.subr.mxu0 0.0
    %9676 = vmatpush1.msra.mxu0 0.0
    %9677 = vmatprep.subr.mxu0 0.0
    %9678 = vmatpush1.msra.mxu0 0.0
    %9679 = vmatprep.mubr.f32.mxu0 0.0
    %9680 = vmatmul.mubr.f32.gmra.mrb[0].mxu0 %v9592
    %v9681 = vpop.f32.mrb[0].mxu0
    %v9682 = vadd.f32 0.0, %v9681
    %v9683 = vpop.f32.mrb[0].mxu0
    %9684 = vmatprep.mubr.f32.mxu0 0.0
    %9685 = vmatmul.mubr.f32.gmra.mrb[0].mxu0 %v9595
    %v9686 = vpop.f32.mrb[0].mxu0
    %v9687 = vadd.f32 0.0, %v9686
    %v9688 = vpop.f32.mrb[0].mxu0
    %9689 = vmatprep.mubr.f32.mxu0 0.0
    %9690 = vmatmul.mubr.f32.gmra.mrb[0].mxu0 %v9598
    %v9691 = vpop.f32.mrb[0].mxu0
    %v9692 = vadd.f32 0.0, %v9691
    %v9693 = vpop.f32.mrb[0].mxu0
    %9694 = vmatprep.mubr.f32.mxu0 0.0
    %9695 = vmatmul.mubr.f32.gmra.mrb[0].mxu0 %v9601
    %v9696 = vpop.f32.mrb[0].mxu0
    %v9697 = vadd.f32 0.0, %v9696
    %v9698 = vpop.f32.mrb[0].mxu0
    %9699 = vmatprep.mubr.f32.mxu0 0.0
    %9700 = vmatmul.mubr.f32.gmra.mrb[0].mxu0 %v9604
    %v9701 = vpop.f32.mrb[0].mxu0
    %v9702 = vadd.f32 0.0, %v9701
    %v9703 = vpop.f32.mrb[0].mxu0
    %9704 = vmatprep.mubr.f32.mxu0 0.0
    %9705 = vmatmul.mubr.f32.gmra.mrb[0].mxu0 %v9607
    %v9706 = vpop.f32.mrb[0].mxu0
    %v9707 = vadd.f32 0.0, %v9706
    %v9708 = vpop.f32.mrb[0].mxu0
    %9709 = vmatprep.mubr.f32.mxu0 0.0
    %9710 = vmatmul.mubr.f32.gmra.mrb[0].mxu0 %v9610
    %v9711 = vpop.f32.mrb[0].mxu0
    %v9712 = vadd.f32 0.0, %v9711
    %v9713 = vpop.f32.mrb[0].mxu0
    %9714 = vmatprep.mubr.f32.mxu0 0.0
    %9715 = vmatmul.mubr.f32.gmra.mrb[0].mxu0 %v9613
    %v9716 = vpop.f32.mrb[0].mxu0
    %v9717 = vadd.f32 0.0, %v9716
    %v9718 = vpop.f32.mrb[0].mxu0
    %9719 = vdwg.mxu0
    %v9720 = vadd.f32 %v9173, %v9682
    %v9721 = vadd.f32 %v9174, %v9687
    %v9722 = vadd.f32 %v9175, %v9692
    %v9723 = vadd.f32 %v9176, %v9697
    %v9724 = vadd.f32 %v9177, %v9702
    %v9725 = vadd.f32 %v9178, %v9707
    %v9726 = vadd.f32 %v9179, %v9712
    %v9727 = vadd.f32 %v9180, %v9717
    %9728 = vrot.lane.b32.xlu0 %v5589, 32
    %v9729 = vpop.permute.xlu0 %9728
    %9730 = vrot.lane.b32.xlu0 %v5594, 32
    %v9731 = vpop.permute.xlu0 %9730
    %9732 = vrot.lane.b32.xlu0 %v5599, 32
    %v9733 = vpop.permute.xlu0 %9732
    %9734 = vrot.lane.b32.xlu0 %v5604, 32
    %v9735 = vpop.permute.xlu0 %9734
    %9736 = vrot.lane.b32.xlu0 %v5609, 32
    %v9737 = vpop.permute.xlu0 %9736
    %9738 = vrot.lane.b32.xlu0 %v5614, 32
    %v9739 = vpop.permute.xlu0 %9738
    %9740 = vrot.lane.b32.xlu0 %v5619, 32
    %v9741 = vpop.permute.xlu0 %9740
    %9742 = vrot.lane.b32.xlu0 %v5624, 32
    %v9743 = vpop.permute.xlu0 %9742
    %9744 = vrot.lane.b32.xlu0 %v5742, 32
    %v9745 = vpop.permute.xlu0 %9744
    %9746 = vrot.lane.b32.xlu0 %v5747, 32
    %v9747 = vpop.permute.xlu0 %9746
    %9748 = vrot.lane.b32.xlu0 %v5752, 32
    %v9749 = vpop.permute.xlu0 %9748
    %9750 = vrot.lane.b32.xlu0 %v5757, 32
    %v9751 = vpop.permute.xlu0 %9750
    %9752 = vrot.lane.b32.xlu0 %v5762, 32
    %v9753 = vpop.permute.xlu0 %9752
    %9754 = vrot.lane.b32.xlu0 %v5767, 32
    %v9755 = vpop.permute.xlu0 %9754
    %9756 = vrot.lane.b32.xlu0 %v5772, 32
    %v9757 = vpop.permute.xlu0 %9756
    %9758 = vrot.lane.b32.xlu0 %v5777, 32
    %v9759 = vpop.permute.xlu0 %9758
    %v9760 = vsel %vm888, %v9729, 0
    %v9762 = vsel %vm888, %v9731, 0
    %v9764 = vsel %vm888, %v9733, 0
    %v9766 = vsel %vm888, %v9735, 0
    %v9768 = vsel %vm888, %v9737, 0
    %v9770 = vsel %vm888, %v9739, 0
    %v9772 = vsel %vm888, %v9741, 0
    %v9774 = vsel %vm888, %v9743, 0
    %v9776 = vsel %vm888, %v9745, 0
    %v9778 = vsel %vm888, %v9747, 0
    %v9780 = vsel %vm888, %v9749, 0
    %v9782 = vsel %vm888, %v9751, 0
    %v9784 = vsel %vm888, %v9753, 0
    %v9786 = vsel %vm888, %v9755, 0
    %v9788 = vsel %vm888, %v9757, 0
    %v9790 = vsel %vm888, %v9759, 0
    %9792 = vmatprep.subr.mxu0 0.0
    %9793 = vmatpush1.xpose.msra.mxu0 %v9776
    %9794 = vmatprep.subr.mxu0 0.0
    %9795 = vmatpush1.xpose.msra.mxu0 %v9778
    %9796 = vmatprep.subr.mxu0 0.0
    %9797 = vmatpush1.xpose.msra.mxu0 %v9780
    %9798 = vmatprep.subr.mxu0 0.0
    %9799 = vmatpush1.xpose.msra.mxu0 %v9782
    %9800 = vmatprep.subr.mxu0 0.0
    %9801 = vmatpush1.xpose.msra.mxu0 %v9784
    %9802 = vmatprep.subr.mxu0 0.0
    %9803 = vmatpush1.xpose.msra.mxu0 %v9786
    %9804 = vmatprep.subr.mxu0 0.0
    %9805 = vmatpush1.xpose.msra.mxu0 %v9788
    %9806 = vmatprep.subr.mxu0 0.0
    %9807 = vmatpush1.xpose.msra.mxu0 %v9790
    %9808 = vmatprep.subr.mxu0 0.0
    %9809 = vmatpush1.xpose.msra.mxu0 0.0
    %9810 = vmatprep.subr.mxu0 0.0
    %9811 = vmatpush1.xpose.msra.mxu0 0.0
    %9812 = vmatprep.subr.mxu0 0.0
    %9813 = vmatpush1.xpose.msra.mxu0 0.0
    %9814 = vmatprep.subr.mxu0 0.0
    %9815 = vmatpush1.xpose.msra.mxu0 0.0
    %9816 = vmatprep.subr.mxu0 0.0
    %9817 = vmatpush1.xpose.msra.mxu0 0.0
    %9818 = vmatprep.subr.mxu0 0.0
    %9819 = vmatpush1.xpose.msra.mxu0 0.0
    %9820 = vmatprep.subr.mxu0 0.0
    %9821 = vmatpush1.xpose.msra.mxu0 0.0
    %9822 = vmatprep.subr.mxu0 0.0
    %9823 = vmatpush1.xpose.msra.mxu0 0.0
    %9824 = vmatprep.subr.mxu0 0.0
    %9825 = vmatpush1.xpose.msra.mxu0 0.0
    %9826 = vmatprep.subr.mxu0 0.0
    %9827 = vmatpush1.xpose.msra.mxu0 0.0
    %9828 = vmatprep.subr.mxu0 0.0
    %9829 = vmatpush1.xpose.msra.mxu0 0.0
    %9830 = vmatprep.subr.mxu0 0.0
    %9831 = vmatpush1.xpose.msra.mxu0 0.0
    %9832 = vmatprep.subr.mxu0 0.0
    %9833 = vmatpush1.xpose.msra.mxu0 0.0
    %9834 = vmatprep.subr.mxu0 0.0
    %9835 = vmatpush1.xpose.msra.mxu0 0.0
    %9836 = vmatprep.subr.mxu0 0.0
    %9837 = vmatpush1.xpose.msra.mxu0 0.0
    %9838 = vmatprep.subr.mxu0 0.0
    %9839 = vmatpush1.xpose.msra.mxu0 0.0
    %9840 = vmatprep.subr.mxu0 0.0
    %9841 = vmatpush1.xpose.msra.mxu0 0.0
    %9842 = vmatprep.subr.mxu0 0.0
    %9843 = vmatpush1.xpose.msra.mxu0 0.0
    %9844 = vmatprep.subr.mxu0 0.0
    %9845 = vmatpush1.xpose.msra.mxu0 0.0
    %9846 = vmatprep.subr.mxu0 0.0
    %9847 = vmatpush1.xpose.msra.mxu0 0.0
    %9848 = vmatprep.subr.mxu0 0.0
    %9849 = vmatpush1.xpose.msra.mxu0 0.0
    %9850 = vmatprep.subr.mxu0 0.0
    %9851 = vmatpush1.xpose.msra.mxu0 0.0
    %9852 = vmatprep.subr.mxu0 0.0
    %9853 = vmatpush1.xpose.msra.mxu0 0.0
    %9854 = vmatprep.subr.mxu0 0.0
    %9855 = vmatpush1.xpose.msra.mxu0 0.0
    %9856 = vmatprep.mubr.f32.mxu0 0.0
    %9857 = vmatmul.mubr.f32.gmra.mrb[0].mxu0 %v9760
    %v9858 = vpop.f32.mrb[0].mxu0
    %v9859 = vadd.f32 0.0, %v9858
    %v9860 = vpop.f32.mrb[0].mxu0
    %9861 = vmatprep.mubr.f32.mxu0 0.0
    %9862 = vmatmul.mubr.f32.gmra.mrb[0].mxu0 %v9762
    %v9863 = vpop.f32.mrb[0].mxu0
    %v9864 = vadd.f32 0.0, %v9863
    %v9865 = vpop.f32.mrb[0].mxu0
    %9866 = vmatprep.mubr.f32.mxu0 0.0
    %9867 = vmatmul.mubr.f32.gmra.mrb[0].mxu0 %v9764
    %v9868 = vpop.f32.mrb[0].mxu0
    %v9869 = vadd.f32 0.0, %v9868
    %v9870 = vpop.f32.mrb[0].mxu0
    %9871 = vmatprep.mubr.f32.mxu0 0.0
    %9872 = vmatmul.mubr.f32.gmra.mrb[0].mxu0 %v9766
    %v9873 = vpop.f32.mrb[0].mxu0
    %v9874 = vadd.f32 0.0, %v9873
    %v9875 = vpop.f32.mrb[0].mxu0
    %9876 = vmatprep.mubr.f32.mxu0 0.0
    %9877 = vmatmul.mubr.f32.gmra.mrb[0].mxu0 %v9768
    %v9878 = vpop.f32.mrb[0].mxu0
    %v9879 = vadd.f32 0.0, %v9878
    %v9880 = vpop.f32.mrb[0].mxu0
    %9881 = vmatprep.mubr.f32.mxu0 0.0
    %9882 = vmatmul.mubr.f32.gmra.mrb[0].mxu0 %v9770
    %v9883 = vpop.f32.mrb[0].mxu0
    %v9884 = vadd.f32 0.0, %v9883
    %v9885 = vpop.f32.mrb[0].mxu0
    %9886 = vmatprep.mubr.f32.mxu0 0.0
    %9887 = vmatmul.mubr.f32.gmra.mrb[0].mxu0 %v9772
    %v9888 = vpop.f32.mrb[0].mxu0
    %v9889 = vadd.f32 0.0, %v9888
    %v9890 = vpop.f32.mrb[0].mxu0
    %9891 = vmatprep.mubr.f32.mxu0 0.0
    %9892 = vmatmul.mubr.f32.gmra.mrb[0].mxu0 %v9774
    %v9893 = vpop.f32.mrb[0].mxu0
    %v9894 = vadd.f32 0.0, %v9893
    %v9895 = vpop.f32.mrb[0].mxu0
    %9896 = vdwg.mxu0
    %v9897 = vsel %vm1042, %v9859, -inf
    %9898 = vmax.xlane.f32.xlu0 %v9897
    %v9899 = vpop.xlane.xlu0 %9898
    %v9900 = vsel %vm1042, %v9864, -inf
    %9901 = vmax.xlane.f32.xlu0 %v9900
    %v9902 = vpop.xlane.xlu0 %9901
    %v9903 = vsel %vm1042, %v9869, -inf
    %9904 = vmax.xlane.f32.xlu0 %v9903
    %v9905 = vpop.xlane.xlu0 %9904
    %v9906 = vsel %vm1042, %v9874, -inf
    %9907 = vmax.xlane.f32.xlu0 %v9906
    %v9908 = vpop.xlane.xlu0 %9907
    %v9909 = vsel %vm1042, %v9879, -inf
    %9910 = vmax.xlane.f32.xlu0 %v9909
    %v9911 = vpop.xlane.xlu0 %9910
    %v9912 = vsel %vm1042, %v9884, -inf
    %9913 = vmax.xlane.f32.xlu0 %v9912
    %v9914 = vpop.xlane.xlu0 %9913
    %v9915 = vsel %vm1042, %v9889, -inf
    %9916 = vmax.xlane.f32.xlu0 %v9915
    %v9917 = vpop.xlane.xlu0 %9916
    %v9918 = vsel %vm1042, %v9894, -inf
    %9919 = vmax.xlane.f32.xlu0 %v9918
    %v9920 = vpop.xlane.xlu0 %9919
    %v9921 = vsub.f32 %v9859, %v9899
    %v9922 = vsub.f32 %v9864, %v9902
    %v9923 = vsub.f32 %v9869, %v9905
    %v9924 = vsub.f32 %v9874, %v9908
    %v9925 = vsub.f32 %v9879, %v9911
    %v9926 = vsub.f32 %v9884, %v9914
    %v9927 = vsub.f32 %v9889, %v9917
    %v9928 = vsub.f32 %v9894, %v9920
    %v9929 = vmul.f32 %v9921, 1.442695
    %v9930 = vpow.pop %v9929
    %v9931 = vmul.f32 %v9922, 1.442695
    %v9932 = vpow.pop %v9931
    %v9933 = vmul.f32 %v9923, 1.442695
    %v9934 = vpow.pop %v9933
    %v9935 = vmul.f32 %v9924, 1.442695
    %v9936 = vpow.pop %v9935
    %v9937 = vmul.f32 %v9925, 1.442695
    %v9938 = vpow.pop %v9937
    %v9939 = vmul.f32 %v9926, 1.442695
    %v9940 = vpow.pop %v9939
    %v9941 = vmul.f32 %v9927, 1.442695
    %v9942 = vpow.pop %v9941
    %v9943 = vmul.f32 %v9928, 1.442695
    %v9944 = vpow.pop %v9943
    %9945 = vrot.lane.b32.xlu0 %v5895, 32
    %v9946 = vpop.permute.xlu0 %9945
    %9947 = vrot.lane.b32.xlu0 %v5900, 32
    %v9948 = vpop.permute.xlu0 %9947
    %9949 = vrot.lane.b32.xlu0 %v5905, 32
    %v9950 = vpop.permute.xlu0 %9949
    %9951 = vrot.lane.b32.xlu0 %v5910, 32
    %v9952 = vpop.permute.xlu0 %9951
    %9953 = vrot.lane.b32.xlu0 %v5915, 32
    %v9954 = vpop.permute.xlu0 %9953
    %9955 = vrot.lane.b32.xlu0 %v5920, 32
    %v9956 = vpop.permute.xlu0 %9955
    %9957 = vrot.lane.b32.xlu0 %v5925, 32
    %v9958 = vpop.permute.xlu0 %9957
    %9959 = vrot.lane.b32.xlu0 %v5930, 32
    %v9960 = vpop.permute.xlu0 %9959
    %v9970 = vsel %vm1042, %v9930, 0
    %v9973 = vsel %vm1042, %v9932, 0
    %v9976 = vsel %vm1042, %v9934, 0
    %v9979 = vsel %vm1042, %v9936, 0
    %v9982 = vsel %vm1042, %v9938, 0
    %v9985 = vsel %vm1042, %v9940, 0
    %v9988 = vsel %vm1042, %v9942, 0
    %v9991 = vsel %vm1042, %v9944, 0
    %9993 = vmatprep.subr.mxu0 0.0
    %9994 = vmatpush1.msra.mxu0 %v9946
    %9995 = vmatprep.subr.mxu0 0.0
    %9996 = vmatpush1.msra.mxu0 %v9948
    %9997 = vmatprep.subr.mxu0 0.0
    %9998 = vmatpush1.msra.mxu0 %v9950
    %9999 = vmatprep.subr.mxu0 0.0
    %10000 = vmatpush1.msra.mxu0 %v9952
    %10001 = vmatprep.subr.mxu0 0.0
    %10002 = vmatpush1.msra.mxu0 %v9954
    %10003 = vmatprep.subr.mxu0 0.0
    %10004 = vmatpush1.msra.mxu0 %v9956
    %10005 = vmatprep.subr.mxu0 0.0
    %10006 = vmatpush1.msra.mxu0 %v9958
    %10007 = vmatprep.subr.mxu0 0.0
    %10008 = vmatpush1.msra.mxu0 %v9960
    %10009 = vmatprep.subr.mxu0 0.0
    %10010 = vmatpush1.msra.mxu0 0.0
    %10011 = vmatprep.subr.mxu0 0.0
    %10012 = vmatpush1.msra.mxu0 0.0
    %10013 = vmatprep.subr.mxu0 0.0
    %10014 = vmatpush1.msra.mxu0 0.0
    %10015 = vmatprep.subr.mxu0 0.0
    %10016 = vmatpush1.msra.mxu0 0.0
    %10017 = vmatprep.subr.mxu0 0.0
    %10018 = vmatpush1.msra.mxu0 0.0
    %10019 = vmatprep.subr.mxu0 0.0
    %10020 = vmatpush1.msra.mxu0 0.0
    %10021 = vmatprep.subr.mxu0 0.0
    %10022 = vmatpush1.msra.mxu0 0.0
    %10023 = vmatprep.subr.mxu0 0.0
    %10024 = vmatpush1.msra.mxu0 0.0
    %10025 = vmatprep.subr.mxu0 0.0
    %10026 = vmatpush1.msra.mxu0 0.0
    %10027 = vmatprep.subr.mxu0 0.0
    %10028 = vmatpush1.msra.mxu0 0.0
    %10029 = vmatprep.subr.mxu0 0.0
    %10030 = vmatpush1.msra.mxu0 0.0
    %10031 = vmatprep.subr.mxu0 0.0
    %10032 = vmatpush1.msra.mxu0 0.0
    %10033 = vmatprep.subr.mxu0 0.0
    %10034 = vmatpush1.msra.mxu0 0.0
    %10035 = vmatprep.subr.mxu0 0.0
    %10036 = vmatpush1.msra.mxu0 0.0
    %10037 = vmatprep.subr.mxu0 0.0
    %10038 = vmatpush1.msra.mxu0 0.0
    %10039 = vmatprep.subr.mxu0 0.0
    %10040 = vmatpush1.msra.mxu0 0.0
    %10041 = vmatprep.subr.mxu0 0.0
    %10042 = vmatpush1.msra.mxu0 0.0
    %10043 = vmatprep.subr.mxu0 0.0
    %10044 = vmatpush1.msra.mxu0 0.0
    %10045 = vmatprep.subr.mxu0 0.0
    %10046 = vmatpush1.msra.mxu0 0.0
    %10047 = vmatprep.subr.mxu0 0.0
    %10048 = vmatpush1.msra.mxu0 0.0
    %10049 = vmatprep.subr.mxu0 0.0
    %10050 = vmatpush1.msra.mxu0 0.0
    %10051 = vmatprep.subr.mxu0 0.0
    %10052 = vmatpush1.msra.mxu0 0.0
    %10053 = vmatprep.subr.mxu0 0.0
    %10054 = vmatpush1.msra.mxu0 0.0
    %10055 = vmatprep.subr.mxu0 0.0
    %10056 = vmatpush1.msra.mxu0 0.0
    %10057 = vmatprep.mubr.f32.mxu0 0.0
    %10058 = vmatmul.mubr.f32.gmra.mrb[0].mxu0 %v9970
    %v10059 = vpop.f32.mrb[0].mxu0
    %v10060 = vadd.f32 0.0, %v10059
    %v10061 = vpop.f32.mrb[0].mxu0
    %10062 = vmatprep.mubr.f32.mxu0 0.0
    %10063 = vmatmul.mubr.f32.gmra.mrb[0].mxu0 %v9973
    %v10064 = vpop.f32.mrb[0].mxu0
    %v10065 = vadd.f32 0.0, %v10064
    %v10066 = vpop.f32.mrb[0].mxu0
    %10067 = vmatprep.mubr.f32.mxu0 0.0
    %10068 = vmatmul.mubr.f32.gmra.mrb[0].mxu0 %v9976
    %v10069 = vpop.f32.mrb[0].mxu0
    %v10070 = vadd.f32 0.0, %v10069
    %v10071 = vpop.f32.mrb[0].mxu0
    %10072 = vmatprep.mubr.f32.mxu0 0.0
    %10073 = vmatmul.mubr.f32.gmra.mrb[0].mxu0 %v9979
    %v10074 = vpop.f32.mrb[0].mxu0
    %v10075 = vadd.f32 0.0, %v10074
    %v10076 = vpop.f32.mrb[0].mxu0
    %10077 = vmatprep.mubr.f32.mxu0 0.0
    %10078 = vmatmul.mubr.f32.gmra.mrb[0].mxu0 %v9982
    %v10079 = vpop.f32.mrb[0].mxu0
    %v10080 = vadd.f32 0.0, %v10079
    %v10081 = vpop.f32.mrb[0].mxu0
    %10082 = vmatprep.mubr.f32.mxu0 0.0
    %10083 = vmatmul.mubr.f32.gmra.mrb[0].mxu0 %v9985
    %v10084 = vpop.f32.mrb[0].mxu0
    %v10085 = vadd.f32 0.0, %v10084
    %v10086 = vpop.f32.mrb[0].mxu0
    %10087 = vmatprep.mubr.f32.mxu0 0.0
    %10088 = vmatmul.mubr.f32.gmra.mrb[0].mxu0 %v9988
    %v10089 = vpop.f32.mrb[0].mxu0
    %v10090 = vadd.f32 0.0, %v10089
    %v10091 = vpop.f32.mrb[0].mxu0
    %10092 = vmatprep.mubr.f32.mxu0 0.0
    %10093 = vmatmul.mubr.f32.gmra.mrb[0].mxu0 %v9991
    %v10094 = vpop.f32.mrb[0].mxu0
    %v10095 = vadd.f32 0.0, %v10094
    %v10096 = vpop.f32.mrb[0].mxu0
    %10097 = vdwg.mxu0
    %v10098 = vsel %vm1042, %v9930, 0.0
    %10099 = vadd.xlane.f32.xlu0 %v10098
    %v10100 = vpop.xlane.xlu0 %10099
    %v10101 = vsel %vm1042, %v9932, 0.0
    %10102 = vadd.xlane.f32.xlu0 %v10101
    %v10103 = vpop.xlane.xlu0 %10102
    %v10104 = vsel %vm1042, %v9934, 0.0
    %10105 = vadd.xlane.f32.xlu0 %v10104
    %v10106 = vpop.xlane.xlu0 %10105
    %v10107 = vsel %vm1042, %v9936, 0.0
    %10108 = vadd.xlane.f32.xlu0 %v10107
    %v10109 = vpop.xlane.xlu0 %10108
    %v10110 = vsel %vm1042, %v9938, 0.0
    %10111 = vadd.xlane.f32.xlu0 %v10110
    %v10112 = vpop.xlane.xlu0 %10111
    %v10113 = vsel %vm1042, %v9940, 0.0
    %10114 = vadd.xlane.f32.xlu0 %v10113
    %v10115 = vpop.xlane.xlu0 %10114
    %v10116 = vsel %vm1042, %v9942, 0.0
    %10117 = vadd.xlane.f32.xlu0 %v10116
    %v10118 = vpop.xlane.xlu0 %10117
    %v10119 = vsel %vm1042, %v9944, 0.0
    %10120 = vadd.xlane.f32.xlu0 %v10119
    %v10121 = vpop.xlane.xlu0 %10120
    %v10122 = vrcp.pop %v10100
    %v10123 = vrcp.pop %v10103
    %v10124 = vrcp.pop %v10106
    %v10125 = vrcp.pop %v10109
    %v10126 = vrcp.pop %v10112
    %v10127 = vrcp.pop %v10115
    %v10128 = vrcp.pop %v10118
    %v10129 = vrcp.pop %v10121
    %v10130 = vmul.f32 %v10060, %v10122
    %v10131 = vmul.f32 %v10065, %v10123
    %v10132 = vmul.f32 %v10070, %v10124
    %v10133 = vmul.f32 %v10075, %v10125
    %v10134 = vmul.f32 %v10080, %v10126
    %v10135 = vmul.f32 %v10085, %v10127
    %v10136 = vmul.f32 %v10090, %v10128
    %v10137 = vmul.f32 %v10095, %v10129
    %v10139 = vsel %vm888, %v10130, 0
    %v10142 = vsel %vm888, %v10131, 0
    %v10145 = vsel %vm888, %v10132, 0
    %v10148 = vsel %vm888, %v10133, 0
    %v10151 = vsel %vm888, %v10134, 0
    %v10154 = vsel %vm888, %v10135, 0
    %v10157 = vsel %vm888, %v10136, 0
    %v10160 = vsel %vm888, %v10137, 0
    %10162 = vmatprep.subr.mxu0 0.0
    %10163 = vmatpush1.msra.mxu0 %v5451
    %10164 = vmatprep.subr.mxu0 0.0
    %10165 = vmatpush1.msra.mxu0 %v5452
    %10166 = vmatprep.subr.mxu0 0.0
    %10167 = vmatpush1.msra.mxu0 %v5453
    %10168 = vmatprep.subr.mxu0 0.0
    %10169 = vmatpush1.msra.mxu0 %v5454
    %10170 = vmatprep.subr.mxu0 0.0
    %10171 = vmatpush1.msra.mxu0 0.0
    %10172 = vmatprep.subr.mxu0 0.0
    %10173 = vmatpush1.msra.mxu0 0.0
    %10174 = vmatprep.subr.mxu0 0.0
    %10175 = vmatpush1.msra.mxu0 0.0
    %10176 = vmatprep.subr.mxu0 0.0
    %10177 = vmatpush1.msra.mxu0 0.0
    %10178 = vmatprep.subr.mxu0 0.0
    %10179 = vmatpush1.msra.mxu0 0.0
    %10180 = vmatprep.subr.mxu0 0.0
    %10181 = vmatpush1.msra.mxu0 0.0
    %10182 = vmatprep.subr.mxu0 0.0
    %10183 = vmatpush1.msra.mxu0 0.0
    %10184 = vmatprep.subr.mxu0 0.0
    %10185 = vmatpush1.msra.mxu0 0.0
    %10186 = vmatprep.subr.mxu0 0.0
    %10187 = vmatpush1.msra.mxu0 0.0
    %10188 = vmatprep.subr.mxu0 0.0
    %10189 = vmatpush1.msra.mxu0 0.0
    %10190 = vmatprep.subr.mxu0 0.0
    %10191 = vmatpush1.msra.mxu0 0.0
    %10192 = vmatprep.subr.mxu0 0.0
    %10193 = vmatpush1.msra.mxu0 0.0
    %10194 = vmatprep.subr.mxu0 0.0
    %10195 = vmatpush1.msra.mxu0 0.0
    %10196 = vmatprep.subr.mxu0 0.0
    %10197 = vmatpush1.msra.mxu0 0.0
    %10198 = vmatprep.subr.mxu0 0.0
    %10199 = vmatpush1.msra.mxu0 0.0
    %10200 = vmatprep.subr.mxu0 0.0
    %10201 = vmatpush1.msra.mxu0 0.0
    %10202 = vmatprep.subr.mxu0 0.0
    %10203 = vmatpush1.msra.mxu0 0.0
    %10204 = vmatprep.subr.mxu0 0.0
    %10205 = vmatpush1.msra.mxu0 0.0
    %10206 = vmatprep.subr.mxu0 0.0
    %10207 = vmatpush1.msra.mxu0 0.0
    %10208 = vmatprep.subr.mxu0 0.0
    %10209 = vmatpush1.msra.mxu0 0.0
    %10210 = vmatprep.subr.mxu0 0.0
    %10211 = vmatpush1.msra.mxu0 0.0
    %10212 = vmatprep.subr.mxu0 0.0
    %10213 = vmatpush1.msra.mxu0 0.0
    %10214 = vmatprep.subr.mxu0 0.0
    %10215 = vmatpush1.msra.mxu0 0.0
    %10216 = vmatprep.subr.mxu0 0.0
    %10217 = vmatpush1.msra.mxu0 0.0
    %10218 = vmatprep.subr.mxu0 0.0
    %10219 = vmatpush1.msra.mxu0 0.0
    %10220 = vmatprep.subr.mxu0 0.0
    %10221 = vmatpush1.msra.mxu0 0.0
    %10222 = vmatprep.subr.mxu0 0.0
    %10223 = vmatpush1.msra.mxu0 0.0
    %10224 = vmatprep.subr.mxu0 0.0
    %10225 = vmatpush1.msra.mxu0 0.0
    %10226 = vmatprep.mubr.f32.mxu0 0.0
    %10227 = vmatmul.mubr.f32.gmra.mrb[0].mxu0 %v10139
    %v10228 = vpop.f32.mrb[0].mxu0
    %v10229 = vadd.f32 0.0, %v10228
    %v10230 = vpop.f32.mrb[0].mxu0
    %10231 = vmatprep.mubr.f32.mxu0 0.0
    %10232 = vmatmul.mubr.f32.gmra.mrb[0].mxu0 %v10142
    %v10233 = vpop.f32.mrb[0].mxu0
    %v10234 = vadd.f32 0.0, %v10233
    %v10235 = vpop.f32.mrb[0].mxu0
    %10236 = vmatprep.mubr.f32.mxu0 0.0
    %10237 = vmatmul.mubr.f32.gmra.mrb[0].mxu0 %v10145
    %v10238 = vpop.f32.mrb[0].mxu0
    %v10239 = vadd.f32 0.0, %v10238
    %v10240 = vpop.f32.mrb[0].mxu0
    %10241 = vmatprep.mubr.f32.mxu0 0.0
    %10242 = vmatmul.mubr.f32.gmra.mrb[0].mxu0 %v10148
    %v10243 = vpop.f32.mrb[0].mxu0
    %v10244 = vadd.f32 0.0, %v10243
    %v10245 = vpop.f32.mrb[0].mxu0
    %10246 = vmatprep.mubr.f32.mxu0 0.0
    %10247 = vmatmul.mubr.f32.gmra.mrb[0].mxu0 %v10151
    %v10248 = vpop.f32.mrb[0].mxu0
    %v10249 = vadd.f32 0.0, %v10248
    %v10250 = vpop.f32.mrb[0].mxu0
    %10251 = vmatprep.mubr.f32.mxu0 0.0
    %10252 = vmatmul.mubr.f32.gmra.mrb[0].mxu0 %v10154
    %v10253 = vpop.f32.mrb[0].mxu0
    %v10254 = vadd.f32 0.0, %v10253
    %v10255 = vpop.f32.mrb[0].mxu0
    %10256 = vmatprep.mubr.f32.mxu0 0.0
    %10257 = vmatmul.mubr.f32.gmra.mrb[0].mxu0 %v10157
    %v10258 = vpop.f32.mrb[0].mxu0
    %v10259 = vadd.f32 0.0, %v10258
    %v10260 = vpop.f32.mrb[0].mxu0
    %10261 = vmatprep.mubr.f32.mxu0 0.0
    %10262 = vmatmul.mubr.f32.gmra.mrb[0].mxu0 %v10160
    %v10263 = vpop.f32.mrb[0].mxu0
    %v10264 = vadd.f32 0.0, %v10263
    %v10265 = vpop.f32.mrb[0].mxu0
    %10266 = vdwg.mxu0
    %v10267 = vadd.f32 %v9720, %v10229
    %v10268 = vadd.f32 %v9721, %v10234
    %v10269 = vadd.f32 %v9722, %v10239
    %v10270 = vadd.f32 %v9723, %v10244
    %v10271 = vadd.f32 %v9724, %v10249
    %v10272 = vadd.f32 %v9725, %v10254
    %v10273 = vadd.f32 %v9726, %v10259
    %v10274 = vadd.f32 %v9727, %v10264
    %10275 = vst [vmem:[#allocation2 + $0x40] sm:$0xff] %v10267
    %10276 = vst [vmem:[#allocation2 + $0x48] sm:$0xff] %v10268
    %10277 = vst [vmem:[#allocation2 + $0x50] sm:$0xff] %v10269
    %10278 = vst [vmem:[#allocation2 + $0x58] sm:$0xff] %v10270
    %10279 = vst [vmem:[#allocation2 + $0x60] sm:$0xff] %v10271
    %10280 = vst [vmem:[#allocation2 + $0x68] sm:$0xff] %v10272
    %10281 = vst [vmem:[#allocation2 + $0x70] sm:$0xff] %v10273
    %10282 = vst [vmem:[#allocation2 + $0x78] sm:$0xff] %v10274
    %v10283 = vld [vmem:[#allocation2] sm:$0xff]
    %v10284 = vld [vmem:[#allocation2 + $0x8] sm:$0xff]
    %v10285 = vld [vmem:[#allocation2 + $0x10] sm:$0xff]
    %v10286 = vld [vmem:[#allocation2 + $0x18] sm:$0xff]
    %v10287 = vld [vmem:[#allocation2 + $0x20] sm:$0xff]
    %v10288 = vld [vmem:[#allocation2 + $0x28] sm:$0xff]
    %v10289 = vld [vmem:[#allocation2 + $0x30] sm:$0xff]
    %v10290 = vld [vmem:[#allocation2 + $0x38] sm:$0xff]
    %v10291 = vld [vmem:[#allocation2 + $0x40] sm:$0xff]
    %v10292 = vld [vmem:[#allocation2 + $0x48] sm:$0xff]
    %v10293 = vld [vmem:[#allocation2 + $0x50] sm:$0xff]
    %v10294 = vld [vmem:[#allocation2 + $0x58] sm:$0xff]
    %v10295 = vld [vmem:[#allocation2 + $0x60] sm:$0xff]
    %v10296 = vld [vmem:[#allocation2 + $0x68] sm:$0xff]
    %v10297 = vld [vmem:[#allocation2 + $0x70] sm:$0xff]
    %v10298 = vld [vmem:[#allocation2 + $0x78] sm:$0xff]
    %10299 = vmatprep.subr.mxu0 0.0
    %10300 = vmatpush1.msra.mxu0 %v5456
    %10301 = vmatprep.subr.mxu0 0.0
    %10302 = vmatpush1.msra.mxu0 %v5457
    %10303 = vmatprep.subr.mxu0 0.0
    %10304 = vmatpush1.msra.mxu0 %v5458
    %10305 = vmatprep.subr.mxu0 0.0
    %10306 = vmatpush1.msra.mxu0 %v5459
    %10307 = vmatprep.subr.mxu0 0.0
    %10308 = vmatpush1.msra.mxu0 %v5460
    %10309 = vmatprep.subr.mxu0 0.0
    %10310 = vmatpush1.msra.mxu0 %v5461
    %10311 = vmatprep.subr.mxu0 0.0
    %10312 = vmatpush1.msra.mxu0 %v5462
    %10313 = vmatprep.subr.mxu0 0.0
    %10314 = vmatpush1.msra.mxu0 %v5463
    %10315 = vmatprep.subr.mxu0 0.0
    %10316 = vmatpush1.msra.mxu0 %v5464
    %10317 = vmatprep.subr.mxu0 0.0
    %10318 = vmatpush1.msra.mxu0 %v5465
    %10319 = vmatprep.subr.mxu0 0.0
    %10320 = vmatpush1.msra.mxu0 %v5466
    %10321 = vmatprep.subr.mxu0 0.0
    %10322 = vmatpush1.msra.mxu0 %v5467
    %10323 = vmatprep.subr.mxu0 0.0
    %10324 = vmatpush1.msra.mxu0 %v5468
    %10325 = vmatprep.subr.mxu0 0.0
    %10326 = vmatpush1.msra.mxu0 %v5469
    %10327 = vmatprep.subr.mxu0 0.0
    %10328 = vmatpush1.msra.mxu0 %v5470
    %10329 = vmatprep.subr.mxu0 0.0
    %10330 = vmatpush1.msra.mxu0 %v5471
    %10331 = vmatprep.subr.mxu0 0.0
    %10332 = vmatpush1.msra.mxu0 0.0
    %10333 = vmatprep.subr.mxu0 0.0
    %10334 = vmatpush1.msra.mxu0 0.0
    %10335 = vmatprep.subr.mxu0 0.0
    %10336 = vmatpush1.msra.mxu0 0.0
    %10337 = vmatprep.subr.mxu0 0.0
    %10338 = vmatpush1.msra.mxu0 0.0
    %10339 = vmatprep.subr.mxu0 0.0
    %10340 = vmatpush1.msra.mxu0 0.0
    %10341 = vmatprep.subr.mxu0 0.0
    %10342 = vmatpush1.msra.mxu0 0.0
    %10343 = vmatprep.subr.mxu0 0.0
    %10344 = vmatpush1.msra.mxu0 0.0
    %10345 = vmatprep.subr.mxu0 0.0
    %10346 = vmatpush1.msra.mxu0 0.0
    %10347 = vmatprep.subr.mxu0 0.0
    %10348 = vmatpush1.msra.mxu0 0.0
    %10349 = vmatprep.subr.mxu0 0.0
    %10350 = vmatpush1.msra.mxu0 0.0
    %10351 = vmatprep.subr.mxu0 0.0
    %10352 = vmatpush1.msra.mxu0 0.0
    %10353 = vmatprep.subr.mxu0 0.0
    %10354 = vmatpush1.msra.mxu0 0.0
    %10355 = vmatprep.subr.mxu0 0.0
    %10356 = vmatpush1.msra.mxu0 0.0
    %10357 = vmatprep.subr.mxu0 0.0
    %10358 = vmatpush1.msra.mxu0 0.0
    %10359 = vmatprep.subr.mxu0 0.0
    %10360 = vmatpush1.msra.mxu0 0.0
    %10361 = vmatprep.subr.mxu0 0.0
    %10362 = vmatpush1.msra.mxu0 0.0
    %10363 = vmatprep.mubr.f32.mxu0 0.0
    %10364 = vmatmul.mubr.f32.gmra.mrb[0].mxu0 %v10283
    %v10365 = vpop.f32.mrb[0].mxu0
    %v10366 = vadd.f32 %v10283, %v10365
    %v10367 = vpop.f32.mrb[0].mxu0
    %10368 = vmatprep.mubr.f32.mxu0 0.0
    %10369 = vmatmul.mubr.f32.gmra.mrb[0].mxu0 %v10284
    %v10370 = vpop.f32.mrb[0].mxu0
    %v10371 = vadd.f32 %v10284, %v10370
    %v10372 = vpop.f32.mrb[0].mxu0
    %10373 = vmatprep.mubr.f32.mxu0 0.0
    %10374 = vmatmul.mubr.f32.gmra.mrb[0].mxu0 %v10285
    %v10375 = vpop.f32.mrb[0].mxu0
    %v10376 = vadd.f32 %v10285, %v10375
    %v10377 = vpop.f32.mrb[0].mxu0
    %10378 = vmatprep.mubr.f32.mxu0 0.0
    %10379 = vmatmul.mubr.f32.gmra.mrb[0].mxu0 %v10286
    %v10380 = vpop.f32.mrb[0].mxu0
    %v10381 = vadd.f32 %v10286, %v10380
    %v10382 = vpop.f32.mrb[0].mxu0
    %10383 = vmatprep.mubr.f32.mxu0 0.0
    %10384 = vmatmul.mubr.f32.gmra.mrb[0].mxu0 %v10287
    %v10385 = vpop.f32.mrb[0].mxu0
    %v10386 = vadd.f32 %v10287, %v10385
    %v10387 = vpop.f32.mrb[0].mxu0
    %10388 = vmatprep.mubr.f32.mxu0 0.0
    %10389 = vmatmul.mubr.f32.gmra.mrb[0].mxu0 %v10288
    %v10390 = vpop.f32.mrb[0].mxu0
    %v10391 = vadd.f32 %v10288, %v10390
    %v10392 = vpop.f32.mrb[0].mxu0
    %10393 = vmatprep.mubr.f32.mxu0 0.0
    %10394 = vmatmul.mubr.f32.gmra.mrb[0].mxu0 %v10289
    %v10395 = vpop.f32.mrb[0].mxu0
    %v10396 = vadd.f32 %v10289, %v10395
    %v10397 = vpop.f32.mrb[0].mxu0
    %10398 = vmatprep.mubr.f32.mxu0 0.0
    %10399 = vmatmul.mubr.f32.gmra.mrb[0].mxu0 %v10290
    %v10400 = vpop.f32.mrb[0].mxu0
    %v10401 = vadd.f32 %v10290, %v10400
    %v10402 = vpop.f32.mrb[0].mxu0
    %10403 = vmatprep.mubr.f32.mxu0 0.0
    %10404 = vmatmul.mubr.f32.gmra.mrb[0].mxu0 %v10291
    %v10405 = vpop.f32.mrb[0].mxu0
    %v10406 = vadd.f32 %v10291, %v10405
    %v10407 = vpop.f32.mrb[0].mxu0
    %10408 = vmatprep.mubr.f32.mxu0 0.0
    %10409 = vmatmul.mubr.f32.gmra.mrb[0].mxu0 %v10292
    %v10410 = vpop.f32.mrb[0].mxu0
    %v10411 = vadd.f32 %v10292, %v10410
    %v10412 = vpop.f32.mrb[0].mxu0
    %10413 = vmatprep.mubr.f32.mxu0 0.0
    %10414 = vmatmul.mubr.f32.gmra.mrb[0].mxu0 %v10293
    %v10415 = vpop.f32.mrb[0].mxu0
    %v10416 = vadd.f32 %v10293, %v10415
    %v10417 = vpop.f32.mrb[0].mxu0
    %10418 = vmatprep.mubr.f32.mxu0 0.0
    %10419 = vmatmul.mubr.f32.gmra.mrb[0].mxu0 %v10294
    %v10420 = vpop.f32.mrb[0].mxu0
    %v10421 = vadd.f32 %v10294, %v10420
    %v10422 = vpop.f32.mrb[0].mxu0
    %10423 = vmatprep.mubr.f32.mxu0 0.0
    %10424 = vmatmul.mubr.f32.gmra.mrb[0].mxu0 %v10295
    %v10425 = vpop.f32.mrb[0].mxu0
    %v10426 = vadd.f32 %v10295, %v10425
    %v10427 = vpop.f32.mrb[0].mxu0
    %10428 = vmatprep.mubr.f32.mxu0 0.0
    %10429 = vmatmul.mubr.f32.gmra.mrb[0].mxu0 %v10296
    %v10430 = vpop.f32.mrb[0].mxu0
    %v10431 = vadd.f32 %v10296, %v10430
    %v10432 = vpop.f32.mrb[0].mxu0
    %10433 = vmatprep.mubr.f32.mxu0 0.0
    %10434 = vmatmul.mubr.f32.gmra.mrb[0].mxu0 %v10297
    %v10435 = vpop.f32.mrb[0].mxu0
    %v10436 = vadd.f32 %v10297, %v10435
    %v10437 = vpop.f32.mrb[0].mxu0
    %10438 = vmatprep.mubr.f32.mxu0 0.0
    %10439 = vmatmul.mubr.f32.gmra.mrb[0].mxu0 %v10298
    %v10440 = vpop.f32.mrb[0].mxu0
    %v10441 = vadd.f32 %v10298, %v10440
    %v10442 = vpop.f32.mrb[0].mxu0
    %10443 = vdwg.mxu0
    %10444 = vst [vmem:[#allocation15] sm:$0xff] %v10366
    %10445 = vst [vmem:[#allocation15 + $0x8] sm:$0xff] %v10371
    %10446 = vst [vmem:[#allocation15 + $0x10] sm:$0xff] %v10376
    %10447 = vst [vmem:[#allocation15 + $0x18] sm:$0xff] %v10381
    %10448 = vst [vmem:[#allocation15 + $0x20] sm:$0xff] %v10386
    %10449 = vst [vmem:[#allocation15 + $0x28] sm:$0xff] %v10391
    %10450 = vst [vmem:[#allocation15 + $0x30] sm:$0xff] %v10396
    %10451 = vst [vmem:[#allocation15 + $0x38] sm:$0xff] %v10401
    %10452 = vst [vmem:[#allocation15 + $0x40] sm:$0xff] %v10406
    %10453 = vst [vmem:[#allocation15 + $0x48] sm:$0xff] %v10411
    %10454 = vst [vmem:[#allocation15 + $0x50] sm:$0xff] %v10416
    %10455 = vst [vmem:[#allocation15 + $0x58] sm:$0xff] %v10421
    %10456 = vst [vmem:[#allocation15 + $0x60] sm:$0xff] %v10426
    %10457 = vst [vmem:[#allocation15 + $0x68] sm:$0xff] %v10431
    %10458 = vst [vmem:[#allocation15 + $0x70] sm:$0xff] %v10436
    %10459 = vst [vmem:[#allocation15 + $0x78] sm:$0xff] %v10441
    // Predicated region
    $region78: #{transformer_block_forward.1} parent=1 // pred_check
      _
    $region79: #{transformer_block_forward.1} parent=1 // pred_check_branch
      %10461 = sbr.rel (0) target = $region81
    $region80: #{transformer_block_forward.1} parent=1 // pred_region
      %s10463 = ssub.s32 2048, 2048
      %10464 = vsyncadd [#allocation5], %s10463
      %s10465 = sshll.u32 [#allocation15], 4
      %s10466 = int_to_ptr.vmem [resolvable:$true] %s10465
      %10471 = dma.vmem_to_hbm [thread:$0]  %s10466, 2048, %s12, [#allocation5], 128, 128, 8
    $region81: #{transformer_block_forward.1} parent=1 // pred_fallthru
      _
    // Predicated region
    $region82: #{transformer_block_forward.1} parent=1 // pred_check
      _
    $region83: #{transformer_block_forward.1} parent=1 // pred_check_branch
      %10473 = sbr.rel (0) target = $region85
    $region84: #{transformer_block_forward.1} parent=1 // pred_region
      %10474 = dma.done [#allocation5], 2048
    $region85: #{transformer_block_forward.1} parent=1 // pred_fallthru
      _
    %10475 = vsyncpa [#allocation4], 1
    %10476 = vsyncpa [#allocation7], 1
    %10477 = vsyncpa [#allocation10], 1
    %10478 = vsyncpa [#allocation13], 1
    %10479 = vsyncpa [#allocation5], 1

</llo_original>
